<compile_context>
chip_gen: v7x
topology: tpu7x:2x2x1
jax: 0.10.0
libtpu: 0.0.40
codegen_flags: <defaults>
</compile_context>

<pallas_src>
import functools
import numpy as np
import jax
import jax.numpy as jnp
from jax import lax
from jax.experimental import pallas as pl
from jax.experimental.pallas import tpu as pltpu


# ----------------------------------------------------------------------------
# Fused Tunnel kernel: L sequential DResNeXtBottleneck blocks, B images/step
# ----------------------------------------------------------------------------
def _tunnel_kernel(x_ref, wr_ref, wc_ref, we_ref, out_ref, pad_ref, *, use_slab):
    # x_ref  : (B, H, W, C)   f32   B images per grid step
    # wr_ref : (L, C, D)      bf16  conv_reduce (1x1) weights, all blocks
    # wc_ref : (L, 9*D, D)    bf16  conv_conv (3x3 grouped), im2col/tap layout
    # we_ref : (L, D, C)      bf16  conv_expand (1x1) weights, all blocks
    # out_ref: (B, H, W, C)   f32
    # pad_ref: (H+2, W+2, D)  bf16  zero-padded staging, reused across blocks/images
    B, H, W, C = x_ref.shape
    L, _, D = wr_ref.shape

    # Zero only the top/bottom halo rows, once per grid step (left/right halo
    # columns are written together with the interior below).  Done every step
    # (not just step 0) because scratch is per-core and a "parallel" grid may
    # be split across TensorCores (megacore / v7x).
    zrow = jnp.zeros((1, W + 2, D), jnp.bfloat16)
    pad_ref[0:1, :, :] = zrow
    pad_ref[H + 1:H + 2, :, :] = zrow

    zcol = jnp.zeros((H, 1, D), jnp.bfloat16)

    def lrelu(v):                      # f32 leaky_relu (v5e VPU has no bf16)
        return jnp.where(v > 0, v, 0.2 * v)

    for b in range(B):                 # images per step (weights reused)
        cur = x_ref[b]                 # (H, W, C) f32

        for l in range(L):             # fused tunnel stack (L small -> unroll)
            # --- conv_reduce (1x1) + leaky_relu (bf16 MXU, f32 accumulate) --
            xm = cur.reshape(H * W, C).astype(jnp.bfloat16)
            t = lrelu(jnp.dot(xm, wr_ref[l],
                              preferred_element_type=jnp.float32))

            # --- stage padded activation in bf16 (rows 1..H, full width) ----
            t3 = jnp.concatenate(
                [zcol, t.reshape(H, W, D).astype(jnp.bfloat16), zcol], axis=1)
            pad_ref[1:H + 1, :, :] = t3                      # (H, W+2, D) bf16

            # --- grouped 3x3 conv -------------------------------------------
            if use_slab:
                # v5e/v6e: ONE K=9*D im2col matmul (MRF would force a VPU
                # accumulate chain for the multi-matmul form).
                taps = [pad_ref[dy:dy + H, dx:dx + W, :]
                        for dy in range(3) for dx in range(3)]
                slab = jnp.concatenate(taps, axis=-1).reshape(H * W, 9 * D)
                conv = jnp.dot(slab, wc_ref[l],
                               preferred_element_type=jnp.float32)
            else:
                # v7x: 9 K=D matmuls; MRB accumulates in place, so no slab
                # build (no 9-way lane concat, no extra VMEM round trip).
                wcl = wc_ref[l]                              # (9*D, D) bf16
                conv = None
                for idx in range(9):
                    dy, dx = idx // 3, idx % 3
                    tap = pad_ref[dy:dy + H, dx:dx + W, :].reshape(H * W, D)
                    part = jnp.dot(tap, wcl[idx * D:(idx + 1) * D, :],
                                   preferred_element_type=jnp.float32)
                    conv = part if conv is None else conv + part
            a = lrelu(conv)

            # --- conv_expand (1x1) + identity residual (f32) ----------------
            y = jnp.dot(a.astype(jnp.bfloat16), we_ref[l],
                        preferred_element_type=jnp.float32)  # (H*W, C)
            cur = cur + y.reshape(H, W, C)

        out_ref[b] = cur


def tunnel_pallas(x_nhwc, wr_all, wc_all, we_all):
    """Tunnel.forward, fused.  x_nhwc: (N,H,W,C) f32; weights stacked over blocks."""
    N, H, W, C = x_nhwc.shape
    L, _, D = wr_all.shape
    Cout = we_all.shape[-1]
    # Identity shortcut only (matches module defaults: stride=1, in == out).
    assert C == Cout, "shortcut conv path (in_channels != out_channels) not implemented"
    # TODO(synk): stride != 1 and the 1x1 shortcut conv are not implemented
    # (Tunnel's default construction never instantiates them).

    # ---- chip-dependent choices -------------------------------------------
    try:
        kind = jax.devices()[0].device_kind.lower()
    except Exception:
        kind = ""
    is_v7x = "7" in kind                       # e.g. "tpu7x"
    use_slab = not is_v7x                      # im2col on v5e/v6e, MRB path on v7x

    # Images per grid step: amortize per-step + MXU fill/drain overhead on
    # single-TC chips; on v7x keep 1/step unless both cores still get >=2 steps.
    if N % 2 == 0 and ((not is_v7x) or (N // 2 >= 2)):
        B = 2
    else:
        B = 1
    grid = (N // B,)

    flops = 2 * N * L * H * W * (C * D + 9 * D * D + D * Cout)
    bytes_accessed = (x_nhwc.size * 4 + N * H * W * Cout * 4
                      + (wr_all.size + wc_all.size + we_all.size) * 2)

    # Explicit VMEM budget (double-buffered x/out blocks + weights + scratch
    # + slab headroom), clamped to a safe range for all chips.
    blk_bytes = B * H * W * C * 4
    w_bytes = (wr_all.size + wc_all.size + we_all.size) * 2
    pad_bytes = (H + 2) * (W + 2) * D * 2
    slab_bytes = H * W * 9 * D * 2
    need = 2 * (2 * blk_bytes) + 2 * w_bytes + pad_bytes + 4 * slab_bytes
    vmem_limit = int(min(64 * 2**20, max(32 * 2**20, 2 * need)))

    kernel = functools.partial(_tunnel_kernel, use_slab=use_slab)

    return pl.pallas_call(
        kernel,
        out_shape=jax.ShapeDtypeStruct((N, H, W, Cout), jnp.float32),
        grid_spec=pltpu.PrefetchScalarGridSpec(
            num_scalar_prefetch=0,
            grid=grid,   # batch-parallel: v7x TCs each take steps; cheap loop on v5e/v6e
            in_specs=[
                pl.BlockSpec((B, H, W, C), lambda n: (n, 0, 0, 0)),
                pl.BlockSpec((L, C, D), lambda n: (0, 0, 0)),
                pl.BlockSpec((L, 9 * D, D), lambda n: (0, 0, 0)),
                pl.BlockSpec((L, D, Cout), lambda n: (0, 0, 0)),
            ],
            out_specs=pl.BlockSpec((B, H, W, Cout), lambda n: (n, 0, 0, 0)),
            scratch_shapes=[pltpu.VMEM((H + 2, W + 2, D), jnp.bfloat16)],
        ),
        compiler_params=pltpu.CompilerParams(
            dimension_semantics=("parallel",),
            vmem_limit_bytes=vmem_limit),
        cost_estimate=pl.CostEstimate(flops=flops, transcendentals=0,
                                      bytes_accessed=bytes_accessed),
    )(x_nhwc, wr_all, wc_all, we_all)


# ----------------------------------------------------------------------------
# Parameter construction (PyTorch layout -> kernel layout)
# ----------------------------------------------------------------------------
def make_bottleneck_params(key, in_channels, out_channels, cardinality):
    D = out_channels // 2
    Dg = D // cardinality
    k1, k2, k3 = jax.random.split(key, 3)
    # PyTorch conv weight layout: (O, I, kH, kW)
    wr_pt = jax.random.normal(k1, (D, in_channels, 1, 1), jnp.float32) * 0.1
    wc_pt = jax.random.normal(k2, (D, Dg, 3, 3), jnp.float32) * 0.1
    we_pt = jax.random.normal(k3, (out_channels, D, 1, 1), jnp.float32) * 0.1

    # kernel layouts (bf16 for the MXU)
    wr = jnp.transpose(wr_pt[:, :, 0, 0], (1, 0)).astype(jnp.bfloat16)   # (Cin, D)
    we = jnp.transpose(we_pt[:, :, 0, 0], (1, 0)).astype(jnp.bfloat16)   # (D, Cout)

    # grouped 3x3 weight -> dense block-diagonal, im2col/tap layout (9*D, D)
    wc_np = np.asarray(wc_pt)
    dense = np.zeros((3, 3, D, D), np.float32)   # (ky, kx, c_in, c_out)
    for g in range(cardinality):
        for ol in range(Dg):
            o = g * Dg + ol
            for il in range(Dg):
                i = g * Dg + il
                dense[:, :, i, o] = wc_np[o, il]
    wc_im2col = jnp.asarray(dense.reshape(9 * D, D)).astype(jnp.bfloat16)
    return (wr_pt, wc_pt, we_pt), (wr, wc_im2col, we)


# ----------------------------------------------------------------------------
# Pure-JAX reference (PyTorch semantics) for verification
# ----------------------------------------------------------------------------
def ref_bottleneck(x_nhwc, wr_pt, wc_pt, we_pt, cardinality):
    dn = ("NHWC", "HWIO", "NHWC")
    def lrelu(v):
        return jnp.where(v > 0, v, 0.2 * v)
    b = lax.conv_general_dilated(x_nhwc, jnp.transpose(wr_pt, (2, 3, 1, 0)),
                                 (1, 1), "VALID", dimension_numbers=dn)
    b = lrelu(b)
    b = lax.conv_general_dilated(b, jnp.transpose(wc_pt, (2, 3, 1, 0)),
                                 (1, 1), ((1, 1), (1, 1)), dimension_numbers=dn,
                                 feature_group_count=cardinality)
    b = lrelu(b)
    b = lax.conv_general_dilated(b, jnp.transpose(we_pt, (2, 3, 1, 0)),
                                 (1, 1), "VALID", dimension_numbers=dn)
    return x_nhwc + b   # identity shortcut (in_channels == out_channels)


# ----------------------------------------------------------------------------
if __name__ == "__main__":
    # Small config: Tunnel of 2 bottlenecks, in=out=64, stride=1, cardinality=8
    # (so D = 32, Dg = 4).  Data is NHWC (channels-last) for the kernel.
    N, H, W = 2, 16, 16
    C_IN = C_OUT = 64
    CARD = 8
    TUNNEL_LEN = 2

    key = jax.random.PRNGKey(0)
    key, xk = jax.random.split(key)
    x_nhwc = jax.random.normal(xk, (N, H, W, C_IN), jnp.float32)

    pt_params, wr_l, wc_l, we_l = [], [], [], []
    for _ in range(TUNNEL_LEN):
        key, bk = jax.random.split(key)
        pt, (wr, wc, we) = make_bottleneck_params(bk, C_IN, C_OUT, CARD)
        pt_params.append(pt)
        wr_l.append(wr); wc_l.append(wc); we_l.append(we)
    wr_all = jnp.stack(wr_l)   # (L, Cin, D)    bf16
    wc_all = jnp.stack(wc_l)   # (L, 9*D, D)    bf16
    we_all = jnp.stack(we_l)   # (L, D, Cout)   bf16

    out = tunnel_pallas(x_nhwc, wr_all, wc_all, we_all)
    out = jax.block_until_ready(out)

    # Reference: f32 math with the same (bf16-rounded) weights the kernel got.
    # NOTE: activations are rounded to bf16 before each matmul; error vs a pure
    # f32 Tunnel grows with L — tolerance below is validated at L=2.
    def rt(w):
        return w.astype(jnp.bfloat16).astype(jnp.float32)
    ref = x_nhwc
    for (wr_pt, wc_pt, we_pt) in pt_params:
        ref = ref_bottleneck(ref, rt(wr_pt), rt(wc_pt), rt(we_pt), CARD)
    ref = jax.block_until_ready(ref)

    assert out.shape == (N, H, W, C_OUT)
    np.testing.assert_allclose(np.asarray(out), np.asarray(ref),
                               rtol=2e-2, atol=2e-2)
    print("KERNEL_OK")
</pallas_src>

<mosaic_0001>
module attributes {stable_mosaic.version = 11 : i64} {
  func.func @_tunnel_kernel(%arg0: i32, %arg1: memref<2x16x16x64xf32, #tpu.memory_space<vmem>>, %arg2: memref<2x64x32xbf16, #tpu.memory_space<vmem>>, %arg3: memref<2x288x32xbf16, #tpu.memory_space<vmem>>, %arg4: memref<2x32x64xbf16, #tpu.memory_space<vmem>>, %arg5: memref<2x16x16x64xf32, #tpu.memory_space<vmem>>, %arg6: memref<18x18x32xbf16, #tpu.memory_space<vmem>>) attributes {dimension_semantics = [#tpu.dimension_semantics<parallel>], iteration_bounds = array<i64: 1>, scalar_prefetch = 0 : i64, scratch_operands = 1 : i64, tpu.core_type = #tpu.core_type<tc>, window_params = [{transform_indices = @transform_0, window_bounds = array<i64: 2, 16, 16, 64>}, {pipeline_mode = #tpu.pipeline_mode<synchronous>, transform_indices = @transform_1, window_bounds = array<i64: 2, 64, 32>}, {pipeline_mode = #tpu.pipeline_mode<synchronous>, transform_indices = @transform_2, window_bounds = array<i64: 2, 288, 32>}, {pipeline_mode = #tpu.pipeline_mode<synchronous>, transform_indices = @transform_3, window_bounds = array<i64: 2, 32, 64>}, {transform_indices = @transform_4, window_bounds = array<i64: 2, 16, 16, 64>}]} {
    %cst = arith.constant 0.000000e+00 : bf16
    %0 = vector.broadcast %cst : bf16 to vector<1x18x32xbf16>
    %c0 = arith.constant 0 : index
    %c0_0 = arith.constant 0 : index
    %c0_1 = arith.constant 0 : index
    %1 = vector.load %arg6[%c0, %c0_0, %c0_1] : memref<18x18x32xbf16, #tpu.memory_space<vmem>>, vector<1x18x32xbf16>
    tpu.vector_store %arg6[%c0, %c0_0, %c0_1], %0 {strides = array<i32>} : memref<18x18x32xbf16, #tpu.memory_space<vmem>>, vector<1x18x32xbf16>,
    %c17 = arith.constant 17 : index
    %c0_2 = arith.constant 0 : index
    %c0_3 = arith.constant 0 : index
    %2 = vector.load %arg6[%c17, %c0_2, %c0_3] : memref<18x18x32xbf16, #tpu.memory_space<vmem>>, vector<1x18x32xbf16>
    tpu.vector_store %arg6[%c17, %c0_2, %c0_3], %0 {strides = array<i32>} : memref<18x18x32xbf16, #tpu.memory_space<vmem>>, vector<1x18x32xbf16>,
    %cst_4 = arith.constant 0.000000e+00 : bf16
    %3 = vector.broadcast %cst_4 : bf16 to vector<16x1x32xbf16>
    %c0_5 = arith.constant 0 : index
    %c0_6 = arith.constant 0 : index
    %c0_7 = arith.constant 0 : index
    %c0_8 = arith.constant 0 : index
    %4 = vector.load %arg1[%c0_5, %c0_6, %c0_7, %c0_8] : memref<2x16x16x64xf32, #tpu.memory_space<vmem>>, vector<1x16x16x64xf32>
    %5 = vector.shape_cast %4 : vector<1x16x16x64xf32> to vector<16x16x64xf32>
    %6 = vector.shape_cast %5 : vector<16x16x64xf32> to vector<256x64xf32>
    %7 = arith.truncf %6 : vector<256x64xf32> to vector<256x64xbf16>
    %c0_9 = arith.constant 0 : index
    %c0_10 = arith.constant 0 : index
    %c0_11 = arith.constant 0 : index
    %8 = vector.load %arg2[%c0_9, %c0_10, %c0_11] : memref<2x64x32xbf16, #tpu.memory_space<vmem>>, vector<1x64x32xbf16>
    %9 = vector.shape_cast %8 : vector<1x64x32xbf16> to vector<64x32xbf16>
    %cst_12 = arith.constant dense<0.000000e+00> : vector<256x32xf32>
    %10 = tpu.matmul %7, %9, %cst_12 {dimension_numbers = #tpu.dot_dimension_numbers<[1], [0], [0], [1], [0, 0, 1, 1], [], []>} : vector<256x64xbf16>, vector<64x32xbf16>, vector<256x32xf32> -> vector<256x32xf32>
    %cst_13 = arith.constant 0.000000e+00 : f32
    %11 = vector.broadcast %cst_13 : f32 to vector<256x32xf32>
    %12 = arith.cmpf ogt, %10, %11 : vector<256x32xf32>
    %cst_14 = arith.constant 2.000000e-01 : f32
    %13 = vector.broadcast %cst_14 : f32 to vector<256x32xf32>
    %14 = arith.mulf %13, %10 : vector<256x32xf32>
    %15 = arith.select %12, %10, %14 : vector<256x32xi1>, vector<256x32xf32>
    %16 = vector.shape_cast %15 : vector<256x32xf32> to vector<16x16x32xf32>
    %17 = arith.truncf %16 : vector<16x16x32xf32> to vector<16x16x32xbf16>
    %18 = tpu.concatenate %3, %17, %3 in 1 : vector<16x1x32xbf16>, vector<16x16x32xbf16>, vector<16x1x32xbf16> -> vector<16x18x32xbf16>
    %c1 = arith.constant 1 : index
    %c0_15 = arith.constant 0 : index
    %c0_16 = arith.constant 0 : index
    %19 = vector.load %arg6[%c1, %c0_15, %c0_16] : memref<18x18x32xbf16, #tpu.memory_space<vmem>>, vector<16x18x32xbf16>
    tpu.vector_store %arg6[%c1, %c0_15, %c0_16], %18 {strides = array<i32>} : memref<18x18x32xbf16, #tpu.memory_space<vmem>>, vector<16x18x32xbf16>,
    %c0_17 = arith.constant 0 : index
    %c0_18 = arith.constant 0 : index
    %c0_19 = arith.constant 0 : index
    %20 = vector.load %arg6[%c0_17, %c0_18, %c0_19] : memref<18x18x32xbf16, #tpu.memory_space<vmem>>, vector<16x16x32xbf16>
    %c0_20 = arith.constant 0 : index
    %c1_21 = arith.constant 1 : index
    %c0_22 = arith.constant 0 : index
    %21 = vector.load %arg6[%c0_20, %c1_21, %c0_22] : memref<18x18x32xbf16, #tpu.memory_space<vmem>>, vector<16x16x32xbf16>
    %c0_23 = arith.constant 0 : index
    %c2 = arith.constant 2 : index
    %c0_24 = arith.constant 0 : index
    %22 = vector.load %arg6[%c0_23, %c2, %c0_24] : memref<18x18x32xbf16, #tpu.memory_space<vmem>>, vector<16x16x32xbf16>
    %c1_25 = arith.constant 1 : index
    %c0_26 = arith.constant 0 : index
    %c0_27 = arith.constant 0 : index
    %23 = vector.load %arg6[%c1_25, %c0_26, %c0_27] : memref<18x18x32xbf16, #tpu.memory_space<vmem>>, vector<16x16x32xbf16>
    %c1_28 = arith.constant 1 : index
    %c1_29 = arith.constant 1 : index
    %c0_30 = arith.constant 0 : index
    %24 = vector.load %arg6[%c1_28, %c1_29, %c0_30] : memref<18x18x32xbf16, #tpu.memory_space<vmem>>, vector<16x16x32xbf16>
    %c1_31 = arith.constant 1 : index
    %c2_32 = arith.constant 2 : index
    %c0_33 = arith.constant 0 : index
    %25 = vector.load %arg6[%c1_31, %c2_32, %c0_33] : memref<18x18x32xbf16, #tpu.memory_space<vmem>>, vector<16x16x32xbf16>
    %c2_34 = arith.constant 2 : index
    %c0_35 = arith.constant 0 : index
    %c0_36 = arith.constant 0 : index
    %26 = vector.load %arg6[%c2_34, %c0_35, %c0_36] : memref<18x18x32xbf16, #tpu.memory_space<vmem>>, vector<16x16x32xbf16>
    %c2_37 = arith.constant 2 : index
    %c1_38 = arith.constant 1 : index
    %c0_39 = arith.constant 0 : index
    %27 = vector.load %arg6[%c2_37, %c1_38, %c0_39] : memref<18x18x32xbf16, #tpu.memory_space<vmem>>, vector<16x16x32xbf16>
    %c2_40 = arith.constant 2 : index
    %c2_41 = arith.constant 2 : index
    %c0_42 = arith.constant 0 : index
    %28 = vector.load %arg6[%c2_40, %c2_41, %c0_42] : memref<18x18x32xbf16, #tpu.memory_space<vmem>>, vector<16x16x32xbf16>
    %29 = tpu.concatenate %20, %21, %22, %23, %24, %25, %26, %27, %28 in 2 : vector<16x16x32xbf16>, vector<16x16x32xbf16>, vector<16x16x32xbf16>, vector<16x16x32xbf16>, vector<16x16x32xbf16>, vector<16x16x32xbf16>, vector<16x16x32xbf16>, vector<16x16x32xbf16>, vector<16x16x32xbf16> -> vector<16x16x288xbf16>
    %30 = vector.shape_cast %29 : vector<16x16x288xbf16> to vector<256x288xbf16>
    %c0_43 = arith.constant 0 : index
    %c0_44 = arith.constant 0 : index
    %c0_45 = arith.constant 0 : index
    %31 = vector.load %arg3[%c0_43, %c0_44, %c0_45] : memref<2x288x32xbf16, #tpu.memory_space<vmem>>, vector<1x288x32xbf16>
    %32 = vector.shape_cast %31 : vector<1x288x32xbf16> to vector<288x32xbf16>
    %cst_46 = arith.constant dense<0.000000e+00> : vector<256x32xf32>
    %33 = tpu.matmul %30, %32, %cst_46 {dimension_numbers = #tpu.dot_dimension_numbers<[1], [0], [0], [1], [0, 0, 1, 1], [], []>} : vector<256x288xbf16>, vector<288x32xbf16>, vector<256x32xf32> -> vector<256x32xf32>
    %cst_47 = arith.constant 0.000000e+00 : f32
    %34 = vector.broadcast %cst_47 : f32 to vector<256x32xf32>
    %35 = arith.cmpf ogt, %33, %34 : vector<256x32xf32>
    %cst_48 = arith.constant 2.000000e-01 : f32
    %36 = vector.broadcast %cst_48 : f32 to vector<256x32xf32>
    %37 = arith.mulf %36, %33 : vector<256x32xf32>
    %38 = arith.select %35, %33, %37 : vector<256x32xi1>, vector<256x32xf32>
    %39 = arith.truncf %38 : vector<256x32xf32> to vector<256x32xbf16>
    %c0_49 = arith.constant 0 : index
    %c0_50 = arith.constant 0 : index
    %c0_51 = arith.constant 0 : index
    %40 = vector.load %arg4[%c0_49, %c0_50, %c0_51] : memref<2x32x64xbf16, #tpu.memory_space<vmem>>, vector<1x32x64xbf16>
    %41 = vector.shape_cast %40 : vector<1x32x64xbf16> to vector<32x64xbf16>
    %cst_52 = arith.constant dense<0.000000e+00> : vector<256x64xf32>
    %42 = tpu.matmul %39, %41, %cst_52 {dimension_numbers = #tpu.dot_dimension_numbers<[1], [0], [0], [1], [0, 0, 1, 1], [], []>} : vector<256x32xbf16>, vector<32x64xbf16>, vector<256x64xf32> -> vector<256x64xf32>
    %43 = vector.shape_cast %42 : vector<256x64xf32> to vector<16x16x64xf32>
    %44 = arith.addf %5, %43 : vector<16x16x64xf32>
    %45 = vector.shape_cast %44 : vector<16x16x64xf32> to vector<256x64xf32>
    %46 = arith.truncf %45 : vector<256x64xf32> to vector<256x64xbf16>
    %c1_53 = arith.constant 1 : index
    %c0_54 = arith.constant 0 : index
    %c0_55 = arith.constant 0 : index
    %47 = vector.load %arg2[%c1_53, %c0_54, %c0_55] : memref<2x64x32xbf16, #tpu.memory_space<vmem>>, vector<1x64x32xbf16>
    %48 = vector.shape_cast %47 : vector<1x64x32xbf16> to vector<64x32xbf16>
    %cst_56 = arith.constant dense<0.000000e+00> : vector<256x32xf32>
    %49 = tpu.matmul %46, %48, %cst_56 {dimension_numbers = #tpu.dot_dimension_numbers<[1], [0], [0], [1], [0, 0, 1, 1], [], []>} : vector<256x64xbf16>, vector<64x32xbf16>, vector<256x32xf32> -> vector<256x32xf32>
    %cst_57 = arith.constant 0.000000e+00 : f32
    %50 = vector.broadcast %cst_57 : f32 to vector<256x32xf32>
    %51 = arith.cmpf ogt, %49, %50 : vector<256x32xf32>
    %cst_58 = arith.constant 2.000000e-01 : f32
    %52 = vector.broadcast %cst_58 : f32 to vector<256x32xf32>
    %53 = arith.mulf %52, %49 : vector<256x32xf32>
    %54 = arith.select %51, %49, %53 : vector<256x32xi1>, vector<256x32xf32>
    %55 = vector.shape_cast %54 : vector<256x32xf32> to vector<16x16x32xf32>
    %56 = arith.truncf %55 : vector<16x16x32xf32> to vector<16x16x32xbf16>
    %57 = tpu.concatenate %3, %56, %3 in 1 : vector<16x1x32xbf16>, vector<16x16x32xbf16>, vector<16x1x32xbf16> -> vector<16x18x32xbf16>
    %c1_59 = arith.constant 1 : index
    %c0_60 = arith.constant 0 : index
    %c0_61 = arith.constant 0 : index
    %58 = vector.load %arg6[%c1_59, %c0_60, %c0_61] : memref<18x18x32xbf16, #tpu.memory_space<vmem>>, vector<16x18x32xbf16>
    tpu.vector_store %arg6[%c1_59, %c0_60, %c0_61], %57 {strides = array<i32>} : memref<18x18x32xbf16, #tpu.memory_space<vmem>>, vector<16x18x32xbf16>,
    %c0_62 = arith.constant 0 : index
    %c0_63 = arith.constant 0 : index
    %c0_64 = arith.constant 0 : index
    %59 = vector.load %arg6[%c0_62, %c0_63, %c0_64] : memref<18x18x32xbf16, #tpu.memory_space<vmem>>, vector<16x16x32xbf16>
    %c0_65 = arith.constant 0 : index
    %c1_66 = arith.constant 1 : index
    %c0_67 = arith.constant 0 : index
    %60 = vector.load %arg6[%c0_65, %c1_66, %c0_67] : memref<18x18x32xbf16, #tpu.memory_space<vmem>>, vector<16x16x32xbf16>
    %c0_68 = arith.constant 0 : index
    %c2_69 = arith.constant 2 : index
    %c0_70 = arith.constant 0 : index
    %61 = vector.load %arg6[%c0_68, %c2_69, %c0_70] : memref<18x18x32xbf16, #tpu.memory_space<vmem>>, vector<16x16x32xbf16>
    %c1_71 = arith.constant 1 : index
    %c0_72 = arith.constant 0 : index
    %c0_73 = arith.constant 0 : index
    %62 = vector.load %arg6[%c1_71, %c0_72, %c0_73] : memref<18x18x32xbf16, #tpu.memory_space<vmem>>, vector<16x16x32xbf16>
    %c1_74 = arith.constant 1 : index
    %c1_75 = arith.constant 1 : index
    %c0_76 = arith.constant 0 : index
    %63 = vector.load %arg6[%c1_74, %c1_75, %c0_76] : memref<18x18x32xbf16, #tpu.memory_space<vmem>>, vector<16x16x32xbf16>
    %c1_77 = arith.constant 1 : index
    %c2_78 = arith.constant 2 : index
    %c0_79 = arith.constant 0 : index
    %64 = vector.load %arg6[%c1_77, %c2_78, %c0_79] : memref<18x18x32xbf16, #tpu.memory_space<vmem>>, vector<16x16x32xbf16>
    %c2_80 = arith.constant 2 : index
    %c0_81 = arith.constant 0 : index
    %c0_82 = arith.constant 0 : index
    %65 = vector.load %arg6[%c2_80, %c0_81, %c0_82] : memref<18x18x32xbf16, #tpu.memory_space<vmem>>, vector<16x16x32xbf16>
    %c2_83 = arith.constant 2 : index
    %c1_84 = arith.constant 1 : index
    %c0_85 = arith.constant 0 : index
    %66 = vector.load %arg6[%c2_83, %c1_84, %c0_85] : memref<18x18x32xbf16, #tpu.memory_space<vmem>>, vector<16x16x32xbf16>
    %c2_86 = arith.constant 2 : index
    %c2_87 = arith.constant 2 : index
    %c0_88 = arith.constant 0 : index
    %67 = vector.load %arg6[%c2_86, %c2_87, %c0_88] : memref<18x18x32xbf16, #tpu.memory_space<vmem>>, vector<16x16x32xbf16>
    %68 = tpu.concatenate %59, %60, %61, %62, %63, %64, %65, %66, %67 in 2 : vector<16x16x32xbf16>, vector<16x16x32xbf16>, vector<16x16x32xbf16>, vector<16x16x32xbf16>, vector<16x16x32xbf16>, vector<16x16x32xbf16>, vector<16x16x32xbf16>, vector<16x16x32xbf16>, vector<16x16x32xbf16> -> vector<16x16x288xbf16>
    %69 = vector.shape_cast %68 : vector<16x16x288xbf16> to vector<256x288xbf16>
    %c1_89 = arith.constant 1 : index
    %c0_90 = arith.constant 0 : index
    %c0_91 = arith.constant 0 : index
    %70 = vector.load %arg3[%c1_89, %c0_90, %c0_91] : memref<2x288x32xbf16, #tpu.memory_space<vmem>>, vector<1x288x32xbf16>
    %71 = vector.shape_cast %70 : vector<1x288x32xbf16> to vector<288x32xbf16>
    %cst_92 = arith.constant dense<0.000000e+00> : vector<256x32xf32>
    %72 = tpu.matmul %69, %71, %cst_92 {dimension_numbers = #tpu.dot_dimension_numbers<[1], [0], [0], [1], [0, 0, 1, 1], [], []>} : vector<256x288xbf16>, vector<288x32xbf16>, vector<256x32xf32> -> vector<256x32xf32>
    %cst_93 = arith.constant 0.000000e+00 : f32
    %73 = vector.broadcast %cst_93 : f32 to vector<256x32xf32>
    %74 = arith.cmpf ogt, %72, %73 : vector<256x32xf32>
    %cst_94 = arith.constant 2.000000e-01 : f32
    %75 = vector.broadcast %cst_94 : f32 to vector<256x32xf32>
    %76 = arith.mulf %75, %72 : vector<256x32xf32>
    %77 = arith.select %74, %72, %76 : vector<256x32xi1>, vector<256x32xf32>
    %78 = arith.truncf %77 : vector<256x32xf32> to vector<256x32xbf16>
    %c1_95 = arith.constant 1 : index
    %c0_96 = arith.constant 0 : index
    %c0_97 = arith.constant 0 : index
    %79 = vector.load %arg4[%c1_95, %c0_96, %c0_97] : memref<2x32x64xbf16, #tpu.memory_space<vmem>>, vector<1x32x64xbf16>
    %80 = vector.shape_cast %79 : vector<1x32x64xbf16> to vector<32x64xbf16>
    %cst_98 = arith.constant dense<0.000000e+00> : vector<256x64xf32>
    %81 = tpu.matmul %78, %80, %cst_98 {dimension_numbers = #tpu.dot_dimension_numbers<[1], [0], [0], [1], [0, 0, 1, 1], [], []>} : vector<256x32xbf16>, vector<32x64xbf16>, vector<256x64xf32> -> vector<256x64xf32>
    %82 = vector.shape_cast %81 : vector<256x64xf32> to vector<16x16x64xf32>
    %83 = arith.addf %44, %82 : vector<16x16x64xf32>
    %c0_99 = arith.constant 0 : index
    %c0_100 = arith.constant 0 : index
    %c0_101 = arith.constant 0 : index
    %c0_102 = arith.constant 0 : index
    %84 = vector.load %arg5[%c0_99, %c0_100, %c0_101, %c0_102] : memref<2x16x16x64xf32, #tpu.memory_space<vmem>>, vector<1x16x16x64xf32>
    %85 = vector.shape_cast %84 : vector<1x16x16x64xf32> to vector<16x16x64xf32>
    %86 = vector.shape_cast %83 : vector<16x16x64xf32> to vector<1x16x16x64xf32>
    tpu.vector_store %arg5[%c0_99, %c0_100, %c0_101, %c0_102], %86 {strides = array<i32>} : memref<2x16x16x64xf32, #tpu.memory_space<vmem>>, vector<1x16x16x64xf32>,
    %c1_103 = arith.constant 1 : index
    %c0_104 = arith.constant 0 : index
    %c0_105 = arith.constant 0 : index
    %c0_106 = arith.constant 0 : index
    %87 = vector.load %arg1[%c1_103, %c0_104, %c0_105, %c0_106] : memref<2x16x16x64xf32, #tpu.memory_space<vmem>>, vector<1x16x16x64xf32>
    %88 = vector.shape_cast %87 : vector<1x16x16x64xf32> to vector<16x16x64xf32>
    %89 = vector.shape_cast %88 : vector<16x16x64xf32> to vector<256x64xf32>
    %90 = arith.truncf %89 : vector<256x64xf32> to vector<256x64xbf16>
    %c0_107 = arith.constant 0 : index
    %c0_108 = arith.constant 0 : index
    %c0_109 = arith.constant 0 : index
    %91 = vector.load %arg2[%c0_107, %c0_108, %c0_109] : memref<2x64x32xbf16, #tpu.memory_space<vmem>>, vector<1x64x32xbf16>
    %92 = vector.shape_cast %91 : vector<1x64x32xbf16> to vector<64x32xbf16>
    %cst_110 = arith.constant dense<0.000000e+00> : vector<256x32xf32>
    %93 = tpu.matmul %90, %92, %cst_110 {dimension_numbers = #tpu.dot_dimension_numbers<[1], [0], [0], [1], [0, 0, 1, 1], [], []>} : vector<256x64xbf16>, vector<64x32xbf16>, vector<256x32xf32> -> vector<256x32xf32>
    %cst_111 = arith.constant 0.000000e+00 : f32
    %94 = vector.broadcast %cst_111 : f32 to vector<256x32xf32>
    %95 = arith.cmpf ogt, %93, %94 : vector<256x32xf32>
    %cst_112 = arith.constant 2.000000e-01 : f32
    %96 = vector.broadcast %cst_112 : f32 to vector<256x32xf32>
    %97 = arith.mulf %96, %93 : vector<256x32xf32>
    %98 = arith.select %95, %93, %97 : vector<256x32xi1>, vector<256x32xf32>
    %99 = vector.shape_cast %98 : vector<256x32xf32> to vector<16x16x32xf32>
    %100 = arith.truncf %99 : vector<16x16x32xf32> to vector<16x16x32xbf16>
    %101 = tpu.concatenate %3, %100, %3 in 1 : vector<16x1x32xbf16>, vector<16x16x32xbf16>, vector<16x1x32xbf16> -> vector<16x18x32xbf16>
    %c1_113 = arith.constant 1 : index
    %c0_114 = arith.constant 0 : index
    %c0_115 = arith.constant 0 : index
    %102 = vector.load %arg6[%c1_113, %c0_114, %c0_115] : memref<18x18x32xbf16, #tpu.memory_space<vmem>>, vector<16x18x32xbf16>
    tpu.vector_store %arg6[%c1_113, %c0_114, %c0_115], %101 {strides = array<i32>} : memref<18x18x32xbf16, #tpu.memory_space<vmem>>, vector<16x18x32xbf16>,
    %c0_116 = arith.constant 0 : index
    %c0_117 = arith.constant 0 : index
    %c0_118 = arith.constant 0 : index
    %103 = vector.load %arg6[%c0_116, %c0_117, %c0_118] : memref<18x18x32xbf16, #tpu.memory_space<vmem>>, vector<16x16x32xbf16>
    %c0_119 = arith.constant 0 : index
    %c1_120 = arith.constant 1 : index
    %c0_121 = arith.constant 0 : index
    %104 = vector.load %arg6[%c0_119, %c1_120, %c0_121] : memref<18x18x32xbf16, #tpu.memory_space<vmem>>, vector<16x16x32xbf16>
    %c0_122 = arith.constant 0 : index
    %c2_123 = arith.constant 2 : index
    %c0_124 = arith.constant 0 : index
    %105 = vector.load %arg6[%c0_122, %c2_123, %c0_124] : memref<18x18x32xbf16, #tpu.memory_space<vmem>>, vector<16x16x32xbf16>
    %c1_125 = arith.constant 1 : index
    %c0_126 = arith.constant 0 : index
    %c0_127 = arith.constant 0 : index
    %106 = vector.load %arg6[%c1_125, %c0_126, %c0_127] : memref<18x18x32xbf16, #tpu.memory_space<vmem>>, vector<16x16x32xbf16>
    %c1_128 = arith.constant 1 : index
    %c1_129 = arith.constant 1 : index
    %c0_130 = arith.constant 0 : index
    %107 = vector.load %arg6[%c1_128, %c1_129, %c0_130] : memref<18x18x32xbf16, #tpu.memory_space<vmem>>, vector<16x16x32xbf16>
    %c1_131 = arith.constant 1 : index
    %c2_132 = arith.constant 2 : index
    %c0_133 = arith.constant 0 : index
    %108 = vector.load %arg6[%c1_131, %c2_132, %c0_133] : memref<18x18x32xbf16, #tpu.memory_space<vmem>>, vector<16x16x32xbf16>
    %c2_134 = arith.constant 2 : index
    %c0_135 = arith.constant 0 : index
    %c0_136 = arith.constant 0 : index
    %109 = vector.load %arg6[%c2_134, %c0_135, %c0_136] : memref<18x18x32xbf16, #tpu.memory_space<vmem>>, vector<16x16x32xbf16>
    %c2_137 = arith.constant 2 : index
    %c1_138 = arith.constant 1 : index
    %c0_139 = arith.constant 0 : index
    %110 = vector.load %arg6[%c2_137, %c1_138, %c0_139] : memref<18x18x32xbf16, #tpu.memory_space<vmem>>, vector<16x16x32xbf16>
    %c2_140 = arith.constant 2 : index
    %c2_141 = arith.constant 2 : index
    %c0_142 = arith.constant 0 : index
    %111 = vector.load %arg6[%c2_140, %c2_141, %c0_142] : memref<18x18x32xbf16, #tpu.memory_space<vmem>>, vector<16x16x32xbf16>
    %112 = tpu.concatenate %103, %104, %105, %106, %107, %108, %109, %110, %111 in 2 : vector<16x16x32xbf16>, vector<16x16x32xbf16>, vector<16x16x32xbf16>, vector<16x16x32xbf16>, vector<16x16x32xbf16>, vector<16x16x32xbf16>, vector<16x16x32xbf16>, vector<16x16x32xbf16>, vector<16x16x32xbf16> -> vector<16x16x288xbf16>
    %113 = vector.shape_cast %112 : vector<16x16x288xbf16> to vector<256x288xbf16>
    %c0_143 = arith.constant 0 : index
    %c0_144 = arith.constant 0 : index
    %c0_145 = arith.constant 0 : index
    %114 = vector.load %arg3[%c0_143, %c0_144, %c0_145] : memref<2x288x32xbf16, #tpu.memory_space<vmem>>, vector<1x288x32xbf16>
    %115 = vector.shape_cast %114 : vector<1x288x32xbf16> to vector<288x32xbf16>
    %cst_146 = arith.constant dense<0.000000e+00> : vector<256x32xf32>
    %116 = tpu.matmul %113, %115, %cst_146 {dimension_numbers = #tpu.dot_dimension_numbers<[1], [0], [0], [1], [0, 0, 1, 1], [], []>} : vector<256x288xbf16>, vector<288x32xbf16>, vector<256x32xf32> -> vector<256x32xf32>
    %cst_147 = arith.constant 0.000000e+00 : f32
    %117 = vector.broadcast %cst_147 : f32 to vector<256x32xf32>
    %118 = arith.cmpf ogt, %116, %117 : vector<256x32xf32>
    %cst_148 = arith.constant 2.000000e-01 : f32
    %119 = vector.broadcast %cst_148 : f32 to vector<256x32xf32>
    %120 = arith.mulf %119, %116 : vector<256x32xf32>
    %121 = arith.select %118, %116, %120 : vector<256x32xi1>, vector<256x32xf32>
    %122 = arith.truncf %121 : vector<256x32xf32> to vector<256x32xbf16>
    %c0_149 = arith.constant 0 : index
    %c0_150 = arith.constant 0 : index
    %c0_151 = arith.constant 0 : index
    %123 = vector.load %arg4[%c0_149, %c0_150, %c0_151] : memref<2x32x64xbf16, #tpu.memory_space<vmem>>, vector<1x32x64xbf16>
    %124 = vector.shape_cast %123 : vector<1x32x64xbf16> to vector<32x64xbf16>
    %cst_152 = arith.constant dense<0.000000e+00> : vector<256x64xf32>
    %125 = tpu.matmul %122, %124, %cst_152 {dimension_numbers = #tpu.dot_dimension_numbers<[1], [0], [0], [1], [0, 0, 1, 1], [], []>} : vector<256x32xbf16>, vector<32x64xbf16>, vector<256x64xf32> -> vector<256x64xf32>
    %126 = vector.shape_cast %125 : vector<256x64xf32> to vector<16x16x64xf32>
    %127 = arith.addf %88, %126 : vector<16x16x64xf32>
    %128 = vector.shape_cast %127 : vector<16x16x64xf32> to vector<256x64xf32>
    %129 = arith.truncf %128 : vector<256x64xf32> to vector<256x64xbf16>
    %c1_153 = arith.constant 1 : index
    %c0_154 = arith.constant 0 : index
    %c0_155 = arith.constant 0 : index
    %130 = vector.load %arg2[%c1_153, %c0_154, %c0_155] : memref<2x64x32xbf16, #tpu.memory_space<vmem>>, vector<1x64x32xbf16>
    %131 = vector.shape_cast %130 : vector<1x64x32xbf16> to vector<64x32xbf16>
    %cst_156 = arith.constant dense<0.000000e+00> : vector<256x32xf32>
    %132 = tpu.matmul %129, %131, %cst_156 {dimension_numbers = #tpu.dot_dimension_numbers<[1], [0], [0], [1], [0, 0, 1, 1], [], []>} : vector<256x64xbf16>, vector<64x32xbf16>, vector<256x32xf32> -> vector<256x32xf32>
    %cst_157 = arith.constant 0.000000e+00 : f32
    %133 = vector.broadcast %cst_157 : f32 to vector<256x32xf32>
    %134 = arith.cmpf ogt, %132, %133 : vector<256x32xf32>
    %cst_158 = arith.constant 2.000000e-01 : f32
    %135 = vector.broadcast %cst_158 : f32 to vector<256x32xf32>
    %136 = arith.mulf %135, %132 : vector<256x32xf32>
    %137 = arith.select %134, %132, %136 : vector<256x32xi1>, vector<256x32xf32>
    %138 = vector.shape_cast %137 : vector<256x32xf32> to vector<16x16x32xf32>
    %139 = arith.truncf %138 : vector<16x16x32xf32> to vector<16x16x32xbf16>
    %140 = tpu.concatenate %3, %139, %3 in 1 : vector<16x1x32xbf16>, vector<16x16x32xbf16>, vector<16x1x32xbf16> -> vector<16x18x32xbf16>
    %c1_159 = arith.constant 1 : index
    %c0_160 = arith.constant 0 : index
    %c0_161 = arith.constant 0 : index
    %141 = vector.load %arg6[%c1_159, %c0_160, %c0_161] : memref<18x18x32xbf16, #tpu.memory_space<vmem>>, vector<16x18x32xbf16>
    tpu.vector_store %arg6[%c1_159, %c0_160, %c0_161], %140 {strides = array<i32>} : memref<18x18x32xbf16, #tpu.memory_space<vmem>>, vector<16x18x32xbf16>,
    %c0_162 = arith.constant 0 : index
    %c0_163 = arith.constant 0 : index
    %c0_164 = arith.constant 0 : index
    %142 = vector.load %arg6[%c0_162, %c0_163, %c0_164] : memref<18x18x32xbf16, #tpu.memory_space<vmem>>, vector<16x16x32xbf16>
    %c0_165 = arith.constant 0 : index
    %c1_166 = arith.constant 1 : index
    %c0_167 = arith.constant 0 : index
    %143 = vector.load %arg6[%c0_165, %c1_166, %c0_167] : memref<18x18x32xbf16, #tpu.memory_space<vmem>>, vector<16x16x32xbf16>
    %c0_168 = arith.constant 0 : index
    %c2_169 = arith.constant 2 : index
    %c0_170 = arith.constant 0 : index
    %144 = vector.load %arg6[%c0_168, %c2_169, %c0_170] : memref<18x18x32xbf16, #tpu.memory_space<vmem>>, vector<16x16x32xbf16>
    %c1_171 = arith.constant 1 : index
    %c0_172 = arith.constant 0 : index
    %c0_173 = arith.constant 0 : index
    %145 = vector.load %arg6[%c1_171, %c0_172, %c0_173] : memref<18x18x32xbf16, #tpu.memory_space<vmem>>, vector<16x16x32xbf16>
    %c1_174 = arith.constant 1 : index
    %c1_175 = arith.constant 1 : index
    %c0_176 = arith.constant 0 : index
    %146 = vector.load %arg6[%c1_174, %c1_175, %c0_176] : memref<18x18x32xbf16, #tpu.memory_space<vmem>>, vector<16x16x32xbf16>
    %c1_177 = arith.constant 1 : index
    %c2_178 = arith.constant 2 : index
    %c0_179 = arith.constant 0 : index
    %147 = vector.load %arg6[%c1_177, %c2_178, %c0_179] : memref<18x18x32xbf16, #tpu.memory_space<vmem>>, vector<16x16x32xbf16>
    %c2_180 = arith.constant 2 : index
    %c0_181 = arith.constant 0 : index
    %c0_182 = arith.constant 0 : index
    %148 = vector.load %arg6[%c2_180, %c0_181, %c0_182] : memref<18x18x32xbf16, #tpu.memory_space<vmem>>, vector<16x16x32xbf16>
    %c2_183 = arith.constant 2 : index
    %c1_184 = arith.constant 1 : index
    %c0_185 = arith.constant 0 : index
    %149 = vector.load %arg6[%c2_183, %c1_184, %c0_185] : memref<18x18x32xbf16, #tpu.memory_space<vmem>>, vector<16x16x32xbf16>
    %c2_186 = arith.constant 2 : index
    %c2_187 = arith.constant 2 : index
    %c0_188 = arith.constant 0 : index
    %150 = vector.load %arg6[%c2_186, %c2_187, %c0_188] : memref<18x18x32xbf16, #tpu.memory_space<vmem>>, vector<16x16x32xbf16>
    %151 = tpu.concatenate %142, %143, %144, %145, %146, %147, %148, %149, %150 in 2 : vector<16x16x32xbf16>, vector<16x16x32xbf16>, vector<16x16x32xbf16>, vector<16x16x32xbf16>, vector<16x16x32xbf16>, vector<16x16x32xbf16>, vector<16x16x32xbf16>, vector<16x16x32xbf16>, vector<16x16x32xbf16> -> vector<16x16x288xbf16>
    %152 = vector.shape_cast %151 : vector<16x16x288xbf16> to vector<256x288xbf16>
    %c1_189 = arith.constant 1 : index
    %c0_190 = arith.constant 0 : index
    %c0_191 = arith.constant 0 : index
    %153 = vector.load %arg3[%c1_189, %c0_190, %c0_191] : memref<2x288x32xbf16, #tpu.memory_space<vmem>>, vector<1x288x32xbf16>
    %154 = vector.shape_cast %153 : vector<1x288x32xbf16> to vector<288x32xbf16>
    %cst_192 = arith.constant dense<0.000000e+00> : vector<256x32xf32>
    %155 = tpu.matmul %152, %154, %cst_192 {dimension_numbers = #tpu.dot_dimension_numbers<[1], [0], [0], [1], [0, 0, 1, 1], [], []>} : vector<256x288xbf16>, vector<288x32xbf16>, vector<256x32xf32> -> vector<256x32xf32>
    %cst_193 = arith.constant 0.000000e+00 : f32
    %156 = vector.broadcast %cst_193 : f32 to vector<256x32xf32>
    %157 = arith.cmpf ogt, %155, %156 : vector<256x32xf32>
    %cst_194 = arith.constant 2.000000e-01 : f32
    %158 = vector.broadcast %cst_194 : f32 to vector<256x32xf32>
    %159 = arith.mulf %158, %155 : vector<256x32xf32>
    %160 = arith.select %157, %155, %159 : vector<256x32xi1>, vector<256x32xf32>
    %161 = arith.truncf %160 : vector<256x32xf32> to vector<256x32xbf16>
    %c1_195 = arith.constant 1 : index
    %c0_196 = arith.constant 0 : index
    %c0_197 = arith.constant 0 : index
    %162 = vector.load %arg4[%c1_195, %c0_196, %c0_197] : memref<2x32x64xbf16, #tpu.memory_space<vmem>>, vector<1x32x64xbf16>
    %163 = vector.shape_cast %162 : vector<1x32x64xbf16> to vector<32x64xbf16>
    %cst_198 = arith.constant dense<0.000000e+00> : vector<256x64xf32>
    %164 = tpu.matmul %161, %163, %cst_198 {dimension_numbers = #tpu.dot_dimension_numbers<[1], [0], [0], [1], [0, 0, 1, 1], [], []>} : vector<256x32xbf16>, vector<32x64xbf16>, vector<256x64xf32> -> vector<256x64xf32>
    %165 = vector.shape_cast %164 : vector<256x64xf32> to vector<16x16x64xf32>
    %166 = arith.addf %127, %165 : vector<16x16x64xf32>
    %c1_199 = arith.constant 1 : index
    %c0_200 = arith.constant 0 : index
    %c0_201 = arith.constant 0 : index
    %c0_202 = arith.constant 0 : index
    %167 = vector.load %arg5[%c1_199, %c0_200, %c0_201, %c0_202] : memref<2x16x16x64xf32, #tpu.memory_space<vmem>>, vector<1x16x16x64xf32>
    %168 = vector.shape_cast %167 : vector<1x16x16x64xf32> to vector<16x16x64xf32>
    %169 = vector.shape_cast %166 : vector<16x16x64xf32> to vector<1x16x16x64xf32>
    tpu.vector_store %arg5[%c1_199, %c0_200, %c0_201, %c0_202], %169 {strides = array<i32>} : memref<2x16x16x64xf32, #tpu.memory_space<vmem>>, vector<1x16x16x64xf32>,
    return
  }
  func.func @transform_0(%arg0: i32) -> (i32, i32, i32, i32) {
    %c0_i32 = arith.constant 0 : i32
    %c0_i32_0 = arith.constant 0 : i32
    %c0_i32_1 = arith.constant 0 : i32
    %c0_i32_2 = arith.constant 0 : i32
    return %arg0, %c0_i32, %c0_i32_0, %c0_i32_1 : i32, i32, i32, i32
  }
  func.func @transform_1(%arg0: i32) -> (i32, i32, i32) {
    %c0_i32 = arith.constant 0 : i32
    %c0_i32_0 = arith.constant 0 : i32
    %c0_i32_1 = arith.constant 0 : i32
    %c0_i32_2 = arith.constant 0 : i32
    return %c0_i32, %c0_i32_0, %c0_i32_1 : i32, i32, i32
  }
  func.func @transform_2(%arg0: i32) -> (i32, i32, i32) {
    %c0_i32 = arith.constant 0 : i32
    %c0_i32_0 = arith.constant 0 : i32
    %c0_i32_1 = arith.constant 0 : i32
    %c0_i32_2 = arith.constant 0 : i32
    return %c0_i32, %c0_i32_0, %c0_i32_1 : i32, i32, i32
  }
  func.func @transform_3(%arg0: i32) -> (i32, i32, i32) {
    %c0_i32 = arith.constant 0 : i32
    %c0_i32_0 = arith.constant 0 : i32
    %c0_i32_1 = arith.constant 0 : i32
    %c0_i32_2 = arith.constant 0 : i32
    return %c0_i32, %c0_i32_0, %c0_i32_1 : i32, i32, i32
  }
  func.func @transform_4(%arg0: i32) -> (i32, i32, i32, i32) {
    %c0_i32 = arith.constant 0 : i32
    %c0_i32_0 = arith.constant 0 : i32
    %c0_i32_1 = arith.constant 0 : i32
    %c0_i32_2 = arith.constant 0 : i32
    return %arg0, %c0_i32, %c0_i32_0, %c0_i32_1 : i32, i32, i32, i32
  }
}

</mosaic_0001>

<llo_original>
// kernel: tpu_custom_call.1
$region0: #{tpu_custom_call.1}
  #allocation0 [shape = 'u32[]', space=smem, size = 0x4, offset = 0x4, fixed_abs, tag = 'smem constant byte address 0x4 - core index']
  #allocation1 [shape = 'u32[144,128]{1,0:T(1,128)}', space=vmem, size = 0x12000, scoped, tag = 'internal scratch']
  #allocation2 [shape = 'bf16[18,18,32]{2,1,0:T(8,128)(2,1)}', space=vmem, size = 0x1b000, scoped, tag = 'scratch operand']
  %s0 = inlined_call_operand.hbm [shape: f32[2,16,16,64], index: 0, kind: input, shape index: {}]
  %s1 = inlined_call_operand.vmem [shape: bf16[2,64,32], index: 1, kind: input, shape index: {}]
  %s2 = inlined_call_operand.vmem [shape: bf16[2,288,32], index: 2, kind: input, shape index: {}]
  %s3 = inlined_call_operand.vmem [shape: bf16[2,32,64], index: 3, kind: input, shape index: {}]
  %s4 = inlined_call_operand.hbm [shape: f32[2,16,16,64], index: 4, kind: output, shape index: {}]
  %s5 = sld [smem:[#allocation0]]
  $region30: #{tpu_custom_call.1} parent=0
    _
  %s7 = ssub.s32 1, %s5
  %s8 = scalar_select 0, %s7, %s5
  $region1: #{tpu_custom_call.1} parent=0
    #allocation3 [shape = 'u8[262144]{0}', space=vmem, size = 0x40000, scoped, tag = 'input window, operand 0, single buffered']
    #allocation4 [shape = 's32[1]{0}', space=sflag, size = 0x4, scoped, tag = 'scoped memory for tpu_custom_call.1']
    #allocation5 [shape = 's32[1]{0}', space=sflag, size = 0x4, scoped, tag = 'scoped memory for tpu_custom_call.1']
    #allocation6 [shape = 'u8[262144]{0}', space=vmem, size = 0x40000, scoped, tag = 'output window, operand 0, single buffered']
    %9 = vsyncpa [#allocation4], 0
    %10 = vsyncpa [#allocation5], 0
    // Predicated region
    $region2: #{tpu_custom_call.1} parent=1 // pred_check
      _
    $region3: #{tpu_custom_call.1} parent=1 // pred_check_branch
      %12 = sbr.rel (0) target = $region5
    $region4: #{tpu_custom_call.1} parent=1 // pred_region
      %s14 = ssub.s32 8192, 8192
      %15 = vsyncadd [#allocation4], %s14
      %s16 = sshll.u32 [#allocation3], 4
      %s17 = int_to_ptr.vmem [resolvable:$true] %s16
      %22 = dma.hbm_to_vmem [thread:$0]  %s0, 8192, %s17, [#allocation4], 128, 128, 8
    $region5: #{tpu_custom_call.1} parent=1 // pred_fallthru
      _
    // Predicated region
    $region6: #{tpu_custom_call.1} parent=1 // pred_check
      _
    $region7: #{tpu_custom_call.1} parent=1 // pred_check_branch
      %24 = sbr.rel (0) target = $region9
    $region8: #{tpu_custom_call.1} parent=1 // pred_region
      _
    $region9: #{tpu_custom_call.1} parent=1 // pred_fallthru
      _
    // Predicated region
    $region10: #{tpu_custom_call.1} parent=1 // pred_check
      _
    $region11: #{tpu_custom_call.1} parent=1 // pred_check_branch
      %26 = sbr.rel (0) target = $region13
    $region12: #{tpu_custom_call.1} parent=1 // pred_region
      _
    $region13: #{tpu_custom_call.1} parent=1 // pred_fallthru
      _
    // Predicated region
    $region14: #{tpu_custom_call.1} parent=1 // pred_check
      _
    $region15: #{tpu_custom_call.1} parent=1 // pred_check_branch
      %28 = sbr.rel (0) target = $region17
    $region16: #{tpu_custom_call.1} parent=1 // pred_region
      _
    $region17: #{tpu_custom_call.1} parent=1 // pred_fallthru
      _
    // Predicated region
    $region18: #{tpu_custom_call.1} parent=1 // pred_check
      _
    $region19: #{tpu_custom_call.1} parent=1 // pred_check_branch
      %30 = sbr.rel (0) target = $region21
    $region20: #{tpu_custom_call.1} parent=1 // pred_region
      %31 = dma.done [#allocation4], 8192
    $region21: #{tpu_custom_call.1} parent=1 // pred_fallthru
      _
    %vm33 = vcmask 257024
    %34 = vst.msk [vmem:[#allocation2] sm:$0xf] %vm33, 0
    %35 = vst.msk [vmem:[#allocation2 + $0x4] sm:$0xf] %vm33, 0
    %vm36 = vcmask 253952
    %37 = vst.msk [vmem:[#allocation2 + $0x8] sm:$0x1] %vm36, 0
    %s38 = scalar_lea.vmem [#allocation2], 204
    %39 = vst.msk [vmem:[%s38] sm:$0xf] %vm33, 0
    %40 = vst.msk [vmem:[%s38 + $0x4] sm:$0xf] %vm33, 0
    %41 = vst.msk [vmem:[%s38 + $0x8] sm:$0x1] %vm36, 0
    %v42 = vld [vmem:[#allocation3] sm:$0xff]
    %v43 = vld [vmem:[#allocation3 + $0x8] sm:$0xff]
    %v44 = vld [vmem:[#allocation3 + $0x10] sm:$0xff]
    %v45 = vld [vmem:[#allocation3 + $0x18] sm:$0xff]
    %v46 = vld [vmem:[#allocation3 + $0x20] sm:$0xff]
    %v47 = vld [vmem:[#allocation3 + $0x28] sm:$0xff]
    %v48 = vld [vmem:[#allocation3 + $0x30] sm:$0xff]
    %v49 = vld [vmem:[#allocation3 + $0x38] sm:$0xff]
    %v50 = vld [vmem:[#allocation3 + $0x40] sm:$0xff]
    %v51 = vld [vmem:[#allocation3 + $0x48] sm:$0xff]
    %v52 = vld [vmem:[#allocation3 + $0x50] sm:$0xff]
    %v53 = vld [vmem:[#allocation3 + $0x58] sm:$0xff]
    %v54 = vld [vmem:[#allocation3 + $0x60] sm:$0xff]
    %v55 = vld [vmem:[#allocation3 + $0x68] sm:$0xff]
    %v56 = vld [vmem:[#allocation3 + $0x70] sm:$0xff]
    %v57 = vld [vmem:[#allocation3 + $0x78] sm:$0xff]
    %v58 = vld [vmem:[#allocation3 + $0x80] sm:$0xff]
    %v59 = vld [vmem:[#allocation3 + $0x88] sm:$0xff]
    %v60 = vld [vmem:[#allocation3 + $0x90] sm:$0xff]
    %v61 = vld [vmem:[#allocation3 + $0x98] sm:$0xff]
    %v62 = vld [vmem:[#allocation3 + $0xa0] sm:$0xff]
    %v63 = vld [vmem:[#allocation3 + $0xa8] sm:$0xff]
    %v64 = vld [vmem:[#allocation3 + $0xb0] sm:$0xff]
    %v65 = vld [vmem:[#allocation3 + $0xb8] sm:$0xff]
    %v66 = vld [vmem:[#allocation3 + $0xc0] sm:$0xff]
    %v67 = vld [vmem:[#allocation3 + $0xc8] sm:$0xff]
    %v68 = vld [vmem:[#allocation3 + $0xd0] sm:$0xff]
    %v69 = vld [vmem:[#allocation3 + $0xd8] sm:$0xff]
    %v70 = vld [vmem:[#allocation3 + $0xe0] sm:$0xff]
    %v71 = vld [vmem:[#allocation3 + $0xe8] sm:$0xff]
    %v72 = vld [vmem:[#allocation3 + $0xf0] sm:$0xff]
    %v73 = vld [vmem:[#allocation3 + $0xf8] sm:$0xff]
    %v74 = vpack.c.bf16 %v43, %v42
    %v75 = vpack.c.bf16 %v45, %v44
    %v76 = vpack.c.bf16 %v47, %v46
    %v77 = vpack.c.bf16 %v49, %v48
    %v78 = vpack.c.bf16 %v51, %v50
    %v79 = vpack.c.bf16 %v53, %v52
    %v80 = vpack.c.bf16 %v55, %v54
    %v81 = vpack.c.bf16 %v57, %v56
    %v82 = vpack.c.bf16 %v59, %v58
    %v83 = vpack.c.bf16 %v61, %v60
    %v84 = vpack.c.bf16 %v63, %v62
    %v85 = vpack.c.bf16 %v65, %v64
    %v86 = vpack.c.bf16 %v67, %v66
    %v87 = vpack.c.bf16 %v69, %v68
    %v88 = vpack.c.bf16 %v71, %v70
    %v89 = vpack.c.bf16 %v73, %v72
    %v90 = vld [vmem:[%s1] sm:$0xf]
    %v91 = vld [vmem:[%s1 + $0x4] sm:$0xf]
    %v92 = vld [vmem:[%s1 + $0x8] sm:$0xf]
    %v93 = vld [vmem:[%s1 + $0xc] sm:$0xf]
    %v94 = vld [vmem:[%s1 + $0x10] sm:$0xf]
    %v95 = vld [vmem:[%s1 + $0x14] sm:$0xf]
    %v96 = vld [vmem:[%s1 + $0x18] sm:$0xf]
    %v97 = vld [vmem:[%s1 + $0x1c] sm:$0xf]
    %v106 = vunpack.c.l.b16 %v90
    %v107 = vunpack.c.l.b16 %v91
    %v108 = vunpack.c.l.b16 %v92
    %v109 = vunpack.c.l.b16 %v93
    %v110 = vunpack.c.l.b16 %v94
    %v111 = vunpack.c.l.b16 %v95
    %v112 = vunpack.c.l.b16 %v96
    %v113 = vunpack.c.l.b16 %v97
    %v114 = vpack.c.b16 %v107, %v106
    %v115 = vpack.c.b16 %v109, %v108
    %v116 = vpack.c.b16 %v111, %v110
    %v117 = vpack.c.b16 %v113, %v112
    %vm122 = vcmask 523264
    %v124 = vsel %vm122, %v74, 0
    %v127 = vsel %vm122, %v75, 0
    %v130 = vsel %vm122, %v76, 0
    %v133 = vsel %vm122, %v77, 0
    %v136 = vsel %vm122, %v78, 0
    %v139 = vsel %vm122, %v79, 0
    %v142 = vsel %vm122, %v80, 0
    %v145 = vsel %vm122, %v81, 0
    %v148 = vsel %vm122, %v82, 0
    %v151 = vsel %vm122, %v83, 0
    %v154 = vsel %vm122, %v84, 0
    %v157 = vsel %vm122, %v85, 0
    %v160 = vsel %vm122, %v86, 0
    %v163 = vsel %vm122, %v87, 0
    %v166 = vsel %vm122, %v88, 0
    %v169 = vsel %vm122, %v89, 0
    %171 = vmatprep.subr.bf16.mxu0 0
    %172 = vmatpush1.bf16.msra.mxu0 %v114
    %173 = vmatprep.subr.bf16.mxu0 0
    %174 = vmatpush1.bf16.msra.mxu0 %v115
    %175 = vmatprep.subr.bf16.mxu0 0
    %176 = vmatpush1.bf16.msra.mxu0 %v116
    %177 = vmatprep.subr.bf16.mxu0 0
    %178 = vmatpush1.bf16.msra.mxu0 %v117
    %179 = vmatprep.subr.bf16.mxu0 0
    %180 = vmatpush1.bf16.msra.mxu0 0
    %181 = vmatprep.subr.bf16.mxu0 0
    %182 = vmatpush1.bf16.msra.mxu0 0
    %183 = vmatprep.subr.bf16.mxu0 0
    %184 = vmatpush1.bf16.msra.mxu0 0
    %185 = vmatprep.subr.bf16.mxu0 0
    %186 = vmatpush1.bf16.msra.mxu0 0
    %187 = vmatprep.subr.bf16.mxu0 0
    %188 = vmatpush1.bf16.msra.mxu0 0
    %189 = vmatprep.subr.bf16.mxu0 0
    %190 = vmatpush1.bf16.msra.mxu0 0
    %191 = vmatprep.subr.bf16.mxu0 0
    %192 = vmatpush1.bf16.msra.mxu0 0
    %193 = vmatprep.subr.bf16.mxu0 0
    %194 = vmatpush1.bf16.msra.mxu0 0
    %195 = vmatprep.subr.bf16.mxu0 0
    %196 = vmatpush1.bf16.msra.mxu0 0
    %197 = vmatprep.subr.bf16.mxu0 0
    %198 = vmatpush1.bf16.msra.mxu0 0
    %199 = vmatprep.subr.bf16.mxu0 0
    %200 = vmatpush1.bf16.msra.mxu0 0
    %201 = vmatprep.subr.bf16.mxu0 0
    %202 = vmatpush1.bf16.msra.mxu0 0
    %203 = vmatprep.mubr.bf16.mxu0 0
    %204 = vmatmul.mubr.bf16.gmra.mrb[0].mxu0 %v124
    %v205 = vpop.f32.mrb[0].mxu0
    %v206 = vadd.f32 0.0, %v205
    %v207 = vpop.f32.mrb[0].mxu0
    %v208 = vpop.f32.mrb[0].mxu0
    %v209 = vadd.f32 0.0, %v208
    %v210 = vpop.f32.mrb[0].mxu0
    %211 = vmatprep.mubr.bf16.mxu0 0
    %212 = vmatmul.mubr.bf16.gmra.mrb[0].mxu0 %v127
    %v213 = vpop.f32.mrb[0].mxu0
    %v214 = vadd.f32 0.0, %v213
    %v215 = vpop.f32.mrb[0].mxu0
    %v216 = vpop.f32.mrb[0].mxu0
    %v217 = vadd.f32 0.0, %v216
    %v218 = vpop.f32.mrb[0].mxu0
    %219 = vmatprep.mubr.bf16.mxu0 0
    %220 = vmatmul.mubr.bf16.gmra.mrb[0].mxu0 %v130
    %v221 = vpop.f32.mrb[0].mxu0
    %v222 = vadd.f32 0.0, %v221
    %v223 = vpop.f32.mrb[0].mxu0
    %v224 = vpop.f32.mrb[0].mxu0
    %v225 = vadd.f32 0.0, %v224
    %v226 = vpop.f32.mrb[0].mxu0
    %227 = vmatprep.mubr.bf16.mxu0 0
    %228 = vmatmul.mubr.bf16.gmra.mrb[0].mxu0 %v133
    %v229 = vpop.f32.mrb[0].mxu0
    %v230 = vadd.f32 0.0, %v229
    %v231 = vpop.f32.mrb[0].mxu0
    %v232 = vpop.f32.mrb[0].mxu0
    %v233 = vadd.f32 0.0, %v232
    %v234 = vpop.f32.mrb[0].mxu0
    %235 = vmatprep.mubr.bf16.mxu0 0
    %236 = vmatmul.mubr.bf16.gmra.mrb[0].mxu0 %v136
    %v237 = vpop.f32.mrb[0].mxu0
    %v238 = vadd.f32 0.0, %v237
    %v239 = vpop.f32.mrb[0].mxu0
    %v240 = vpop.f32.mrb[0].mxu0
    %v241 = vadd.f32 0.0, %v240
    %v242 = vpop.f32.mrb[0].mxu0
    %243 = vmatprep.mubr.bf16.mxu0 0
    %244 = vmatmul.mubr.bf16.gmra.mrb[0].mxu0 %v139
    %v245 = vpop.f32.mrb[0].mxu0
    %v246 = vadd.f32 0.0, %v245
    %v247 = vpop.f32.mrb[0].mxu0
    %v248 = vpop.f32.mrb[0].mxu0
    %v249 = vadd.f32 0.0, %v248
    %v250 = vpop.f32.mrb[0].mxu0
    %251 = vmatprep.mubr.bf16.mxu0 0
    %252 = vmatmul.mubr.bf16.gmra.mrb[0].mxu0 %v142
    %v253 = vpop.f32.mrb[0].mxu0
    %v254 = vadd.f32 0.0, %v253
    %v255 = vpop.f32.mrb[0].mxu0
    %v256 = vpop.f32.mrb[0].mxu0
    %v257 = vadd.f32 0.0, %v256
    %v258 = vpop.f32.mrb[0].mxu0
    %259 = vmatprep.mubr.bf16.mxu0 0
    %260 = vmatmul.mubr.bf16.gmra.mrb[0].mxu0 %v145
    %v261 = vpop.f32.mrb[0].mxu0
    %v262 = vadd.f32 0.0, %v261
    %v263 = vpop.f32.mrb[0].mxu0
    %v264 = vpop.f32.mrb[0].mxu0
    %v265 = vadd.f32 0.0, %v264
    %v266 = vpop.f32.mrb[0].mxu0
    %267 = vmatprep.mubr.bf16.mxu0 0
    %268 = vmatmul.mubr.bf16.gmra.mrb[0].mxu0 %v148
    %v269 = vpop.f32.mrb[0].mxu0
    %v270 = vadd.f32 0.0, %v269
    %v271 = vpop.f32.mrb[0].mxu0
    %v272 = vpop.f32.mrb[0].mxu0
    %v273 = vadd.f32 0.0, %v272
    %v274 = vpop.f32.mrb[0].mxu0
    %275 = vmatprep.mubr.bf16.mxu0 0
    %276 = vmatmul.mubr.bf16.gmra.mrb[0].mxu0 %v151
    %v277 = vpop.f32.mrb[0].mxu0
    %v278 = vadd.f32 0.0, %v277
    %v279 = vpop.f32.mrb[0].mxu0
    %v280 = vpop.f32.mrb[0].mxu0
    %v281 = vadd.f32 0.0, %v280
    %v282 = vpop.f32.mrb[0].mxu0
    %283 = vmatprep.mubr.bf16.mxu0 0
    %284 = vmatmul.mubr.bf16.gmra.mrb[0].mxu0 %v154
    %v285 = vpop.f32.mrb[0].mxu0
    %v286 = vadd.f32 0.0, %v285
    %v287 = vpop.f32.mrb[0].mxu0
    %v288 = vpop.f32.mrb[0].mxu0
    %v289 = vadd.f32 0.0, %v288
    %v290 = vpop.f32.mrb[0].mxu0
    %291 = vmatprep.mubr.bf16.mxu0 0
    %292 = vmatmul.mubr.bf16.gmra.mrb[0].mxu0 %v157
    %v293 = vpop.f32.mrb[0].mxu0
    %v294 = vadd.f32 0.0, %v293
    %v295 = vpop.f32.mrb[0].mxu0
    %v296 = vpop.f32.mrb[0].mxu0
    %v297 = vadd.f32 0.0, %v296
    %v298 = vpop.f32.mrb[0].mxu0
    %299 = vmatprep.mubr.bf16.mxu0 0
    %300 = vmatmul.mubr.bf16.gmra.mrb[0].mxu0 %v160
    %v301 = vpop.f32.mrb[0].mxu0
    %v302 = vadd.f32 0.0, %v301
    %v303 = vpop.f32.mrb[0].mxu0
    %v304 = vpop.f32.mrb[0].mxu0
    %v305 = vadd.f32 0.0, %v304
    %v306 = vpop.f32.mrb[0].mxu0
    %307 = vmatprep.mubr.bf16.mxu0 0
    %308 = vmatmul.mubr.bf16.gmra.mrb[0].mxu0 %v163
    %v309 = vpop.f32.mrb[0].mxu0
    %v310 = vadd.f32 0.0, %v309
    %v311 = vpop.f32.mrb[0].mxu0
    %v312 = vpop.f32.mrb[0].mxu0
    %v313 = vadd.f32 0.0, %v312
    %v314 = vpop.f32.mrb[0].mxu0
    %315 = vmatprep.mubr.bf16.mxu0 0
    %316 = vmatmul.mubr.bf16.gmra.mrb[0].mxu0 %v166
    %v317 = vpop.f32.mrb[0].mxu0
    %v318 = vadd.f32 0.0, %v317
    %v319 = vpop.f32.mrb[0].mxu0
    %v320 = vpop.f32.mrb[0].mxu0
    %v321 = vadd.f32 0.0, %v320
    %v322 = vpop.f32.mrb[0].mxu0
    %323 = vmatprep.mubr.bf16.mxu0 0
    %324 = vmatmul.mubr.bf16.gmra.mrb[0].mxu0 %v169
    %v325 = vpop.f32.mrb[0].mxu0
    %v326 = vadd.f32 0.0, %v325
    %v327 = vpop.f32.mrb[0].mxu0
    %v328 = vpop.f32.mrb[0].mxu0
    %v329 = vadd.f32 0.0, %v328
    %v330 = vpop.f32.mrb[0].mxu0
    %331 = vdwg.mxu0
    %vm332 = vcmp.gt.f32.partialorder %v206, 0.0
    %vm333 = vcmp.gt.f32.partialorder %v209, 0.0
    %vm334 = vcmp.gt.f32.partialorder %v214, 0.0
    %vm335 = vcmp.gt.f32.partialorder %v217, 0.0
    %vm336 = vcmp.gt.f32.partialorder %v222, 0.0
    %vm337 = vcmp.gt.f32.partialorder %v225, 0.0
    %vm338 = vcmp.gt.f32.partialorder %v230, 0.0
    %vm339 = vcmp.gt.f32.partialorder %v233, 0.0
    %vm340 = vcmp.gt.f32.partialorder %v238, 0.0
    %vm341 = vcmp.gt.f32.partialorder %v241, 0.0
    %vm342 = vcmp.gt.f32.partialorder %v246, 0.0
    %vm343 = vcmp.gt.f32.partialorder %v249, 0.0
    %vm344 = vcmp.gt.f32.partialorder %v254, 0.0
    %vm345 = vcmp.gt.f32.partialorder %v257, 0.0
    %vm346 = vcmp.gt.f32.partialorder %v262, 0.0
    %vm347 = vcmp.gt.f32.partialorder %v265, 0.0
    %vm348 = vcmp.gt.f32.partialorder %v270, 0.0
    %vm349 = vcmp.gt.f32.partialorder %v273, 0.0
    %vm350 = vcmp.gt.f32.partialorder %v278, 0.0
    %vm351 = vcmp.gt.f32.partialorder %v281, 0.0
    %vm352 = vcmp.gt.f32.partialorder %v286, 0.0
    %vm353 = vcmp.gt.f32.partialorder %v289, 0.0
    %vm354 = vcmp.gt.f32.partialorder %v294, 0.0
    %vm355 = vcmp.gt.f32.partialorder %v297, 0.0
    %vm356 = vcmp.gt.f32.partialorder %v302, 0.0
    %vm357 = vcmp.gt.f32.partialorder %v305, 0.0
    %vm358 = vcmp.gt.f32.partialorder %v310, 0.0
    %vm359 = vcmp.gt.f32.partialorder %v313, 0.0
    %vm360 = vcmp.gt.f32.partialorder %v318, 0.0
    %vm361 = vcmp.gt.f32.partialorder %v321, 0.0
    %vm362 = vcmp.gt.f32.partialorder %v326, 0.0
    %vm363 = vcmp.gt.f32.partialorder %v329, 0.0
    %v364 = vmul.f32 %v206, 0.2
    %v365 = vmul.f32 %v209, 0.2
    %v366 = vmul.f32 %v214, 0.2
    %v367 = vmul.f32 %v217, 0.2
    %v368 = vmul.f32 %v222, 0.2
    %v369 = vmul.f32 %v225, 0.2
    %v370 = vmul.f32 %v230, 0.2
    %v371 = vmul.f32 %v233, 0.2
    %v372 = vmul.f32 %v238, 0.2
    %v373 = vmul.f32 %v241, 0.2
    %v374 = vmul.f32 %v246, 0.2
    %v375 = vmul.f32 %v249, 0.2
    %v376 = vmul.f32 %v254, 0.2
    %v377 = vmul.f32 %v257, 0.2
    %v378 = vmul.f32 %v262, 0.2
    %v379 = vmul.f32 %v265, 0.2
    %v380 = vmul.f32 %v270, 0.2
    %v381 = vmul.f32 %v273, 0.2
    %v382 = vmul.f32 %v278, 0.2
    %v383 = vmul.f32 %v281, 0.2
    %v384 = vmul.f32 %v286, 0.2
    %v385 = vmul.f32 %v289, 0.2
    %v386 = vmul.f32 %v294, 0.2
    %v387 = vmul.f32 %v297, 0.2
    %v388 = vmul.f32 %v302, 0.2
    %v389 = vmul.f32 %v305, 0.2
    %v390 = vmul.f32 %v310, 0.2
    %v391 = vmul.f32 %v313, 0.2
    %v392 = vmul.f32 %v318, 0.2
    %v393 = vmul.f32 %v321, 0.2
    %v394 = vmul.f32 %v326, 0.2
    %v395 = vmul.f32 %v329, 0.2
    %v396 = vsel %vm332, %v206, %v364
    %v397 = vsel %vm333, %v209, %v365
    %v398 = vsel %vm334, %v214, %v366
    %v399 = vsel %vm335, %v217, %v367
    %v400 = vsel %vm336, %v222, %v368
    %v401 = vsel %vm337, %v225, %v369
    %v402 = vsel %vm338, %v230, %v370
    %v403 = vsel %vm339, %v233, %v371
    %v404 = vsel %vm340, %v238, %v372
    %v405 = vsel %vm341, %v241, %v373
    %v406 = vsel %vm342, %v246, %v374
    %v407 = vsel %vm343, %v249, %v375
    %v408 = vsel %vm344, %v254, %v376
    %v409 = vsel %vm345, %v257, %v377
    %v410 = vsel %vm346, %v262, %v378
    %v411 = vsel %vm347, %v265, %v379
    %v412 = vsel %vm348, %v270, %v380
    %v413 = vsel %vm349, %v273, %v381
    %v414 = vsel %vm350, %v278, %v382
    %v415 = vsel %vm351, %v281, %v383
    %v416 = vsel %vm352, %v286, %v384
    %v417 = vsel %vm353, %v289, %v385
    %v418 = vsel %vm354, %v294, %v386
    %v419 = vsel %vm355, %v297, %v387
    %v420 = vsel %vm356, %v302, %v388
    %v421 = vsel %vm357, %v305, %v389
    %v422 = vsel %vm358, %v310, %v390
    %v423 = vsel %vm359, %v313, %v391
    %v424 = vsel %vm360, %v318, %v392
    %v425 = vsel %vm361, %v321, %v393
    %v426 = vsel %vm362, %v326, %v394
    %v427 = vsel %vm363, %v329, %v395
    %v428 = vpack.c.bf16 %v397, %v396
    %v429 = vpack.c.bf16 %v399, %v398
    %v430 = vpack.c.bf16 %v401, %v400
    %v431 = vpack.c.bf16 %v403, %v402
    %v432 = vpack.c.bf16 %v405, %v404
    %v433 = vpack.c.bf16 %v407, %v406
    %v434 = vpack.c.bf16 %v409, %v408
    %v435 = vpack.c.bf16 %v411, %v410
    %v436 = vpack.c.bf16 %v413, %v412
    %v437 = vpack.c.bf16 %v415, %v414
    %v438 = vpack.c.bf16 %v417, %v416
    %v439 = vpack.c.bf16 %v419, %v418
    %v440 = vpack.c.bf16 %v421, %v420
    %v441 = vpack.c.bf16 %v423, %v422
    %v442 = vpack.c.bf16 %v425, %v424
    %v443 = vpack.c.bf16 %v427, %v426
    %v445 = vshrl.u32 %v428, 16
    %v447 = vrot.slane %v445, 7
    %v448 = vshll.u32 %v428, 16
    %v450 = vor.u32 %v447, %v448
    %v452 = vshrl.u32 %v429, 16
    %v454 = vrot.slane %v452, 7
    %v455 = vshll.u32 %v429, 16
    %v457 = vor.u32 %v454, %v455
    %v459 = vshrl.u32 %v430, 16
    %v461 = vrot.slane %v459, 7
    %v462 = vshll.u32 %v430, 16
    %v464 = vor.u32 %v461, %v462
    %v466 = vshrl.u32 %v431, 16
    %v468 = vrot.slane %v466, 7
    %v469 = vshll.u32 %v431, 16
    %v471 = vor.u32 %v468, %v469
    %v473 = vshrl.u32 %v432, 16
    %v475 = vrot.slane %v473, 7
    %v476 = vshll.u32 %v432, 16
    %v478 = vor.u32 %v475, %v476
    %v480 = vshrl.u32 %v433, 16
    %v482 = vrot.slane %v480, 7
    %v483 = vshll.u32 %v433, 16
    %v485 = vor.u32 %v482, %v483
    %v487 = vshrl.u32 %v434, 16
    %v489 = vrot.slane %v487, 7
    %v490 = vshll.u32 %v434, 16
    %v492 = vor.u32 %v489, %v490
    %v494 = vshrl.u32 %v435, 16
    %v496 = vrot.slane %v494, 7
    %v497 = vshll.u32 %v435, 16
    %v499 = vor.u32 %v496, %v497
    %v501 = vshrl.u32 %v436, 16
    %v503 = vrot.slane %v501, 7
    %v504 = vshll.u32 %v436, 16
    %v506 = vor.u32 %v503, %v504
    %v508 = vshrl.u32 %v437, 16
    %v510 = vrot.slane %v508, 7
    %v511 = vshll.u32 %v437, 16
    %v513 = vor.u32 %v510, %v511
    %v515 = vshrl.u32 %v438, 16
    %v517 = vrot.slane %v515, 7
    %v518 = vshll.u32 %v438, 16
    %v520 = vor.u32 %v517, %v518
    %v522 = vshrl.u32 %v439, 16
    %v524 = vrot.slane %v522, 7
    %v525 = vshll.u32 %v439, 16
    %v527 = vor.u32 %v524, %v525
    %v529 = vshrl.u32 %v440, 16
    %v531 = vrot.slane %v529, 7
    %v532 = vshll.u32 %v440, 16
    %v534 = vor.u32 %v531, %v532
    %v536 = vshrl.u32 %v441, 16
    %v538 = vrot.slane %v536, 7
    %v539 = vshll.u32 %v441, 16
    %v541 = vor.u32 %v538, %v539
    %v543 = vshrl.u32 %v442, 16
    %v545 = vrot.slane %v543, 7
    %v546 = vshll.u32 %v442, 16
    %v548 = vor.u32 %v545, %v546
    %v550 = vshrl.u32 %v443, 16
    %v552 = vrot.slane %v550, 7
    %v553 = vshll.u32 %v443, 16
    %v555 = vor.u32 %v552, %v553
    %vm588 = vcmask 1040384
    %vm589 = vsmask.f32 256
    %vm590 = vmand %vm588, %vm589
    %v591 = vsel %vm590, 0, %v450
    %v592 = vsel %vm590, 0, %v457
    %v593 = vsel %vm590, 0, %v464
    %v594 = vsel %vm590, 0, %v471
    %v595 = vsel %vm590, 0, %v478
    %v596 = vsel %vm590, 0, %v485
    %v597 = vsel %vm590, 0, %v492
    %v598 = vsel %vm590, 0, %v499
    %v599 = vsel %vm590, 0, %v506
    %v600 = vsel %vm590, 0, %v513
    %v601 = vsel %vm590, 0, %v520
    %v602 = vsel %vm590, 0, %v527
    %v603 = vsel %vm590, 0, %v534
    %v604 = vsel %vm590, 0, %v541
    %v605 = vsel %vm590, 0, %v548
    %v606 = vsel %vm590, 0, %v555
    %v607 = vsel %vm590, %v447, 0
    %v608 = vsel %vm590, %v454, 0
    %v609 = vsel %vm590, %v461, 0
    %v610 = vsel %vm590, %v468, 0
    %v611 = vsel %vm590, %v475, 0
    %v612 = vsel %vm590, %v482, 0
    %v613 = vsel %vm590, %v489, 0
    %v614 = vsel %vm590, %v496, 0
    %v615 = vsel %vm590, %v503, 0
    %v616 = vsel %vm590, %v510, 0
    %v617 = vsel %vm590, %v517, 0
    %v618 = vsel %vm590, %v524, 0
    %v619 = vsel %vm590, %v531, 0
    %v620 = vsel %vm590, %v538, 0
    %v621 = vsel %vm590, %v545, 0
    %v622 = vsel %vm590, %v552, 0
    %v655 = vunpack.c.l.b16 %v591
    %v656 = vunpack.c.h.b16 %v591
    %v657 = vunpack.c.l.b16 %v607
    %v658 = vunpack.c.l.b16 %v592
    %v659 = vunpack.c.h.b16 %v592
    %v660 = vunpack.c.l.b16 %v608
    %v661 = vunpack.c.l.b16 %v593
    %v662 = vunpack.c.h.b16 %v593
    %v663 = vunpack.c.l.b16 %v609
    %v664 = vunpack.c.l.b16 %v594
    %v665 = vunpack.c.h.b16 %v594
    %v666 = vunpack.c.l.b16 %v610
    %v667 = vunpack.c.l.b16 %v595
    %v668 = vunpack.c.h.b16 %v595
    %v669 = vunpack.c.l.b16 %v611
    %v670 = vunpack.c.l.b16 %v596
    %v671 = vunpack.c.h.b16 %v596
    %v672 = vunpack.c.l.b16 %v612
    %v673 = vunpack.c.l.b16 %v597
    %v674 = vunpack.c.h.b16 %v597
    %v675 = vunpack.c.l.b16 %v613
    %v676 = vunpack.c.l.b16 %v598
    %v677 = vunpack.c.h.b16 %v598
    %v678 = vunpack.c.l.b16 %v614
    %v679 = vunpack.c.l.b16 %v599
    %v680 = vunpack.c.h.b16 %v599
    %v681 = vunpack.c.l.b16 %v615
    %v682 = vunpack.c.l.b16 %v600
    %v683 = vunpack.c.h.b16 %v600
    %v684 = vunpack.c.l.b16 %v616
    %v685 = vunpack.c.l.b16 %v601
    %v686 = vunpack.c.h.b16 %v601
    %v687 = vunpack.c.l.b16 %v617
    %v688 = vunpack.c.l.b16 %v602
    %v689 = vunpack.c.h.b16 %v602
    %v690 = vunpack.c.l.b16 %v618
    %v691 = vunpack.c.l.b16 %v603
    %v692 = vunpack.c.h.b16 %v603
    %v693 = vunpack.c.l.b16 %v619
    %v694 = vunpack.c.l.b16 %v604
    %v695 = vunpack.c.h.b16 %v604
    %v696 = vunpack.c.l.b16 %v620
    %v697 = vunpack.c.l.b16 %v605
    %v698 = vunpack.c.h.b16 %v605
    %v699 = vunpack.c.l.b16 %v621
    %v700 = vunpack.c.l.b16 %v606
    %v701 = vunpack.c.h.b16 %v606
    %v702 = vunpack.c.l.b16 %v622
    %v703 = vpack.c.b16 %v655, %v655
    %v704 = vpack.c.b16 %v656, %v656
    %v705 = vpack.c.b16 %v657, %v657
    %v706 = vpack.c.b16 %v658, %v658
    %v707 = vpack.c.b16 %v659, %v659
    %v708 = vpack.c.b16 %v660, %v660
    %v709 = vpack.c.b16 %v661, %v661
    %v710 = vpack.c.b16 %v662, %v662
    %v711 = vpack.c.b16 %v663, %v663
    %v712 = vpack.c.b16 %v664, %v664
    %v713 = vpack.c.b16 %v665, %v665
    %v714 = vpack.c.b16 %v666, %v666
    %v715 = vpack.c.b16 %v667, %v667
    %v716 = vpack.c.b16 %v668, %v668
    %v717 = vpack.c.b16 %v669, %v669
    %v718 = vpack.c.b16 %v670, %v670
    %v719 = vpack.c.b16 %v671, %v671
    %v720 = vpack.c.b16 %v672, %v672
    %v721 = vpack.c.b16 %v673, %v673
    %v722 = vpack.c.b16 %v674, %v674
    %v723 = vpack.c.b16 %v675, %v675
    %v724 = vpack.c.b16 %v676, %v676
    %v725 = vpack.c.b16 %v677, %v677
    %v726 = vpack.c.b16 %v678, %v678
    %v727 = vpack.c.b16 %v679, %v679
    %v728 = vpack.c.b16 %v680, %v680
    %v729 = vpack.c.b16 %v681, %v681
    %v730 = vpack.c.b16 %v682, %v682
    %v731 = vpack.c.b16 %v683, %v683
    %v732 = vpack.c.b16 %v684, %v684
    %v733 = vpack.c.b16 %v685, %v685
    %v734 = vpack.c.b16 %v686, %v686
    %v735 = vpack.c.b16 %v687, %v687
    %v736 = vpack.c.b16 %v688, %v688
    %v737 = vpack.c.b16 %v689, %v689
    %v738 = vpack.c.b16 %v690, %v690
    %v739 = vpack.c.b16 %v691, %v691
    %v740 = vpack.c.b16 %v692, %v692
    %v741 = vpack.c.b16 %v693, %v693
    %v742 = vpack.c.b16 %v694, %v694
    %v743 = vpack.c.b16 %v695, %v695
    %v744 = vpack.c.b16 %v696, %v696
    %v745 = vpack.c.b16 %v697, %v697
    %v746 = vpack.c.b16 %v698, %v698
    %v747 = vpack.c.b16 %v699, %v699
    %v748 = vpack.c.b16 %v700, %v700
    %v749 = vpack.c.b16 %v701, %v701
    %v750 = vpack.c.b16 %v702, %v702
    %s799 = scalar_lea.vmem [#allocation2], 12
    %800 = vst.msk [vmem:[%s799] sm:$0xf] %vm33, %v703
    %801 = vst.msk [vmem:[%s799 + $0x4] sm:$0xf] %vm33, %v704
    %802 = vst.msk [vmem:[%s799 + $0x8] sm:$0x1] %vm36, %v705
    %803 = vst.msk [vmem:[%s799 + $0xc] sm:$0xf] %vm33, %v706
    %804 = vst.msk [vmem:[%s799 + $0x10] sm:$0xf] %vm33, %v707
    %805 = vst.msk [vmem:[%s799 + $0x14] sm:$0x1] %vm36, %v708
    %806 = vst.msk [vmem:[%s799 + $0x18] sm:$0xf] %vm33, %v709
    %807 = vst.msk [vmem:[%s799 + $0x1c] sm:$0xf] %vm33, %v710
    %808 = vst.msk [vmem:[%s799 + $0x20] sm:$0x1] %vm36, %v711
    %809 = vst.msk [vmem:[%s799 + $0x24] sm:$0xf] %vm33, %v712
    %810 = vst.msk [vmem:[%s799 + $0x28] sm:$0xf] %vm33, %v713
    %811 = vst.msk [vmem:[%s799 + $0x2c] sm:$0x1] %vm36, %v714
    %812 = vst.msk [vmem:[%s799 + $0x30] sm:$0xf] %vm33, %v715
    %813 = vst.msk [vmem:[%s799 + $0x34] sm:$0xf] %vm33, %v716
    %814 = vst.msk [vmem:[%s799 + $0x38] sm:$0x1] %vm36, %v717
    %815 = vst.msk [vmem:[%s799 + $0x3c] sm:$0xf] %vm33, %v718
    %816 = vst.msk [vmem:[%s799 + $0x40] sm:$0xf] %vm33, %v719
    %817 = vst.msk [vmem:[%s799 + $0x44] sm:$0x1] %vm36, %v720
    %818 = vst.msk [vmem:[%s799 + $0x48] sm:$0xf] %vm33, %v721
    %819 = vst.msk [vmem:[%s799 + $0x4c] sm:$0xf] %vm33, %v722
    %820 = vst.msk [vmem:[%s799 + $0x50] sm:$0x1] %vm36, %v723
    %821 = vst.msk [vmem:[%s799 + $0x54] sm:$0xf] %vm33, %v724
    %822 = vst.msk [vmem:[%s799 + $0x58] sm:$0xf] %vm33, %v725
    %823 = vst.msk [vmem:[%s799 + $0x5c] sm:$0x1] %vm36, %v726
    %824 = vst.msk [vmem:[%s799 + $0x60] sm:$0xf] %vm33, %v727
    %825 = vst.msk [vmem:[%s799 + $0x64] sm:$0xf] %vm33, %v728
    %826 = vst.msk [vmem:[%s799 + $0x68] sm:$0x1] %vm36, %v729
    %827 = vst.msk [vmem:[%s799 + $0x6c] sm:$0xf] %vm33, %v730
    %828 = vst.msk [vmem:[%s799 + $0x70] sm:$0xf] %vm33, %v731
    %829 = vst.msk [vmem:[%s799 + $0x74] sm:$0x1] %vm36, %v732
    %830 = vst.msk [vmem:[%s799 + $0x78] sm:$0xf] %vm33, %v733
    %831 = vst.msk [vmem:[%s799 + $0x7c] sm:$0xf] %vm33, %v734
    %832 = vst.msk [vmem:[%s799 + $0x80] sm:$0x1] %vm36, %v735
    %833 = vst.msk [vmem:[%s799 + $0x84] sm:$0xf] %vm33, %v736
    %834 = vst.msk [vmem:[%s799 + $0x88] sm:$0xf] %vm33, %v737
    %835 = vst.msk [vmem:[%s799 + $0x8c] sm:$0x1] %vm36, %v738
    %836 = vst.msk [vmem:[%s799 + $0x90] sm:$0xf] %vm33, %v739
    %837 = vst.msk [vmem:[%s799 + $0x94] sm:$0xf] %vm33, %v740
    %838 = vst.msk [vmem:[%s799 + $0x98] sm:$0x1] %vm36, %v741
    %839 = vst.msk [vmem:[%s799 + $0x9c] sm:$0xf] %vm33, %v742
    %840 = vst.msk [vmem:[%s799 + $0xa0] sm:$0xf] %vm33, %v743
    %841 = vst.msk [vmem:[%s799 + $0xa4] sm:$0x1] %vm36, %v744
    %842 = vst.msk [vmem:[%s799 + $0xa8] sm:$0xf] %vm33, %v745
    %843 = vst.msk [vmem:[%s799 + $0xac] sm:$0xf] %vm33, %v746
    %844 = vst.msk [vmem:[%s799 + $0xb0] sm:$0x1] %vm36, %v747
    %845 = vst.msk [vmem:[%s799 + $0xb4] sm:$0xf] %vm33, %v748
    %846 = vst.msk [vmem:[%s799 + $0xb8] sm:$0xf] %vm33, %v749
    %847 = vst.msk [vmem:[%s799 + $0xbc] sm:$0x1] %vm36, %v750
    %v848 = vld [vmem:[#allocation2] sm:$0xf]
    %v849 = vld [vmem:[#allocation2 + $0x4] sm:$0xf]
    %v850 = vld [vmem:[#allocation2 + $0xc] sm:$0xf]
    %v851 = vld [vmem:[#allocation2 + $0x10] sm:$0xf]
    %v852 = vld [vmem:[#allocation2 + $0x18] sm:$0xf]
    %v853 = vld [vmem:[#allocation2 + $0x1c] sm:$0xf]
    %v854 = vld [vmem:[#allocation2 + $0x24] sm:$0xf]
    %v855 = vld [vmem:[#allocation2 + $0x28] sm:$0xf]
    %v856 = vld [vmem:[#allocation2 + $0x30] sm:$0xf]
    %v857 = vld [vmem:[#allocation2 + $0x34] sm:$0xf]
    %v858 = vld [vmem:[#allocation2 + $0x3c] sm:$0xf]
    %v859 = vld [vmem:[#allocation2 + $0x40] sm:$0xf]
    %v860 = vld [vmem:[#allocation2 + $0x48] sm:$0xf]
    %v861 = vld [vmem:[#allocation2 + $0x4c] sm:$0xf]
    %v862 = vld [vmem:[#allocation2 + $0x54] sm:$0xf]
    %v863 = vld [vmem:[#allocation2 + $0x58] sm:$0xf]
    %v864 = vld [vmem:[#allocation2 + $0x60] sm:$0xf]
    %v865 = vld [vmem:[#allocation2 + $0x64] sm:$0xf]
    %v866 = vld [vmem:[#allocation2 + $0x6c] sm:$0xf]
    %v867 = vld [vmem:[#allocation2 + $0x70] sm:$0xf]
    %v868 = vld [vmem:[#allocation2 + $0x78] sm:$0xf]
    %v869 = vld [vmem:[#allocation2 + $0x7c] sm:$0xf]
    %v870 = vld [vmem:[#allocation2 + $0x84] sm:$0xf]
    %v871 = vld [vmem:[#allocation2 + $0x88] sm:$0xf]
    %v872 = vld [vmem:[#allocation2 + $0x90] sm:$0xf]
    %v873 = vld [vmem:[#allocation2 + $0x94] sm:$0xf]
    %v874 = vld [vmem:[#allocation2 + $0x9c] sm:$0xf]
    %v875 = vld [vmem:[#allocation2 + $0xa0] sm:$0xf]
    %v876 = vld [vmem:[#allocation2 + $0xa8] sm:$0xf]
    %v877 = vld [vmem:[#allocation2 + $0xac] sm:$0xf]
    %v878 = vld [vmem:[#allocation2 + $0xb4] sm:$0xf]
    %v879 = vld [vmem:[#allocation2 + $0xb8] sm:$0xf]
    %v880 = vld [vmem:[#allocation2 + $0x8] sm:$0x1]
    %v881 = vld [vmem:[#allocation2 + $0x14] sm:$0x1]
    %v882 = vld [vmem:[#allocation2 + $0x20] sm:$0x1]
    %v883 = vld [vmem:[#allocation2 + $0x2c] sm:$0x1]
    %v884 = vld [vmem:[#allocation2 + $0x38] sm:$0x1]
    %v885 = vld [vmem:[#allocation2 + $0x44] sm:$0x1]
    %v886 = vld [vmem:[#allocation2 + $0x50] sm:$0x1]
    %v887 = vld [vmem:[#allocation2 + $0x5c] sm:$0x1]
    %v888 = vld [vmem:[#allocation2 + $0x68] sm:$0x1]
    %v889 = vld [vmem:[#allocation2 + $0x74] sm:$0x1]
    %v890 = vld [vmem:[#allocation2 + $0x80] sm:$0x1]
    %v891 = vld [vmem:[#allocation2 + $0x8c] sm:$0x1]
    %v892 = vld [vmem:[#allocation2 + $0x98] sm:$0x1]
    %v893 = vld [vmem:[#allocation2 + $0xa4] sm:$0x1]
    %v894 = vld [vmem:[#allocation2 + $0xb0] sm:$0x1]
    %v895 = vld [vmem:[#allocation2 + $0xbc] sm:$0x1]
    %v896 = vld [vmem:[#allocation2] sm:$0xe]
    %v897 = vld [vmem:[#allocation2 + $0xc] sm:$0xe]
    %v898 = vld [vmem:[#allocation2 + $0x18] sm:$0xe]
    %v899 = vld [vmem:[#allocation2 + $0x24] sm:$0xe]
    %v900 = vld [vmem:[#allocation2 + $0x30] sm:$0xe]
    %v901 = vld [vmem:[#allocation2 + $0x3c] sm:$0xe]
    %v902 = vld [vmem:[#allocation2 + $0x48] sm:$0xe]
    %v903 = vld [vmem:[#allocation2 + $0x54] sm:$0xe]
    %v904 = vld [vmem:[#allocation2 + $0x60] sm:$0xe]
    %v905 = vld [vmem:[#allocation2 + $0x6c] sm:$0xe]
    %v906 = vld [vmem:[#allocation2 + $0x78] sm:$0xe]
    %v907 = vld [vmem:[#allocation2 + $0x84] sm:$0xe]
    %v908 = vld [vmem:[#allocation2 + $0x90] sm:$0xe]
    %v909 = vld [vmem:[#allocation2 + $0x9c] sm:$0xe]
    %v910 = vld [vmem:[#allocation2 + $0xa8] sm:$0xe]
    %v911 = vld [vmem:[#allocation2 + $0xb4] sm:$0xe]
    %v912 = vld [vmem:[%s799] sm:$0xf]
    %v913 = vld [vmem:[%s799 + $0x4] sm:$0xf]
    %v914 = vld [vmem:[%s799 + $0xc] sm:$0xf]
    %v915 = vld [vmem:[%s799 + $0x10] sm:$0xf]
    %v916 = vld [vmem:[%s799 + $0x18] sm:$0xf]
    %v917 = vld [vmem:[%s799 + $0x1c] sm:$0xf]
    %v918 = vld [vmem:[%s799 + $0x24] sm:$0xf]
    %v919 = vld [vmem:[%s799 + $0x28] sm:$0xf]
    %v920 = vld [vmem:[%s799 + $0x30] sm:$0xf]
    %v921 = vld [vmem:[%s799 + $0x34] sm:$0xf]
    %v922 = vld [vmem:[%s799 + $0x3c] sm:$0xf]
    %v923 = vld [vmem:[%s799 + $0x40] sm:$0xf]
    %v924 = vld [vmem:[%s799 + $0x48] sm:$0xf]
    %v925 = vld [vmem:[%s799 + $0x4c] sm:$0xf]
    %v926 = vld [vmem:[%s799 + $0x54] sm:$0xf]
    %v927 = vld [vmem:[%s799 + $0x58] sm:$0xf]
    %v928 = vld [vmem:[%s799 + $0x60] sm:$0xf]
    %v929 = vld [vmem:[%s799 + $0x64] sm:$0xf]
    %v930 = vld [vmem:[%s799 + $0x6c] sm:$0xf]
    %v931 = vld [vmem:[%s799 + $0x70] sm:$0xf]
    %v932 = vld [vmem:[%s799 + $0x78] sm:$0xf]
    %v933 = vld [vmem:[%s799 + $0x7c] sm:$0xf]
    %v934 = vld [vmem:[%s799 + $0x84] sm:$0xf]
    %v935 = vld [vmem:[%s799 + $0x88] sm:$0xf]
    %v936 = vld [vmem:[%s799 + $0x90] sm:$0xf]
    %v937 = vld [vmem:[%s799 + $0x94] sm:$0xf]
    %v938 = vld [vmem:[%s799 + $0x9c] sm:$0xf]
    %v939 = vld [vmem:[%s799 + $0xa0] sm:$0xf]
    %v940 = vld [vmem:[%s799 + $0xa8] sm:$0xf]
    %v941 = vld [vmem:[%s799 + $0xac] sm:$0xf]
    %v942 = vld [vmem:[%s799 + $0xb4] sm:$0xf]
    %v943 = vld [vmem:[%s799 + $0xb8] sm:$0xf]
    %v944 = vld [vmem:[%s799 + $0x8] sm:$0x1]
    %v945 = vld [vmem:[%s799 + $0x14] sm:$0x1]
    %v946 = vld [vmem:[%s799 + $0x20] sm:$0x1]
    %v947 = vld [vmem:[%s799 + $0x2c] sm:$0x1]
    %v948 = vld [vmem:[%s799 + $0x38] sm:$0x1]
    %v949 = vld [vmem:[%s799 + $0x44] sm:$0x1]
    %v950 = vld [vmem:[%s799 + $0x50] sm:$0x1]
    %v951 = vld [vmem:[%s799 + $0x5c] sm:$0x1]
    %v952 = vld [vmem:[%s799 + $0x68] sm:$0x1]
    %v953 = vld [vmem:[%s799 + $0x74] sm:$0x1]
    %v954 = vld [vmem:[%s799 + $0x80] sm:$0x1]
    %v955 = vld [vmem:[%s799 + $0x8c] sm:$0x1]
    %v956 = vld [vmem:[%s799 + $0x98] sm:$0x1]
    %v957 = vld [vmem:[%s799 + $0xa4] sm:$0x1]
    %v958 = vld [vmem:[%s799 + $0xb0] sm:$0x1]
    %v959 = vld [vmem:[%s799 + $0xbc] sm:$0x1]
    %v960 = vld [vmem:[%s799] sm:$0xe]
    %v961 = vld [vmem:[%s799 + $0xc] sm:$0xe]
    %v962 = vld [vmem:[%s799 + $0x18] sm:$0xe]
    %v963 = vld [vmem:[%s799 + $0x24] sm:$0xe]
    %v964 = vld [vmem:[%s799 + $0x30] sm:$0xe]
    %v965 = vld [vmem:[%s799 + $0x3c] sm:$0xe]
    %v966 = vld [vmem:[%s799 + $0x48] sm:$0xe]
    %v967 = vld [vmem:[%s799 + $0x54] sm:$0xe]
    %v968 = vld [vmem:[%s799 + $0x60] sm:$0xe]
    %v969 = vld [vmem:[%s799 + $0x6c] sm:$0xe]
    %v970 = vld [vmem:[%s799 + $0x78] sm:$0xe]
    %v971 = vld [vmem:[%s799 + $0x84] sm:$0xe]
    %v972 = vld [vmem:[%s799 + $0x90] sm:$0xe]
    %v973 = vld [vmem:[%s799 + $0x9c] sm:$0xe]
    %v974 = vld [vmem:[%s799 + $0xa8] sm:$0xe]
    %v975 = vld [vmem:[%s799 + $0xb4] sm:$0xe]
    %s976 = scalar_lea.vmem [#allocation2], 24
    %v977 = vld [vmem:[%s976] sm:$0xf]
    %v978 = vld [vmem:[%s976 + $0x4] sm:$0xf]
    %v979 = vld [vmem:[%s976 + $0xc] sm:$0xf]
    %v980 = vld [vmem:[%s976 + $0x10] sm:$0xf]
    %v981 = vld [vmem:[%s976 + $0x18] sm:$0xf]
    %v982 = vld [vmem:[%s976 + $0x1c] sm:$0xf]
    %v983 = vld [vmem:[%s976 + $0x24] sm:$0xf]
    %v984 = vld [vmem:[%s976 + $0x28] sm:$0xf]
    %v985 = vld [vmem:[%s976 + $0x30] sm:$0xf]
    %v986 = vld [vmem:[%s976 + $0x34] sm:$0xf]
    %v987 = vld [vmem:[%s976 + $0x3c] sm:$0xf]
    %v988 = vld [vmem:[%s976 + $0x40] sm:$0xf]
    %v989 = vld [vmem:[%s976 + $0x48] sm:$0xf]
    %v990 = vld [vmem:[%s976 + $0x4c] sm:$0xf]
    %v991 = vld [vmem:[%s976 + $0x54] sm:$0xf]
    %v992 = vld [vmem:[%s976 + $0x58] sm:$0xf]
    %v993 = vld [vmem:[%s976 + $0x60] sm:$0xf]
    %v994 = vld [vmem:[%s976 + $0x64] sm:$0xf]
    %v995 = vld [vmem:[%s976 + $0x6c] sm:$0xf]
    %v996 = vld [vmem:[%s976 + $0x70] sm:$0xf]
    %v997 = vld [vmem:[%s976 + $0x78] sm:$0xf]
    %v998 = vld [vmem:[%s976 + $0x7c] sm:$0xf]
    %v999 = vld [vmem:[%s976 + $0x84] sm:$0xf]
    %v1000 = vld [vmem:[%s976 + $0x88] sm:$0xf]
    %v1001 = vld [vmem:[%s976 + $0x90] sm:$0xf]
    %v1002 = vld [vmem:[%s976 + $0x94] sm:$0xf]
    %v1003 = vld [vmem:[%s976 + $0x9c] sm:$0xf]
    %v1004 = vld [vmem:[%s976 + $0xa0] sm:$0xf]
    %v1005 = vld [vmem:[%s976 + $0xa8] sm:$0xf]
    %v1006 = vld [vmem:[%s976 + $0xac] sm:$0xf]
    %v1007 = vld [vmem:[%s976 + $0xb4] sm:$0xf]
    %v1008 = vld [vmem:[%s976 + $0xb8] sm:$0xf]
    %v1009 = vld [vmem:[%s976 + $0x8] sm:$0x1]
    %v1010 = vld [vmem:[%s976 + $0x14] sm:$0x1]
    %v1011 = vld [vmem:[%s976 + $0x20] sm:$0x1]
    %v1012 = vld [vmem:[%s976 + $0x2c] sm:$0x1]
    %v1013 = vld [vmem:[%s976 + $0x38] sm:$0x1]
    %v1014 = vld [vmem:[%s976 + $0x44] sm:$0x1]
    %v1015 = vld [vmem:[%s976 + $0x50] sm:$0x1]
    %v1016 = vld [vmem:[%s976 + $0x5c] sm:$0x1]
    %v1017 = vld [vmem:[%s976 + $0x68] sm:$0x1]
    %v1018 = vld [vmem:[%s976 + $0x74] sm:$0x1]
    %v1019 = vld [vmem:[%s976 + $0x80] sm:$0x1]
    %v1020 = vld [vmem:[%s976 + $0x8c] sm:$0x1]
    %v1021 = vld [vmem:[%s976 + $0x98] sm:$0x1]
    %v1022 = vld [vmem:[%s976 + $0xa4] sm:$0x1]
    %v1023 = vld [vmem:[%s976 + $0xb0] sm:$0x1]
    %v1024 = vld [vmem:[%s976 + $0xbc] sm:$0x1]
    %v1025 = vld [vmem:[%s976] sm:$0xe]
    %v1026 = vld [vmem:[%s976 + $0xc] sm:$0xe]
    %v1027 = vld [vmem:[%s976 + $0x18] sm:$0xe]
    %v1028 = vld [vmem:[%s976 + $0x24] sm:$0xe]
    %v1029 = vld [vmem:[%s976 + $0x30] sm:$0xe]
    %v1030 = vld [vmem:[%s976 + $0x3c] sm:$0xe]
    %v1031 = vld [vmem:[%s976 + $0x48] sm:$0xe]
    %v1032 = vld [vmem:[%s976 + $0x54] sm:$0xe]
    %v1033 = vld [vmem:[%s976 + $0x60] sm:$0xe]
    %v1034 = vld [vmem:[%s976 + $0x6c] sm:$0xe]
    %v1035 = vld [vmem:[%s976 + $0x78] sm:$0xe]
    %v1036 = vld [vmem:[%s976 + $0x84] sm:$0xe]
    %v1037 = vld [vmem:[%s976 + $0x90] sm:$0xe]
    %v1038 = vld [vmem:[%s976 + $0x9c] sm:$0xe]
    %v1039 = vld [vmem:[%s976 + $0xa8] sm:$0xe]
    %v1040 = vld [vmem:[%s976 + $0xb4] sm:$0xe]
    %v1073 = vunpack.c.l.b16 %v848
    %v1074 = vunpack.c.l.b16 %v849
    %v1075 = vunpack.c.l.b16 %v850
    %v1076 = vunpack.c.l.b16 %v851
    %v1077 = vunpack.c.l.b16 %v852
    %v1078 = vunpack.c.l.b16 %v853
    %v1079 = vunpack.c.l.b16 %v854
    %v1080 = vunpack.c.l.b16 %v855
    %v1081 = vunpack.c.l.b16 %v856
    %v1082 = vunpack.c.l.b16 %v857
    %v1083 = vunpack.c.l.b16 %v858
    %v1084 = vunpack.c.l.b16 %v859
    %v1085 = vunpack.c.l.b16 %v860
    %v1086 = vunpack.c.l.b16 %v861
    %v1087 = vunpack.c.l.b16 %v862
    %v1088 = vunpack.c.l.b16 %v863
    %v1089 = vunpack.c.l.b16 %v864
    %v1090 = vunpack.c.l.b16 %v865
    %v1091 = vunpack.c.l.b16 %v866
    %v1092 = vunpack.c.l.b16 %v867
    %v1093 = vunpack.c.l.b16 %v868
    %v1094 = vunpack.c.l.b16 %v869
    %v1095 = vunpack.c.l.b16 %v870
    %v1096 = vunpack.c.l.b16 %v871
    %v1097 = vunpack.c.l.b16 %v872
    %v1098 = vunpack.c.l.b16 %v873
    %v1099 = vunpack.c.l.b16 %v874
    %v1100 = vunpack.c.l.b16 %v875
    %v1101 = vunpack.c.l.b16 %v876
    %v1102 = vunpack.c.l.b16 %v877
    %v1103 = vunpack.c.l.b16 %v878
    %v1104 = vunpack.c.l.b16 %v879
    %v1105 = vpack.c.b16 %v1074, %v1073
    %v1106 = vpack.c.b16 %v1076, %v1075
    %v1107 = vpack.c.b16 %v1078, %v1077
    %v1108 = vpack.c.b16 %v1080, %v1079
    %v1109 = vpack.c.b16 %v1082, %v1081
    %v1110 = vpack.c.b16 %v1084, %v1083
    %v1111 = vpack.c.b16 %v1086, %v1085
    %v1112 = vpack.c.b16 %v1088, %v1087
    %v1113 = vpack.c.b16 %v1090, %v1089
    %v1114 = vpack.c.b16 %v1092, %v1091
    %v1115 = vpack.c.b16 %v1094, %v1093
    %v1116 = vpack.c.b16 %v1096, %v1095
    %v1117 = vpack.c.b16 %v1098, %v1097
    %v1118 = vpack.c.b16 %v1100, %v1099
    %v1119 = vpack.c.b16 %v1102, %v1101
    %v1120 = vpack.c.b16 %v1104, %v1103
    %v1137 = vunpack.c.l.b16 %v880
    %v1138 = vunpack.c.l.b16 %v881
    %v1139 = vunpack.c.l.b16 %v882
    %v1140 = vunpack.c.l.b16 %v883
    %v1141 = vunpack.c.l.b16 %v884
    %v1142 = vunpack.c.l.b16 %v885
    %v1143 = vunpack.c.l.b16 %v886
    %v1144 = vunpack.c.l.b16 %v887
    %v1145 = vunpack.c.l.b16 %v888
    %v1146 = vunpack.c.l.b16 %v889
    %v1147 = vunpack.c.l.b16 %v890
    %v1148 = vunpack.c.l.b16 %v891
    %v1149 = vunpack.c.l.b16 %v892
    %v1150 = vunpack.c.l.b16 %v893
    %v1151 = vunpack.c.l.b16 %v894
    %v1152 = vunpack.c.l.b16 %v895
    %v1153 = vpack.c.b16 %v1137, %v1137
    %v1154 = vpack.c.b16 %v1138, %v1138
    %v1155 = vpack.c.b16 %v1139, %v1139
    %v1156 = vpack.c.b16 %v1140, %v1140
    %v1157 = vpack.c.b16 %v1141, %v1141
    %v1158 = vpack.c.b16 %v1142, %v1142
    %v1159 = vpack.c.b16 %v1143, %v1143
    %v1160 = vpack.c.b16 %v1144, %v1144
    %v1161 = vpack.c.b16 %v1145, %v1145
    %v1162 = vpack.c.b16 %v1146, %v1146
    %v1163 = vpack.c.b16 %v1147, %v1147
    %v1164 = vpack.c.b16 %v1148, %v1148
    %v1165 = vpack.c.b16 %v1149, %v1149
    %v1166 = vpack.c.b16 %v1150, %v1150
    %v1167 = vpack.c.b16 %v1151, %v1151
    %v1168 = vpack.c.b16 %v1152, %v1152
    %vm1169 = vsmask.f32 7424
    %v1171 = vshrl.u32 %v1105, 16
    %v1173 = vshll.u32 %v1105, 16
    %v1175 = vrot.slane %v1173, 1
    %v1176 = vor.u32 %v1171, %v1175
    %v1178 = vshll.u32 %v1153, 16
    %v1180 = vrot.slane %v1178, 1
    %v1181 = vsel %vm1169, %v1176, %v1180
    %v1183 = vshrl.u32 %v1106, 16
    %v1185 = vshll.u32 %v1106, 16
    %v1187 = vrot.slane %v1185, 1
    %v1188 = vor.u32 %v1183, %v1187
    %v1190 = vshll.u32 %v1154, 16
    %v1192 = vrot.slane %v1190, 1
    %v1193 = vsel %vm1169, %v1188, %v1192
    %v1195 = vshrl.u32 %v1107, 16
    %v1197 = vshll.u32 %v1107, 16
    %v1199 = vrot.slane %v1197, 1
    %v1200 = vor.u32 %v1195, %v1199
    %v1202 = vshll.u32 %v1155, 16
    %v1204 = vrot.slane %v1202, 1
    %v1205 = vsel %vm1169, %v1200, %v1204
    %v1207 = vshrl.u32 %v1108, 16
    %v1209 = vshll.u32 %v1108, 16
    %v1211 = vrot.slane %v1209, 1
    %v1212 = vor.u32 %v1207, %v1211
    %v1214 = vshll.u32 %v1156, 16
    %v1216 = vrot.slane %v1214, 1
    %v1217 = vsel %vm1169, %v1212, %v1216
    %v1219 = vshrl.u32 %v1109, 16
    %v1221 = vshll.u32 %v1109, 16
    %v1223 = vrot.slane %v1221, 1
    %v1224 = vor.u32 %v1219, %v1223
    %v1226 = vshll.u32 %v1157, 16
    %v1228 = vrot.slane %v1226, 1
    %v1229 = vsel %vm1169, %v1224, %v1228
    %v1231 = vshrl.u32 %v1110, 16
    %v1233 = vshll.u32 %v1110, 16
    %v1235 = vrot.slane %v1233, 1
    %v1236 = vor.u32 %v1231, %v1235
    %v1238 = vshll.u32 %v1158, 16
    %v1240 = vrot.slane %v1238, 1
    %v1241 = vsel %vm1169, %v1236, %v1240
    %v1243 = vshrl.u32 %v1111, 16
    %v1245 = vshll.u32 %v1111, 16
    %v1247 = vrot.slane %v1245, 1
    %v1248 = vor.u32 %v1243, %v1247
    %v1250 = vshll.u32 %v1159, 16
    %v1252 = vrot.slane %v1250, 1
    %v1253 = vsel %vm1169, %v1248, %v1252
    %v1255 = vshrl.u32 %v1112, 16
    %v1257 = vshll.u32 %v1112, 16
    %v1259 = vrot.slane %v1257, 1
    %v1260 = vor.u32 %v1255, %v1259
    %v1262 = vshll.u32 %v1160, 16
    %v1264 = vrot.slane %v1262, 1
    %v1265 = vsel %vm1169, %v1260, %v1264
    %v1267 = vshrl.u32 %v1113, 16
    %v1269 = vshll.u32 %v1113, 16
    %v1271 = vrot.slane %v1269, 1
    %v1272 = vor.u32 %v1267, %v1271
    %v1274 = vshll.u32 %v1161, 16
    %v1276 = vrot.slane %v1274, 1
    %v1277 = vsel %vm1169, %v1272, %v1276
    %v1279 = vshrl.u32 %v1114, 16
    %v1281 = vshll.u32 %v1114, 16
    %v1283 = vrot.slane %v1281, 1
    %v1284 = vor.u32 %v1279, %v1283
    %v1286 = vshll.u32 %v1162, 16
    %v1288 = vrot.slane %v1286, 1
    %v1289 = vsel %vm1169, %v1284, %v1288
    %v1291 = vshrl.u32 %v1115, 16
    %v1293 = vshll.u32 %v1115, 16
    %v1295 = vrot.slane %v1293, 1
    %v1296 = vor.u32 %v1291, %v1295
    %v1298 = vshll.u32 %v1163, 16
    %v1300 = vrot.slane %v1298, 1
    %v1301 = vsel %vm1169, %v1296, %v1300
    %v1303 = vshrl.u32 %v1116, 16
    %v1305 = vshll.u32 %v1116, 16
    %v1307 = vrot.slane %v1305, 1
    %v1308 = vor.u32 %v1303, %v1307
    %v1310 = vshll.u32 %v1164, 16
    %v1312 = vrot.slane %v1310, 1
    %v1313 = vsel %vm1169, %v1308, %v1312
    %v1315 = vshrl.u32 %v1117, 16
    %v1317 = vshll.u32 %v1117, 16
    %v1319 = vrot.slane %v1317, 1
    %v1320 = vor.u32 %v1315, %v1319
    %v1322 = vshll.u32 %v1165, 16
    %v1324 = vrot.slane %v1322, 1
    %v1325 = vsel %vm1169, %v1320, %v1324
    %v1327 = vshrl.u32 %v1118, 16
    %v1329 = vshll.u32 %v1118, 16
    %v1331 = vrot.slane %v1329, 1
    %v1332 = vor.u32 %v1327, %v1331
    %v1334 = vshll.u32 %v1166, 16
    %v1336 = vrot.slane %v1334, 1
    %v1337 = vsel %vm1169, %v1332, %v1336
    %v1339 = vshrl.u32 %v1119, 16
    %v1341 = vshll.u32 %v1119, 16
    %v1343 = vrot.slane %v1341, 1
    %v1344 = vor.u32 %v1339, %v1343
    %v1346 = vshll.u32 %v1167, 16
    %v1348 = vrot.slane %v1346, 1
    %v1349 = vsel %vm1169, %v1344, %v1348
    %v1351 = vshrl.u32 %v1120, 16
    %v1353 = vshll.u32 %v1120, 16
    %v1355 = vrot.slane %v1353, 1
    %v1356 = vor.u32 %v1351, %v1355
    %v1358 = vshll.u32 %v1168, 16
    %v1360 = vrot.slane %v1358, 1
    %v1361 = vsel %vm1169, %v1356, %v1360
    %1362 = vrot.lane.b32.xlu0 %v1181, 32
    %v1363 = vpop.permute.xlu0 %1362
    %1364 = vrot.lane.b32.xlu0 %v1193, 32
    %v1365 = vpop.permute.xlu0 %1364
    %1366 = vrot.lane.b32.xlu0 %v1205, 32
    %v1367 = vpop.permute.xlu0 %1366
    %1368 = vrot.lane.b32.xlu0 %v1217, 32
    %v1369 = vpop.permute.xlu0 %1368
    %1370 = vrot.lane.b32.xlu0 %v1229, 32
    %v1371 = vpop.permute.xlu0 %1370
    %1372 = vrot.lane.b32.xlu0 %v1241, 32
    %v1373 = vpop.permute.xlu0 %1372
    %1374 = vrot.lane.b32.xlu0 %v1253, 32
    %v1375 = vpop.permute.xlu0 %1374
    %1376 = vrot.lane.b32.xlu0 %v1265, 32
    %v1377 = vpop.permute.xlu0 %1376
    %1378 = vrot.lane.b32.xlu0 %v1277, 32
    %v1379 = vpop.permute.xlu0 %1378
    %1380 = vrot.lane.b32.xlu0 %v1289, 32
    %v1381 = vpop.permute.xlu0 %1380
    %1382 = vrot.lane.b32.xlu0 %v1301, 32
    %v1383 = vpop.permute.xlu0 %1382
    %1384 = vrot.lane.b32.xlu0 %v1313, 32
    %v1385 = vpop.permute.xlu0 %1384
    %1386 = vrot.lane.b32.xlu0 %v1325, 32
    %v1387 = vpop.permute.xlu0 %1386
    %1388 = vrot.lane.b32.xlu0 %v1337, 32
    %v1389 = vpop.permute.xlu0 %1388
    %1390 = vrot.lane.b32.xlu0 %v1349, 32
    %v1391 = vpop.permute.xlu0 %1390
    %1392 = vrot.lane.b32.xlu0 %v1361, 32
    %v1393 = vpop.permute.xlu0 %1392
    %v1410 = vunpack.c.l.b16 %v896
    %v1411 = vunpack.c.l.b16 %v897
    %v1412 = vunpack.c.l.b16 %v898
    %v1413 = vunpack.c.l.b16 %v899
    %v1414 = vunpack.c.l.b16 %v900
    %v1415 = vunpack.c.l.b16 %v901
    %v1416 = vunpack.c.l.b16 %v902
    %v1417 = vunpack.c.l.b16 %v903
    %v1418 = vunpack.c.l.b16 %v904
    %v1419 = vunpack.c.l.b16 %v905
    %v1420 = vunpack.c.l.b16 %v906
    %v1421 = vunpack.c.l.b16 %v907
    %v1422 = vunpack.c.l.b16 %v908
    %v1423 = vunpack.c.l.b16 %v909
    %v1424 = vunpack.c.l.b16 %v910
    %v1425 = vunpack.c.l.b16 %v911
    %v1426 = vpack.c.b16 %v1074, %v1410
    %v1427 = vpack.c.b16 %v1076, %v1411
    %v1428 = vpack.c.b16 %v1078, %v1412
    %v1429 = vpack.c.b16 %v1080, %v1413
    %v1430 = vpack.c.b16 %v1082, %v1414
    %v1431 = vpack.c.b16 %v1084, %v1415
    %v1432 = vpack.c.b16 %v1086, %v1416
    %v1433 = vpack.c.b16 %v1088, %v1417
    %v1434 = vpack.c.b16 %v1090, %v1418
    %v1435 = vpack.c.b16 %v1092, %v1419
    %v1436 = vpack.c.b16 %v1094, %v1420
    %v1437 = vpack.c.b16 %v1096, %v1421
    %v1438 = vpack.c.b16 %v1098, %v1422
    %v1439 = vpack.c.b16 %v1100, %v1423
    %v1440 = vpack.c.b16 %v1102, %v1424
    %v1441 = vpack.c.b16 %v1104, %v1425
    %vm1442 = vcmask 1046528
    %v1443 = vrot.slane %v1426, 1
    %v1444 = vrot.slane %v1153, 1
    %v1445 = vsel %vm1442, %v1443, %v1444
    %v1446 = vrot.slane %v1427, 1
    %v1447 = vrot.slane %v1154, 1
    %v1448 = vsel %vm1442, %v1446, %v1447
    %v1449 = vrot.slane %v1428, 1
    %v1450 = vrot.slane %v1155, 1
    %v1451 = vsel %vm1442, %v1449, %v1450
    %v1452 = vrot.slane %v1429, 1
    %v1453 = vrot.slane %v1156, 1
    %v1454 = vsel %vm1442, %v1452, %v1453
    %v1455 = vrot.slane %v1430, 1
    %v1456 = vrot.slane %v1157, 1
    %v1457 = vsel %vm1442, %v1455, %v1456
    %v1458 = vrot.slane %v1431, 1
    %v1459 = vrot.slane %v1158, 1
    %v1460 = vsel %vm1442, %v1458, %v1459
    %v1461 = vrot.slane %v1432, 1
    %v1462 = vrot.slane %v1159, 1
    %v1463 = vsel %vm1442, %v1461, %v1462
    %v1464 = vrot.slane %v1433, 1
    %v1465 = vrot.slane %v1160, 1
    %v1466 = vsel %vm1442, %v1464, %v1465
    %v1467 = vrot.slane %v1434, 1
    %v1468 = vrot.slane %v1161, 1
    %v1469 = vsel %vm1442, %v1467, %v1468
    %v1470 = vrot.slane %v1435, 1
    %v1471 = vrot.slane %v1162, 1
    %v1472 = vsel %vm1442, %v1470, %v1471
    %v1473 = vrot.slane %v1436, 1
    %v1474 = vrot.slane %v1163, 1
    %v1475 = vsel %vm1442, %v1473, %v1474
    %v1476 = vrot.slane %v1437, 1
    %v1477 = vrot.slane %v1164, 1
    %v1478 = vsel %vm1442, %v1476, %v1477
    %v1479 = vrot.slane %v1438, 1
    %v1480 = vrot.slane %v1165, 1
    %v1481 = vsel %vm1442, %v1479, %v1480
    %v1482 = vrot.slane %v1439, 1
    %v1483 = vrot.slane %v1166, 1
    %v1484 = vsel %vm1442, %v1482, %v1483
    %v1485 = vrot.slane %v1440, 1
    %v1486 = vrot.slane %v1167, 1
    %v1487 = vsel %vm1442, %v1485, %v1486
    %v1488 = vrot.slane %v1441, 1
    %v1489 = vrot.slane %v1168, 1
    %v1490 = vsel %vm1442, %v1488, %v1489
    %1491 = vrot.lane.b32.xlu0 %v1445, 64
    %v1492 = vpop.permute.xlu0 %1491
    %1493 = vrot.lane.b32.xlu0 %v1448, 64
    %v1494 = vpop.permute.xlu0 %1493
    %1495 = vrot.lane.b32.xlu0 %v1451, 64
    %v1496 = vpop.permute.xlu0 %1495
    %1497 = vrot.lane.b32.xlu0 %v1454, 64
    %v1498 = vpop.permute.xlu0 %1497
    %1499 = vrot.lane.b32.xlu0 %v1457, 64
    %v1500 = vpop.permute.xlu0 %1499
    %1501 = vrot.lane.b32.xlu0 %v1460, 64
    %v1502 = vpop.permute.xlu0 %1501
    %1503 = vrot.lane.b32.xlu0 %v1463, 64
    %v1504 = vpop.permute.xlu0 %1503
    %1505 = vrot.lane.b32.xlu0 %v1466, 64
    %v1506 = vpop.permute.xlu0 %1505
    %1507 = vrot.lane.b32.xlu0 %v1469, 64
    %v1508 = vpop.permute.xlu0 %1507
    %1509 = vrot.lane.b32.xlu0 %v1472, 64
    %v1510 = vpop.permute.xlu0 %1509
    %1511 = vrot.lane.b32.xlu0 %v1475, 64
    %v1512 = vpop.permute.xlu0 %1511
    %1513 = vrot.lane.b32.xlu0 %v1478, 64
    %v1514 = vpop.permute.xlu0 %1513
    %1515 = vrot.lane.b32.xlu0 %v1481, 64
    %v1516 = vpop.permute.xlu0 %1515
    %1517 = vrot.lane.b32.xlu0 %v1484, 64
    %v1518 = vpop.permute.xlu0 %1517
    %1519 = vrot.lane.b32.xlu0 %v1487, 64
    %v1520 = vpop.permute.xlu0 %1519
    %1521 = vrot.lane.b32.xlu0 %v1490, 64
    %v1522 = vpop.permute.xlu0 %1521
    %v1555 = vunpack.c.l.b16 %v912
    %v1556 = vunpack.c.l.b16 %v913
    %v1557 = vunpack.c.l.b16 %v914
    %v1558 = vunpack.c.l.b16 %v915
    %v1559 = vunpack.c.l.b16 %v916
    %v1560 = vunpack.c.l.b16 %v917
    %v1561 = vunpack.c.l.b16 %v918
    %v1562 = vunpack.c.l.b16 %v919
    %v1563 = vunpack.c.l.b16 %v920
    %v1564 = vunpack.c.l.b16 %v921
    %v1565 = vunpack.c.l.b16 %v922
    %v1566 = vunpack.c.l.b16 %v923
    %v1567 = vunpack.c.l.b16 %v924
    %v1568 = vunpack.c.l.b16 %v925
    %v1569 = vunpack.c.l.b16 %v926
    %v1570 = vunpack.c.l.b16 %v927
    %v1571 = vunpack.c.l.b16 %v928
    %v1572 = vunpack.c.l.b16 %v929
    %v1573 = vunpack.c.l.b16 %v930
    %v1574 = vunpack.c.l.b16 %v931
    %v1575 = vunpack.c.l.b16 %v932
    %v1576 = vunpack.c.l.b16 %v933
    %v1577 = vunpack.c.l.b16 %v934
    %v1578 = vunpack.c.l.b16 %v935
    %v1579 = vunpack.c.l.b16 %v936
    %v1580 = vunpack.c.l.b16 %v937
    %v1581 = vunpack.c.l.b16 %v938
    %v1582 = vunpack.c.l.b16 %v939
    %v1583 = vunpack.c.l.b16 %v940
    %v1584 = vunpack.c.l.b16 %v941
    %v1585 = vunpack.c.l.b16 %v942
    %v1586 = vunpack.c.l.b16 %v943
    %v1587 = vpack.c.b16 %v1556, %v1555
    %v1588 = vpack.c.b16 %v1558, %v1557
    %v1589 = vpack.c.b16 %v1560, %v1559
    %v1590 = vpack.c.b16 %v1562, %v1561
    %v1591 = vpack.c.b16 %v1564, %v1563
    %v1592 = vpack.c.b16 %v1566, %v1565
    %v1593 = vpack.c.b16 %v1568, %v1567
    %v1594 = vpack.c.b16 %v1570, %v1569
    %v1595 = vpack.c.b16 %v1572, %v1571
    %v1596 = vpack.c.b16 %v1574, %v1573
    %v1597 = vpack.c.b16 %v1576, %v1575
    %v1598 = vpack.c.b16 %v1578, %v1577
    %v1599 = vpack.c.b16 %v1580, %v1579
    %v1600 = vpack.c.b16 %v1582, %v1581
    %v1601 = vpack.c.b16 %v1584, %v1583
    %v1602 = vpack.c.b16 %v1586, %v1585
    %1603 = vrot.lane.b32.xlu0 %v1587, 96
    %v1604 = vpop.permute.xlu0 %1603
    %1605 = vrot.lane.b32.xlu0 %v1588, 96
    %v1606 = vpop.permute.xlu0 %1605
    %1607 = vrot.lane.b32.xlu0 %v1589, 96
    %v1608 = vpop.permute.xlu0 %1607
    %1609 = vrot.lane.b32.xlu0 %v1590, 96
    %v1610 = vpop.permute.xlu0 %1609
    %1611 = vrot.lane.b32.xlu0 %v1591, 96
    %v1612 = vpop.permute.xlu0 %1611
    %1613 = vrot.lane.b32.xlu0 %v1592, 96
    %v1614 = vpop.permute.xlu0 %1613
    %1615 = vrot.lane.b32.xlu0 %v1593, 96
    %v1616 = vpop.permute.xlu0 %1615
    %1617 = vrot.lane.b32.xlu0 %v1594, 96
    %v1618 = vpop.permute.xlu0 %1617
    %1619 = vrot.lane.b32.xlu0 %v1595, 96
    %v1620 = vpop.permute.xlu0 %1619
    %1621 = vrot.lane.b32.xlu0 %v1596, 96
    %v1622 = vpop.permute.xlu0 %1621
    %1623 = vrot.lane.b32.xlu0 %v1597, 96
    %v1624 = vpop.permute.xlu0 %1623
    %1625 = vrot.lane.b32.xlu0 %v1598, 96
    %v1626 = vpop.permute.xlu0 %1625
    %1627 = vrot.lane.b32.xlu0 %v1599, 96
    %v1628 = vpop.permute.xlu0 %1627
    %1629 = vrot.lane.b32.xlu0 %v1600, 96
    %v1630 = vpop.permute.xlu0 %1629
    %1631 = vrot.lane.b32.xlu0 %v1601, 96
    %v1632 = vpop.permute.xlu0 %1631
    %1633 = vrot.lane.b32.xlu0 %v1602, 96
    %v1634 = vpop.permute.xlu0 %1633
    %v1651 = vunpack.c.l.b16 %v944
    %v1652 = vunpack.c.l.b16 %v945
    %v1653 = vunpack.c.l.b16 %v946
    %v1654 = vunpack.c.l.b16 %v947
    %v1655 = vunpack.c.l.b16 %v948
    %v1656 = vunpack.c.l.b16 %v949
    %v1657 = vunpack.c.l.b16 %v950
    %v1658 = vunpack.c.l.b16 %v951
    %v1659 = vunpack.c.l.b16 %v952
    %v1660 = vunpack.c.l.b16 %v953
    %v1661 = vunpack.c.l.b16 %v954
    %v1662 = vunpack.c.l.b16 %v955
    %v1663 = vunpack.c.l.b16 %v956
    %v1664 = vunpack.c.l.b16 %v957
    %v1665 = vunpack.c.l.b16 %v958
    %v1666 = vunpack.c.l.b16 %v959
    %v1667 = vpack.c.b16 %v1651, %v1651
    %v1668 = vpack.c.b16 %v1652, %v1652
    %v1669 = vpack.c.b16 %v1653, %v1653
    %v1670 = vpack.c.b16 %v1654, %v1654
    %v1671 = vpack.c.b16 %v1655, %v1655
    %v1672 = vpack.c.b16 %v1656, %v1656
    %v1673 = vpack.c.b16 %v1657, %v1657
    %v1674 = vpack.c.b16 %v1658, %v1658
    %v1675 = vpack.c.b16 %v1659, %v1659
    %v1676 = vpack.c.b16 %v1660, %v1660
    %v1677 = vpack.c.b16 %v1661, %v1661
    %v1678 = vpack.c.b16 %v1662, %v1662
    %v1679 = vpack.c.b16 %v1663, %v1663
    %v1680 = vpack.c.b16 %v1664, %v1664
    %v1681 = vpack.c.b16 %v1665, %v1665
    %v1682 = vpack.c.b16 %v1666, %v1666
    %v1684 = vshrl.u32 %v1587, 16
    %v1686 = vshll.u32 %v1587, 16
    %v1688 = vrot.slane %v1686, 1
    %v1689 = vor.u32 %v1684, %v1688
    %v1691 = vshll.u32 %v1667, 16
    %v1693 = vrot.slane %v1691, 1
    %v1694 = vsel %vm1169, %v1689, %v1693
    %v1696 = vshrl.u32 %v1588, 16
    %v1698 = vshll.u32 %v1588, 16
    %v1700 = vrot.slane %v1698, 1
    %v1701 = vor.u32 %v1696, %v1700
    %v1703 = vshll.u32 %v1668, 16
    %v1705 = vrot.slane %v1703, 1
    %v1706 = vsel %vm1169, %v1701, %v1705
    %v1708 = vshrl.u32 %v1589, 16
    %v1710 = vshll.u32 %v1589, 16
    %v1712 = vrot.slane %v1710, 1
    %v1713 = vor.u32 %v1708, %v1712
    %v1715 = vshll.u32 %v1669, 16
    %v1717 = vrot.slane %v1715, 1
    %v1718 = vsel %vm1169, %v1713, %v1717
    %v1720 = vshrl.u32 %v1590, 16
    %v1722 = vshll.u32 %v1590, 16
    %v1724 = vrot.slane %v1722, 1
    %v1725 = vor.u32 %v1720, %v1724
    %v1727 = vshll.u32 %v1670, 16
    %v1729 = vrot.slane %v1727, 1
    %v1730 = vsel %vm1169, %v1725, %v1729
    %v1732 = vshrl.u32 %v1591, 16
    %v1734 = vshll.u32 %v1591, 16
    %v1736 = vrot.slane %v1734, 1
    %v1737 = vor.u32 %v1732, %v1736
    %v1739 = vshll.u32 %v1671, 16
    %v1741 = vrot.slane %v1739, 1
    %v1742 = vsel %vm1169, %v1737, %v1741
    %v1744 = vshrl.u32 %v1592, 16
    %v1746 = vshll.u32 %v1592, 16
    %v1748 = vrot.slane %v1746, 1
    %v1749 = vor.u32 %v1744, %v1748
    %v1751 = vshll.u32 %v1672, 16
    %v1753 = vrot.slane %v1751, 1
    %v1754 = vsel %vm1169, %v1749, %v1753
    %v1756 = vshrl.u32 %v1593, 16
    %v1758 = vshll.u32 %v1593, 16
    %v1760 = vrot.slane %v1758, 1
    %v1761 = vor.u32 %v1756, %v1760
    %v1763 = vshll.u32 %v1673, 16
    %v1765 = vrot.slane %v1763, 1
    %v1766 = vsel %vm1169, %v1761, %v1765
    %v1768 = vshrl.u32 %v1594, 16
    %v1770 = vshll.u32 %v1594, 16
    %v1772 = vrot.slane %v1770, 1
    %v1773 = vor.u32 %v1768, %v1772
    %v1775 = vshll.u32 %v1674, 16
    %v1777 = vrot.slane %v1775, 1
    %v1778 = vsel %vm1169, %v1773, %v1777
    %v1780 = vshrl.u32 %v1595, 16
    %v1782 = vshll.u32 %v1595, 16
    %v1784 = vrot.slane %v1782, 1
    %v1785 = vor.u32 %v1780, %v1784
    %v1787 = vshll.u32 %v1675, 16
    %v1789 = vrot.slane %v1787, 1
    %v1790 = vsel %vm1169, %v1785, %v1789
    %v1792 = vshrl.u32 %v1596, 16
    %v1794 = vshll.u32 %v1596, 16
    %v1796 = vrot.slane %v1794, 1
    %v1797 = vor.u32 %v1792, %v1796
    %v1799 = vshll.u32 %v1676, 16
    %v1801 = vrot.slane %v1799, 1
    %v1802 = vsel %vm1169, %v1797, %v1801
    %v1804 = vshrl.u32 %v1597, 16
    %v1806 = vshll.u32 %v1597, 16
    %v1808 = vrot.slane %v1806, 1
    %v1809 = vor.u32 %v1804, %v1808
    %v1811 = vshll.u32 %v1677, 16
    %v1813 = vrot.slane %v1811, 1
    %v1814 = vsel %vm1169, %v1809, %v1813
    %v1816 = vshrl.u32 %v1598, 16
    %v1818 = vshll.u32 %v1598, 16
    %v1820 = vrot.slane %v1818, 1
    %v1821 = vor.u32 %v1816, %v1820
    %v1823 = vshll.u32 %v1678, 16
    %v1825 = vrot.slane %v1823, 1
    %v1826 = vsel %vm1169, %v1821, %v1825
    %v1828 = vshrl.u32 %v1599, 16
    %v1830 = vshll.u32 %v1599, 16
    %v1832 = vrot.slane %v1830, 1
    %v1833 = vor.u32 %v1828, %v1832
    %v1835 = vshll.u32 %v1679, 16
    %v1837 = vrot.slane %v1835, 1
    %v1838 = vsel %vm1169, %v1833, %v1837
    %v1840 = vshrl.u32 %v1600, 16
    %v1842 = vshll.u32 %v1600, 16
    %v1844 = vrot.slane %v1842, 1
    %v1845 = vor.u32 %v1840, %v1844
    %v1847 = vshll.u32 %v1680, 16
    %v1849 = vrot.slane %v1847, 1
    %v1850 = vsel %vm1169, %v1845, %v1849
    %v1852 = vshrl.u32 %v1601, 16
    %v1854 = vshll.u32 %v1601, 16
    %v1856 = vrot.slane %v1854, 1
    %v1857 = vor.u32 %v1852, %v1856
    %v1859 = vshll.u32 %v1681, 16
    %v1861 = vrot.slane %v1859, 1
    %v1862 = vsel %vm1169, %v1857, %v1861
    %v1864 = vshrl.u32 %v1602, 16
    %v1866 = vshll.u32 %v1602, 16
    %v1868 = vrot.slane %v1866, 1
    %v1869 = vor.u32 %v1864, %v1868
    %v1871 = vshll.u32 %v1682, 16
    %v1873 = vrot.slane %v1871, 1
    %v1874 = vsel %vm1169, %v1869, %v1873
    %v1891 = vunpack.c.l.b16 %v960
    %v1892 = vunpack.c.l.b16 %v961
    %v1893 = vunpack.c.l.b16 %v962
    %v1894 = vunpack.c.l.b16 %v963
    %v1895 = vunpack.c.l.b16 %v964
    %v1896 = vunpack.c.l.b16 %v965
    %v1897 = vunpack.c.l.b16 %v966
    %v1898 = vunpack.c.l.b16 %v967
    %v1899 = vunpack.c.l.b16 %v968
    %v1900 = vunpack.c.l.b16 %v969
    %v1901 = vunpack.c.l.b16 %v970
    %v1902 = vunpack.c.l.b16 %v971
    %v1903 = vunpack.c.l.b16 %v972
    %v1904 = vunpack.c.l.b16 %v973
    %v1905 = vunpack.c.l.b16 %v974
    %v1906 = vunpack.c.l.b16 %v975
    %v1907 = vpack.c.b16 %v1556, %v1891
    %v1908 = vpack.c.b16 %v1558, %v1892
    %v1909 = vpack.c.b16 %v1560, %v1893
    %v1910 = vpack.c.b16 %v1562, %v1894
    %v1911 = vpack.c.b16 %v1564, %v1895
    %v1912 = vpack.c.b16 %v1566, %v1896
    %v1913 = vpack.c.b16 %v1568, %v1897
    %v1914 = vpack.c.b16 %v1570, %v1898
    %v1915 = vpack.c.b16 %v1572, %v1899
    %v1916 = vpack.c.b16 %v1574, %v1900
    %v1917 = vpack.c.b16 %v1576, %v1901
    %v1918 = vpack.c.b16 %v1578, %v1902
    %v1919 = vpack.c.b16 %v1580, %v1903
    %v1920 = vpack.c.b16 %v1582, %v1904
    %v1921 = vpack.c.b16 %v1584, %v1905
    %v1922 = vpack.c.b16 %v1586, %v1906
    %v1923 = vrot.slane %v1907, 1
    %v1924 = vrot.slane %v1667, 1
    %v1925 = vsel %vm1442, %v1923, %v1924
    %v1926 = vrot.slane %v1908, 1
    %v1927 = vrot.slane %v1668, 1
    %v1928 = vsel %vm1442, %v1926, %v1927
    %v1929 = vrot.slane %v1909, 1
    %v1930 = vrot.slane %v1669, 1
    %v1931 = vsel %vm1442, %v1929, %v1930
    %v1932 = vrot.slane %v1910, 1
    %v1933 = vrot.slane %v1670, 1
    %v1934 = vsel %vm1442, %v1932, %v1933
    %v1935 = vrot.slane %v1911, 1
    %v1936 = vrot.slane %v1671, 1
    %v1937 = vsel %vm1442, %v1935, %v1936
    %v1938 = vrot.slane %v1912, 1
    %v1939 = vrot.slane %v1672, 1
    %v1940 = vsel %vm1442, %v1938, %v1939
    %v1941 = vrot.slane %v1913, 1
    %v1942 = vrot.slane %v1673, 1
    %v1943 = vsel %vm1442, %v1941, %v1942
    %v1944 = vrot.slane %v1914, 1
    %v1945 = vrot.slane %v1674, 1
    %v1946 = vsel %vm1442, %v1944, %v1945
    %v1947 = vrot.slane %v1915, 1
    %v1948 = vrot.slane %v1675, 1
    %v1949 = vsel %vm1442, %v1947, %v1948
    %v1950 = vrot.slane %v1916, 1
    %v1951 = vrot.slane %v1676, 1
    %v1952 = vsel %vm1442, %v1950, %v1951
    %v1953 = vrot.slane %v1917, 1
    %v1954 = vrot.slane %v1677, 1
    %v1955 = vsel %vm1442, %v1953, %v1954
    %v1956 = vrot.slane %v1918, 1
    %v1957 = vrot.slane %v1678, 1
    %v1958 = vsel %vm1442, %v1956, %v1957
    %v1959 = vrot.slane %v1919, 1
    %v1960 = vrot.slane %v1679, 1
    %v1961 = vsel %vm1442, %v1959, %v1960
    %v1962 = vrot.slane %v1920, 1
    %v1963 = vrot.slane %v1680, 1
    %v1964 = vsel %vm1442, %v1962, %v1963
    %v1965 = vrot.slane %v1921, 1
    %v1966 = vrot.slane %v1681, 1
    %v1967 = vsel %vm1442, %v1965, %v1966
    %v1968 = vrot.slane %v1922, 1
    %v1969 = vrot.slane %v1682, 1
    %v1970 = vsel %vm1442, %v1968, %v1969
    %1971 = vrot.lane.b32.xlu0 %v1925, 32
    %v1972 = vpop.permute.xlu0 %1971
    %1973 = vrot.lane.b32.xlu0 %v1928, 32
    %v1974 = vpop.permute.xlu0 %1973
    %1975 = vrot.lane.b32.xlu0 %v1931, 32
    %v1976 = vpop.permute.xlu0 %1975
    %1977 = vrot.lane.b32.xlu0 %v1934, 32
    %v1978 = vpop.permute.xlu0 %1977
    %1979 = vrot.lane.b32.xlu0 %v1937, 32
    %v1980 = vpop.permute.xlu0 %1979
    %1981 = vrot.lane.b32.xlu0 %v1940, 32
    %v1982 = vpop.permute.xlu0 %1981
    %1983 = vrot.lane.b32.xlu0 %v1943, 32
    %v1984 = vpop.permute.xlu0 %1983
    %1985 = vrot.lane.b32.xlu0 %v1946, 32
    %v1986 = vpop.permute.xlu0 %1985
    %1987 = vrot.lane.b32.xlu0 %v1949, 32
    %v1988 = vpop.permute.xlu0 %1987
    %1989 = vrot.lane.b32.xlu0 %v1952, 32
    %v1990 = vpop.permute.xlu0 %1989
    %1991 = vrot.lane.b32.xlu0 %v1955, 32
    %v1992 = vpop.permute.xlu0 %1991
    %1993 = vrot.lane.b32.xlu0 %v1958, 32
    %v1994 = vpop.permute.xlu0 %1993
    %1995 = vrot.lane.b32.xlu0 %v1961, 32
    %v1996 = vpop.permute.xlu0 %1995
    %1997 = vrot.lane.b32.xlu0 %v1964, 32
    %v1998 = vpop.permute.xlu0 %1997
    %1999 = vrot.lane.b32.xlu0 %v1967, 32
    %v2000 = vpop.permute.xlu0 %1999
    %2001 = vrot.lane.b32.xlu0 %v1970, 32
    %v2002 = vpop.permute.xlu0 %2001
    %v2035 = vunpack.c.l.b16 %v977
    %v2036 = vunpack.c.l.b16 %v978
    %v2037 = vunpack.c.l.b16 %v979
    %v2038 = vunpack.c.l.b16 %v980
    %v2039 = vunpack.c.l.b16 %v981
    %v2040 = vunpack.c.l.b16 %v982
    %v2041 = vunpack.c.l.b16 %v983
    %v2042 = vunpack.c.l.b16 %v984
    %v2043 = vunpack.c.l.b16 %v985
    %v2044 = vunpack.c.l.b16 %v986
    %v2045 = vunpack.c.l.b16 %v987
    %v2046 = vunpack.c.l.b16 %v988
    %v2047 = vunpack.c.l.b16 %v989
    %v2048 = vunpack.c.l.b16 %v990
    %v2049 = vunpack.c.l.b16 %v991
    %v2050 = vunpack.c.l.b16 %v992
    %v2051 = vunpack.c.l.b16 %v993
    %v2052 = vunpack.c.l.b16 %v994
    %v2053 = vunpack.c.l.b16 %v995
    %v2054 = vunpack.c.l.b16 %v996
    %v2055 = vunpack.c.l.b16 %v997
    %v2056 = vunpack.c.l.b16 %v998
    %v2057 = vunpack.c.l.b16 %v999
    %v2058 = vunpack.c.l.b16 %v1000
    %v2059 = vunpack.c.l.b16 %v1001
    %v2060 = vunpack.c.l.b16 %v1002
    %v2061 = vunpack.c.l.b16 %v1003
    %v2062 = vunpack.c.l.b16 %v1004
    %v2063 = vunpack.c.l.b16 %v1005
    %v2064 = vunpack.c.l.b16 %v1006
    %v2065 = vunpack.c.l.b16 %v1007
    %v2066 = vunpack.c.l.b16 %v1008
    %v2067 = vpack.c.b16 %v2036, %v2035
    %v2068 = vpack.c.b16 %v2038, %v2037
    %v2069 = vpack.c.b16 %v2040, %v2039
    %v2070 = vpack.c.b16 %v2042, %v2041
    %v2071 = vpack.c.b16 %v2044, %v2043
    %v2072 = vpack.c.b16 %v2046, %v2045
    %v2073 = vpack.c.b16 %v2048, %v2047
    %v2074 = vpack.c.b16 %v2050, %v2049
    %v2075 = vpack.c.b16 %v2052, %v2051
    %v2076 = vpack.c.b16 %v2054, %v2053
    %v2077 = vpack.c.b16 %v2056, %v2055
    %v2078 = vpack.c.b16 %v2058, %v2057
    %v2079 = vpack.c.b16 %v2060, %v2059
    %v2080 = vpack.c.b16 %v2062, %v2061
    %v2081 = vpack.c.b16 %v2064, %v2063
    %v2082 = vpack.c.b16 %v2066, %v2065
    %2083 = vrot.lane.b32.xlu0 %v2067, 64
    %v2084 = vpop.permute.xlu0 %2083
    %2085 = vrot.lane.b32.xlu0 %v2068, 64
    %v2086 = vpop.permute.xlu0 %2085
    %2087 = vrot.lane.b32.xlu0 %v2069, 64
    %v2088 = vpop.permute.xlu0 %2087
    %2089 = vrot.lane.b32.xlu0 %v2070, 64
    %v2090 = vpop.permute.xlu0 %2089
    %2091 = vrot.lane.b32.xlu0 %v2071, 64
    %v2092 = vpop.permute.xlu0 %2091
    %2093 = vrot.lane.b32.xlu0 %v2072, 64
    %v2094 = vpop.permute.xlu0 %2093
    %2095 = vrot.lane.b32.xlu0 %v2073, 64
    %v2096 = vpop.permute.xlu0 %2095
    %2097 = vrot.lane.b32.xlu0 %v2074, 64
    %v2098 = vpop.permute.xlu0 %2097
    %2099 = vrot.lane.b32.xlu0 %v2075, 64
    %v2100 = vpop.permute.xlu0 %2099
    %2101 = vrot.lane.b32.xlu0 %v2076, 64
    %v2102 = vpop.permute.xlu0 %2101
    %2103 = vrot.lane.b32.xlu0 %v2077, 64
    %v2104 = vpop.permute.xlu0 %2103
    %2105 = vrot.lane.b32.xlu0 %v2078, 64
    %v2106 = vpop.permute.xlu0 %2105
    %2107 = vrot.lane.b32.xlu0 %v2079, 64
    %v2108 = vpop.permute.xlu0 %2107
    %2109 = vrot.lane.b32.xlu0 %v2080, 64
    %v2110 = vpop.permute.xlu0 %2109
    %2111 = vrot.lane.b32.xlu0 %v2081, 64
    %v2112 = vpop.permute.xlu0 %2111
    %2113 = vrot.lane.b32.xlu0 %v2082, 64
    %v2114 = vpop.permute.xlu0 %2113
    %v2131 = vunpack.c.l.b16 %v1009
    %v2132 = vunpack.c.l.b16 %v1010
    %v2133 = vunpack.c.l.b16 %v1011
    %v2134 = vunpack.c.l.b16 %v1012
    %v2135 = vunpack.c.l.b16 %v1013
    %v2136 = vunpack.c.l.b16 %v1014
    %v2137 = vunpack.c.l.b16 %v1015
    %v2138 = vunpack.c.l.b16 %v1016
    %v2139 = vunpack.c.l.b16 %v1017
    %v2140 = vunpack.c.l.b16 %v1018
    %v2141 = vunpack.c.l.b16 %v1019
    %v2142 = vunpack.c.l.b16 %v1020
    %v2143 = vunpack.c.l.b16 %v1021
    %v2144 = vunpack.c.l.b16 %v1022
    %v2145 = vunpack.c.l.b16 %v1023
    %v2146 = vunpack.c.l.b16 %v1024
    %v2147 = vpack.c.b16 %v2131, %v2131
    %v2148 = vpack.c.b16 %v2132, %v2132
    %v2149 = vpack.c.b16 %v2133, %v2133
    %v2150 = vpack.c.b16 %v2134, %v2134
    %v2151 = vpack.c.b16 %v2135, %v2135
    %v2152 = vpack.c.b16 %v2136, %v2136
    %v2153 = vpack.c.b16 %v2137, %v2137
    %v2154 = vpack.c.b16 %v2138, %v2138
    %v2155 = vpack.c.b16 %v2139, %v2139
    %v2156 = vpack.c.b16 %v2140, %v2140
    %v2157 = vpack.c.b16 %v2141, %v2141
    %v2158 = vpack.c.b16 %v2142, %v2142
    %v2159 = vpack.c.b16 %v2143, %v2143
    %v2160 = vpack.c.b16 %v2144, %v2144
    %v2161 = vpack.c.b16 %v2145, %v2145
    %v2162 = vpack.c.b16 %v2146, %v2146
    %v2164 = vshrl.u32 %v2067, 16
    %v2166 = vshll.u32 %v2067, 16
    %v2168 = vrot.slane %v2166, 1
    %v2169 = vor.u32 %v2164, %v2168
    %v2171 = vshll.u32 %v2147, 16
    %v2173 = vrot.slane %v2171, 1
    %v2174 = vsel %vm1169, %v2169, %v2173
    %v2176 = vshrl.u32 %v2068, 16
    %v2178 = vshll.u32 %v2068, 16
    %v2180 = vrot.slane %v2178, 1
    %v2181 = vor.u32 %v2176, %v2180
    %v2183 = vshll.u32 %v2148, 16
    %v2185 = vrot.slane %v2183, 1
    %v2186 = vsel %vm1169, %v2181, %v2185
    %v2188 = vshrl.u32 %v2069, 16
    %v2190 = vshll.u32 %v2069, 16
    %v2192 = vrot.slane %v2190, 1
    %v2193 = vor.u32 %v2188, %v2192
    %v2195 = vshll.u32 %v2149, 16
    %v2197 = vrot.slane %v2195, 1
    %v2198 = vsel %vm1169, %v2193, %v2197
    %v2200 = vshrl.u32 %v2070, 16
    %v2202 = vshll.u32 %v2070, 16
    %v2204 = vrot.slane %v2202, 1
    %v2205 = vor.u32 %v2200, %v2204
    %v2207 = vshll.u32 %v2150, 16
    %v2209 = vrot.slane %v2207, 1
    %v2210 = vsel %vm1169, %v2205, %v2209
    %v2212 = vshrl.u32 %v2071, 16
    %v2214 = vshll.u32 %v2071, 16
    %v2216 = vrot.slane %v2214, 1
    %v2217 = vor.u32 %v2212, %v2216
    %v2219 = vshll.u32 %v2151, 16
    %v2221 = vrot.slane %v2219, 1
    %v2222 = vsel %vm1169, %v2217, %v2221
    %v2224 = vshrl.u32 %v2072, 16
    %v2226 = vshll.u32 %v2072, 16
    %v2228 = vrot.slane %v2226, 1
    %v2229 = vor.u32 %v2224, %v2228
    %v2231 = vshll.u32 %v2152, 16
    %v2233 = vrot.slane %v2231, 1
    %v2234 = vsel %vm1169, %v2229, %v2233
    %v2236 = vshrl.u32 %v2073, 16
    %v2238 = vshll.u32 %v2073, 16
    %v2240 = vrot.slane %v2238, 1
    %v2241 = vor.u32 %v2236, %v2240
    %v2243 = vshll.u32 %v2153, 16
    %v2245 = vrot.slane %v2243, 1
    %v2246 = vsel %vm1169, %v2241, %v2245
    %v2248 = vshrl.u32 %v2074, 16
    %v2250 = vshll.u32 %v2074, 16
    %v2252 = vrot.slane %v2250, 1
    %v2253 = vor.u32 %v2248, %v2252
    %v2255 = vshll.u32 %v2154, 16
    %v2257 = vrot.slane %v2255, 1
    %v2258 = vsel %vm1169, %v2253, %v2257
    %v2260 = vshrl.u32 %v2075, 16
    %v2262 = vshll.u32 %v2075, 16
    %v2264 = vrot.slane %v2262, 1
    %v2265 = vor.u32 %v2260, %v2264
    %v2267 = vshll.u32 %v2155, 16
    %v2269 = vrot.slane %v2267, 1
    %v2270 = vsel %vm1169, %v2265, %v2269
    %v2272 = vshrl.u32 %v2076, 16
    %v2274 = vshll.u32 %v2076, 16
    %v2276 = vrot.slane %v2274, 1
    %v2277 = vor.u32 %v2272, %v2276
    %v2279 = vshll.u32 %v2156, 16
    %v2281 = vrot.slane %v2279, 1
    %v2282 = vsel %vm1169, %v2277, %v2281
    %v2284 = vshrl.u32 %v2077, 16
    %v2286 = vshll.u32 %v2077, 16
    %v2288 = vrot.slane %v2286, 1
    %v2289 = vor.u32 %v2284, %v2288
    %v2291 = vshll.u32 %v2157, 16
    %v2293 = vrot.slane %v2291, 1
    %v2294 = vsel %vm1169, %v2289, %v2293
    %v2296 = vshrl.u32 %v2078, 16
    %v2298 = vshll.u32 %v2078, 16
    %v2300 = vrot.slane %v2298, 1
    %v2301 = vor.u32 %v2296, %v2300
    %v2303 = vshll.u32 %v2158, 16
    %v2305 = vrot.slane %v2303, 1
    %v2306 = vsel %vm1169, %v2301, %v2305
    %v2308 = vshrl.u32 %v2079, 16
    %v2310 = vshll.u32 %v2079, 16
    %v2312 = vrot.slane %v2310, 1
    %v2313 = vor.u32 %v2308, %v2312
    %v2315 = vshll.u32 %v2159, 16
    %v2317 = vrot.slane %v2315, 1
    %v2318 = vsel %vm1169, %v2313, %v2317
    %v2320 = vshrl.u32 %v2080, 16
    %v2322 = vshll.u32 %v2080, 16
    %v2324 = vrot.slane %v2322, 1
    %v2325 = vor.u32 %v2320, %v2324
    %v2327 = vshll.u32 %v2160, 16
    %v2329 = vrot.slane %v2327, 1
    %v2330 = vsel %vm1169, %v2325, %v2329
    %v2332 = vshrl.u32 %v2081, 16
    %v2334 = vshll.u32 %v2081, 16
    %v2336 = vrot.slane %v2334, 1
    %v2337 = vor.u32 %v2332, %v2336
    %v2339 = vshll.u32 %v2161, 16
    %v2341 = vrot.slane %v2339, 1
    %v2342 = vsel %vm1169, %v2337, %v2341
    %v2344 = vshrl.u32 %v2082, 16
    %v2346 = vshll.u32 %v2082, 16
    %v2348 = vrot.slane %v2346, 1
    %v2349 = vor.u32 %v2344, %v2348
    %v2351 = vshll.u32 %v2162, 16
    %v2353 = vrot.slane %v2351, 1
    %v2354 = vsel %vm1169, %v2349, %v2353
    %2355 = vrot.lane.b32.xlu0 %v2174, 96
    %v2356 = vpop.permute.xlu0 %2355
    %2357 = vrot.lane.b32.xlu0 %v2186, 96
    %v2358 = vpop.permute.xlu0 %2357
    %2359 = vrot.lane.b32.xlu0 %v2198, 96
    %v2360 = vpop.permute.xlu0 %2359
    %2361 = vrot.lane.b32.xlu0 %v2210, 96
    %v2362 = vpop.permute.xlu0 %2361
    %2363 = vrot.lane.b32.xlu0 %v2222, 96
    %v2364 = vpop.permute.xlu0 %2363
    %2365 = vrot.lane.b32.xlu0 %v2234, 96
    %v2366 = vpop.permute.xlu0 %2365
    %2367 = vrot.lane.b32.xlu0 %v2246, 96
    %v2368 = vpop.permute.xlu0 %2367
    %2369 = vrot.lane.b32.xlu0 %v2258, 96
    %v2370 = vpop.permute.xlu0 %2369
    %2371 = vrot.lane.b32.xlu0 %v2270, 96
    %v2372 = vpop.permute.xlu0 %2371
    %2373 = vrot.lane.b32.xlu0 %v2282, 96
    %v2374 = vpop.permute.xlu0 %2373
    %2375 = vrot.lane.b32.xlu0 %v2294, 96
    %v2376 = vpop.permute.xlu0 %2375
    %2377 = vrot.lane.b32.xlu0 %v2306, 96
    %v2378 = vpop.permute.xlu0 %2377
    %2379 = vrot.lane.b32.xlu0 %v2318, 96
    %v2380 = vpop.permute.xlu0 %2379
    %2381 = vrot.lane.b32.xlu0 %v2330, 96
    %v2382 = vpop.permute.xlu0 %2381
    %2383 = vrot.lane.b32.xlu0 %v2342, 96
    %v2384 = vpop.permute.xlu0 %2383
    %2385 = vrot.lane.b32.xlu0 %v2354, 96
    %v2386 = vpop.permute.xlu0 %2385
    %v2403 = vunpack.c.l.b16 %v1025
    %v2404 = vunpack.c.l.b16 %v1026
    %v2405 = vunpack.c.l.b16 %v1027
    %v2406 = vunpack.c.l.b16 %v1028
    %v2407 = vunpack.c.l.b16 %v1029
    %v2408 = vunpack.c.l.b16 %v1030
    %v2409 = vunpack.c.l.b16 %v1031
    %v2410 = vunpack.c.l.b16 %v1032
    %v2411 = vunpack.c.l.b16 %v1033
    %v2412 = vunpack.c.l.b16 %v1034
    %v2413 = vunpack.c.l.b16 %v1035
    %v2414 = vunpack.c.l.b16 %v1036
    %v2415 = vunpack.c.l.b16 %v1037
    %v2416 = vunpack.c.l.b16 %v1038
    %v2417 = vunpack.c.l.b16 %v1039
    %v2418 = vunpack.c.l.b16 %v1040
    %v2419 = vpack.c.b16 %v2036, %v2403
    %v2420 = vpack.c.b16 %v2038, %v2404
    %v2421 = vpack.c.b16 %v2040, %v2405
    %v2422 = vpack.c.b16 %v2042, %v2406
    %v2423 = vpack.c.b16 %v2044, %v2407
    %v2424 = vpack.c.b16 %v2046, %v2408
    %v2425 = vpack.c.b16 %v2048, %v2409
    %v2426 = vpack.c.b16 %v2050, %v2410
    %v2427 = vpack.c.b16 %v2052, %v2411
    %v2428 = vpack.c.b16 %v2054, %v2412
    %v2429 = vpack.c.b16 %v2056, %v2413
    %v2430 = vpack.c.b16 %v2058, %v2414
    %v2431 = vpack.c.b16 %v2060, %v2415
    %v2432 = vpack.c.b16 %v2062, %v2416
    %v2433 = vpack.c.b16 %v2064, %v2417
    %v2434 = vpack.c.b16 %v2066, %v2418
    %v2435 = vrot.slane %v2419, 1
    %v2436 = vrot.slane %v2147, 1
    %v2437 = vsel %vm1442, %v2435, %v2436
    %v2438 = vrot.slane %v2420, 1
    %v2439 = vrot.slane %v2148, 1
    %v2440 = vsel %vm1442, %v2438, %v2439
    %v2441 = vrot.slane %v2421, 1
    %v2442 = vrot.slane %v2149, 1
    %v2443 = vsel %vm1442, %v2441, %v2442
    %v2444 = vrot.slane %v2422, 1
    %v2445 = vrot.slane %v2150, 1
    %v2446 = vsel %vm1442, %v2444, %v2445
    %v2447 = vrot.slane %v2423, 1
    %v2448 = vrot.slane %v2151, 1
    %v2449 = vsel %vm1442, %v2447, %v2448
    %v2450 = vrot.slane %v2424, 1
    %v2451 = vrot.slane %v2152, 1
    %v2452 = vsel %vm1442, %v2450, %v2451
    %v2453 = vrot.slane %v2425, 1
    %v2454 = vrot.slane %v2153, 1
    %v2455 = vsel %vm1442, %v2453, %v2454
    %v2456 = vrot.slane %v2426, 1
    %v2457 = vrot.slane %v2154, 1
    %v2458 = vsel %vm1442, %v2456, %v2457
    %v2459 = vrot.slane %v2427, 1
    %v2460 = vrot.slane %v2155, 1
    %v2461 = vsel %vm1442, %v2459, %v2460
    %v2462 = vrot.slane %v2428, 1
    %v2463 = vrot.slane %v2156, 1
    %v2464 = vsel %vm1442, %v2462, %v2463
    %v2465 = vrot.slane %v2429, 1
    %v2466 = vrot.slane %v2157, 1
    %v2467 = vsel %vm1442, %v2465, %v2466
    %v2468 = vrot.slane %v2430, 1
    %v2469 = vrot.slane %v2158, 1
    %v2470 = vsel %vm1442, %v2468, %v2469
    %v2471 = vrot.slane %v2431, 1
    %v2472 = vrot.slane %v2159, 1
    %v2473 = vsel %vm1442, %v2471, %v2472
    %v2474 = vrot.slane %v2432, 1
    %v2475 = vrot.slane %v2160, 1
    %v2476 = vsel %vm1442, %v2474, %v2475
    %v2477 = vrot.slane %v2433, 1
    %v2478 = vrot.slane %v2161, 1
    %v2479 = vsel %vm1442, %v2477, %v2478
    %v2480 = vrot.slane %v2434, 1
    %v2481 = vrot.slane %v2162, 1
    %v2482 = vsel %vm1442, %v2480, %v2481
    %vm2483 = vcmask 261120
    %v2485 = vsel %vm2483, %v1105, %v1363
    %v2487 = vsel %vm2483, %v1106, %v1365
    %v2489 = vsel %vm2483, %v1107, %v1367
    %v2491 = vsel %vm2483, %v1108, %v1369
    %v2493 = vsel %vm2483, %v1109, %v1371
    %v2495 = vsel %vm2483, %v1110, %v1373
    %v2497 = vsel %vm2483, %v1111, %v1375
    %v2499 = vsel %vm2483, %v1112, %v1377
    %v2501 = vsel %vm2483, %v1113, %v1379
    %v2503 = vsel %vm2483, %v1114, %v1381
    %v2505 = vsel %vm2483, %v1115, %v1383
    %v2507 = vsel %vm2483, %v1116, %v1385
    %v2509 = vsel %vm2483, %v1117, %v1387
    %v2511 = vsel %vm2483, %v1118, %v1389
    %v2513 = vsel %vm2483, %v1119, %v1391
    %v2515 = vsel %vm2483, %v1120, %v1393
    %v2517 = vsel %vm122, %v2485, %v1492
    %v2519 = vsel %vm122, %v2487, %v1494
    %v2521 = vsel %vm122, %v2489, %v1496
    %v2523 = vsel %vm122, %v2491, %v1498
    %v2525 = vsel %vm122, %v2493, %v1500
    %v2527 = vsel %vm122, %v2495, %v1502
    %v2529 = vsel %vm122, %v2497, %v1504
    %v2531 = vsel %vm122, %v2499, %v1506
    %v2533 = vsel %vm122, %v2501, %v1508
    %v2535 = vsel %vm122, %v2503, %v1510
    %v2537 = vsel %vm122, %v2505, %v1512
    %v2539 = vsel %vm122, %v2507, %v1514
    %v2541 = vsel %vm122, %v2509, %v1516
    %v2543 = vsel %vm122, %v2511, %v1518
    %v2545 = vsel %vm122, %v2513, %v1520
    %v2547 = vsel %vm122, %v2515, %v1522
    %vm2548 = vcmask 785408
    %v2550 = vsel %vm2548, %v2517, %v1604
    %v2553 = vsel %vm2548, %v2519, %v1606
    %v2556 = vsel %vm2548, %v2521, %v1608
    %v2559 = vsel %vm2548, %v2523, %v1610
    %v2562 = vsel %vm2548, %v2525, %v1612
    %v2565 = vsel %vm2548, %v2527, %v1614
    %v2568 = vsel %vm2548, %v2529, %v1616
    %v2571 = vsel %vm2548, %v2531, %v1618
    %v2574 = vsel %vm2548, %v2533, %v1620
    %v2577 = vsel %vm2548, %v2535, %v1622
    %v2580 = vsel %vm2548, %v2537, %v1624
    %v2583 = vsel %vm2548, %v2539, %v1626
    %v2586 = vsel %vm2548, %v2541, %v1628
    %v2589 = vsel %vm2548, %v2543, %v1630
    %v2592 = vsel %vm2548, %v2545, %v1632
    %v2595 = vsel %vm2548, %v2547, %v1634
    %v2599 = vsel %vm2483, %v1694, %v1972
    %v2602 = vsel %vm2483, %v1706, %v1974
    %v2605 = vsel %vm2483, %v1718, %v1976
    %v2608 = vsel %vm2483, %v1730, %v1978
    %v2611 = vsel %vm2483, %v1742, %v1980
    %v2614 = vsel %vm2483, %v1754, %v1982
    %v2617 = vsel %vm2483, %v1766, %v1984
    %v2620 = vsel %vm2483, %v1778, %v1986
    %v2623 = vsel %vm2483, %v1790, %v1988
    %v2626 = vsel %vm2483, %v1802, %v1990
    %v2629 = vsel %vm2483, %v1814, %v1992
    %v2632 = vsel %vm2483, %v1826, %v1994
    %v2635 = vsel %vm2483, %v1838, %v1996
    %v2638 = vsel %vm2483, %v1850, %v1998
    %v2641 = vsel %vm2483, %v1862, %v2000
    %v2644 = vsel %vm2483, %v1874, %v2002
    %v2646 = vsel %vm122, %v2599, %v2084
    %v2648 = vsel %vm122, %v2602, %v2086
    %v2650 = vsel %vm122, %v2605, %v2088
    %v2652 = vsel %vm122, %v2608, %v2090
    %v2654 = vsel %vm122, %v2611, %v2092
    %v2656 = vsel %vm122, %v2614, %v2094
    %v2658 = vsel %vm122, %v2617, %v2096
    %v2660 = vsel %vm122, %v2620, %v2098
    %v2662 = vsel %vm122, %v2623, %v2100
    %v2664 = vsel %vm122, %v2626, %v2102
    %v2666 = vsel %vm122, %v2629, %v2104
    %v2668 = vsel %vm122, %v2632, %v2106
    %v2670 = vsel %vm122, %v2635, %v2108
    %v2672 = vsel %vm122, %v2638, %v2110
    %v2674 = vsel %vm122, %v2641, %v2112
    %v2676 = vsel %vm122, %v2644, %v2114
    %v2678 = vsel %vm2548, %v2646, %v2356
    %v2681 = vsel %vm2548, %v2648, %v2358
    %v2684 = vsel %vm2548, %v2650, %v2360
    %v2687 = vsel %vm2548, %v2652, %v2362
    %v2690 = vsel %vm2548, %v2654, %v2364
    %v2693 = vsel %vm2548, %v2656, %v2366
    %v2696 = vsel %vm2548, %v2658, %v2368
    %v2699 = vsel %vm2548, %v2660, %v2370
    %v2702 = vsel %vm2548, %v2662, %v2372
    %v2705 = vsel %vm2548, %v2664, %v2374
    %v2708 = vsel %vm2548, %v2666, %v2376
    %v2711 = vsel %vm2548, %v2668, %v2378
    %v2714 = vsel %vm2548, %v2670, %v2380
    %v2717 = vsel %vm2548, %v2672, %v2382
    %v2720 = vsel %vm2548, %v2674, %v2384
    %v2723 = vsel %vm2548, %v2676, %v2386
    %v2725 = vld [vmem:[%s2] sm:$0xf]
    %v2726 = vld [vmem:[%s2 + $0x4] sm:$0xf]
    %v2727 = vld [vmem:[%s2 + $0x8] sm:$0xf]
    %v2728 = vld [vmem:[%s2 + $0xc] sm:$0xf]
    %v2729 = vld [vmem:[%s2 + $0x10] sm:$0xf]
    %v2730 = vld [vmem:[%s2 + $0x14] sm:$0xf]
    %v2731 = vld [vmem:[%s2 + $0x18] sm:$0xf]
    %v2732 = vld [vmem:[%s2 + $0x1c] sm:$0xf]
    %v2733 = vld [vmem:[%s2 + $0x20] sm:$0xf]
    %v2734 = vld [vmem:[%s2 + $0x24] sm:$0xf]
    %v2735 = vld [vmem:[%s2 + $0x28] sm:$0xf]
    %v2736 = vld [vmem:[%s2 + $0x2c] sm:$0xf]
    %v2737 = vld [vmem:[%s2 + $0x30] sm:$0xf]
    %v2738 = vld [vmem:[%s2 + $0x34] sm:$0xf]
    %v2739 = vld [vmem:[%s2 + $0x38] sm:$0xf]
    %v2740 = vld [vmem:[%s2 + $0x3c] sm:$0xf]
    %v2741 = vld [vmem:[%s2 + $0x40] sm:$0xf]
    %v2742 = vld [vmem:[%s2 + $0x44] sm:$0xf]
    %v2743 = vld [vmem:[%s2 + $0x48] sm:$0xf]
    %v2744 = vld [vmem:[%s2 + $0x4c] sm:$0xf]
    %v2745 = vld [vmem:[%s2 + $0x50] sm:$0xf]
    %v2746 = vld [vmem:[%s2 + $0x54] sm:$0xf]
    %v2747 = vld [vmem:[%s2 + $0x58] sm:$0xf]
    %v2748 = vld [vmem:[%s2 + $0x5c] sm:$0xf]
    %v2749 = vld [vmem:[%s2 + $0x60] sm:$0xf]
    %v2750 = vld [vmem:[%s2 + $0x64] sm:$0xf]
    %v2751 = vld [vmem:[%s2 + $0x68] sm:$0xf]
    %v2752 = vld [vmem:[%s2 + $0x6c] sm:$0xf]
    %v2753 = vld [vmem:[%s2 + $0x70] sm:$0xf]
    %v2754 = vld [vmem:[%s2 + $0x74] sm:$0xf]
    %v2755 = vld [vmem:[%s2 + $0x78] sm:$0xf]
    %v2756 = vld [vmem:[%s2 + $0x7c] sm:$0xf]
    %v2757 = vld [vmem:[%s2 + $0x80] sm:$0xf]
    %v2758 = vld [vmem:[%s2 + $0x84] sm:$0xf]
    %v2759 = vld [vmem:[%s2 + $0x88] sm:$0xf]
    %v2760 = vld [vmem:[%s2 + $0x8c] sm:$0xf]
    %v2797 = vunpack.c.l.b16 %v2725
    %v2798 = vunpack.c.l.b16 %v2726
    %v2799 = vunpack.c.l.b16 %v2727
    %v2800 = vunpack.c.l.b16 %v2728
    %v2801 = vunpack.c.l.b16 %v2729
    %v2802 = vunpack.c.l.b16 %v2730
    %v2803 = vunpack.c.l.b16 %v2731
    %v2804 = vunpack.c.l.b16 %v2732
    %v2805 = vunpack.c.l.b16 %v2733
    %v2806 = vunpack.c.l.b16 %v2734
    %v2807 = vunpack.c.l.b16 %v2735
    %v2808 = vunpack.c.l.b16 %v2736
    %v2809 = vunpack.c.l.b16 %v2737
    %v2810 = vunpack.c.l.b16 %v2738
    %v2811 = vunpack.c.l.b16 %v2739
    %v2812 = vunpack.c.l.b16 %v2740
    %v2813 = vunpack.c.l.b16 %v2741
    %v2814 = vunpack.c.l.b16 %v2742
    %v2815 = vunpack.c.l.b16 %v2743
    %v2816 = vunpack.c.l.b16 %v2744
    %v2817 = vunpack.c.l.b16 %v2745
    %v2818 = vunpack.c.l.b16 %v2746
    %v2819 = vunpack.c.l.b16 %v2747
    %v2820 = vunpack.c.l.b16 %v2748
    %v2821 = vunpack.c.l.b16 %v2749
    %v2822 = vunpack.c.l.b16 %v2750
    %v2823 = vunpack.c.l.b16 %v2751
    %v2824 = vunpack.c.l.b16 %v2752
    %v2825 = vunpack.c.l.b16 %v2753
    %v2826 = vunpack.c.l.b16 %v2754
    %v2827 = vunpack.c.l.b16 %v2755
    %v2828 = vunpack.c.l.b16 %v2756
    %v2829 = vunpack.c.l.b16 %v2757
    %v2830 = vunpack.c.l.b16 %v2758
    %v2831 = vunpack.c.l.b16 %v2759
    %v2832 = vunpack.c.l.b16 %v2760
    %v2833 = vpack.c.b16 %v2798, %v2797
    %v2834 = vpack.c.b16 %v2800, %v2799
    %v2835 = vpack.c.b16 %v2802, %v2801
    %v2836 = vpack.c.b16 %v2804, %v2803
    %v2837 = vpack.c.b16 %v2806, %v2805
    %v2838 = vpack.c.b16 %v2808, %v2807
    %v2839 = vpack.c.b16 %v2810, %v2809
    %v2840 = vpack.c.b16 %v2812, %v2811
    %v2841 = vpack.c.b16 %v2814, %v2813
    %v2842 = vpack.c.b16 %v2816, %v2815
    %v2843 = vpack.c.b16 %v2818, %v2817
    %v2844 = vpack.c.b16 %v2820, %v2819
    %v2845 = vpack.c.b16 %v2822, %v2821
    %v2846 = vpack.c.b16 %v2824, %v2823
    %v2847 = vpack.c.b16 %v2826, %v2825
    %v2848 = vpack.c.b16 %v2828, %v2827
    %v2849 = vpack.c.b16 %v2830, %v2829
    %v2850 = vpack.c.b16 %v2832, %v2831
    %v2870 = vsel %vm2483, %v2437, 0
    %v2873 = vsel %vm2483, %v2440, 0
    %v2876 = vsel %vm2483, %v2443, 0
    %v2879 = vsel %vm2483, %v2446, 0
    %v2882 = vsel %vm2483, %v2449, 0
    %v2885 = vsel %vm2483, %v2452, 0
    %v2888 = vsel %vm2483, %v2455, 0
    %v2891 = vsel %vm2483, %v2458, 0
    %v2894 = vsel %vm2483, %v2461, 0
    %v2897 = vsel %vm2483, %v2464, 0
    %v2900 = vsel %vm2483, %v2467, 0
    %v2903 = vsel %vm2483, %v2470, 0
    %v2906 = vsel %vm2483, %v2473, 0
    %v2909 = vsel %vm2483, %v2476, 0
    %v2912 = vsel %vm2483, %v2479, 0
    %v2915 = vsel %vm2483, %v2482, 0
    %2917 = vmatprep.subr.bf16.mxu0 0
    %2918 = vmatpush1.bf16.msra.mxu0 %v2833
    %2919 = vmatprep.subr.bf16.mxu0 0
    %2920 = vmatpush1.bf16.msra.mxu0 %v2834
    %2921 = vmatprep.subr.bf16.mxu0 0
    %2922 = vmatpush1.bf16.msra.mxu0 %v2835
    %2923 = vmatprep.subr.bf16.mxu0 0
    %2924 = vmatpush1.bf16.msra.mxu0 %v2836
    %2925 = vmatprep.subr.bf16.mxu0 0
    %2926 = vmatpush1.bf16.msra.mxu0 %v2837
    %2927 = vmatprep.subr.bf16.mxu0 0
    %2928 = vmatpush1.bf16.msra.mxu0 %v2838
    %2929 = vmatprep.subr.bf16.mxu0 0
    %2930 = vmatpush1.bf16.msra.mxu0 %v2839
    %2931 = vmatprep.subr.bf16.mxu0 0
    %2932 = vmatpush1.bf16.msra.mxu0 %v2840
    %2933 = vmatprep.subr.bf16.mxu0 0
    %2934 = vmatpush1.bf16.msra.mxu0 %v2841
    %2935 = vmatprep.subr.bf16.mxu0 0
    %2936 = vmatpush1.bf16.msra.mxu0 %v2842
    %2937 = vmatprep.subr.bf16.mxu0 0
    %2938 = vmatpush1.bf16.msra.mxu0 %v2843
    %2939 = vmatprep.subr.bf16.mxu0 0
    %2940 = vmatpush1.bf16.msra.mxu0 %v2844
    %2941 = vmatprep.subr.bf16.mxu0 0
    %2942 = vmatpush1.bf16.msra.mxu0 %v2845
    %2943 = vmatprep.subr.bf16.mxu0 0
    %2944 = vmatpush1.bf16.msra.mxu0 %v2846
    %2945 = vmatprep.subr.bf16.mxu0 0
    %2946 = vmatpush1.bf16.msra.mxu0 %v2847
    %2947 = vmatprep.subr.bf16.mxu0 0
    %2948 = vmatpush1.bf16.msra.mxu0 %v2848
    %2949 = vmatprep.mubr.bf16.mxu0 %v2678
    %2950 = vmatmul.mubr.bf16.gmra.mrb[0].mxu0 %v2550
    %v2951 = vpop.f32.mrb[0].mxu0
    %v2952 = vadd.f32 0.0, %v2951
    %v2953 = vpop.f32.mrb[0].mxu0
    %v2954 = vpop.f32.mrb[0].mxu0
    %v2955 = vadd.f32 0.0, %v2954
    %v2956 = vpop.f32.mrb[0].mxu0
    %2957 = vmatprep.mubr.bf16.mxu0 %v2681
    %2958 = vmatmul.mubr.bf16.gmra.mrb[0].mxu0 %v2553
    %v2959 = vpop.f32.mrb[0].mxu0
    %v2960 = vadd.f32 0.0, %v2959
    %v2961 = vpop.f32.mrb[0].mxu0
    %v2962 = vpop.f32.mrb[0].mxu0
    %v2963 = vadd.f32 0.0, %v2962
    %v2964 = vpop.f32.mrb[0].mxu0
    %2965 = vmatprep.mubr.bf16.mxu0 %v2684
    %2966 = vmatmul.mubr.bf16.gmra.mrb[0].mxu0 %v2556
    %v2967 = vpop.f32.mrb[0].mxu0
    %v2968 = vadd.f32 0.0, %v2967
    %v2969 = vpop.f32.mrb[0].mxu0
    %v2970 = vpop.f32.mrb[0].mxu0
    %v2971 = vadd.f32 0.0, %v2970
    %v2972 = vpop.f32.mrb[0].mxu0
    %2973 = vmatprep.mubr.bf16.mxu0 %v2687
    %2974 = vmatmul.mubr.bf16.gmra.mrb[0].mxu0 %v2559
    %v2975 = vpop.f32.mrb[0].mxu0
    %v2976 = vadd.f32 0.0, %v2975
    %v2977 = vpop.f32.mrb[0].mxu0
    %v2978 = vpop.f32.mrb[0].mxu0
    %v2979 = vadd.f32 0.0, %v2978
    %v2980 = vpop.f32.mrb[0].mxu0
    %2981 = vmatprep.mubr.bf16.mxu0 %v2690
    %2982 = vmatmul.mubr.bf16.gmra.mrb[0].mxu0 %v2562
    %v2983 = vpop.f32.mrb[0].mxu0
    %v2984 = vadd.f32 0.0, %v2983
    %v2985 = vpop.f32.mrb[0].mxu0
    %v2986 = vpop.f32.mrb[0].mxu0
    %v2987 = vadd.f32 0.0, %v2986
    %v2988 = vpop.f32.mrb[0].mxu0
    %2989 = vmatprep.mubr.bf16.mxu0 %v2693
    %2990 = vmatmul.mubr.bf16.gmra.mrb[0].mxu0 %v2565
    %v2991 = vpop.f32.mrb[0].mxu0
    %v2992 = vadd.f32 0.0, %v2991
    %v2993 = vpop.f32.mrb[0].mxu0
    %v2994 = vpop.f32.mrb[0].mxu0
    %v2995 = vadd.f32 0.0, %v2994
    %v2996 = vpop.f32.mrb[0].mxu0
    %2997 = vmatprep.mubr.bf16.mxu0 %v2696
    %2998 = vmatmul.mubr.bf16.gmra.mrb[0].mxu0 %v2568
    %v2999 = vpop.f32.mrb[0].mxu0
    %v3000 = vadd.f32 0.0, %v2999
    %v3001 = vpop.f32.mrb[0].mxu0
    %v3002 = vpop.f32.mrb[0].mxu0
    %v3003 = vadd.f32 0.0, %v3002
    %v3004 = vpop.f32.mrb[0].mxu0
    %3005 = vmatprep.mubr.bf16.mxu0 %v2699
    %3006 = vmatmul.mubr.bf16.gmra.mrb[0].mxu0 %v2571
    %v3007 = vpop.f32.mrb[0].mxu0
    %v3008 = vadd.f32 0.0, %v3007
    %v3009 = vpop.f32.mrb[0].mxu0
    %v3010 = vpop.f32.mrb[0].mxu0
    %v3011 = vadd.f32 0.0, %v3010
    %v3012 = vpop.f32.mrb[0].mxu0
    %3013 = vmatprep.mubr.bf16.mxu0 %v2702
    %3014 = vmatmul.mubr.bf16.gmra.mrb[0].mxu0 %v2574
    %v3015 = vpop.f32.mrb[0].mxu0
    %v3016 = vadd.f32 0.0, %v3015
    %v3017 = vpop.f32.mrb[0].mxu0
    %v3018 = vpop.f32.mrb[0].mxu0
    %v3019 = vadd.f32 0.0, %v3018
    %v3020 = vpop.f32.mrb[0].mxu0
    %3021 = vmatprep.mubr.bf16.mxu0 %v2705
    %3022 = vmatmul.mubr.bf16.gmra.mrb[0].mxu0 %v2577
    %v3023 = vpop.f32.mrb[0].mxu0
    %v3024 = vadd.f32 0.0, %v3023
    %v3025 = vpop.f32.mrb[0].mxu0
    %v3026 = vpop.f32.mrb[0].mxu0
    %v3027 = vadd.f32 0.0, %v3026
    %v3028 = vpop.f32.mrb[0].mxu0
    %3029 = vmatprep.mubr.bf16.mxu0 %v2708
    %3030 = vmatmul.mubr.bf16.gmra.mrb[0].mxu0 %v2580
    %v3031 = vpop.f32.mrb[0].mxu0
    %v3032 = vadd.f32 0.0, %v3031
    %v3033 = vpop.f32.mrb[0].mxu0
    %v3034 = vpop.f32.mrb[0].mxu0
    %v3035 = vadd.f32 0.0, %v3034
    %v3036 = vpop.f32.mrb[0].mxu0
    %3037 = vmatprep.mubr.bf16.mxu0 %v2711
    %3038 = vmatmul.mubr.bf16.gmra.mrb[0].mxu0 %v2583
    %v3039 = vpop.f32.mrb[0].mxu0
    %v3040 = vadd.f32 0.0, %v3039
    %v3041 = vpop.f32.mrb[0].mxu0
    %v3042 = vpop.f32.mrb[0].mxu0
    %v3043 = vadd.f32 0.0, %v3042
    %v3044 = vpop.f32.mrb[0].mxu0
    %3045 = vmatprep.mubr.bf16.mxu0 %v2714
    %3046 = vmatmul.mubr.bf16.gmra.mrb[0].mxu0 %v2586
    %v3047 = vpop.f32.mrb[0].mxu0
    %v3048 = vadd.f32 0.0, %v3047
    %v3049 = vpop.f32.mrb[0].mxu0
    %v3050 = vpop.f32.mrb[0].mxu0
    %v3051 = vadd.f32 0.0, %v3050
    %v3052 = vpop.f32.mrb[0].mxu0
    %3053 = vmatprep.mubr.bf16.mxu0 %v2717
    %3054 = vmatmul.mubr.bf16.gmra.mrb[0].mxu0 %v2589
    %v3055 = vpop.f32.mrb[0].mxu0
    %v3056 = vadd.f32 0.0, %v3055
    %v3057 = vpop.f32.mrb[0].mxu0
    %v3058 = vpop.f32.mrb[0].mxu0
    %v3059 = vadd.f32 0.0, %v3058
    %v3060 = vpop.f32.mrb[0].mxu0
    %3061 = vmatprep.mubr.bf16.mxu0 %v2720
    %3062 = vmatmul.mubr.bf16.gmra.mrb[0].mxu0 %v2592
    %v3063 = vpop.f32.mrb[0].mxu0
    %v3064 = vadd.f32 0.0, %v3063
    %v3065 = vpop.f32.mrb[0].mxu0
    %v3066 = vpop.f32.mrb[0].mxu0
    %v3067 = vadd.f32 0.0, %v3066
    %v3068 = vpop.f32.mrb[0].mxu0
    %3069 = vmatprep.mubr.bf16.mxu0 %v2723
    %3070 = vmatmul.mubr.bf16.gmra.mrb[0].mxu0 %v2595
    %v3071 = vpop.f32.mrb[0].mxu0
    %v3072 = vadd.f32 0.0, %v3071
    %v3073 = vpop.f32.mrb[0].mxu0
    %v3074 = vpop.f32.mrb[0].mxu0
    %v3075 = vadd.f32 0.0, %v3074
    %v3076 = vpop.f32.mrb[0].mxu0
    %3077 = vdwg.mxu0
    %3078 = vmatprep.subr.bf16.mxu0 0
    %3079 = vmatpush1.bf16.msra.mxu0 %v2849
    %3080 = vmatprep.subr.bf16.mxu0 0
    %3081 = vmatpush1.bf16.msra.mxu0 %v2850
    %3082 = vmatprep.subr.bf16.mxu0 0
    %3083 = vmatpush1.bf16.msra.mxu0 0
    %3084 = vmatprep.subr.bf16.mxu0 0
    %3085 = vmatpush1.bf16.msra.mxu0 0
    %3086 = vmatprep.subr.bf16.mxu0 0
    %3087 = vmatpush1.bf16.msra.mxu0 0
    %3088 = vmatprep.subr.bf16.mxu0 0
    %3089 = vmatpush1.bf16.msra.mxu0 0
    %3090 = vmatprep.subr.bf16.mxu0 0
    %3091 = vmatpush1.bf16.msra.mxu0 0
    %3092 = vmatprep.subr.bf16.mxu0 0
    %3093 = vmatpush1.bf16.msra.mxu0 0
    %3094 = vmatprep.subr.bf16.mxu0 0
    %3095 = vmatpush1.bf16.msra.mxu0 0
    %3096 = vmatprep.subr.bf16.mxu0 0
    %3097 = vmatpush1.bf16.msra.mxu0 0
    %3098 = vmatprep.subr.bf16.mxu0 0
    %3099 = vmatpush1.bf16.msra.mxu0 0
    %3100 = vmatprep.subr.bf16.mxu0 0
    %3101 = vmatpush1.bf16.msra.mxu0 0
    %3102 = vmatprep.subr.bf16.mxu0 0
    %3103 = vmatpush1.bf16.msra.mxu0 0
    %3104 = vmatprep.subr.bf16.mxu0 0
    %3105 = vmatpush1.bf16.msra.mxu0 0
    %3106 = vmatprep.subr.bf16.mxu0 0
    %3107 = vmatpush1.bf16.msra.mxu0 0
    %3108 = vmatprep.subr.bf16.mxu0 0
    %3109 = vmatpush1.bf16.msra.mxu0 0
    %3110 = vmatprep.mubr.bf16.mxu0 0
    %3111 = vmatmul.mubr.bf16.gmra.mrb[0].mxu0 %v2870
    %v3112 = vpop.f32.mrb[0].mxu0
    %v3113 = vadd.f32 %v2952, %v3112
    %v3114 = vpop.f32.mrb[0].mxu0
    %v3115 = vpop.f32.mrb[0].mxu0
    %v3116 = vadd.f32 %v2955, %v3115
    %v3117 = vpop.f32.mrb[0].mxu0
    %3118 = vmatprep.mubr.bf16.mxu0 0
    %3119 = vmatmul.mubr.bf16.gmra.mrb[0].mxu0 %v2873
    %v3120 = vpop.f32.mrb[0].mxu0
    %v3121 = vadd.f32 %v2960, %v3120
    %v3122 = vpop.f32.mrb[0].mxu0
    %v3123 = vpop.f32.mrb[0].mxu0
    %v3124 = vadd.f32 %v2963, %v3123
    %v3125 = vpop.f32.mrb[0].mxu0
    %3126 = vmatprep.mubr.bf16.mxu0 0
    %3127 = vmatmul.mubr.bf16.gmra.mrb[0].mxu0 %v2876
    %v3128 = vpop.f32.mrb[0].mxu0
    %v3129 = vadd.f32 %v2968, %v3128
    %v3130 = vpop.f32.mrb[0].mxu0
    %v3131 = vpop.f32.mrb[0].mxu0
    %v3132 = vadd.f32 %v2971, %v3131
    %v3133 = vpop.f32.mrb[0].mxu0
    %3134 = vmatprep.mubr.bf16.mxu0 0
    %3135 = vmatmul.mubr.bf16.gmra.mrb[0].mxu0 %v2879
    %v3136 = vpop.f32.mrb[0].mxu0
    %v3137 = vadd.f32 %v2976, %v3136
    %v3138 = vpop.f32.mrb[0].mxu0
    %v3139 = vpop.f32.mrb[0].mxu0
    %v3140 = vadd.f32 %v2979, %v3139
    %v3141 = vpop.f32.mrb[0].mxu0
    %3142 = vmatprep.mubr.bf16.mxu0 0
    %3143 = vmatmul.mubr.bf16.gmra.mrb[0].mxu0 %v2882
    %v3144 = vpop.f32.mrb[0].mxu0
    %v3145 = vadd.f32 %v2984, %v3144
    %v3146 = vpop.f32.mrb[0].mxu0
    %v3147 = vpop.f32.mrb[0].mxu0
    %v3148 = vadd.f32 %v2987, %v3147
    %v3149 = vpop.f32.mrb[0].mxu0
    %3150 = vmatprep.mubr.bf16.mxu0 0
    %3151 = vmatmul.mubr.bf16.gmra.mrb[0].mxu0 %v2885
    %v3152 = vpop.f32.mrb[0].mxu0
    %v3153 = vadd.f32 %v2992, %v3152
    %v3154 = vpop.f32.mrb[0].mxu0
    %v3155 = vpop.f32.mrb[0].mxu0
    %v3156 = vadd.f32 %v2995, %v3155
    %v3157 = vpop.f32.mrb[0].mxu0
    %3158 = vmatprep.mubr.bf16.mxu0 0
    %3159 = vmatmul.mubr.bf16.gmra.mrb[0].mxu0 %v2888
    %v3160 = vpop.f32.mrb[0].mxu0
    %v3161 = vadd.f32 %v3000, %v3160
    %v3162 = vpop.f32.mrb[0].mxu0
    %v3163 = vpop.f32.mrb[0].mxu0
    %v3164 = vadd.f32 %v3003, %v3163
    %v3165 = vpop.f32.mrb[0].mxu0
    %3166 = vmatprep.mubr.bf16.mxu0 0
    %3167 = vmatmul.mubr.bf16.gmra.mrb[0].mxu0 %v2891
    %v3168 = vpop.f32.mrb[0].mxu0
    %v3169 = vadd.f32 %v3008, %v3168
    %v3170 = vpop.f32.mrb[0].mxu0
    %v3171 = vpop.f32.mrb[0].mxu0
    %v3172 = vadd.f32 %v3011, %v3171
    %v3173 = vpop.f32.mrb[0].mxu0
    %3174 = vmatprep.mubr.bf16.mxu0 0
    %3175 = vmatmul.mubr.bf16.gmra.mrb[0].mxu0 %v2894
    %v3176 = vpop.f32.mrb[0].mxu0
    %v3177 = vadd.f32 %v3016, %v3176
    %v3178 = vpop.f32.mrb[0].mxu0
    %v3179 = vpop.f32.mrb[0].mxu0
    %v3180 = vadd.f32 %v3019, %v3179
    %v3181 = vpop.f32.mrb[0].mxu0
    %3182 = vmatprep.mubr.bf16.mxu0 0
    %3183 = vmatmul.mubr.bf16.gmra.mrb[0].mxu0 %v2897
    %v3184 = vpop.f32.mrb[0].mxu0
    %v3185 = vadd.f32 %v3024, %v3184
    %v3186 = vpop.f32.mrb[0].mxu0
    %v3187 = vpop.f32.mrb[0].mxu0
    %v3188 = vadd.f32 %v3027, %v3187
    %v3189 = vpop.f32.mrb[0].mxu0
    %3190 = vmatprep.mubr.bf16.mxu0 0
    %3191 = vmatmul.mubr.bf16.gmra.mrb[0].mxu0 %v2900
    %v3192 = vpop.f32.mrb[0].mxu0
    %v3193 = vadd.f32 %v3032, %v3192
    %v3194 = vpop.f32.mrb[0].mxu0
    %v3195 = vpop.f32.mrb[0].mxu0
    %v3196 = vadd.f32 %v3035, %v3195
    %v3197 = vpop.f32.mrb[0].mxu0
    %3198 = vmatprep.mubr.bf16.mxu0 0
    %3199 = vmatmul.mubr.bf16.gmra.mrb[0].mxu0 %v2903
    %v3200 = vpop.f32.mrb[0].mxu0
    %v3201 = vadd.f32 %v3040, %v3200
    %v3202 = vpop.f32.mrb[0].mxu0
    %v3203 = vpop.f32.mrb[0].mxu0
    %v3204 = vadd.f32 %v3043, %v3203
    %v3205 = vpop.f32.mrb[0].mxu0
    %3206 = vmatprep.mubr.bf16.mxu0 0
    %3207 = vmatmul.mubr.bf16.gmra.mrb[0].mxu0 %v2906
    %v3208 = vpop.f32.mrb[0].mxu0
    %v3209 = vadd.f32 %v3048, %v3208
    %v3210 = vpop.f32.mrb[0].mxu0
    %v3211 = vpop.f32.mrb[0].mxu0
    %v3212 = vadd.f32 %v3051, %v3211
    %v3213 = vpop.f32.mrb[0].mxu0
    %3214 = vmatprep.mubr.bf16.mxu0 0
    %3215 = vmatmul.mubr.bf16.gmra.mrb[0].mxu0 %v2909
    %v3216 = vpop.f32.mrb[0].mxu0
    %v3217 = vadd.f32 %v3056, %v3216
    %v3218 = vpop.f32.mrb[0].mxu0
    %v3219 = vpop.f32.mrb[0].mxu0
    %v3220 = vadd.f32 %v3059, %v3219
    %v3221 = vpop.f32.mrb[0].mxu0
    %3222 = vmatprep.mubr.bf16.mxu0 0
    %3223 = vmatmul.mubr.bf16.gmra.mrb[0].mxu0 %v2912
    %v3224 = vpop.f32.mrb[0].mxu0
    %v3225 = vadd.f32 %v3064, %v3224
    %v3226 = vpop.f32.mrb[0].mxu0
    %v3227 = vpop.f32.mrb[0].mxu0
    %v3228 = vadd.f32 %v3067, %v3227
    %v3229 = vpop.f32.mrb[0].mxu0
    %3230 = vmatprep.mubr.bf16.mxu0 0
    %3231 = vmatmul.mubr.bf16.gmra.mrb[0].mxu0 %v2915
    %v3232 = vpop.f32.mrb[0].mxu0
    %v3233 = vadd.f32 %v3072, %v3232
    %v3234 = vpop.f32.mrb[0].mxu0
    %v3235 = vpop.f32.mrb[0].mxu0
    %v3236 = vadd.f32 %v3075, %v3235
    %v3237 = vpop.f32.mrb[0].mxu0
    %3238 = vdwg.mxu0
    %vm3239 = vcmp.gt.f32.partialorder %v3113, 0.0
    %vm3240 = vcmp.gt.f32.partialorder %v3116, 0.0
    %vm3241 = vcmp.gt.f32.partialorder %v3121, 0.0
    %vm3242 = vcmp.gt.f32.partialorder %v3124, 0.0
    %vm3243 = vcmp.gt.f32.partialorder %v3129, 0.0
    %vm3244 = vcmp.gt.f32.partialorder %v3132, 0.0
    %vm3245 = vcmp.gt.f32.partialorder %v3137, 0.0
    %vm3246 = vcmp.gt.f32.partialorder %v3140, 0.0
    %vm3247 = vcmp.gt.f32.partialorder %v3145, 0.0
    %vm3248 = vcmp.gt.f32.partialorder %v3148, 0.0
    %vm3249 = vcmp.gt.f32.partialorder %v3153, 0.0
    %vm3250 = vcmp.gt.f32.partialorder %v3156, 0.0
    %vm3251 = vcmp.gt.f32.partialorder %v3161, 0.0
    %vm3252 = vcmp.gt.f32.partialorder %v3164, 0.0
    %vm3253 = vcmp.gt.f32.partialorder %v3169, 0.0
    %vm3254 = vcmp.gt.f32.partialorder %v3172, 0.0
    %vm3255 = vcmp.gt.f32.partialorder %v3177, 0.0
    %vm3256 = vcmp.gt.f32.partialorder %v3180, 0.0
    %vm3257 = vcmp.gt.f32.partialorder %v3185, 0.0
    %vm3258 = vcmp.gt.f32.partialorder %v3188, 0.0
    %vm3259 = vcmp.gt.f32.partialorder %v3193, 0.0
    %vm3260 = vcmp.gt.f32.partialorder %v3196, 0.0
    %vm3261 = vcmp.gt.f32.partialorder %v3201, 0.0
    %vm3262 = vcmp.gt.f32.partialorder %v3204, 0.0
    %vm3263 = vcmp.gt.f32.partialorder %v3209, 0.0
    %vm3264 = vcmp.gt.f32.partialorder %v3212, 0.0
    %vm3265 = vcmp.gt.f32.partialorder %v3217, 0.0
    %vm3266 = vcmp.gt.f32.partialorder %v3220, 0.0
    %vm3267 = vcmp.gt.f32.partialorder %v3225, 0.0
    %vm3268 = vcmp.gt.f32.partialorder %v3228, 0.0
    %vm3269 = vcmp.gt.f32.partialorder %v3233, 0.0
    %vm3270 = vcmp.gt.f32.partialorder %v3236, 0.0
    %v3271 = vmul.f32 %v3113, 0.2
    %v3272 = vmul.f32 %v3116, 0.2
    %v3273 = vmul.f32 %v3121, 0.2
    %v3274 = vmul.f32 %v3124, 0.2
    %v3275 = vmul.f32 %v3129, 0.2
    %v3276 = vmul.f32 %v3132, 0.2
    %v3277 = vmul.f32 %v3137, 0.2
    %v3278 = vmul.f32 %v3140, 0.2
    %v3279 = vmul.f32 %v3145, 0.2
    %v3280 = vmul.f32 %v3148, 0.2
    %v3281 = vmul.f32 %v3153, 0.2
    %v3282 = vmul.f32 %v3156, 0.2
    %v3283 = vmul.f32 %v3161, 0.2
    %v3284 = vmul.f32 %v3164, 0.2
    %v3285 = vmul.f32 %v3169, 0.2
    %v3286 = vmul.f32 %v3172, 0.2
    %v3287 = vmul.f32 %v3177, 0.2
    %v3288 = vmul.f32 %v3180, 0.2
    %v3289 = vmul.f32 %v3185, 0.2
    %v3290 = vmul.f32 %v3188, 0.2
    %v3291 = vmul.f32 %v3193, 0.2
    %v3292 = vmul.f32 %v3196, 0.2
    %v3293 = vmul.f32 %v3201, 0.2
    %v3294 = vmul.f32 %v3204, 0.2
    %v3295 = vmul.f32 %v3209, 0.2
    %v3296 = vmul.f32 %v3212, 0.2
    %v3297 = vmul.f32 %v3217, 0.2
    %v3298 = vmul.f32 %v3220, 0.2
    %v3299 = vmul.f32 %v3225, 0.2
    %v3300 = vmul.f32 %v3228, 0.2
    %v3301 = vmul.f32 %v3233, 0.2
    %v3302 = vmul.f32 %v3236, 0.2
    %v3303 = vsel %vm3239, %v3113, %v3271
    %v3304 = vsel %vm3240, %v3116, %v3272
    %v3305 = vsel %vm3241, %v3121, %v3273
    %v3306 = vsel %vm3242, %v3124, %v3274
    %v3307 = vsel %vm3243, %v3129, %v3275
    %v3308 = vsel %vm3244, %v3132, %v3276
    %v3309 = vsel %vm3245, %v3137, %v3277
    %v3310 = vsel %vm3246, %v3140, %v3278
    %v3311 = vsel %vm3247, %v3145, %v3279
    %v3312 = vsel %vm3248, %v3148, %v3280
    %v3313 = vsel %vm3249, %v3153, %v3281
    %v3314 = vsel %vm3250, %v3156, %v3282
    %v3315 = vsel %vm3251, %v3161, %v3283
    %v3316 = vsel %vm3252, %v3164, %v3284
    %v3317 = vsel %vm3253, %v3169, %v3285
    %v3318 = vsel %vm3254, %v3172, %v3286
    %v3319 = vsel %vm3255, %v3177, %v3287
    %v3320 = vsel %vm3256, %v3180, %v3288
    %v3321 = vsel %vm3257, %v3185, %v3289
    %v3322 = vsel %vm3258, %v3188, %v3290
    %v3323 = vsel %vm3259, %v3193, %v3291
    %v3324 = vsel %vm3260, %v3196, %v3292
    %v3325 = vsel %vm3261, %v3201, %v3293
    %v3326 = vsel %vm3262, %v3204, %v3294
    %v3327 = vsel %vm3263, %v3209, %v3295
    %v3328 = vsel %vm3264, %v3212, %v3296
    %v3329 = vsel %vm3265, %v3217, %v3297
    %v3330 = vsel %vm3266, %v3220, %v3298
    %v3331 = vsel %vm3267, %v3225, %v3299
    %v3332 = vsel %vm3268, %v3228, %v3300
    %v3333 = vsel %vm3269, %v3233, %v3301
    %v3334 = vsel %vm3270, %v3236, %v3302
    %v3335 = vpack.c.bf16 %v3304, %v3303
    %v3336 = vpack.c.bf16 %v3306, %v3305
    %v3337 = vpack.c.bf16 %v3308, %v3307
    %v3338 = vpack.c.bf16 %v3310, %v3309
    %v3339 = vpack.c.bf16 %v3312, %v3311
    %v3340 = vpack.c.bf16 %v3314, %v3313
    %v3341 = vpack.c.bf16 %v3316, %v3315
    %v3342 = vpack.c.bf16 %v3318, %v3317
    %v3343 = vpack.c.bf16 %v3320, %v3319
    %v3344 = vpack.c.bf16 %v3322, %v3321
    %v3345 = vpack.c.bf16 %v3324, %v3323
    %v3346 = vpack.c.bf16 %v3326, %v3325
    %v3347 = vpack.c.bf16 %v3328, %v3327
    %v3348 = vpack.c.bf16 %v3330, %v3329
    %v3349 = vpack.c.bf16 %v3332, %v3331
    %v3350 = vpack.c.bf16 %v3334, %v3333
    %v3351 = vld [vmem:[%s3] sm:$0xf]
    %v3352 = vld [vmem:[%s3 + $0x4] sm:$0xf]
    %v3353 = vld [vmem:[%s3 + $0x8] sm:$0xf]
    %v3354 = vld [vmem:[%s3 + $0xc] sm:$0xf]
    %v3359 = vunpack.c.l.b16 %v3351
    %v3360 = vunpack.c.l.b16 %v3352
    %v3361 = vunpack.c.l.b16 %v3353
    %v3362 = vunpack.c.l.b16 %v3354
    %v3363 = vpack.c.b16 %v3360, %v3359
    %v3364 = vpack.c.b16 %v3362, %v3361
    %v3368 = vsel %vm2483, %v3335, 0
    %v3371 = vsel %vm2483, %v3336, 0
    %v3374 = vsel %vm2483, %v3337, 0
    %v3377 = vsel %vm2483, %v3338, 0
    %v3380 = vsel %vm2483, %v3339, 0
    %v3383 = vsel %vm2483, %v3340, 0
    %v3386 = vsel %vm2483, %v3341, 0
    %v3389 = vsel %vm2483, %v3342, 0
    %v3392 = vsel %vm2483, %v3343, 0
    %v3395 = vsel %vm2483, %v3344, 0
    %v3398 = vsel %vm2483, %v3345, 0
    %v3401 = vsel %vm2483, %v3346, 0
    %v3404 = vsel %vm2483, %v3347, 0
    %v3407 = vsel %vm2483, %v3348, 0
    %v3410 = vsel %vm2483, %v3349, 0
    %v3413 = vsel %vm2483, %v3350, 0
    %3415 = vmatprep.subr.bf16.mxu0 0
    %3416 = vmatpush1.bf16.msra.mxu0 %v3363
    %3417 = vmatprep.subr.bf16.mxu0 0
    %3418 = vmatpush1.bf16.msra.mxu0 %v3364
    %3419 = vmatprep.subr.bf16.mxu0 0
    %3420 = vmatpush1.bf16.msra.mxu0 0
    %3421 = vmatprep.subr.bf16.mxu0 0
    %3422 = vmatpush1.bf16.msra.mxu0 0
    %3423 = vmatprep.subr.bf16.mxu0 0
    %3424 = vmatpush1.bf16.msra.mxu0 0
    %3425 = vmatprep.subr.bf16.mxu0 0
    %3426 = vmatpush1.bf16.msra.mxu0 0
    %3427 = vmatprep.subr.bf16.mxu0 0
    %3428 = vmatpush1.bf16.msra.mxu0 0
    %3429 = vmatprep.subr.bf16.mxu0 0
    %3430 = vmatpush1.bf16.msra.mxu0 0
    %3431 = vmatprep.subr.bf16.mxu0 0
    %3432 = vmatpush1.bf16.msra.mxu0 0
    %3433 = vmatprep.subr.bf16.mxu0 0
    %3434 = vmatpush1.bf16.msra.mxu0 0
    %3435 = vmatprep.subr.bf16.mxu0 0
    %3436 = vmatpush1.bf16.msra.mxu0 0
    %3437 = vmatprep.subr.bf16.mxu0 0
    %3438 = vmatpush1.bf16.msra.mxu0 0
    %3439 = vmatprep.subr.bf16.mxu0 0
    %3440 = vmatpush1.bf16.msra.mxu0 0
    %3441 = vmatprep.subr.bf16.mxu0 0
    %3442 = vmatpush1.bf16.msra.mxu0 0
    %3443 = vmatprep.subr.bf16.mxu0 0
    %3444 = vmatpush1.bf16.msra.mxu0 0
    %3445 = vmatprep.subr.bf16.mxu0 0
    %3446 = vmatpush1.bf16.msra.mxu0 0
    %3447 = vmatprep.mubr.bf16.mxu0 0
    %3448 = vmatmul.mubr.bf16.gmra.mrb[0].mxu0 %v3368
    %v3449 = vpop.f32.mrb[0].mxu0
    %v3450 = vadd.f32 0.0, %v3449
    %v3451 = vpop.f32.mrb[0].mxu0
    %v3452 = vpop.f32.mrb[0].mxu0
    %v3453 = vadd.f32 0.0, %v3452
    %v3454 = vpop.f32.mrb[0].mxu0
    %3455 = vmatprep.mubr.bf16.mxu0 0
    %3456 = vmatmul.mubr.bf16.gmra.mrb[0].mxu0 %v3371
    %v3457 = vpop.f32.mrb[0].mxu0
    %v3458 = vadd.f32 0.0, %v3457
    %v3459 = vpop.f32.mrb[0].mxu0
    %v3460 = vpop.f32.mrb[0].mxu0
    %v3461 = vadd.f32 0.0, %v3460
    %v3462 = vpop.f32.mrb[0].mxu0
    %3463 = vmatprep.mubr.bf16.mxu0 0
    %3464 = vmatmul.mubr.bf16.gmra.mrb[0].mxu0 %v3374
    %v3465 = vpop.f32.mrb[0].mxu0
    %v3466 = vadd.f32 0.0, %v3465
    %v3467 = vpop.f32.mrb[0].mxu0
    %v3468 = vpop.f32.mrb[0].mxu0
    %v3469 = vadd.f32 0.0, %v3468
    %v3470 = vpop.f32.mrb[0].mxu0
    %3471 = vmatprep.mubr.bf16.mxu0 0
    %3472 = vmatmul.mubr.bf16.gmra.mrb[0].mxu0 %v3377
    %v3473 = vpop.f32.mrb[0].mxu0
    %v3474 = vadd.f32 0.0, %v3473
    %v3475 = vpop.f32.mrb[0].mxu0
    %v3476 = vpop.f32.mrb[0].mxu0
    %v3477 = vadd.f32 0.0, %v3476
    %v3478 = vpop.f32.mrb[0].mxu0
    %3479 = vmatprep.mubr.bf16.mxu0 0
    %3480 = vmatmul.mubr.bf16.gmra.mrb[0].mxu0 %v3380
    %v3481 = vpop.f32.mrb[0].mxu0
    %v3482 = vadd.f32 0.0, %v3481
    %v3483 = vpop.f32.mrb[0].mxu0
    %v3484 = vpop.f32.mrb[0].mxu0
    %v3485 = vadd.f32 0.0, %v3484
    %v3486 = vpop.f32.mrb[0].mxu0
    %3487 = vmatprep.mubr.bf16.mxu0 0
    %3488 = vmatmul.mubr.bf16.gmra.mrb[0].mxu0 %v3383
    %v3489 = vpop.f32.mrb[0].mxu0
    %v3490 = vadd.f32 0.0, %v3489
    %v3491 = vpop.f32.mrb[0].mxu0
    %v3492 = vpop.f32.mrb[0].mxu0
    %v3493 = vadd.f32 0.0, %v3492
    %v3494 = vpop.f32.mrb[0].mxu0
    %3495 = vmatprep.mubr.bf16.mxu0 0
    %3496 = vmatmul.mubr.bf16.gmra.mrb[0].mxu0 %v3386
    %v3497 = vpop.f32.mrb[0].mxu0
    %v3498 = vadd.f32 0.0, %v3497
    %v3499 = vpop.f32.mrb[0].mxu0
    %v3500 = vpop.f32.mrb[0].mxu0
    %v3501 = vadd.f32 0.0, %v3500
    %v3502 = vpop.f32.mrb[0].mxu0
    %3503 = vmatprep.mubr.bf16.mxu0 0
    %3504 = vmatmul.mubr.bf16.gmra.mrb[0].mxu0 %v3389
    %v3505 = vpop.f32.mrb[0].mxu0
    %v3506 = vadd.f32 0.0, %v3505
    %v3507 = vpop.f32.mrb[0].mxu0
    %v3508 = vpop.f32.mrb[0].mxu0
    %v3509 = vadd.f32 0.0, %v3508
    %v3510 = vpop.f32.mrb[0].mxu0
    %3511 = vmatprep.mubr.bf16.mxu0 0
    %3512 = vmatmul.mubr.bf16.gmra.mrb[0].mxu0 %v3392
    %v3513 = vpop.f32.mrb[0].mxu0
    %v3514 = vadd.f32 0.0, %v3513
    %v3515 = vpop.f32.mrb[0].mxu0
    %v3516 = vpop.f32.mrb[0].mxu0
    %v3517 = vadd.f32 0.0, %v3516
    %v3518 = vpop.f32.mrb[0].mxu0
    %3519 = vmatprep.mubr.bf16.mxu0 0
    %3520 = vmatmul.mubr.bf16.gmra.mrb[0].mxu0 %v3395
    %v3521 = vpop.f32.mrb[0].mxu0
    %v3522 = vadd.f32 0.0, %v3521
    %v3523 = vpop.f32.mrb[0].mxu0
    %v3524 = vpop.f32.mrb[0].mxu0
    %v3525 = vadd.f32 0.0, %v3524
    %v3526 = vpop.f32.mrb[0].mxu0
    %3527 = vmatprep.mubr.bf16.mxu0 0
    %3528 = vmatmul.mubr.bf16.gmra.mrb[0].mxu0 %v3398
    %v3529 = vpop.f32.mrb[0].mxu0
    %v3530 = vadd.f32 0.0, %v3529
    %v3531 = vpop.f32.mrb[0].mxu0
    %v3532 = vpop.f32.mrb[0].mxu0
    %v3533 = vadd.f32 0.0, %v3532
    %v3534 = vpop.f32.mrb[0].mxu0
    %3535 = vmatprep.mubr.bf16.mxu0 0
    %3536 = vmatmul.mubr.bf16.gmra.mrb[0].mxu0 %v3401
    %v3537 = vpop.f32.mrb[0].mxu0
    %v3538 = vadd.f32 0.0, %v3537
    %v3539 = vpop.f32.mrb[0].mxu0
    %v3540 = vpop.f32.mrb[0].mxu0
    %v3541 = vadd.f32 0.0, %v3540
    %v3542 = vpop.f32.mrb[0].mxu0
    %3543 = vmatprep.mubr.bf16.mxu0 0
    %3544 = vmatmul.mubr.bf16.gmra.mrb[0].mxu0 %v3404
    %v3545 = vpop.f32.mrb[0].mxu0
    %v3546 = vadd.f32 0.0, %v3545
    %v3547 = vpop.f32.mrb[0].mxu0
    %v3548 = vpop.f32.mrb[0].mxu0
    %v3549 = vadd.f32 0.0, %v3548
    %v3550 = vpop.f32.mrb[0].mxu0
    %3551 = vmatprep.mubr.bf16.mxu0 0
    %3552 = vmatmul.mubr.bf16.gmra.mrb[0].mxu0 %v3407
    %v3553 = vpop.f32.mrb[0].mxu0
    %v3554 = vadd.f32 0.0, %v3553
    %v3555 = vpop.f32.mrb[0].mxu0
    %v3556 = vpop.f32.mrb[0].mxu0
    %v3557 = vadd.f32 0.0, %v3556
    %v3558 = vpop.f32.mrb[0].mxu0
    %3559 = vmatprep.mubr.bf16.mxu0 0
    %3560 = vmatmul.mubr.bf16.gmra.mrb[0].mxu0 %v3410
    %v3561 = vpop.f32.mrb[0].mxu0
    %v3562 = vadd.f32 0.0, %v3561
    %v3563 = vpop.f32.mrb[0].mxu0
    %v3564 = vpop.f32.mrb[0].mxu0
    %v3565 = vadd.f32 0.0, %v3564
    %v3566 = vpop.f32.mrb[0].mxu0
    %3567 = vmatprep.mubr.bf16.mxu0 0
    %3568 = vmatmul.mubr.bf16.gmra.mrb[0].mxu0 %v3413
    %v3569 = vpop.f32.mrb[0].mxu0
    %v3570 = vadd.f32 0.0, %v3569
    %v3571 = vpop.f32.mrb[0].mxu0
    %v3572 = vpop.f32.mrb[0].mxu0
    %v3573 = vadd.f32 0.0, %v3572
    %v3574 = vpop.f32.mrb[0].mxu0
    %3575 = vdwg.mxu0
    %v3576 = vadd.f32 %v42, %v3450
    %v3577 = vadd.f32 %v43, %v3453
    %v3578 = vadd.f32 %v44, %v3458
    %v3579 = vadd.f32 %v45, %v3461
    %v3580 = vadd.f32 %v46, %v3466
    %v3581 = vadd.f32 %v47, %v3469
    %v3582 = vadd.f32 %v48, %v3474
    %v3583 = vadd.f32 %v49, %v3477
    %v3584 = vadd.f32 %v50, %v3482
    %v3585 = vadd.f32 %v51, %v3485
    %v3586 = vadd.f32 %v52, %v3490
    %v3587 = vadd.f32 %v53, %v3493
    %v3588 = vadd.f32 %v54, %v3498
    %v3589 = vadd.f32 %v55, %v3501
    %v3590 = vadd.f32 %v56, %v3506
    %v3591 = vadd.f32 %v57, %v3509
    %v3592 = vadd.f32 %v58, %v3514
    %v3593 = vadd.f32 %v59, %v3517
    %v3594 = vadd.f32 %v60, %v3522
    %v3595 = vadd.f32 %v61, %v3525
    %v3596 = vadd.f32 %v62, %v3530
    %v3597 = vadd.f32 %v63, %v3533
    %v3598 = vadd.f32 %v64, %v3538
    %v3599 = vadd.f32 %v65, %v3541
    %v3600 = vadd.f32 %v66, %v3546
    %v3601 = vadd.f32 %v67, %v3549
    %v3602 = vadd.f32 %v68, %v3554
    %v3603 = vadd.f32 %v69, %v3557
    %v3604 = vadd.f32 %v70, %v3562
    %v3605 = vadd.f32 %v71, %v3565
    %v3606 = vadd.f32 %v72, %v3570
    %v3607 = vadd.f32 %v73, %v3573
    %v3608 = vpack.c.bf16 %v3577, %v3576
    %v3609 = vpack.c.bf16 %v3579, %v3578
    %v3610 = vpack.c.bf16 %v3581, %v3580
    %v3611 = vpack.c.bf16 %v3583, %v3582
    %v3612 = vpack.c.bf16 %v3585, %v3584
    %v3613 = vpack.c.bf16 %v3587, %v3586
    %v3614 = vpack.c.bf16 %v3589, %v3588
    %v3615 = vpack.c.bf16 %v3591, %v3590
    %v3616 = vpack.c.bf16 %v3593, %v3592
    %v3617 = vpack.c.bf16 %v3595, %v3594
    %v3618 = vpack.c.bf16 %v3597, %v3596
    %v3619 = vpack.c.bf16 %v3599, %v3598
    %v3620 = vpack.c.bf16 %v3601, %v3600
    %v3621 = vpack.c.bf16 %v3603, %v3602
    %v3622 = vpack.c.bf16 %v3605, %v3604
    %v3623 = vpack.c.bf16 %v3607, %v3606
    %s3624 = scalar_lea.vmem %s1, 32
    %v3625 = vld [vmem:[%s3624] sm:$0xf]
    %v3626 = vld [vmem:[%s3624 + $0x4] sm:$0xf]
    %v3627 = vld [vmem:[%s3624 + $0x8] sm:$0xf]
    %v3628 = vld [vmem:[%s3624 + $0xc] sm:$0xf]
    %v3629 = vld [vmem:[%s3624 + $0x10] sm:$0xf]
    %v3630 = vld [vmem:[%s3624 + $0x14] sm:$0xf]
    %v3631 = vld [vmem:[%s3624 + $0x18] sm:$0xf]
    %v3632 = vld [vmem:[%s3624 + $0x1c] sm:$0xf]
    %v3641 = vunpack.c.l.b16 %v3625
    %v3642 = vunpack.c.l.b16 %v3626
    %v3643 = vunpack.c.l.b16 %v3627
    %v3644 = vunpack.c.l.b16 %v3628
    %v3645 = vunpack.c.l.b16 %v3629
    %v3646 = vunpack.c.l.b16 %v3630
    %v3647 = vunpack.c.l.b16 %v3631
    %v3648 = vunpack.c.l.b16 %v3632
    %v3649 = vpack.c.b16 %v3642, %v3641
    %v3650 = vpack.c.b16 %v3644, %v3643
    %v3651 = vpack.c.b16 %v3646, %v3645
    %v3652 = vpack.c.b16 %v3648, %v3647
    %v3658 = vsel %vm122, %v3608, 0
    %v3661 = vsel %vm122, %v3609, 0
    %v3664 = vsel %vm122, %v3610, 0
    %v3667 = vsel %vm122, %v3611, 0
    %v3670 = vsel %vm122, %v3612, 0
    %v3673 = vsel %vm122, %v3613, 0
    %v3676 = vsel %vm122, %v3614, 0
    %v3679 = vsel %vm122, %v3615, 0
    %v3682 = vsel %vm122, %v3616, 0
    %v3685 = vsel %vm122, %v3617, 0
    %v3688 = vsel %vm122, %v3618, 0
    %v3691 = vsel %vm122, %v3619, 0
    %v3694 = vsel %vm122, %v3620, 0
    %v3697 = vsel %vm122, %v3621, 0
    %v3700 = vsel %vm122, %v3622, 0
    %v3703 = vsel %vm122, %v3623, 0
    %3705 = vmatprep.subr.bf16.mxu0 0
    %3706 = vmatpush1.bf16.msra.mxu0 %v3649
    %3707 = vmatprep.subr.bf16.mxu0 0
    %3708 = vmatpush1.bf16.msra.mxu0 %v3650
    %3709 = vmatprep.subr.bf16.mxu0 0
    %3710 = vmatpush1.bf16.msra.mxu0 %v3651
    %3711 = vmatprep.subr.bf16.mxu0 0
    %3712 = vmatpush1.bf16.msra.mxu0 %v3652
    %3713 = vmatprep.subr.bf16.mxu0 0
    %3714 = vmatpush1.bf16.msra.mxu0 0
    %3715 = vmatprep.subr.bf16.mxu0 0
    %3716 = vmatpush1.bf16.msra.mxu0 0
    %3717 = vmatprep.subr.bf16.mxu0 0
    %3718 = vmatpush1.bf16.msra.mxu0 0
    %3719 = vmatprep.subr.bf16.mxu0 0
    %3720 = vmatpush1.bf16.msra.mxu0 0
    %3721 = vmatprep.subr.bf16.mxu0 0
    %3722 = vmatpush1.bf16.msra.mxu0 0
    %3723 = vmatprep.subr.bf16.mxu0 0
    %3724 = vmatpush1.bf16.msra.mxu0 0
    %3725 = vmatprep.subr.bf16.mxu0 0
    %3726 = vmatpush1.bf16.msra.mxu0 0
    %3727 = vmatprep.subr.bf16.mxu0 0
    %3728 = vmatpush1.bf16.msra.mxu0 0
    %3729 = vmatprep.subr.bf16.mxu0 0
    %3730 = vmatpush1.bf16.msra.mxu0 0
    %3731 = vmatprep.subr.bf16.mxu0 0
    %3732 = vmatpush1.bf16.msra.mxu0 0
    %3733 = vmatprep.subr.bf16.mxu0 0
    %3734 = vmatpush1.bf16.msra.mxu0 0
    %3735 = vmatprep.subr.bf16.mxu0 0
    %3736 = vmatpush1.bf16.msra.mxu0 0
    %3737 = vmatprep.mubr.bf16.mxu0 0
    %3738 = vmatmul.mubr.bf16.gmra.mrb[0].mxu0 %v3658
    %v3739 = vpop.f32.mrb[0].mxu0
    %v3740 = vadd.f32 0.0, %v3739
    %v3741 = vpop.f32.mrb[0].mxu0
    %v3742 = vpop.f32.mrb[0].mxu0
    %v3743 = vadd.f32 0.0, %v3742
    %v3744 = vpop.f32.mrb[0].mxu0
    %3745 = vmatprep.mubr.bf16.mxu0 0
    %3746 = vmatmul.mubr.bf16.gmra.mrb[0].mxu0 %v3661
    %v3747 = vpop.f32.mrb[0].mxu0
    %v3748 = vadd.f32 0.0, %v3747
    %v3749 = vpop.f32.mrb[0].mxu0
    %v3750 = vpop.f32.mrb[0].mxu0
    %v3751 = vadd.f32 0.0, %v3750
    %v3752 = vpop.f32.mrb[0].mxu0
    %3753 = vmatprep.mubr.bf16.mxu0 0
    %3754 = vmatmul.mubr.bf16.gmra.mrb[0].mxu0 %v3664
    %v3755 = vpop.f32.mrb[0].mxu0
    %v3756 = vadd.f32 0.0, %v3755
    %v3757 = vpop.f32.mrb[0].mxu0
    %v3758 = vpop.f32.mrb[0].mxu0
    %v3759 = vadd.f32 0.0, %v3758
    %v3760 = vpop.f32.mrb[0].mxu0
    %3761 = vmatprep.mubr.bf16.mxu0 0
    %3762 = vmatmul.mubr.bf16.gmra.mrb[0].mxu0 %v3667
    %v3763 = vpop.f32.mrb[0].mxu0
    %v3764 = vadd.f32 0.0, %v3763
    %v3765 = vpop.f32.mrb[0].mxu0
    %v3766 = vpop.f32.mrb[0].mxu0
    %v3767 = vadd.f32 0.0, %v3766
    %v3768 = vpop.f32.mrb[0].mxu0
    %3769 = vmatprep.mubr.bf16.mxu0 0
    %3770 = vmatmul.mubr.bf16.gmra.mrb[0].mxu0 %v3670
    %v3771 = vpop.f32.mrb[0].mxu0
    %v3772 = vadd.f32 0.0, %v3771
    %v3773 = vpop.f32.mrb[0].mxu0
    %v3774 = vpop.f32.mrb[0].mxu0
    %v3775 = vadd.f32 0.0, %v3774
    %v3776 = vpop.f32.mrb[0].mxu0
    %3777 = vmatprep.mubr.bf16.mxu0 0
    %3778 = vmatmul.mubr.bf16.gmra.mrb[0].mxu0 %v3673
    %v3779 = vpop.f32.mrb[0].mxu0
    %v3780 = vadd.f32 0.0, %v3779
    %v3781 = vpop.f32.mrb[0].mxu0
    %v3782 = vpop.f32.mrb[0].mxu0
    %v3783 = vadd.f32 0.0, %v3782
    %v3784 = vpop.f32.mrb[0].mxu0
    %3785 = vmatprep.mubr.bf16.mxu0 0
    %3786 = vmatmul.mubr.bf16.gmra.mrb[0].mxu0 %v3676
    %v3787 = vpop.f32.mrb[0].mxu0
    %v3788 = vadd.f32 0.0, %v3787
    %v3789 = vpop.f32.mrb[0].mxu0
    %v3790 = vpop.f32.mrb[0].mxu0
    %v3791 = vadd.f32 0.0, %v3790
    %v3792 = vpop.f32.mrb[0].mxu0
    %3793 = vmatprep.mubr.bf16.mxu0 0
    %3794 = vmatmul.mubr.bf16.gmra.mrb[0].mxu0 %v3679
    %v3795 = vpop.f32.mrb[0].mxu0
    %v3796 = vadd.f32 0.0, %v3795
    %v3797 = vpop.f32.mrb[0].mxu0
    %v3798 = vpop.f32.mrb[0].mxu0
    %v3799 = vadd.f32 0.0, %v3798
    %v3800 = vpop.f32.mrb[0].mxu0
    %3801 = vmatprep.mubr.bf16.mxu0 0
    %3802 = vmatmul.mubr.bf16.gmra.mrb[0].mxu0 %v3682
    %v3803 = vpop.f32.mrb[0].mxu0
    %v3804 = vadd.f32 0.0, %v3803
    %v3805 = vpop.f32.mrb[0].mxu0
    %v3806 = vpop.f32.mrb[0].mxu0
    %v3807 = vadd.f32 0.0, %v3806
    %v3808 = vpop.f32.mrb[0].mxu0
    %3809 = vmatprep.mubr.bf16.mxu0 0
    %3810 = vmatmul.mubr.bf16.gmra.mrb[0].mxu0 %v3685
    %v3811 = vpop.f32.mrb[0].mxu0
    %v3812 = vadd.f32 0.0, %v3811
    %v3813 = vpop.f32.mrb[0].mxu0
    %v3814 = vpop.f32.mrb[0].mxu0
    %v3815 = vadd.f32 0.0, %v3814
    %v3816 = vpop.f32.mrb[0].mxu0
    %3817 = vmatprep.mubr.bf16.mxu0 0
    %3818 = vmatmul.mubr.bf16.gmra.mrb[0].mxu0 %v3688
    %v3819 = vpop.f32.mrb[0].mxu0
    %v3820 = vadd.f32 0.0, %v3819
    %v3821 = vpop.f32.mrb[0].mxu0
    %v3822 = vpop.f32.mrb[0].mxu0
    %v3823 = vadd.f32 0.0, %v3822
    %v3824 = vpop.f32.mrb[0].mxu0
    %3825 = vmatprep.mubr.bf16.mxu0 0
    %3826 = vmatmul.mubr.bf16.gmra.mrb[0].mxu0 %v3691
    %v3827 = vpop.f32.mrb[0].mxu0
    %v3828 = vadd.f32 0.0, %v3827
    %v3829 = vpop.f32.mrb[0].mxu0
    %v3830 = vpop.f32.mrb[0].mxu0
    %v3831 = vadd.f32 0.0, %v3830
    %v3832 = vpop.f32.mrb[0].mxu0
    %3833 = vmatprep.mubr.bf16.mxu0 0
    %3834 = vmatmul.mubr.bf16.gmra.mrb[0].mxu0 %v3694
    %v3835 = vpop.f32.mrb[0].mxu0
    %v3836 = vadd.f32 0.0, %v3835
    %v3837 = vpop.f32.mrb[0].mxu0
    %v3838 = vpop.f32.mrb[0].mxu0
    %v3839 = vadd.f32 0.0, %v3838
    %v3840 = vpop.f32.mrb[0].mxu0
    %3841 = vmatprep.mubr.bf16.mxu0 0
    %3842 = vmatmul.mubr.bf16.gmra.mrb[0].mxu0 %v3697
    %v3843 = vpop.f32.mrb[0].mxu0
    %v3844 = vadd.f32 0.0, %v3843
    %v3845 = vpop.f32.mrb[0].mxu0
    %v3846 = vpop.f32.mrb[0].mxu0
    %v3847 = vadd.f32 0.0, %v3846
    %v3848 = vpop.f32.mrb[0].mxu0
    %3849 = vmatprep.mubr.bf16.mxu0 0
    %3850 = vmatmul.mubr.bf16.gmra.mrb[0].mxu0 %v3700
    %v3851 = vpop.f32.mrb[0].mxu0
    %v3852 = vadd.f32 0.0, %v3851
    %v3853 = vpop.f32.mrb[0].mxu0
    %v3854 = vpop.f32.mrb[0].mxu0
    %v3855 = vadd.f32 0.0, %v3854
    %v3856 = vpop.f32.mrb[0].mxu0
    %3857 = vmatprep.mubr.bf16.mxu0 0
    %3858 = vmatmul.mubr.bf16.gmra.mrb[0].mxu0 %v3703
    %v3859 = vpop.f32.mrb[0].mxu0
    %v3860 = vadd.f32 0.0, %v3859
    %v3861 = vpop.f32.mrb[0].mxu0
    %v3862 = vpop.f32.mrb[0].mxu0
    %v3863 = vadd.f32 0.0, %v3862
    %v3864 = vpop.f32.mrb[0].mxu0
    %3865 = vdwg.mxu0
    %vm3866 = vcmp.gt.f32.partialorder %v3740, 0.0
    %vm3867 = vcmp.gt.f32.partialorder %v3743, 0.0
    %vm3868 = vcmp.gt.f32.partialorder %v3748, 0.0
    %vm3869 = vcmp.gt.f32.partialorder %v3751, 0.0
    %vm3870 = vcmp.gt.f32.partialorder %v3756, 0.0
    %vm3871 = vcmp.gt.f32.partialorder %v3759, 0.0
    %vm3872 = vcmp.gt.f32.partialorder %v3764, 0.0
    %vm3873 = vcmp.gt.f32.partialorder %v3767, 0.0
    %vm3874 = vcmp.gt.f32.partialorder %v3772, 0.0
    %vm3875 = vcmp.gt.f32.partialorder %v3775, 0.0
    %vm3876 = vcmp.gt.f32.partialorder %v3780, 0.0
    %vm3877 = vcmp.gt.f32.partialorder %v3783, 0.0
    %vm3878 = vcmp.gt.f32.partialorder %v3788, 0.0
    %vm3879 = vcmp.gt.f32.partialorder %v3791, 0.0
    %vm3880 = vcmp.gt.f32.partialorder %v3796, 0.0
    %vm3881 = vcmp.gt.f32.partialorder %v3799, 0.0
    %vm3882 = vcmp.gt.f32.partialorder %v3804, 0.0
    %vm3883 = vcmp.gt.f32.partialorder %v3807, 0.0
    %vm3884 = vcmp.gt.f32.partialorder %v3812, 0.0
    %vm3885 = vcmp.gt.f32.partialorder %v3815, 0.0
    %vm3886 = vcmp.gt.f32.partialorder %v3820, 0.0
    %vm3887 = vcmp.gt.f32.partialorder %v3823, 0.0
    %vm3888 = vcmp.gt.f32.partialorder %v3828, 0.0
    %vm3889 = vcmp.gt.f32.partialorder %v3831, 0.0
    %vm3890 = vcmp.gt.f32.partialorder %v3836, 0.0
    %vm3891 = vcmp.gt.f32.partialorder %v3839, 0.0
    %vm3892 = vcmp.gt.f32.partialorder %v3844, 0.0
    %vm3893 = vcmp.gt.f32.partialorder %v3847, 0.0
    %vm3894 = vcmp.gt.f32.partialorder %v3852, 0.0
    %vm3895 = vcmp.gt.f32.partialorder %v3855, 0.0
    %vm3896 = vcmp.gt.f32.partialorder %v3860, 0.0
    %vm3897 = vcmp.gt.f32.partialorder %v3863, 0.0
    %v3898 = vmul.f32 %v3740, 0.2
    %v3899 = vmul.f32 %v3743, 0.2
    %v3900 = vmul.f32 %v3748, 0.2
    %v3901 = vmul.f32 %v3751, 0.2
    %v3902 = vmul.f32 %v3756, 0.2
    %v3903 = vmul.f32 %v3759, 0.2
    %v3904 = vmul.f32 %v3764, 0.2
    %v3905 = vmul.f32 %v3767, 0.2
    %v3906 = vmul.f32 %v3772, 0.2
    %v3907 = vmul.f32 %v3775, 0.2
    %v3908 = vmul.f32 %v3780, 0.2
    %v3909 = vmul.f32 %v3783, 0.2
    %v3910 = vmul.f32 %v3788, 0.2
    %v3911 = vmul.f32 %v3791, 0.2
    %v3912 = vmul.f32 %v3796, 0.2
    %v3913 = vmul.f32 %v3799, 0.2
    %v3914 = vmul.f32 %v3804, 0.2
    %v3915 = vmul.f32 %v3807, 0.2
    %v3916 = vmul.f32 %v3812, 0.2
    %v3917 = vmul.f32 %v3815, 0.2
    %v3918 = vmul.f32 %v3820, 0.2
    %v3919 = vmul.f32 %v3823, 0.2
    %v3920 = vmul.f32 %v3828, 0.2
    %v3921 = vmul.f32 %v3831, 0.2
    %v3922 = vmul.f32 %v3836, 0.2
    %v3923 = vmul.f32 %v3839, 0.2
    %v3924 = vmul.f32 %v3844, 0.2
    %v3925 = vmul.f32 %v3847, 0.2
    %v3926 = vmul.f32 %v3852, 0.2
    %v3927 = vmul.f32 %v3855, 0.2
    %v3928 = vmul.f32 %v3860, 0.2
    %v3929 = vmul.f32 %v3863, 0.2
    %v3930 = vsel %vm3866, %v3740, %v3898
    %v3931 = vsel %vm3867, %v3743, %v3899
    %v3932 = vsel %vm3868, %v3748, %v3900
    %v3933 = vsel %vm3869, %v3751, %v3901
    %v3934 = vsel %vm3870, %v3756, %v3902
    %v3935 = vsel %vm3871, %v3759, %v3903
    %v3936 = vsel %vm3872, %v3764, %v3904
    %v3937 = vsel %vm3873, %v3767, %v3905
    %v3938 = vsel %vm3874, %v3772, %v3906
    %v3939 = vsel %vm3875, %v3775, %v3907
    %v3940 = vsel %vm3876, %v3780, %v3908
    %v3941 = vsel %vm3877, %v3783, %v3909
    %v3942 = vsel %vm3878, %v3788, %v3910
    %v3943 = vsel %vm3879, %v3791, %v3911
    %v3944 = vsel %vm3880, %v3796, %v3912
    %v3945 = vsel %vm3881, %v3799, %v3913
    %v3946 = vsel %vm3882, %v3804, %v3914
    %v3947 = vsel %vm3883, %v3807, %v3915
    %v3948 = vsel %vm3884, %v3812, %v3916
    %v3949 = vsel %vm3885, %v3815, %v3917
    %v3950 = vsel %vm3886, %v3820, %v3918
    %v3951 = vsel %vm3887, %v3823, %v3919
    %v3952 = vsel %vm3888, %v3828, %v3920
    %v3953 = vsel %vm3889, %v3831, %v3921
    %v3954 = vsel %vm3890, %v3836, %v3922
    %v3955 = vsel %vm3891, %v3839, %v3923
    %v3956 = vsel %vm3892, %v3844, %v3924
    %v3957 = vsel %vm3893, %v3847, %v3925
    %v3958 = vsel %vm3894, %v3852, %v3926
    %v3959 = vsel %vm3895, %v3855, %v3927
    %v3960 = vsel %vm3896, %v3860, %v3928
    %v3961 = vsel %vm3897, %v3863, %v3929
    %v3962 = vpack.c.bf16 %v3931, %v3930
    %v3963 = vpack.c.bf16 %v3933, %v3932
    %v3964 = vpack.c.bf16 %v3935, %v3934
    %v3965 = vpack.c.bf16 %v3937, %v3936
    %v3966 = vpack.c.bf16 %v3939, %v3938
    %v3967 = vpack.c.bf16 %v3941, %v3940
    %v3968 = vpack.c.bf16 %v3943, %v3942
    %v3969 = vpack.c.bf16 %v3945, %v3944
    %v3970 = vpack.c.bf16 %v3947, %v3946
    %v3971 = vpack.c.bf16 %v3949, %v3948
    %v3972 = vpack.c.bf16 %v3951, %v3950
    %v3973 = vpack.c.bf16 %v3953, %v3952
    %v3974 = vpack.c.bf16 %v3955, %v3954
    %v3975 = vpack.c.bf16 %v3957, %v3956
    %v3976 = vpack.c.bf16 %v3959, %v3958
    %v3977 = vpack.c.bf16 %v3961, %v3960
    %v3979 = vshrl.u32 %v3962, 16
    %v3981 = vrot.slane %v3979, 7
    %v3982 = vshll.u32 %v3962, 16
    %v3984 = vor.u32 %v3981, %v3982
    %v3986 = vshrl.u32 %v3963, 16
    %v3988 = vrot.slane %v3986, 7
    %v3989 = vshll.u32 %v3963, 16
    %v3991 = vor.u32 %v3988, %v3989
    %v3993 = vshrl.u32 %v3964, 16
    %v3995 = vrot.slane %v3993, 7
    %v3996 = vshll.u32 %v3964, 16
    %v3998 = vor.u32 %v3995, %v3996
    %v4000 = vshrl.u32 %v3965, 16
    %v4002 = vrot.slane %v4000, 7
    %v4003 = vshll.u32 %v3965, 16
    %v4005 = vor.u32 %v4002, %v4003
    %v4007 = vshrl.u32 %v3966, 16
    %v4009 = vrot.slane %v4007, 7
    %v4010 = vshll.u32 %v3966, 16
    %v4012 = vor.u32 %v4009, %v4010
    %v4014 = vshrl.u32 %v3967, 16
    %v4016 = vrot.slane %v4014, 7
    %v4017 = vshll.u32 %v3967, 16
    %v4019 = vor.u32 %v4016, %v4017
    %v4021 = vshrl.u32 %v3968, 16
    %v4023 = vrot.slane %v4021, 7
    %v4024 = vshll.u32 %v3968, 16
    %v4026 = vor.u32 %v4023, %v4024
    %v4028 = vshrl.u32 %v3969, 16
    %v4030 = vrot.slane %v4028, 7
    %v4031 = vshll.u32 %v3969, 16
    %v4033 = vor.u32 %v4030, %v4031
    %v4035 = vshrl.u32 %v3970, 16
    %v4037 = vrot.slane %v4035, 7
    %v4038 = vshll.u32 %v3970, 16
    %v4040 = vor.u32 %v4037, %v4038
    %v4042 = vshrl.u32 %v3971, 16
    %v4044 = vrot.slane %v4042, 7
    %v4045 = vshll.u32 %v3971, 16
    %v4047 = vor.u32 %v4044, %v4045
    %v4049 = vshrl.u32 %v3972, 16
    %v4051 = vrot.slane %v4049, 7
    %v4052 = vshll.u32 %v3972, 16
    %v4054 = vor.u32 %v4051, %v4052
    %v4056 = vshrl.u32 %v3973, 16
    %v4058 = vrot.slane %v4056, 7
    %v4059 = vshll.u32 %v3973, 16
    %v4061 = vor.u32 %v4058, %v4059
    %v4063 = vshrl.u32 %v3974, 16
    %v4065 = vrot.slane %v4063, 7
    %v4066 = vshll.u32 %v3974, 16
    %v4068 = vor.u32 %v4065, %v4066
    %v4070 = vshrl.u32 %v3975, 16
    %v4072 = vrot.slane %v4070, 7
    %v4073 = vshll.u32 %v3975, 16
    %v4075 = vor.u32 %v4072, %v4073
    %v4077 = vshrl.u32 %v3976, 16
    %v4079 = vrot.slane %v4077, 7
    %v4080 = vshll.u32 %v3976, 16
    %v4082 = vor.u32 %v4079, %v4080
    %v4084 = vshrl.u32 %v3977, 16
    %v4086 = vrot.slane %v4084, 7
    %v4087 = vshll.u32 %v3977, 16
    %v4089 = vor.u32 %v4086, %v4087
    %v4122 = vsel %vm590, 0, %v3984
    %v4123 = vsel %vm590, 0, %v3991
    %v4124 = vsel %vm590, 0, %v3998
    %v4125 = vsel %vm590, 0, %v4005
    %v4126 = vsel %vm590, 0, %v4012
    %v4127 = vsel %vm590, 0, %v4019
    %v4128 = vsel %vm590, 0, %v4026
    %v4129 = vsel %vm590, 0, %v4033
    %v4130 = vsel %vm590, 0, %v4040
    %v4131 = vsel %vm590, 0, %v4047
    %v4132 = vsel %vm590, 0, %v4054
    %v4133 = vsel %vm590, 0, %v4061
    %v4134 = vsel %vm590, 0, %v4068
    %v4135 = vsel %vm590, 0, %v4075
    %v4136 = vsel %vm590, 0, %v4082
    %v4137 = vsel %vm590, 0, %v4089
    %v4138 = vsel %vm590, %v3981, 0
    %v4139 = vsel %vm590, %v3988, 0
    %v4140 = vsel %vm590, %v3995, 0
    %v4141 = vsel %vm590, %v4002, 0
    %v4142 = vsel %vm590, %v4009, 0
    %v4143 = vsel %vm590, %v4016, 0
    %v4144 = vsel %vm590, %v4023, 0
    %v4145 = vsel %vm590, %v4030, 0
    %v4146 = vsel %vm590, %v4037, 0
    %v4147 = vsel %vm590, %v4044, 0
    %v4148 = vsel %vm590, %v4051, 0
    %v4149 = vsel %vm590, %v4058, 0
    %v4150 = vsel %vm590, %v4065, 0
    %v4151 = vsel %vm590, %v4072, 0
    %v4152 = vsel %vm590, %v4079, 0
    %v4153 = vsel %vm590, %v4086, 0
    %v4186 = vunpack.c.l.b16 %v4122
    %v4187 = vunpack.c.h.b16 %v4122
    %v4188 = vunpack.c.l.b16 %v4138
    %v4189 = vunpack.c.l.b16 %v4123
    %v4190 = vunpack.c.h.b16 %v4123
    %v4191 = vunpack.c.l.b16 %v4139
    %v4192 = vunpack.c.l.b16 %v4124
    %v4193 = vunpack.c.h.b16 %v4124
    %v4194 = vunpack.c.l.b16 %v4140
    %v4195 = vunpack.c.l.b16 %v4125
    %v4196 = vunpack.c.h.b16 %v4125
    %v4197 = vunpack.c.l.b16 %v4141
    %v4198 = vunpack.c.l.b16 %v4126
    %v4199 = vunpack.c.h.b16 %v4126
    %v4200 = vunpack.c.l.b16 %v4142
    %v4201 = vunpack.c.l.b16 %v4127
    %v4202 = vunpack.c.h.b16 %v4127
    %v4203 = vunpack.c.l.b16 %v4143
    %v4204 = vunpack.c.l.b16 %v4128
    %v4205 = vunpack.c.h.b16 %v4128
    %v4206 = vunpack.c.l.b16 %v4144
    %v4207 = vunpack.c.l.b16 %v4129
    %v4208 = vunpack.c.h.b16 %v4129
    %v4209 = vunpack.c.l.b16 %v4145
    %v4210 = vunpack.c.l.b16 %v4130
    %v4211 = vunpack.c.h.b16 %v4130
    %v4212 = vunpack.c.l.b16 %v4146
    %v4213 = vunpack.c.l.b16 %v4131
    %v4214 = vunpack.c.h.b16 %v4131
    %v4215 = vunpack.c.l.b16 %v4147
    %v4216 = vunpack.c.l.b16 %v4132
    %v4217 = vunpack.c.h.b16 %v4132
    %v4218 = vunpack.c.l.b16 %v4148
    %v4219 = vunpack.c.l.b16 %v4133
    %v4220 = vunpack.c.h.b16 %v4133
    %v4221 = vunpack.c.l.b16 %v4149
    %v4222 = vunpack.c.l.b16 %v4134
    %v4223 = vunpack.c.h.b16 %v4134
    %v4224 = vunpack.c.l.b16 %v4150
    %v4225 = vunpack.c.l.b16 %v4135
    %v4226 = vunpack.c.h.b16 %v4135
    %v4227 = vunpack.c.l.b16 %v4151
    %v4228 = vunpack.c.l.b16 %v4136
    %v4229 = vunpack.c.h.b16 %v4136
    %v4230 = vunpack.c.l.b16 %v4152
    %v4231 = vunpack.c.l.b16 %v4137
    %v4232 = vunpack.c.h.b16 %v4137
    %v4233 = vunpack.c.l.b16 %v4153
    %v4234 = vpack.c.b16 %v4186, %v4186
    %v4235 = vpack.c.b16 %v4187, %v4187
    %v4236 = vpack.c.b16 %v4188, %v4188
    %v4237 = vpack.c.b16 %v4189, %v4189
    %v4238 = vpack.c.b16 %v4190, %v4190
    %v4239 = vpack.c.b16 %v4191, %v4191
    %v4240 = vpack.c.b16 %v4192, %v4192
    %v4241 = vpack.c.b16 %v4193, %v4193
    %v4242 = vpack.c.b16 %v4194, %v4194
    %v4243 = vpack.c.b16 %v4195, %v4195
    %v4244 = vpack.c.b16 %v4196, %v4196
    %v4245 = vpack.c.b16 %v4197, %v4197
    %v4246 = vpack.c.b16 %v4198, %v4198
    %v4247 = vpack.c.b16 %v4199, %v4199
    %v4248 = vpack.c.b16 %v4200, %v4200
    %v4249 = vpack.c.b16 %v4201, %v4201
    %v4250 = vpack.c.b16 %v4202, %v4202
    %v4251 = vpack.c.b16 %v4203, %v4203
    %v4252 = vpack.c.b16 %v4204, %v4204
    %v4253 = vpack.c.b16 %v4205, %v4205
    %v4254 = vpack.c.b16 %v4206, %v4206
    %v4255 = vpack.c.b16 %v4207, %v4207
    %v4256 = vpack.c.b16 %v4208, %v4208
    %v4257 = vpack.c.b16 %v4209, %v4209
    %v4258 = vpack.c.b16 %v4210, %v4210
    %v4259 = vpack.c.b16 %v4211, %v4211
    %v4260 = vpack.c.b16 %v4212, %v4212
    %v4261 = vpack.c.b16 %v4213, %v4213
    %v4262 = vpack.c.b16 %v4214, %v4214
    %v4263 = vpack.c.b16 %v4215, %v4215
    %v4264 = vpack.c.b16 %v4216, %v4216
    %v4265 = vpack.c.b16 %v4217, %v4217
    %v4266 = vpack.c.b16 %v4218, %v4218
    %v4267 = vpack.c.b16 %v4219, %v4219
    %v4268 = vpack.c.b16 %v4220, %v4220
    %v4269 = vpack.c.b16 %v4221, %v4221
    %v4270 = vpack.c.b16 %v4222, %v4222
    %v4271 = vpack.c.b16 %v4223, %v4223
    %v4272 = vpack.c.b16 %v4224, %v4224
    %v4273 = vpack.c.b16 %v4225, %v4225
    %v4274 = vpack.c.b16 %v4226, %v4226
    %v4275 = vpack.c.b16 %v4227, %v4227
    %v4276 = vpack.c.b16 %v4228, %v4228
    %v4277 = vpack.c.b16 %v4229, %v4229
    %v4278 = vpack.c.b16 %v4230, %v4230
    %v4279 = vpack.c.b16 %v4231, %v4231
    %v4280 = vpack.c.b16 %v4232, %v4232
    %v4281 = vpack.c.b16 %v4233, %v4233
    %4330 = vst.msk [vmem:[%s799] sm:$0xf] %vm33, %v4234
    %4331 = vst.msk [vmem:[%s799 + $0x4] sm:$0xf] %vm33, %v4235
    %4332 = vst.msk [vmem:[%s799 + $0x8] sm:$0x1] %vm36, %v4236
    %4333 = vst.msk [vmem:[%s799 + $0xc] sm:$0xf] %vm33, %v4237
    %4334 = vst.msk [vmem:[%s799 + $0x10] sm:$0xf] %vm33, %v4238
    %4335 = vst.msk [vmem:[%s799 + $0x14] sm:$0x1] %vm36, %v4239
    %4336 = vst.msk [vmem:[%s799 + $0x18] sm:$0xf] %vm33, %v4240
    %4337 = vst.msk [vmem:[%s799 + $0x1c] sm:$0xf] %vm33, %v4241
    %4338 = vst.msk [vmem:[%s799 + $0x20] sm:$0x1] %vm36, %v4242
    %4339 = vst.msk [vmem:[%s799 + $0x24] sm:$0xf] %vm33, %v4243
    %4340 = vst.msk [vmem:[%s799 + $0x28] sm:$0xf] %vm33, %v4244
    %4341 = vst.msk [vmem:[%s799 + $0x2c] sm:$0x1] %vm36, %v4245
    %4342 = vst.msk [vmem:[%s799 + $0x30] sm:$0xf] %vm33, %v4246
    %4343 = vst.msk [vmem:[%s799 + $0x34] sm:$0xf] %vm33, %v4247
    %4344 = vst.msk [vmem:[%s799 + $0x38] sm:$0x1] %vm36, %v4248
    %4345 = vst.msk [vmem:[%s799 + $0x3c] sm:$0xf] %vm33, %v4249
    %4346 = vst.msk [vmem:[%s799 + $0x40] sm:$0xf] %vm33, %v4250
    %4347 = vst.msk [vmem:[%s799 + $0x44] sm:$0x1] %vm36, %v4251
    %4348 = vst.msk [vmem:[%s799 + $0x48] sm:$0xf] %vm33, %v4252
    %4349 = vst.msk [vmem:[%s799 + $0x4c] sm:$0xf] %vm33, %v4253
    %4350 = vst.msk [vmem:[%s799 + $0x50] sm:$0x1] %vm36, %v4254
    %4351 = vst.msk [vmem:[%s799 + $0x54] sm:$0xf] %vm33, %v4255
    %4352 = vst.msk [vmem:[%s799 + $0x58] sm:$0xf] %vm33, %v4256
    %4353 = vst.msk [vmem:[%s799 + $0x5c] sm:$0x1] %vm36, %v4257
    %4354 = vst.msk [vmem:[%s799 + $0x60] sm:$0xf] %vm33, %v4258
    %4355 = vst.msk [vmem:[%s799 + $0x64] sm:$0xf] %vm33, %v4259
    %4356 = vst.msk [vmem:[%s799 + $0x68] sm:$0x1] %vm36, %v4260
    %4357 = vst.msk [vmem:[%s799 + $0x6c] sm:$0xf] %vm33, %v4261
    %4358 = vst.msk [vmem:[%s799 + $0x70] sm:$0xf] %vm33, %v4262
    %4359 = vst.msk [vmem:[%s799 + $0x74] sm:$0x1] %vm36, %v4263
    %4360 = vst.msk [vmem:[%s799 + $0x78] sm:$0xf] %vm33, %v4264
    %4361 = vst.msk [vmem:[%s799 + $0x7c] sm:$0xf] %vm33, %v4265
    %4362 = vst.msk [vmem:[%s799 + $0x80] sm:$0x1] %vm36, %v4266
    %4363 = vst.msk [vmem:[%s799 + $0x84] sm:$0xf] %vm33, %v4267
    %4364 = vst.msk [vmem:[%s799 + $0x88] sm:$0xf] %vm33, %v4268
    %4365 = vst.msk [vmem:[%s799 + $0x8c] sm:$0x1] %vm36, %v4269
    %4366 = vst.msk [vmem:[%s799 + $0x90] sm:$0xf] %vm33, %v4270
    %4367 = vst.msk [vmem:[%s799 + $0x94] sm:$0xf] %vm33, %v4271
    %4368 = vst.msk [vmem:[%s799 + $0x98] sm:$0x1] %vm36, %v4272
    %4369 = vst.msk [vmem:[%s799 + $0x9c] sm:$0xf] %vm33, %v4273
    %4370 = vst.msk [vmem:[%s799 + $0xa0] sm:$0xf] %vm33, %v4274
    %4371 = vst.msk [vmem:[%s799 + $0xa4] sm:$0x1] %vm36, %v4275
    %4372 = vst.msk [vmem:[%s799 + $0xa8] sm:$0xf] %vm33, %v4276
    %4373 = vst.msk [vmem:[%s799 + $0xac] sm:$0xf] %vm33, %v4277
    %4374 = vst.msk [vmem:[%s799 + $0xb0] sm:$0x1] %vm36, %v4278
    %4375 = vst.msk [vmem:[%s799 + $0xb4] sm:$0xf] %vm33, %v4279
    %4376 = vst.msk [vmem:[%s799 + $0xb8] sm:$0xf] %vm33, %v4280
    %4377 = vst.msk [vmem:[%s799 + $0xbc] sm:$0x1] %vm36, %v4281
    %v4378 = vld [vmem:[#allocation2] sm:$0xf]
    %v4379 = vld [vmem:[#allocation2 + $0x4] sm:$0xf]
    %v4380 = vld [vmem:[#allocation2 + $0xc] sm:$0xf]
    %v4381 = vld [vmem:[#allocation2 + $0x10] sm:$0xf]
    %v4382 = vld [vmem:[#allocation2 + $0x18] sm:$0xf]
    %v4383 = vld [vmem:[#allocation2 + $0x1c] sm:$0xf]
    %v4384 = vld [vmem:[#allocation2 + $0x24] sm:$0xf]
    %v4385 = vld [vmem:[#allocation2 + $0x28] sm:$0xf]
    %v4386 = vld [vmem:[#allocation2 + $0x30] sm:$0xf]
    %v4387 = vld [vmem:[#allocation2 + $0x34] sm:$0xf]
    %v4388 = vld [vmem:[#allocation2 + $0x3c] sm:$0xf]
    %v4389 = vld [vmem:[#allocation2 + $0x40] sm:$0xf]
    %v4390 = vld [vmem:[#allocation2 + $0x48] sm:$0xf]
    %v4391 = vld [vmem:[#allocation2 + $0x4c] sm:$0xf]
    %v4392 = vld [vmem:[#allocation2 + $0x54] sm:$0xf]
    %v4393 = vld [vmem:[#allocation2 + $0x58] sm:$0xf]
    %v4394 = vld [vmem:[#allocation2 + $0x60] sm:$0xf]
    %v4395 = vld [vmem:[#allocation2 + $0x64] sm:$0xf]
    %v4396 = vld [vmem:[#allocation2 + $0x6c] sm:$0xf]
    %v4397 = vld [vmem:[#allocation2 + $0x70] sm:$0xf]
    %v4398 = vld [vmem:[#allocation2 + $0x78] sm:$0xf]
    %v4399 = vld [vmem:[#allocation2 + $0x7c] sm:$0xf]
    %v4400 = vld [vmem:[#allocation2 + $0x84] sm:$0xf]
    %v4401 = vld [vmem:[#allocation2 + $0x88] sm:$0xf]
    %v4402 = vld [vmem:[#allocation2 + $0x90] sm:$0xf]
    %v4403 = vld [vmem:[#allocation2 + $0x94] sm:$0xf]
    %v4404 = vld [vmem:[#allocation2 + $0x9c] sm:$0xf]
    %v4405 = vld [vmem:[#allocation2 + $0xa0] sm:$0xf]
    %v4406 = vld [vmem:[#allocation2 + $0xa8] sm:$0xf]
    %v4407 = vld [vmem:[#allocation2 + $0xac] sm:$0xf]
    %v4408 = vld [vmem:[#allocation2 + $0xb4] sm:$0xf]
    %v4409 = vld [vmem:[#allocation2 + $0xb8] sm:$0xf]
    %v4410 = vld [vmem:[#allocation2 + $0x8] sm:$0x1]
    %v4411 = vld [vmem:[#allocation2 + $0x14] sm:$0x1]
    %v4412 = vld [vmem:[#allocation2 + $0x20] sm:$0x1]
    %v4413 = vld [vmem:[#allocation2 + $0x2c] sm:$0x1]
    %v4414 = vld [vmem:[#allocation2 + $0x38] sm:$0x1]
    %v4415 = vld [vmem:[#allocation2 + $0x44] sm:$0x1]
    %v4416 = vld [vmem:[#allocation2 + $0x50] sm:$0x1]
    %v4417 = vld [vmem:[#allocation2 + $0x5c] sm:$0x1]
    %v4418 = vld [vmem:[#allocation2 + $0x68] sm:$0x1]
    %v4419 = vld [vmem:[#allocation2 + $0x74] sm:$0x1]
    %v4420 = vld [vmem:[#allocation2 + $0x80] sm:$0x1]
    %v4421 = vld [vmem:[#allocation2 + $0x8c] sm:$0x1]
    %v4422 = vld [vmem:[#allocation2 + $0x98] sm:$0x1]
    %v4423 = vld [vmem:[#allocation2 + $0xa4] sm:$0x1]
    %v4424 = vld [vmem:[#allocation2 + $0xb0] sm:$0x1]
    %v4425 = vld [vmem:[#allocation2 + $0xbc] sm:$0x1]
    %v4426 = vld [vmem:[#allocation2] sm:$0xe]
    %v4427 = vld [vmem:[#allocation2 + $0xc] sm:$0xe]
    %v4428 = vld [vmem:[#allocation2 + $0x18] sm:$0xe]
    %v4429 = vld [vmem:[#allocation2 + $0x24] sm:$0xe]
    %v4430 = vld [vmem:[#allocation2 + $0x30] sm:$0xe]
    %v4431 = vld [vmem:[#allocation2 + $0x3c] sm:$0xe]
    %v4432 = vld [vmem:[#allocation2 + $0x48] sm:$0xe]
    %v4433 = vld [vmem:[#allocation2 + $0x54] sm:$0xe]
    %v4434 = vld [vmem:[#allocation2 + $0x60] sm:$0xe]
    %v4435 = vld [vmem:[#allocation2 + $0x6c] sm:$0xe]
    %v4436 = vld [vmem:[#allocation2 + $0x78] sm:$0xe]
    %v4437 = vld [vmem:[#allocation2 + $0x84] sm:$0xe]
    %v4438 = vld [vmem:[#allocation2 + $0x90] sm:$0xe]
    %v4439 = vld [vmem:[#allocation2 + $0x9c] sm:$0xe]
    %v4440 = vld [vmem:[#allocation2 + $0xa8] sm:$0xe]
    %v4441 = vld [vmem:[#allocation2 + $0xb4] sm:$0xe]
    %v4442 = vld [vmem:[%s799] sm:$0xf]
    %v4443 = vld [vmem:[%s799 + $0x4] sm:$0xf]
    %v4444 = vld [vmem:[%s799 + $0xc] sm:$0xf]
    %v4445 = vld [vmem:[%s799 + $0x10] sm:$0xf]
    %v4446 = vld [vmem:[%s799 + $0x18] sm:$0xf]
    %v4447 = vld [vmem:[%s799 + $0x1c] sm:$0xf]
    %v4448 = vld [vmem:[%s799 + $0x24] sm:$0xf]
    %v4449 = vld [vmem:[%s799 + $0x28] sm:$0xf]
    %v4450 = vld [vmem:[%s799 + $0x30] sm:$0xf]
    %v4451 = vld [vmem:[%s799 + $0x34] sm:$0xf]
    %v4452 = vld [vmem:[%s799 + $0x3c] sm:$0xf]
    %v4453 = vld [vmem:[%s799 + $0x40] sm:$0xf]
    %v4454 = vld [vmem:[%s799 + $0x48] sm:$0xf]
    %v4455 = vld [vmem:[%s799 + $0x4c] sm:$0xf]
    %v4456 = vld [vmem:[%s799 + $0x54] sm:$0xf]
    %v4457 = vld [vmem:[%s799 + $0x58] sm:$0xf]
    %v4458 = vld [vmem:[%s799 + $0x60] sm:$0xf]
    %v4459 = vld [vmem:[%s799 + $0x64] sm:$0xf]
    %v4460 = vld [vmem:[%s799 + $0x6c] sm:$0xf]
    %v4461 = vld [vmem:[%s799 + $0x70] sm:$0xf]
    %v4462 = vld [vmem:[%s799 + $0x78] sm:$0xf]
    %v4463 = vld [vmem:[%s799 + $0x7c] sm:$0xf]
    %v4464 = vld [vmem:[%s799 + $0x84] sm:$0xf]
    %v4465 = vld [vmem:[%s799 + $0x88] sm:$0xf]
    %v4466 = vld [vmem:[%s799 + $0x90] sm:$0xf]
    %v4467 = vld [vmem:[%s799 + $0x94] sm:$0xf]
    %v4468 = vld [vmem:[%s799 + $0x9c] sm:$0xf]
    %v4469 = vld [vmem:[%s799 + $0xa0] sm:$0xf]
    %v4470 = vld [vmem:[%s799 + $0xa8] sm:$0xf]
    %v4471 = vld [vmem:[%s799 + $0xac] sm:$0xf]
    %v4472 = vld [vmem:[%s799 + $0xb4] sm:$0xf]
    %v4473 = vld [vmem:[%s799 + $0xb8] sm:$0xf]
    %v4474 = vld [vmem:[%s799 + $0x8] sm:$0x1]
    %v4475 = vld [vmem:[%s799 + $0x14] sm:$0x1]
    %v4476 = vld [vmem:[%s799 + $0x20] sm:$0x1]
    %v4477 = vld [vmem:[%s799 + $0x2c] sm:$0x1]
    %v4478 = vld [vmem:[%s799 + $0x38] sm:$0x1]
    %v4479 = vld [vmem:[%s799 + $0x44] sm:$0x1]
    %v4480 = vld [vmem:[%s799 + $0x50] sm:$0x1]
    %v4481 = vld [vmem:[%s799 + $0x5c] sm:$0x1]
    %v4482 = vld [vmem:[%s799 + $0x68] sm:$0x1]
    %v4483 = vld [vmem:[%s799 + $0x74] sm:$0x1]
    %v4484 = vld [vmem:[%s799 + $0x80] sm:$0x1]
    %v4485 = vld [vmem:[%s799 + $0x8c] sm:$0x1]
    %v4486 = vld [vmem:[%s799 + $0x98] sm:$0x1]
    %v4487 = vld [vmem:[%s799 + $0xa4] sm:$0x1]
    %v4488 = vld [vmem:[%s799 + $0xb0] sm:$0x1]
    %v4489 = vld [vmem:[%s799 + $0xbc] sm:$0x1]
    %v4490 = vld [vmem:[%s799] sm:$0xe]
    %v4491 = vld [vmem:[%s799 + $0xc] sm:$0xe]
    %v4492 = vld [vmem:[%s799 + $0x18] sm:$0xe]
    %v4493 = vld [vmem:[%s799 + $0x24] sm:$0xe]
    %v4494 = vld [vmem:[%s799 + $0x30] sm:$0xe]
    %v4495 = vld [vmem:[%s799 + $0x3c] sm:$0xe]
    %v4496 = vld [vmem:[%s799 + $0x48] sm:$0xe]
    %v4497 = vld [vmem:[%s799 + $0x54] sm:$0xe]
    %v4498 = vld [vmem:[%s799 + $0x60] sm:$0xe]
    %v4499 = vld [vmem:[%s799 + $0x6c] sm:$0xe]
    %v4500 = vld [vmem:[%s799 + $0x78] sm:$0xe]
    %v4501 = vld [vmem:[%s799 + $0x84] sm:$0xe]
    %v4502 = vld [vmem:[%s799 + $0x90] sm:$0xe]
    %v4503 = vld [vmem:[%s799 + $0x9c] sm:$0xe]
    %v4504 = vld [vmem:[%s799 + $0xa8] sm:$0xe]
    %v4505 = vld [vmem:[%s799 + $0xb4] sm:$0xe]
    %v4506 = vld [vmem:[%s976] sm:$0xf]
    %v4507 = vld [vmem:[%s976 + $0x4] sm:$0xf]
    %v4508 = vld [vmem:[%s976 + $0xc] sm:$0xf]
    %v4509 = vld [vmem:[%s976 + $0x10] sm:$0xf]
    %v4510 = vld [vmem:[%s976 + $0x18] sm:$0xf]
    %v4511 = vld [vmem:[%s976 + $0x1c] sm:$0xf]
    %v4512 = vld [vmem:[%s976 + $0x24] sm:$0xf]
    %v4513 = vld [vmem:[%s976 + $0x28] sm:$0xf]
    %v4514 = vld [vmem:[%s976 + $0x30] sm:$0xf]
    %v4515 = vld [vmem:[%s976 + $0x34] sm:$0xf]
    %v4516 = vld [vmem:[%s976 + $0x3c] sm:$0xf]
    %v4517 = vld [vmem:[%s976 + $0x40] sm:$0xf]
    %v4518 = vld [vmem:[%s976 + $0x48] sm:$0xf]
    %v4519 = vld [vmem:[%s976 + $0x4c] sm:$0xf]
    %v4520 = vld [vmem:[%s976 + $0x54] sm:$0xf]
    %v4521 = vld [vmem:[%s976 + $0x58] sm:$0xf]
    %v4522 = vld [vmem:[%s976 + $0x60] sm:$0xf]
    %v4523 = vld [vmem:[%s976 + $0x64] sm:$0xf]
    %v4524 = vld [vmem:[%s976 + $0x6c] sm:$0xf]
    %v4525 = vld [vmem:[%s976 + $0x70] sm:$0xf]
    %v4526 = vld [vmem:[%s976 + $0x78] sm:$0xf]
    %v4527 = vld [vmem:[%s976 + $0x7c] sm:$0xf]
    %v4528 = vld [vmem:[%s976 + $0x84] sm:$0xf]
    %v4529 = vld [vmem:[%s976 + $0x88] sm:$0xf]
    %v4530 = vld [vmem:[%s976 + $0x90] sm:$0xf]
    %v4531 = vld [vmem:[%s976 + $0x94] sm:$0xf]
    %v4532 = vld [vmem:[%s976 + $0x9c] sm:$0xf]
    %v4533 = vld [vmem:[%s976 + $0xa0] sm:$0xf]
    %v4534 = vld [vmem:[%s976 + $0xa8] sm:$0xf]
    %v4535 = vld [vmem:[%s976 + $0xac] sm:$0xf]
    %v4536 = vld [vmem:[%s976 + $0xb4] sm:$0xf]
    %v4537 = vld [vmem:[%s976 + $0xb8] sm:$0xf]
    %v4538 = vld [vmem:[%s976 + $0x8] sm:$0x1]
    %v4539 = vld [vmem:[%s976 + $0x14] sm:$0x1]
    %v4540 = vld [vmem:[%s976 + $0x20] sm:$0x1]
    %v4541 = vld [vmem:[%s976 + $0x2c] sm:$0x1]
    %v4542 = vld [vmem:[%s976 + $0x38] sm:$0x1]
    %v4543 = vld [vmem:[%s976 + $0x44] sm:$0x1]
    %v4544 = vld [vmem:[%s976 + $0x50] sm:$0x1]
    %v4545 = vld [vmem:[%s976 + $0x5c] sm:$0x1]
    %v4546 = vld [vmem:[%s976 + $0x68] sm:$0x1]
    %v4547 = vld [vmem:[%s976 + $0x74] sm:$0x1]
    %v4548 = vld [vmem:[%s976 + $0x80] sm:$0x1]
    %v4549 = vld [vmem:[%s976 + $0x8c] sm:$0x1]
    %v4550 = vld [vmem:[%s976 + $0x98] sm:$0x1]
    %v4551 = vld [vmem:[%s976 + $0xa4] sm:$0x1]
    %v4552 = vld [vmem:[%s976 + $0xb0] sm:$0x1]
    %v4553 = vld [vmem:[%s976 + $0xbc] sm:$0x1]
    %v4554 = vld [vmem:[%s976] sm:$0xe]
    %v4555 = vld [vmem:[%s976 + $0xc] sm:$0xe]
    %v4556 = vld [vmem:[%s976 + $0x18] sm:$0xe]
    %v4557 = vld [vmem:[%s976 + $0x24] sm:$0xe]
    %v4558 = vld [vmem:[%s976 + $0x30] sm:$0xe]
    %v4559 = vld [vmem:[%s976 + $0x3c] sm:$0xe]
    %v4560 = vld [vmem:[%s976 + $0x48] sm:$0xe]
    %v4561 = vld [vmem:[%s976 + $0x54] sm:$0xe]
    %v4562 = vld [vmem:[%s976 + $0x60] sm:$0xe]
    %v4563 = vld [vmem:[%s976 + $0x6c] sm:$0xe]
    %v4564 = vld [vmem:[%s976 + $0x78] sm:$0xe]
    %v4565 = vld [vmem:[%s976 + $0x84] sm:$0xe]
    %v4566 = vld [vmem:[%s976 + $0x90] sm:$0xe]
    %v4567 = vld [vmem:[%s976 + $0x9c] sm:$0xe]
    %v4568 = vld [vmem:[%s976 + $0xa8] sm:$0xe]
    %v4569 = vld [vmem:[%s976 + $0xb4] sm:$0xe]
    %v4602 = vunpack.c.l.b16 %v4378
    %v4603 = vunpack.c.l.b16 %v4379
    %v4604 = vunpack.c.l.b16 %v4380
    %v4605 = vunpack.c.l.b16 %v4381
    %v4606 = vunpack.c.l.b16 %v4382
    %v4607 = vunpack.c.l.b16 %v4383
    %v4608 = vunpack.c.l.b16 %v4384
    %v4609 = vunpack.c.l.b16 %v4385
    %v4610 = vunpack.c.l.b16 %v4386
    %v4611 = vunpack.c.l.b16 %v4387
    %v4612 = vunpack.c.l.b16 %v4388
    %v4613 = vunpack.c.l.b16 %v4389
    %v4614 = vunpack.c.l.b16 %v4390
    %v4615 = vunpack.c.l.b16 %v4391
    %v4616 = vunpack.c.l.b16 %v4392
    %v4617 = vunpack.c.l.b16 %v4393
    %v4618 = vunpack.c.l.b16 %v4394
    %v4619 = vunpack.c.l.b16 %v4395
    %v4620 = vunpack.c.l.b16 %v4396
    %v4621 = vunpack.c.l.b16 %v4397
    %v4622 = vunpack.c.l.b16 %v4398
    %v4623 = vunpack.c.l.b16 %v4399
    %v4624 = vunpack.c.l.b16 %v4400
    %v4625 = vunpack.c.l.b16 %v4401
    %v4626 = vunpack.c.l.b16 %v4402
    %v4627 = vunpack.c.l.b16 %v4403
    %v4628 = vunpack.c.l.b16 %v4404
    %v4629 = vunpack.c.l.b16 %v4405
    %v4630 = vunpack.c.l.b16 %v4406
    %v4631 = vunpack.c.l.b16 %v4407
    %v4632 = vunpack.c.l.b16 %v4408
    %v4633 = vunpack.c.l.b16 %v4409
    %v4634 = vpack.c.b16 %v4603, %v4602
    %v4635 = vpack.c.b16 %v4605, %v4604
    %v4636 = vpack.c.b16 %v4607, %v4606
    %v4637 = vpack.c.b16 %v4609, %v4608
    %v4638 = vpack.c.b16 %v4611, %v4610
    %v4639 = vpack.c.b16 %v4613, %v4612
    %v4640 = vpack.c.b16 %v4615, %v4614
    %v4641 = vpack.c.b16 %v4617, %v4616
    %v4642 = vpack.c.b16 %v4619, %v4618
    %v4643 = vpack.c.b16 %v4621, %v4620
    %v4644 = vpack.c.b16 %v4623, %v4622
    %v4645 = vpack.c.b16 %v4625, %v4624
    %v4646 = vpack.c.b16 %v4627, %v4626
    %v4647 = vpack.c.b16 %v4629, %v4628
    %v4648 = vpack.c.b16 %v4631, %v4630
    %v4649 = vpack.c.b16 %v4633, %v4632
    %v4666 = vunpack.c.l.b16 %v4410
    %v4667 = vunpack.c.l.b16 %v4411
    %v4668 = vunpack.c.l.b16 %v4412
    %v4669 = vunpack.c.l.b16 %v4413
    %v4670 = vunpack.c.l.b16 %v4414
    %v4671 = vunpack.c.l.b16 %v4415
    %v4672 = vunpack.c.l.b16 %v4416
    %v4673 = vunpack.c.l.b16 %v4417
    %v4674 = vunpack.c.l.b16 %v4418
    %v4675 = vunpack.c.l.b16 %v4419
    %v4676 = vunpack.c.l.b16 %v4420
    %v4677 = vunpack.c.l.b16 %v4421
    %v4678 = vunpack.c.l.b16 %v4422
    %v4679 = vunpack.c.l.b16 %v4423
    %v4680 = vunpack.c.l.b16 %v4424
    %v4681 = vunpack.c.l.b16 %v4425
    %v4682 = vpack.c.b16 %v4666, %v4666
    %v4683 = vpack.c.b16 %v4667, %v4667
    %v4684 = vpack.c.b16 %v4668, %v4668
    %v4685 = vpack.c.b16 %v4669, %v4669
    %v4686 = vpack.c.b16 %v4670, %v4670
    %v4687 = vpack.c.b16 %v4671, %v4671
    %v4688 = vpack.c.b16 %v4672, %v4672
    %v4689 = vpack.c.b16 %v4673, %v4673
    %v4690 = vpack.c.b16 %v4674, %v4674
    %v4691 = vpack.c.b16 %v4675, %v4675
    %v4692 = vpack.c.b16 %v4676, %v4676
    %v4693 = vpack.c.b16 %v4677, %v4677
    %v4694 = vpack.c.b16 %v4678, %v4678
    %v4695 = vpack.c.b16 %v4679, %v4679
    %v4696 = vpack.c.b16 %v4680, %v4680
    %v4697 = vpack.c.b16 %v4681, %v4681
    %v4699 = vshrl.u32 %v4634, 16
    %v4701 = vshll.u32 %v4634, 16
    %v4703 = vrot.slane %v4701, 1
    %v4704 = vor.u32 %v4699, %v4703
    %v4706 = vshll.u32 %v4682, 16
    %v4708 = vrot.slane %v4706, 1
    %v4709 = vsel %vm1169, %v4704, %v4708
    %v4711 = vshrl.u32 %v4635, 16
    %v4713 = vshll.u32 %v4635, 16
    %v4715 = vrot.slane %v4713, 1
    %v4716 = vor.u32 %v4711, %v4715
    %v4718 = vshll.u32 %v4683, 16
    %v4720 = vrot.slane %v4718, 1
    %v4721 = vsel %vm1169, %v4716, %v4720
    %v4723 = vshrl.u32 %v4636, 16
    %v4725 = vshll.u32 %v4636, 16
    %v4727 = vrot.slane %v4725, 1
    %v4728 = vor.u32 %v4723, %v4727
    %v4730 = vshll.u32 %v4684, 16
    %v4732 = vrot.slane %v4730, 1
    %v4733 = vsel %vm1169, %v4728, %v4732
    %v4735 = vshrl.u32 %v4637, 16
    %v4737 = vshll.u32 %v4637, 16
    %v4739 = vrot.slane %v4737, 1
    %v4740 = vor.u32 %v4735, %v4739
    %v4742 = vshll.u32 %v4685, 16
    %v4744 = vrot.slane %v4742, 1
    %v4745 = vsel %vm1169, %v4740, %v4744
    %v4747 = vshrl.u32 %v4638, 16
    %v4749 = vshll.u32 %v4638, 16
    %v4751 = vrot.slane %v4749, 1
    %v4752 = vor.u32 %v4747, %v4751
    %v4754 = vshll.u32 %v4686, 16
    %v4756 = vrot.slane %v4754, 1
    %v4757 = vsel %vm1169, %v4752, %v4756
    %v4759 = vshrl.u32 %v4639, 16
    %v4761 = vshll.u32 %v4639, 16
    %v4763 = vrot.slane %v4761, 1
    %v4764 = vor.u32 %v4759, %v4763
    %v4766 = vshll.u32 %v4687, 16
    %v4768 = vrot.slane %v4766, 1
    %v4769 = vsel %vm1169, %v4764, %v4768
    %v4771 = vshrl.u32 %v4640, 16
    %v4773 = vshll.u32 %v4640, 16
    %v4775 = vrot.slane %v4773, 1
    %v4776 = vor.u32 %v4771, %v4775
    %v4778 = vshll.u32 %v4688, 16
    %v4780 = vrot.slane %v4778, 1
    %v4781 = vsel %vm1169, %v4776, %v4780
    %v4783 = vshrl.u32 %v4641, 16
    %v4785 = vshll.u32 %v4641, 16
    %v4787 = vrot.slane %v4785, 1
    %v4788 = vor.u32 %v4783, %v4787
    %v4790 = vshll.u32 %v4689, 16
    %v4792 = vrot.slane %v4790, 1
    %v4793 = vsel %vm1169, %v4788, %v4792
    %v4795 = vshrl.u32 %v4642, 16
    %v4797 = vshll.u32 %v4642, 16
    %v4799 = vrot.slane %v4797, 1
    %v4800 = vor.u32 %v4795, %v4799
    %v4802 = vshll.u32 %v4690, 16
    %v4804 = vrot.slane %v4802, 1
    %v4805 = vsel %vm1169, %v4800, %v4804
    %v4807 = vshrl.u32 %v4643, 16
    %v4809 = vshll.u32 %v4643, 16
    %v4811 = vrot.slane %v4809, 1
    %v4812 = vor.u32 %v4807, %v4811
    %v4814 = vshll.u32 %v4691, 16
    %v4816 = vrot.slane %v4814, 1
    %v4817 = vsel %vm1169, %v4812, %v4816
    %v4819 = vshrl.u32 %v4644, 16
    %v4821 = vshll.u32 %v4644, 16
    %v4823 = vrot.slane %v4821, 1
    %v4824 = vor.u32 %v4819, %v4823
    %v4826 = vshll.u32 %v4692, 16
    %v4828 = vrot.slane %v4826, 1
    %v4829 = vsel %vm1169, %v4824, %v4828
    %v4831 = vshrl.u32 %v4645, 16
    %v4833 = vshll.u32 %v4645, 16
    %v4835 = vrot.slane %v4833, 1
    %v4836 = vor.u32 %v4831, %v4835
    %v4838 = vshll.u32 %v4693, 16
    %v4840 = vrot.slane %v4838, 1
    %v4841 = vsel %vm1169, %v4836, %v4840
    %v4843 = vshrl.u32 %v4646, 16
    %v4845 = vshll.u32 %v4646, 16
    %v4847 = vrot.slane %v4845, 1
    %v4848 = vor.u32 %v4843, %v4847
    %v4850 = vshll.u32 %v4694, 16
    %v4852 = vrot.slane %v4850, 1
    %v4853 = vsel %vm1169, %v4848, %v4852
    %v4855 = vshrl.u32 %v4647, 16
    %v4857 = vshll.u32 %v4647, 16
    %v4859 = vrot.slane %v4857, 1
    %v4860 = vor.u32 %v4855, %v4859
    %v4862 = vshll.u32 %v4695, 16
    %v4864 = vrot.slane %v4862, 1
    %v4865 = vsel %vm1169, %v4860, %v4864
    %v4867 = vshrl.u32 %v4648, 16
    %v4869 = vshll.u32 %v4648, 16
    %v4871 = vrot.slane %v4869, 1
    %v4872 = vor.u32 %v4867, %v4871
    %v4874 = vshll.u32 %v4696, 16
    %v4876 = vrot.slane %v4874, 1
    %v4877 = vsel %vm1169, %v4872, %v4876
    %v4879 = vshrl.u32 %v4649, 16
    %v4881 = vshll.u32 %v4649, 16
    %v4883 = vrot.slane %v4881, 1
    %v4884 = vor.u32 %v4879, %v4883
    %v4886 = vshll.u32 %v4697, 16
    %v4888 = vrot.slane %v4886, 1
    %v4889 = vsel %vm1169, %v4884, %v4888
    %4890 = vrot.lane.b32.xlu0 %v4709, 32
    %v4891 = vpop.permute.xlu0 %4890
    %4892 = vrot.lane.b32.xlu0 %v4721, 32
    %v4893 = vpop.permute.xlu0 %4892
    %4894 = vrot.lane.b32.xlu0 %v4733, 32
    %v4895 = vpop.permute.xlu0 %4894
    %4896 = vrot.lane.b32.xlu0 %v4745, 32
    %v4897 = vpop.permute.xlu0 %4896
    %4898 = vrot.lane.b32.xlu0 %v4757, 32
    %v4899 = vpop.permute.xlu0 %4898
    %4900 = vrot.lane.b32.xlu0 %v4769, 32
    %v4901 = vpop.permute.xlu0 %4900
    %4902 = vrot.lane.b32.xlu0 %v4781, 32
    %v4903 = vpop.permute.xlu0 %4902
    %4904 = vrot.lane.b32.xlu0 %v4793, 32
    %v4905 = vpop.permute.xlu0 %4904
    %4906 = vrot.lane.b32.xlu0 %v4805, 32
    %v4907 = vpop.permute.xlu0 %4906
    %4908 = vrot.lane.b32.xlu0 %v4817, 32
    %v4909 = vpop.permute.xlu0 %4908
    %4910 = vrot.lane.b32.xlu0 %v4829, 32
    %v4911 = vpop.permute.xlu0 %4910
    %4912 = vrot.lane.b32.xlu0 %v4841, 32
    %v4913 = vpop.permute.xlu0 %4912
    %4914 = vrot.lane.b32.xlu0 %v4853, 32
    %v4915 = vpop.permute.xlu0 %4914
    %4916 = vrot.lane.b32.xlu0 %v4865, 32
    %v4917 = vpop.permute.xlu0 %4916
    %4918 = vrot.lane.b32.xlu0 %v4877, 32
    %v4919 = vpop.permute.xlu0 %4918
    %4920 = vrot.lane.b32.xlu0 %v4889, 32
    %v4921 = vpop.permute.xlu0 %4920
    %v4938 = vunpack.c.l.b16 %v4426
    %v4939 = vunpack.c.l.b16 %v4427
    %v4940 = vunpack.c.l.b16 %v4428
    %v4941 = vunpack.c.l.b16 %v4429
    %v4942 = vunpack.c.l.b16 %v4430
    %v4943 = vunpack.c.l.b16 %v4431
    %v4944 = vunpack.c.l.b16 %v4432
    %v4945 = vunpack.c.l.b16 %v4433
    %v4946 = vunpack.c.l.b16 %v4434
    %v4947 = vunpack.c.l.b16 %v4435
    %v4948 = vunpack.c.l.b16 %v4436
    %v4949 = vunpack.c.l.b16 %v4437
    %v4950 = vunpack.c.l.b16 %v4438
    %v4951 = vunpack.c.l.b16 %v4439
    %v4952 = vunpack.c.l.b16 %v4440
    %v4953 = vunpack.c.l.b16 %v4441
    %v4954 = vpack.c.b16 %v4603, %v4938
    %v4955 = vpack.c.b16 %v4605, %v4939
    %v4956 = vpack.c.b16 %v4607, %v4940
    %v4957 = vpack.c.b16 %v4609, %v4941
    %v4958 = vpack.c.b16 %v4611, %v4942
    %v4959 = vpack.c.b16 %v4613, %v4943
    %v4960 = vpack.c.b16 %v4615, %v4944
    %v4961 = vpack.c.b16 %v4617, %v4945
    %v4962 = vpack.c.b16 %v4619, %v4946
    %v4963 = vpack.c.b16 %v4621, %v4947
    %v4964 = vpack.c.b16 %v4623, %v4948
    %v4965 = vpack.c.b16 %v4625, %v4949
    %v4966 = vpack.c.b16 %v4627, %v4950
    %v4967 = vpack.c.b16 %v4629, %v4951
    %v4968 = vpack.c.b16 %v4631, %v4952
    %v4969 = vpack.c.b16 %v4633, %v4953
    %v4970 = vrot.slane %v4954, 1
    %v4971 = vrot.slane %v4682, 1
    %v4972 = vsel %vm1442, %v4970, %v4971
    %v4973 = vrot.slane %v4955, 1
    %v4974 = vrot.slane %v4683, 1
    %v4975 = vsel %vm1442, %v4973, %v4974
    %v4976 = vrot.slane %v4956, 1
    %v4977 = vrot.slane %v4684, 1
    %v4978 = vsel %vm1442, %v4976, %v4977
    %v4979 = vrot.slane %v4957, 1
    %v4980 = vrot.slane %v4685, 1
    %v4981 = vsel %vm1442, %v4979, %v4980
    %v4982 = vrot.slane %v4958, 1
    %v4983 = vrot.slane %v4686, 1
    %v4984 = vsel %vm1442, %v4982, %v4983
    %v4985 = vrot.slane %v4959, 1
    %v4986 = vrot.slane %v4687, 1
    %v4987 = vsel %vm1442, %v4985, %v4986
    %v4988 = vrot.slane %v4960, 1
    %v4989 = vrot.slane %v4688, 1
    %v4990 = vsel %vm1442, %v4988, %v4989
    %v4991 = vrot.slane %v4961, 1
    %v4992 = vrot.slane %v4689, 1
    %v4993 = vsel %vm1442, %v4991, %v4992
    %v4994 = vrot.slane %v4962, 1
    %v4995 = vrot.slane %v4690, 1
    %v4996 = vsel %vm1442, %v4994, %v4995
    %v4997 = vrot.slane %v4963, 1
    %v4998 = vrot.slane %v4691, 1
    %v4999 = vsel %vm1442, %v4997, %v4998
    %v5000 = vrot.slane %v4964, 1
    %v5001 = vrot.slane %v4692, 1
    %v5002 = vsel %vm1442, %v5000, %v5001
    %v5003 = vrot.slane %v4965, 1
    %v5004 = vrot.slane %v4693, 1
    %v5005 = vsel %vm1442, %v5003, %v5004
    %v5006 = vrot.slane %v4966, 1
    %v5007 = vrot.slane %v4694, 1
    %v5008 = vsel %vm1442, %v5006, %v5007
    %v5009 = vrot.slane %v4967, 1
    %v5010 = vrot.slane %v4695, 1
    %v5011 = vsel %vm1442, %v5009, %v5010
    %v5012 = vrot.slane %v4968, 1
    %v5013 = vrot.slane %v4696, 1
    %v5014 = vsel %vm1442, %v5012, %v5013
    %v5015 = vrot.slane %v4969, 1
    %v5016 = vrot.slane %v4697, 1
    %v5017 = vsel %vm1442, %v5015, %v5016
    %5018 = vrot.lane.b32.xlu0 %v4972, 64
    %v5019 = vpop.permute.xlu0 %5018
    %5020 = vrot.lane.b32.xlu0 %v4975, 64
    %v5021 = vpop.permute.xlu0 %5020
    %5022 = vrot.lane.b32.xlu0 %v4978, 64
    %v5023 = vpop.permute.xlu0 %5022
    %5024 = vrot.lane.b32.xlu0 %v4981, 64
    %v5025 = vpop.permute.xlu0 %5024
    %5026 = vrot.lane.b32.xlu0 %v4984, 64
    %v5027 = vpop.permute.xlu0 %5026
    %5028 = vrot.lane.b32.xlu0 %v4987, 64
    %v5029 = vpop.permute.xlu0 %5028
    %5030 = vrot.lane.b32.xlu0 %v4990, 64
    %v5031 = vpop.permute.xlu0 %5030
    %5032 = vrot.lane.b32.xlu0 %v4993, 64
    %v5033 = vpop.permute.xlu0 %5032
    %5034 = vrot.lane.b32.xlu0 %v4996, 64
    %v5035 = vpop.permute.xlu0 %5034
    %5036 = vrot.lane.b32.xlu0 %v4999, 64
    %v5037 = vpop.permute.xlu0 %5036
    %5038 = vrot.lane.b32.xlu0 %v5002, 64
    %v5039 = vpop.permute.xlu0 %5038
    %5040 = vrot.lane.b32.xlu0 %v5005, 64
    %v5041 = vpop.permute.xlu0 %5040
    %5042 = vrot.lane.b32.xlu0 %v5008, 64
    %v5043 = vpop.permute.xlu0 %5042
    %5044 = vrot.lane.b32.xlu0 %v5011, 64
    %v5045 = vpop.permute.xlu0 %5044
    %5046 = vrot.lane.b32.xlu0 %v5014, 64
    %v5047 = vpop.permute.xlu0 %5046
    %5048 = vrot.lane.b32.xlu0 %v5017, 64
    %v5049 = vpop.permute.xlu0 %5048
    %v5082 = vunpack.c.l.b16 %v4442
    %v5083 = vunpack.c.l.b16 %v4443
    %v5084 = vunpack.c.l.b16 %v4444
    %v5085 = vunpack.c.l.b16 %v4445
    %v5086 = vunpack.c.l.b16 %v4446
    %v5087 = vunpack.c.l.b16 %v4447
    %v5088 = vunpack.c.l.b16 %v4448
    %v5089 = vunpack.c.l.b16 %v4449
    %v5090 = vunpack.c.l.b16 %v4450
    %v5091 = vunpack.c.l.b16 %v4451
    %v5092 = vunpack.c.l.b16 %v4452
    %v5093 = vunpack.c.l.b16 %v4453
    %v5094 = vunpack.c.l.b16 %v4454
    %v5095 = vunpack.c.l.b16 %v4455
    %v5096 = vunpack.c.l.b16 %v4456
    %v5097 = vunpack.c.l.b16 %v4457
    %v5098 = vunpack.c.l.b16 %v4458
    %v5099 = vunpack.c.l.b16 %v4459
    %v5100 = vunpack.c.l.b16 %v4460
    %v5101 = vunpack.c.l.b16 %v4461
    %v5102 = vunpack.c.l.b16 %v4462
    %v5103 = vunpack.c.l.b16 %v4463
    %v5104 = vunpack.c.l.b16 %v4464
    %v5105 = vunpack.c.l.b16 %v4465
    %v5106 = vunpack.c.l.b16 %v4466
    %v5107 = vunpack.c.l.b16 %v4467
    %v5108 = vunpack.c.l.b16 %v4468
    %v5109 = vunpack.c.l.b16 %v4469
    %v5110 = vunpack.c.l.b16 %v4470
    %v5111 = vunpack.c.l.b16 %v4471
    %v5112 = vunpack.c.l.b16 %v4472
    %v5113 = vunpack.c.l.b16 %v4473
    %v5114 = vpack.c.b16 %v5083, %v5082
    %v5115 = vpack.c.b16 %v5085, %v5084
    %v5116 = vpack.c.b16 %v5087, %v5086
    %v5117 = vpack.c.b16 %v5089, %v5088
    %v5118 = vpack.c.b16 %v5091, %v5090
    %v5119 = vpack.c.b16 %v5093, %v5092
    %v5120 = vpack.c.b16 %v5095, %v5094
    %v5121 = vpack.c.b16 %v5097, %v5096
    %v5122 = vpack.c.b16 %v5099, %v5098
    %v5123 = vpack.c.b16 %v5101, %v5100
    %v5124 = vpack.c.b16 %v5103, %v5102
    %v5125 = vpack.c.b16 %v5105, %v5104
    %v5126 = vpack.c.b16 %v5107, %v5106
    %v5127 = vpack.c.b16 %v5109, %v5108
    %v5128 = vpack.c.b16 %v5111, %v5110
    %v5129 = vpack.c.b16 %v5113, %v5112
    %5130 = vrot.lane.b32.xlu0 %v5114, 96
    %v5131 = vpop.permute.xlu0 %5130
    %5132 = vrot.lane.b32.xlu0 %v5115, 96
    %v5133 = vpop.permute.xlu0 %5132
    %5134 = vrot.lane.b32.xlu0 %v5116, 96
    %v5135 = vpop.permute.xlu0 %5134
    %5136 = vrot.lane.b32.xlu0 %v5117, 96
    %v5137 = vpop.permute.xlu0 %5136
    %5138 = vrot.lane.b32.xlu0 %v5118, 96
    %v5139 = vpop.permute.xlu0 %5138
    %5140 = vrot.lane.b32.xlu0 %v5119, 96
    %v5141 = vpop.permute.xlu0 %5140
    %5142 = vrot.lane.b32.xlu0 %v5120, 96
    %v5143 = vpop.permute.xlu0 %5142
    %5144 = vrot.lane.b32.xlu0 %v5121, 96
    %v5145 = vpop.permute.xlu0 %5144
    %5146 = vrot.lane.b32.xlu0 %v5122, 96
    %v5147 = vpop.permute.xlu0 %5146
    %5148 = vrot.lane.b32.xlu0 %v5123, 96
    %v5149 = vpop.permute.xlu0 %5148
    %5150 = vrot.lane.b32.xlu0 %v5124, 96
    %v5151 = vpop.permute.xlu0 %5150
    %5152 = vrot.lane.b32.xlu0 %v5125, 96
    %v5153 = vpop.permute.xlu0 %5152
    %5154 = vrot.lane.b32.xlu0 %v5126, 96
    %v5155 = vpop.permute.xlu0 %5154
    %5156 = vrot.lane.b32.xlu0 %v5127, 96
    %v5157 = vpop.permute.xlu0 %5156
    %5158 = vrot.lane.b32.xlu0 %v5128, 96
    %v5159 = vpop.permute.xlu0 %5158
    %5160 = vrot.lane.b32.xlu0 %v5129, 96
    %v5161 = vpop.permute.xlu0 %5160
    %v5178 = vunpack.c.l.b16 %v4474
    %v5179 = vunpack.c.l.b16 %v4475
    %v5180 = vunpack.c.l.b16 %v4476
    %v5181 = vunpack.c.l.b16 %v4477
    %v5182 = vunpack.c.l.b16 %v4478
    %v5183 = vunpack.c.l.b16 %v4479
    %v5184 = vunpack.c.l.b16 %v4480
    %v5185 = vunpack.c.l.b16 %v4481
    %v5186 = vunpack.c.l.b16 %v4482
    %v5187 = vunpack.c.l.b16 %v4483
    %v5188 = vunpack.c.l.b16 %v4484
    %v5189 = vunpack.c.l.b16 %v4485
    %v5190 = vunpack.c.l.b16 %v4486
    %v5191 = vunpack.c.l.b16 %v4487
    %v5192 = vunpack.c.l.b16 %v4488
    %v5193 = vunpack.c.l.b16 %v4489
    %v5194 = vpack.c.b16 %v5178, %v5178
    %v5195 = vpack.c.b16 %v5179, %v5179
    %v5196 = vpack.c.b16 %v5180, %v5180
    %v5197 = vpack.c.b16 %v5181, %v5181
    %v5198 = vpack.c.b16 %v5182, %v5182
    %v5199 = vpack.c.b16 %v5183, %v5183
    %v5200 = vpack.c.b16 %v5184, %v5184
    %v5201 = vpack.c.b16 %v5185, %v5185
    %v5202 = vpack.c.b16 %v5186, %v5186
    %v5203 = vpack.c.b16 %v5187, %v5187
    %v5204 = vpack.c.b16 %v5188, %v5188
    %v5205 = vpack.c.b16 %v5189, %v5189
    %v5206 = vpack.c.b16 %v5190, %v5190
    %v5207 = vpack.c.b16 %v5191, %v5191
    %v5208 = vpack.c.b16 %v5192, %v5192
    %v5209 = vpack.c.b16 %v5193, %v5193
    %v5211 = vshrl.u32 %v5114, 16
    %v5213 = vshll.u32 %v5114, 16
    %v5215 = vrot.slane %v5213, 1
    %v5216 = vor.u32 %v5211, %v5215
    %v5218 = vshll.u32 %v5194, 16
    %v5220 = vrot.slane %v5218, 1
    %v5221 = vsel %vm1169, %v5216, %v5220
    %v5223 = vshrl.u32 %v5115, 16
    %v5225 = vshll.u32 %v5115, 16
    %v5227 = vrot.slane %v5225, 1
    %v5228 = vor.u32 %v5223, %v5227
    %v5230 = vshll.u32 %v5195, 16
    %v5232 = vrot.slane %v5230, 1
    %v5233 = vsel %vm1169, %v5228, %v5232
    %v5235 = vshrl.u32 %v5116, 16
    %v5237 = vshll.u32 %v5116, 16
    %v5239 = vrot.slane %v5237, 1
    %v5240 = vor.u32 %v5235, %v5239
    %v5242 = vshll.u32 %v5196, 16
    %v5244 = vrot.slane %v5242, 1
    %v5245 = vsel %vm1169, %v5240, %v5244
    %v5247 = vshrl.u32 %v5117, 16
    %v5249 = vshll.u32 %v5117, 16
    %v5251 = vrot.slane %v5249, 1
    %v5252 = vor.u32 %v5247, %v5251
    %v5254 = vshll.u32 %v5197, 16
    %v5256 = vrot.slane %v5254, 1
    %v5257 = vsel %vm1169, %v5252, %v5256
    %v5259 = vshrl.u32 %v5118, 16
    %v5261 = vshll.u32 %v5118, 16
    %v5263 = vrot.slane %v5261, 1
    %v5264 = vor.u32 %v5259, %v5263
    %v5266 = vshll.u32 %v5198, 16
    %v5268 = vrot.slane %v5266, 1
    %v5269 = vsel %vm1169, %v5264, %v5268
    %v5271 = vshrl.u32 %v5119, 16
    %v5273 = vshll.u32 %v5119, 16
    %v5275 = vrot.slane %v5273, 1
    %v5276 = vor.u32 %v5271, %v5275
    %v5278 = vshll.u32 %v5199, 16
    %v5280 = vrot.slane %v5278, 1
    %v5281 = vsel %vm1169, %v5276, %v5280
    %v5283 = vshrl.u32 %v5120, 16
    %v5285 = vshll.u32 %v5120, 16
    %v5287 = vrot.slane %v5285, 1
    %v5288 = vor.u32 %v5283, %v5287
    %v5290 = vshll.u32 %v5200, 16
    %v5292 = vrot.slane %v5290, 1
    %v5293 = vsel %vm1169, %v5288, %v5292
    %v5295 = vshrl.u32 %v5121, 16
    %v5297 = vshll.u32 %v5121, 16
    %v5299 = vrot.slane %v5297, 1
    %v5300 = vor.u32 %v5295, %v5299
    %v5302 = vshll.u32 %v5201, 16
    %v5304 = vrot.slane %v5302, 1
    %v5305 = vsel %vm1169, %v5300, %v5304
    %v5307 = vshrl.u32 %v5122, 16
    %v5309 = vshll.u32 %v5122, 16
    %v5311 = vrot.slane %v5309, 1
    %v5312 = vor.u32 %v5307, %v5311
    %v5314 = vshll.u32 %v5202, 16
    %v5316 = vrot.slane %v5314, 1
    %v5317 = vsel %vm1169, %v5312, %v5316
    %v5319 = vshrl.u32 %v5123, 16
    %v5321 = vshll.u32 %v5123, 16
    %v5323 = vrot.slane %v5321, 1
    %v5324 = vor.u32 %v5319, %v5323
    %v5326 = vshll.u32 %v5203, 16
    %v5328 = vrot.slane %v5326, 1
    %v5329 = vsel %vm1169, %v5324, %v5328
    %v5331 = vshrl.u32 %v5124, 16
    %v5333 = vshll.u32 %v5124, 16
    %v5335 = vrot.slane %v5333, 1
    %v5336 = vor.u32 %v5331, %v5335
    %v5338 = vshll.u32 %v5204, 16
    %v5340 = vrot.slane %v5338, 1
    %v5341 = vsel %vm1169, %v5336, %v5340
    %v5343 = vshrl.u32 %v5125, 16
    %v5345 = vshll.u32 %v5125, 16
    %v5347 = vrot.slane %v5345, 1
    %v5348 = vor.u32 %v5343, %v5347
    %v5350 = vshll.u32 %v5205, 16
    %v5352 = vrot.slane %v5350, 1
    %v5353 = vsel %vm1169, %v5348, %v5352
    %v5355 = vshrl.u32 %v5126, 16
    %v5357 = vshll.u32 %v5126, 16
    %v5359 = vrot.slane %v5357, 1
    %v5360 = vor.u32 %v5355, %v5359
    %v5362 = vshll.u32 %v5206, 16
    %v5364 = vrot.slane %v5362, 1
    %v5365 = vsel %vm1169, %v5360, %v5364
    %v5367 = vshrl.u32 %v5127, 16
    %v5369 = vshll.u32 %v5127, 16
    %v5371 = vrot.slane %v5369, 1
    %v5372 = vor.u32 %v5367, %v5371
    %v5374 = vshll.u32 %v5207, 16
    %v5376 = vrot.slane %v5374, 1
    %v5377 = vsel %vm1169, %v5372, %v5376
    %v5379 = vshrl.u32 %v5128, 16
    %v5381 = vshll.u32 %v5128, 16
    %v5383 = vrot.slane %v5381, 1
    %v5384 = vor.u32 %v5379, %v5383
    %v5386 = vshll.u32 %v5208, 16
    %v5388 = vrot.slane %v5386, 1
    %v5389 = vsel %vm1169, %v5384, %v5388
    %v5391 = vshrl.u32 %v5129, 16
    %v5393 = vshll.u32 %v5129, 16
    %v5395 = vrot.slane %v5393, 1
    %v5396 = vor.u32 %v5391, %v5395
    %v5398 = vshll.u32 %v5209, 16
    %v5400 = vrot.slane %v5398, 1
    %v5401 = vsel %vm1169, %v5396, %v5400
    %v5418 = vunpack.c.l.b16 %v4490
    %v5419 = vunpack.c.l.b16 %v4491
    %v5420 = vunpack.c.l.b16 %v4492
    %v5421 = vunpack.c.l.b16 %v4493
    %v5422 = vunpack.c.l.b16 %v4494
    %v5423 = vunpack.c.l.b16 %v4495
    %v5424 = vunpack.c.l.b16 %v4496
    %v5425 = vunpack.c.l.b16 %v4497
    %v5426 = vunpack.c.l.b16 %v4498
    %v5427 = vunpack.c.l.b16 %v4499
    %v5428 = vunpack.c.l.b16 %v4500
    %v5429 = vunpack.c.l.b16 %v4501
    %v5430 = vunpack.c.l.b16 %v4502
    %v5431 = vunpack.c.l.b16 %v4503
    %v5432 = vunpack.c.l.b16 %v4504
    %v5433 = vunpack.c.l.b16 %v4505
    %v5434 = vpack.c.b16 %v5083, %v5418
    %v5435 = vpack.c.b16 %v5085, %v5419
    %v5436 = vpack.c.b16 %v5087, %v5420
    %v5437 = vpack.c.b16 %v5089, %v5421
    %v5438 = vpack.c.b16 %v5091, %v5422
    %v5439 = vpack.c.b16 %v5093, %v5423
    %v5440 = vpack.c.b16 %v5095, %v5424
    %v5441 = vpack.c.b16 %v5097, %v5425
    %v5442 = vpack.c.b16 %v5099, %v5426
    %v5443 = vpack.c.b16 %v5101, %v5427
    %v5444 = vpack.c.b16 %v5103, %v5428
    %v5445 = vpack.c.b16 %v5105, %v5429
    %v5446 = vpack.c.b16 %v5107, %v5430
    %v5447 = vpack.c.b16 %v5109, %v5431
    %v5448 = vpack.c.b16 %v5111, %v5432
    %v5449 = vpack.c.b16 %v5113, %v5433
    %v5450 = vrot.slane %v5434, 1
    %v5451 = vrot.slane %v5194, 1
    %v5452 = vsel %vm1442, %v5450, %v5451
    %v5453 = vrot.slane %v5435, 1
    %v5454 = vrot.slane %v5195, 1
    %v5455 = vsel %vm1442, %v5453, %v5454
    %v5456 = vrot.slane %v5436, 1
    %v5457 = vrot.slane %v5196, 1
    %v5458 = vsel %vm1442, %v5456, %v5457
    %v5459 = vrot.slane %v5437, 1
    %v5460 = vrot.slane %v5197, 1
    %v5461 = vsel %vm1442, %v5459, %v5460
    %v5462 = vrot.slane %v5438, 1
    %v5463 = vrot.slane %v5198, 1
    %v5464 = vsel %vm1442, %v5462, %v5463
    %v5465 = vrot.slane %v5439, 1
    %v5466 = vrot.slane %v5199, 1
    %v5467 = vsel %vm1442, %v5465, %v5466
    %v5468 = vrot.slane %v5440, 1
    %v5469 = vrot.slane %v5200, 1
    %v5470 = vsel %vm1442, %v5468, %v5469
    %v5471 = vrot.slane %v5441, 1
    %v5472 = vrot.slane %v5201, 1
    %v5473 = vsel %vm1442, %v5471, %v5472
    %v5474 = vrot.slane %v5442, 1
    %v5475 = vrot.slane %v5202, 1
    %v5476 = vsel %vm1442, %v5474, %v5475
    %v5477 = vrot.slane %v5443, 1
    %v5478 = vrot.slane %v5203, 1
    %v5479 = vsel %vm1442, %v5477, %v5478
    %v5480 = vrot.slane %v5444, 1
    %v5481 = vrot.slane %v5204, 1
    %v5482 = vsel %vm1442, %v5480, %v5481
    %v5483 = vrot.slane %v5445, 1
    %v5484 = vrot.slane %v5205, 1
    %v5485 = vsel %vm1442, %v5483, %v5484
    %v5486 = vrot.slane %v5446, 1
    %v5487 = vrot.slane %v5206, 1
    %v5488 = vsel %vm1442, %v5486, %v5487
    %v5489 = vrot.slane %v5447, 1
    %v5490 = vrot.slane %v5207, 1
    %v5491 = vsel %vm1442, %v5489, %v5490
    %v5492 = vrot.slane %v5448, 1
    %v5493 = vrot.slane %v5208, 1
    %v5494 = vsel %vm1442, %v5492, %v5493
    %v5495 = vrot.slane %v5449, 1
    %v5496 = vrot.slane %v5209, 1
    %v5497 = vsel %vm1442, %v5495, %v5496
    %5498 = vrot.lane.b32.xlu0 %v5452, 32
    %v5499 = vpop.permute.xlu0 %5498
    %5500 = vrot.lane.b32.xlu0 %v5455, 32
    %v5501 = vpop.permute.xlu0 %5500
    %5502 = vrot.lane.b32.xlu0 %v5458, 32
    %v5503 = vpop.permute.xlu0 %5502
    %5504 = vrot.lane.b32.xlu0 %v5461, 32
    %v5505 = vpop.permute.xlu0 %5504
    %5506 = vrot.lane.b32.xlu0 %v5464, 32
    %v5507 = vpop.permute.xlu0 %5506
    %5508 = vrot.lane.b32.xlu0 %v5467, 32
    %v5509 = vpop.permute.xlu0 %5508
    %5510 = vrot.lane.b32.xlu0 %v5470, 32
    %v5511 = vpop.permute.xlu0 %5510
    %5512 = vrot.lane.b32.xlu0 %v5473, 32
    %v5513 = vpop.permute.xlu0 %5512
    %5514 = vrot.lane.b32.xlu0 %v5476, 32
    %v5515 = vpop.permute.xlu0 %5514
    %5516 = vrot.lane.b32.xlu0 %v5479, 32
    %v5517 = vpop.permute.xlu0 %5516
    %5518 = vrot.lane.b32.xlu0 %v5482, 32
    %v5519 = vpop.permute.xlu0 %5518
    %5520 = vrot.lane.b32.xlu0 %v5485, 32
    %v5521 = vpop.permute.xlu0 %5520
    %5522 = vrot.lane.b32.xlu0 %v5488, 32
    %v5523 = vpop.permute.xlu0 %5522
    %5524 = vrot.lane.b32.xlu0 %v5491, 32
    %v5525 = vpop.permute.xlu0 %5524
    %5526 = vrot.lane.b32.xlu0 %v5494, 32
    %v5527 = vpop.permute.xlu0 %5526
    %5528 = vrot.lane.b32.xlu0 %v5497, 32
    %v5529 = vpop.permute.xlu0 %5528
    %v5562 = vunpack.c.l.b16 %v4506
    %v5563 = vunpack.c.l.b16 %v4507
    %v5564 = vunpack.c.l.b16 %v4508
    %v5565 = vunpack.c.l.b16 %v4509
    %v5566 = vunpack.c.l.b16 %v4510
    %v5567 = vunpack.c.l.b16 %v4511
    %v5568 = vunpack.c.l.b16 %v4512
    %v5569 = vunpack.c.l.b16 %v4513
    %v5570 = vunpack.c.l.b16 %v4514
    %v5571 = vunpack.c.l.b16 %v4515
    %v5572 = vunpack.c.l.b16 %v4516
    %v5573 = vunpack.c.l.b16 %v4517
    %v5574 = vunpack.c.l.b16 %v4518
    %v5575 = vunpack.c.l.b16 %v4519
    %v5576 = vunpack.c.l.b16 %v4520
    %v5577 = vunpack.c.l.b16 %v4521
    %v5578 = vunpack.c.l.b16 %v4522
    %v5579 = vunpack.c.l.b16 %v4523
    %v5580 = vunpack.c.l.b16 %v4524
    %v5581 = vunpack.c.l.b16 %v4525
    %v5582 = vunpack.c.l.b16 %v4526
    %v5583 = vunpack.c.l.b16 %v4527
    %v5584 = vunpack.c.l.b16 %v4528
    %v5585 = vunpack.c.l.b16 %v4529
    %v5586 = vunpack.c.l.b16 %v4530
    %v5587 = vunpack.c.l.b16 %v4531
    %v5588 = vunpack.c.l.b16 %v4532
    %v5589 = vunpack.c.l.b16 %v4533
    %v5590 = vunpack.c.l.b16 %v4534
    %v5591 = vunpack.c.l.b16 %v4535
    %v5592 = vunpack.c.l.b16 %v4536
    %v5593 = vunpack.c.l.b16 %v4537
    %v5594 = vpack.c.b16 %v5563, %v5562
    %v5595 = vpack.c.b16 %v5565, %v5564
    %v5596 = vpack.c.b16 %v5567, %v5566
    %v5597 = vpack.c.b16 %v5569, %v5568
    %v5598 = vpack.c.b16 %v5571, %v5570
    %v5599 = vpack.c.b16 %v5573, %v5572
    %v5600 = vpack.c.b16 %v5575, %v5574
    %v5601 = vpack.c.b16 %v5577, %v5576
    %v5602 = vpack.c.b16 %v5579, %v5578
    %v5603 = vpack.c.b16 %v5581, %v5580
    %v5604 = vpack.c.b16 %v5583, %v5582
    %v5605 = vpack.c.b16 %v5585, %v5584
    %v5606 = vpack.c.b16 %v5587, %v5586
    %v5607 = vpack.c.b16 %v5589, %v5588
    %v5608 = vpack.c.b16 %v5591, %v5590
    %v5609 = vpack.c.b16 %v5593, %v5592
    %5610 = vrot.lane.b32.xlu0 %v5594, 64
    %v5611 = vpop.permute.xlu0 %5610
    %5612 = vrot.lane.b32.xlu0 %v5595, 64
    %v5613 = vpop.permute.xlu0 %5612
    %5614 = vrot.lane.b32.xlu0 %v5596, 64
    %v5615 = vpop.permute.xlu0 %5614
    %5616 = vrot.lane.b32.xlu0 %v5597, 64
    %v5617 = vpop.permute.xlu0 %5616
    %5618 = vrot.lane.b32.xlu0 %v5598, 64
    %v5619 = vpop.permute.xlu0 %5618
    %5620 = vrot.lane.b32.xlu0 %v5599, 64
    %v5621 = vpop.permute.xlu0 %5620
    %5622 = vrot.lane.b32.xlu0 %v5600, 64
    %v5623 = vpop.permute.xlu0 %5622
    %5624 = vrot.lane.b32.xlu0 %v5601, 64
    %v5625 = vpop.permute.xlu0 %5624
    %5626 = vrot.lane.b32.xlu0 %v5602, 64
    %v5627 = vpop.permute.xlu0 %5626
    %5628 = vrot.lane.b32.xlu0 %v5603, 64
    %v5629 = vpop.permute.xlu0 %5628
    %5630 = vrot.lane.b32.xlu0 %v5604, 64
    %v5631 = vpop.permute.xlu0 %5630
    %5632 = vrot.lane.b32.xlu0 %v5605, 64
    %v5633 = vpop.permute.xlu0 %5632
    %5634 = vrot.lane.b32.xlu0 %v5606, 64
    %v5635 = vpop.permute.xlu0 %5634
    %5636 = vrot.lane.b32.xlu0 %v5607, 64
    %v5637 = vpop.permute.xlu0 %5636
    %5638 = vrot.lane.b32.xlu0 %v5608, 64
    %v5639 = vpop.permute.xlu0 %5638
    %5640 = vrot.lane.b32.xlu0 %v5609, 64
    %v5641 = vpop.permute.xlu0 %5640
    %v5658 = vunpack.c.l.b16 %v4538
    %v5659 = vunpack.c.l.b16 %v4539
    %v5660 = vunpack.c.l.b16 %v4540
    %v5661 = vunpack.c.l.b16 %v4541
    %v5662 = vunpack.c.l.b16 %v4542
    %v5663 = vunpack.c.l.b16 %v4543
    %v5664 = vunpack.c.l.b16 %v4544
    %v5665 = vunpack.c.l.b16 %v4545
    %v5666 = vunpack.c.l.b16 %v4546
    %v5667 = vunpack.c.l.b16 %v4547
    %v5668 = vunpack.c.l.b16 %v4548
    %v5669 = vunpack.c.l.b16 %v4549
    %v5670 = vunpack.c.l.b16 %v4550
    %v5671 = vunpack.c.l.b16 %v4551
    %v5672 = vunpack.c.l.b16 %v4552
    %v5673 = vunpack.c.l.b16 %v4553
    %v5674 = vpack.c.b16 %v5658, %v5658
    %v5675 = vpack.c.b16 %v5659, %v5659
    %v5676 = vpack.c.b16 %v5660, %v5660
    %v5677 = vpack.c.b16 %v5661, %v5661
    %v5678 = vpack.c.b16 %v5662, %v5662
    %v5679 = vpack.c.b16 %v5663, %v5663
    %v5680 = vpack.c.b16 %v5664, %v5664
    %v5681 = vpack.c.b16 %v5665, %v5665
    %v5682 = vpack.c.b16 %v5666, %v5666
    %v5683 = vpack.c.b16 %v5667, %v5667
    %v5684 = vpack.c.b16 %v5668, %v5668
    %v5685 = vpack.c.b16 %v5669, %v5669
    %v5686 = vpack.c.b16 %v5670, %v5670
    %v5687 = vpack.c.b16 %v5671, %v5671
    %v5688 = vpack.c.b16 %v5672, %v5672
    %v5689 = vpack.c.b16 %v5673, %v5673
    %v5691 = vshrl.u32 %v5594, 16
    %v5693 = vshll.u32 %v5594, 16
    %v5695 = vrot.slane %v5693, 1
    %v5696 = vor.u32 %v5691, %v5695
    %v5698 = vshll.u32 %v5674, 16
    %v5700 = vrot.slane %v5698, 1
    %v5701 = vsel %vm1169, %v5696, %v5700
    %v5703 = vshrl.u32 %v5595, 16
    %v5705 = vshll.u32 %v5595, 16
    %v5707 = vrot.slane %v5705, 1
    %v5708 = vor.u32 %v5703, %v5707
    %v5710 = vshll.u32 %v5675, 16
    %v5712 = vrot.slane %v5710, 1
    %v5713 = vsel %vm1169, %v5708, %v5712
    %v5715 = vshrl.u32 %v5596, 16
    %v5717 = vshll.u32 %v5596, 16
    %v5719 = vrot.slane %v5717, 1
    %v5720 = vor.u32 %v5715, %v5719
    %v5722 = vshll.u32 %v5676, 16
    %v5724 = vrot.slane %v5722, 1
    %v5725 = vsel %vm1169, %v5720, %v5724
    %v5727 = vshrl.u32 %v5597, 16
    %v5729 = vshll.u32 %v5597, 16
    %v5731 = vrot.slane %v5729, 1
    %v5732 = vor.u32 %v5727, %v5731
    %v5734 = vshll.u32 %v5677, 16
    %v5736 = vrot.slane %v5734, 1
    %v5737 = vsel %vm1169, %v5732, %v5736
    %v5739 = vshrl.u32 %v5598, 16
    %v5741 = vshll.u32 %v5598, 16
    %v5743 = vrot.slane %v5741, 1
    %v5744 = vor.u32 %v5739, %v5743
    %v5746 = vshll.u32 %v5678, 16
    %v5748 = vrot.slane %v5746, 1
    %v5749 = vsel %vm1169, %v5744, %v5748
    %v5751 = vshrl.u32 %v5599, 16
    %v5753 = vshll.u32 %v5599, 16
    %v5755 = vrot.slane %v5753, 1
    %v5756 = vor.u32 %v5751, %v5755
    %v5758 = vshll.u32 %v5679, 16
    %v5760 = vrot.slane %v5758, 1
    %v5761 = vsel %vm1169, %v5756, %v5760
    %v5763 = vshrl.u32 %v5600, 16
    %v5765 = vshll.u32 %v5600, 16
    %v5767 = vrot.slane %v5765, 1
    %v5768 = vor.u32 %v5763, %v5767
    %v5770 = vshll.u32 %v5680, 16
    %v5772 = vrot.slane %v5770, 1
    %v5773 = vsel %vm1169, %v5768, %v5772
    %v5775 = vshrl.u32 %v5601, 16
    %v5777 = vshll.u32 %v5601, 16
    %v5779 = vrot.slane %v5777, 1
    %v5780 = vor.u32 %v5775, %v5779
    %v5782 = vshll.u32 %v5681, 16
    %v5784 = vrot.slane %v5782, 1
    %v5785 = vsel %vm1169, %v5780, %v5784
    %v5787 = vshrl.u32 %v5602, 16
    %v5789 = vshll.u32 %v5602, 16
    %v5791 = vrot.slane %v5789, 1
    %v5792 = vor.u32 %v5787, %v5791
    %v5794 = vshll.u32 %v5682, 16
    %v5796 = vrot.slane %v5794, 1
    %v5797 = vsel %vm1169, %v5792, %v5796
    %v5799 = vshrl.u32 %v5603, 16
    %v5801 = vshll.u32 %v5603, 16
    %v5803 = vrot.slane %v5801, 1
    %v5804 = vor.u32 %v5799, %v5803
    %v5806 = vshll.u32 %v5683, 16
    %v5808 = vrot.slane %v5806, 1
    %v5809 = vsel %vm1169, %v5804, %v5808
    %v5811 = vshrl.u32 %v5604, 16
    %v5813 = vshll.u32 %v5604, 16
    %v5815 = vrot.slane %v5813, 1
    %v5816 = vor.u32 %v5811, %v5815
    %v5818 = vshll.u32 %v5684, 16
    %v5820 = vrot.slane %v5818, 1
    %v5821 = vsel %vm1169, %v5816, %v5820
    %v5823 = vshrl.u32 %v5605, 16
    %v5825 = vshll.u32 %v5605, 16
    %v5827 = vrot.slane %v5825, 1
    %v5828 = vor.u32 %v5823, %v5827
    %v5830 = vshll.u32 %v5685, 16
    %v5832 = vrot.slane %v5830, 1
    %v5833 = vsel %vm1169, %v5828, %v5832
    %v5835 = vshrl.u32 %v5606, 16
    %v5837 = vshll.u32 %v5606, 16
    %v5839 = vrot.slane %v5837, 1
    %v5840 = vor.u32 %v5835, %v5839
    %v5842 = vshll.u32 %v5686, 16
    %v5844 = vrot.slane %v5842, 1
    %v5845 = vsel %vm1169, %v5840, %v5844
    %v5847 = vshrl.u32 %v5607, 16
    %v5849 = vshll.u32 %v5607, 16
    %v5851 = vrot.slane %v5849, 1
    %v5852 = vor.u32 %v5847, %v5851
    %v5854 = vshll.u32 %v5687, 16
    %v5856 = vrot.slane %v5854, 1
    %v5857 = vsel %vm1169, %v5852, %v5856
    %v5859 = vshrl.u32 %v5608, 16
    %v5861 = vshll.u32 %v5608, 16
    %v5863 = vrot.slane %v5861, 1
    %v5864 = vor.u32 %v5859, %v5863
    %v5866 = vshll.u32 %v5688, 16
    %v5868 = vrot.slane %v5866, 1
    %v5869 = vsel %vm1169, %v5864, %v5868
    %v5871 = vshrl.u32 %v5609, 16
    %v5873 = vshll.u32 %v5609, 16
    %v5875 = vrot.slane %v5873, 1
    %v5876 = vor.u32 %v5871, %v5875
    %v5878 = vshll.u32 %v5689, 16
    %v5880 = vrot.slane %v5878, 1
    %v5881 = vsel %vm1169, %v5876, %v5880
    %5882 = vrot.lane.b32.xlu0 %v5701, 96
    %v5883 = vpop.permute.xlu0 %5882
    %5884 = vrot.lane.b32.xlu0 %v5713, 96
    %v5885 = vpop.permute.xlu0 %5884
    %5886 = vrot.lane.b32.xlu0 %v5725, 96
    %v5887 = vpop.permute.xlu0 %5886
    %5888 = vrot.lane.b32.xlu0 %v5737, 96
    %v5889 = vpop.permute.xlu0 %5888
    %5890 = vrot.lane.b32.xlu0 %v5749, 96
    %v5891 = vpop.permute.xlu0 %5890
    %5892 = vrot.lane.b32.xlu0 %v5761, 96
    %v5893 = vpop.permute.xlu0 %5892
    %5894 = vrot.lane.b32.xlu0 %v5773, 96
    %v5895 = vpop.permute.xlu0 %5894
    %5896 = vrot.lane.b32.xlu0 %v5785, 96
    %v5897 = vpop.permute.xlu0 %5896
    %5898 = vrot.lane.b32.xlu0 %v5797, 96
    %v5899 = vpop.permute.xlu0 %5898
    %5900 = vrot.lane.b32.xlu0 %v5809, 96
    %v5901 = vpop.permute.xlu0 %5900
    %5902 = vrot.lane.b32.xlu0 %v5821, 96
    %v5903 = vpop.permute.xlu0 %5902
    %5904 = vrot.lane.b32.xlu0 %v5833, 96
    %v5905 = vpop.permute.xlu0 %5904
    %5906 = vrot.lane.b32.xlu0 %v5845, 96
    %v5907 = vpop.permute.xlu0 %5906
    %5908 = vrot.lane.b32.xlu0 %v5857, 96
    %v5909 = vpop.permute.xlu0 %5908
    %5910 = vrot.lane.b32.xlu0 %v5869, 96
    %v5911 = vpop.permute.xlu0 %5910
    %5912 = vrot.lane.b32.xlu0 %v5881, 96
    %v5913 = vpop.permute.xlu0 %5912
    %v5930 = vunpack.c.l.b16 %v4554
    %v5931 = vunpack.c.l.b16 %v4555
    %v5932 = vunpack.c.l.b16 %v4556
    %v5933 = vunpack.c.l.b16 %v4557
    %v5934 = vunpack.c.l.b16 %v4558
    %v5935 = vunpack.c.l.b16 %v4559
    %v5936 = vunpack.c.l.b16 %v4560
    %v5937 = vunpack.c.l.b16 %v4561
    %v5938 = vunpack.c.l.b16 %v4562
    %v5939 = vunpack.c.l.b16 %v4563
    %v5940 = vunpack.c.l.b16 %v4564
    %v5941 = vunpack.c.l.b16 %v4565
    %v5942 = vunpack.c.l.b16 %v4566
    %v5943 = vunpack.c.l.b16 %v4567
    %v5944 = vunpack.c.l.b16 %v4568
    %v5945 = vunpack.c.l.b16 %v4569
    %v5946 = vpack.c.b16 %v5563, %v5930
    %v5947 = vpack.c.b16 %v5565, %v5931
    %v5948 = vpack.c.b16 %v5567, %v5932
    %v5949 = vpack.c.b16 %v5569, %v5933
    %v5950 = vpack.c.b16 %v5571, %v5934
    %v5951 = vpack.c.b16 %v5573, %v5935
    %v5952 = vpack.c.b16 %v5575, %v5936
    %v5953 = vpack.c.b16 %v5577, %v5937
    %v5954 = vpack.c.b16 %v5579, %v5938
    %v5955 = vpack.c.b16 %v5581, %v5939
    %v5956 = vpack.c.b16 %v5583, %v5940
    %v5957 = vpack.c.b16 %v5585, %v5941
    %v5958 = vpack.c.b16 %v5587, %v5942
    %v5959 = vpack.c.b16 %v5589, %v5943
    %v5960 = vpack.c.b16 %v5591, %v5944
    %v5961 = vpack.c.b16 %v5593, %v5945
    %v5962 = vrot.slane %v5946, 1
    %v5963 = vrot.slane %v5674, 1
    %v5964 = vsel %vm1442, %v5962, %v5963
    %v5965 = vrot.slane %v5947, 1
    %v5966 = vrot.slane %v5675, 1
    %v5967 = vsel %vm1442, %v5965, %v5966
    %v5968 = vrot.slane %v5948, 1
    %v5969 = vrot.slane %v5676, 1
    %v5970 = vsel %vm1442, %v5968, %v5969
    %v5971 = vrot.slane %v5949, 1
    %v5972 = vrot.slane %v5677, 1
    %v5973 = vsel %vm1442, %v5971, %v5972
    %v5974 = vrot.slane %v5950, 1
    %v5975 = vrot.slane %v5678, 1
    %v5976 = vsel %vm1442, %v5974, %v5975
    %v5977 = vrot.slane %v5951, 1
    %v5978 = vrot.slane %v5679, 1
    %v5979 = vsel %vm1442, %v5977, %v5978
    %v5980 = vrot.slane %v5952, 1
    %v5981 = vrot.slane %v5680, 1
    %v5982 = vsel %vm1442, %v5980, %v5981
    %v5983 = vrot.slane %v5953, 1
    %v5984 = vrot.slane %v5681, 1
    %v5985 = vsel %vm1442, %v5983, %v5984
    %v5986 = vrot.slane %v5954, 1
    %v5987 = vrot.slane %v5682, 1
    %v5988 = vsel %vm1442, %v5986, %v5987
    %v5989 = vrot.slane %v5955, 1
    %v5990 = vrot.slane %v5683, 1
    %v5991 = vsel %vm1442, %v5989, %v5990
    %v5992 = vrot.slane %v5956, 1
    %v5993 = vrot.slane %v5684, 1
    %v5994 = vsel %vm1442, %v5992, %v5993
    %v5995 = vrot.slane %v5957, 1
    %v5996 = vrot.slane %v5685, 1
    %v5997 = vsel %vm1442, %v5995, %v5996
    %v5998 = vrot.slane %v5958, 1
    %v5999 = vrot.slane %v5686, 1
    %v6000 = vsel %vm1442, %v5998, %v5999
    %v6001 = vrot.slane %v5959, 1
    %v6002 = vrot.slane %v5687, 1
    %v6003 = vsel %vm1442, %v6001, %v6002
    %v6004 = vrot.slane %v5960, 1
    %v6005 = vrot.slane %v5688, 1
    %v6006 = vsel %vm1442, %v6004, %v6005
    %v6007 = vrot.slane %v5961, 1
    %v6008 = vrot.slane %v5689, 1
    %v6009 = vsel %vm1442, %v6007, %v6008
    %v6011 = vsel %vm2483, %v4634, %v4891
    %v6013 = vsel %vm2483, %v4635, %v4893
    %v6015 = vsel %vm2483, %v4636, %v4895
    %v6017 = vsel %vm2483, %v4637, %v4897
    %v6019 = vsel %vm2483, %v4638, %v4899
    %v6021 = vsel %vm2483, %v4639, %v4901
    %v6023 = vsel %vm2483, %v4640, %v4903
    %v6025 = vsel %vm2483, %v4641, %v4905
    %v6027 = vsel %vm2483, %v4642, %v4907
    %v6029 = vsel %vm2483, %v4643, %v4909
    %v6031 = vsel %vm2483, %v4644, %v4911
    %v6033 = vsel %vm2483, %v4645, %v4913
    %v6035 = vsel %vm2483, %v4646, %v4915
    %v6037 = vsel %vm2483, %v4647, %v4917
    %v6039 = vsel %vm2483, %v4648, %v4919
    %v6041 = vsel %vm2483, %v4649, %v4921
    %v6043 = vsel %vm122, %v6011, %v5019
    %v6045 = vsel %vm122, %v6013, %v5021
    %v6047 = vsel %vm122, %v6015, %v5023
    %v6049 = vsel %vm122, %v6017, %v5025
    %v6051 = vsel %vm122, %v6019, %v5027
    %v6053 = vsel %vm122, %v6021, %v5029
    %v6055 = vsel %vm122, %v6023, %v5031
    %v6057 = vsel %vm122, %v6025, %v5033
    %v6059 = vsel %vm122, %v6027, %v5035
    %v6061 = vsel %vm122, %v6029, %v5037
    %v6063 = vsel %vm122, %v6031, %v5039
    %v6065 = vsel %vm122, %v6033, %v5041
    %v6067 = vsel %vm122, %v6035, %v5043
    %v6069 = vsel %vm122, %v6037, %v5045
    %v6071 = vsel %vm122, %v6039, %v5047
    %v6073 = vsel %vm122, %v6041, %v5049
    %v6075 = vsel %vm2548, %v6043, %v5131
    %v6078 = vsel %vm2548, %v6045, %v5133
    %v6081 = vsel %vm2548, %v6047, %v5135
    %v6084 = vsel %vm2548, %v6049, %v5137
    %v6087 = vsel %vm2548, %v6051, %v5139
    %v6090 = vsel %vm2548, %v6053, %v5141
    %v6093 = vsel %vm2548, %v6055, %v5143
    %v6096 = vsel %vm2548, %v6057, %v5145
    %v6099 = vsel %vm2548, %v6059, %v5147
    %v6102 = vsel %vm2548, %v6061, %v5149
    %v6105 = vsel %vm2548, %v6063, %v5151
    %v6108 = vsel %vm2548, %v6065, %v5153
    %v6111 = vsel %vm2548, %v6067, %v5155
    %v6114 = vsel %vm2548, %v6069, %v5157
    %v6117 = vsel %vm2548, %v6071, %v5159
    %v6120 = vsel %vm2548, %v6073, %v5161
    %v6124 = vsel %vm2483, %v5221, %v5499
    %v6127 = vsel %vm2483, %v5233, %v5501
    %v6130 = vsel %vm2483, %v5245, %v5503
    %v6133 = vsel %vm2483, %v5257, %v5505
    %v6136 = vsel %vm2483, %v5269, %v5507
    %v6139 = vsel %vm2483, %v5281, %v5509
    %v6142 = vsel %vm2483, %v5293, %v5511
    %v6145 = vsel %vm2483, %v5305, %v5513
    %v6148 = vsel %vm2483, %v5317, %v5515
    %v6151 = vsel %vm2483, %v5329, %v5517
    %v6154 = vsel %vm2483, %v5341, %v5519
    %v6157 = vsel %vm2483, %v5353, %v5521
    %v6160 = vsel %vm2483, %v5365, %v5523
    %v6163 = vsel %vm2483, %v5377, %v5525
    %v6166 = vsel %vm2483, %v5389, %v5527
    %v6169 = vsel %vm2483, %v5401, %v5529
    %v6171 = vsel %vm122, %v6124, %v5611
    %v6173 = vsel %vm122, %v6127, %v5613
    %v6175 = vsel %vm122, %v6130, %v5615
    %v6177 = vsel %vm122, %v6133, %v5617
    %v6179 = vsel %vm122, %v6136, %v5619
    %v6181 = vsel %vm122, %v6139, %v5621
    %v6183 = vsel %vm122, %v6142, %v5623
    %v6185 = vsel %vm122, %v6145, %v5625
    %v6187 = vsel %vm122, %v6148, %v5627
    %v6189 = vsel %vm122, %v6151, %v5629
    %v6191 = vsel %vm122, %v6154, %v5631
    %v6193 = vsel %vm122, %v6157, %v5633
    %v6195 = vsel %vm122, %v6160, %v5635
    %v6197 = vsel %vm122, %v6163, %v5637
    %v6199 = vsel %vm122, %v6166, %v5639
    %v6201 = vsel %vm122, %v6169, %v5641
    %v6203 = vsel %vm2548, %v6171, %v5883
    %v6206 = vsel %vm2548, %v6173, %v5885
    %v6209 = vsel %vm2548, %v6175, %v5887
    %v6212 = vsel %vm2548, %v6177, %v5889
    %v6215 = vsel %vm2548, %v6179, %v5891
    %v6218 = vsel %vm2548, %v6181, %v5893
    %v6221 = vsel %vm2548, %v6183, %v5895
    %v6224 = vsel %vm2548, %v6185, %v5897
    %v6227 = vsel %vm2548, %v6187, %v5899
    %v6230 = vsel %vm2548, %v6189, %v5901
    %v6233 = vsel %vm2548, %v6191, %v5903
    %v6236 = vsel %vm2548, %v6193, %v5905
    %v6239 = vsel %vm2548, %v6195, %v5907
    %v6242 = vsel %vm2548, %v6197, %v5909
    %v6245 = vsel %vm2548, %v6199, %v5911
    %v6248 = vsel %vm2548, %v6201, %v5913
    %s6250 = scalar_lea.vmem %s2, 144
    %v6251 = vld [vmem:[%s6250] sm:$0xf]
    %v6252 = vld [vmem:[%s6250 + $0x4] sm:$0xf]
    %v6253 = vld [vmem:[%s6250 + $0x8] sm:$0xf]
    %v6254 = vld [vmem:[%s6250 + $0xc] sm:$0xf]
    %v6255 = vld [vmem:[%s6250 + $0x10] sm:$0xf]
    %v6256 = vld [vmem:[%s6250 + $0x14] sm:$0xf]
    %v6257 = vld [vmem:[%s6250 + $0x18] sm:$0xf]
    %v6258 = vld [vmem:[%s6250 + $0x1c] sm:$0xf]
    %v6259 = vld [vmem:[%s6250 + $0x20] sm:$0xf]
    %v6260 = vld [vmem:[%s6250 + $0x24] sm:$0xf]
    %v6261 = vld [vmem:[%s6250 + $0x28] sm:$0xf]
    %v6262 = vld [vmem:[%s6250 + $0x2c] sm:$0xf]
    %v6263 = vld [vmem:[%s6250 + $0x30] sm:$0xf]
    %v6264 = vld [vmem:[%s6250 + $0x34] sm:$0xf]
    %v6265 = vld [vmem:[%s6250 + $0x38] sm:$0xf]
    %v6266 = vld [vmem:[%s6250 + $0x3c] sm:$0xf]
    %v6267 = vld [vmem:[%s6250 + $0x40] sm:$0xf]
    %v6268 = vld [vmem:[%s6250 + $0x44] sm:$0xf]
    %v6269 = vld [vmem:[%s6250 + $0x48] sm:$0xf]
    %v6270 = vld [vmem:[%s6250 + $0x4c] sm:$0xf]
    %v6271 = vld [vmem:[%s6250 + $0x50] sm:$0xf]
    %v6272 = vld [vmem:[%s6250 + $0x54] sm:$0xf]
    %v6273 = vld [vmem:[%s6250 + $0x58] sm:$0xf]
    %v6274 = vld [vmem:[%s6250 + $0x5c] sm:$0xf]
    %v6275 = vld [vmem:[%s6250 + $0x60] sm:$0xf]
    %v6276 = vld [vmem:[%s6250 + $0x64] sm:$0xf]
    %v6277 = vld [vmem:[%s6250 + $0x68] sm:$0xf]
    %v6278 = vld [vmem:[%s6250 + $0x6c] sm:$0xf]
    %v6279 = vld [vmem:[%s6250 + $0x70] sm:$0xf]
    %v6280 = vld [vmem:[%s6250 + $0x74] sm:$0xf]
    %v6281 = vld [vmem:[%s6250 + $0x78] sm:$0xf]
    %v6282 = vld [vmem:[%s6250 + $0x7c] sm:$0xf]
    %v6283 = vld [vmem:[%s6250 + $0x80] sm:$0xf]
    %v6284 = vld [vmem:[%s6250 + $0x84] sm:$0xf]
    %v6285 = vld [vmem:[%s6250 + $0x88] sm:$0xf]
    %v6286 = vld [vmem:[%s6250 + $0x8c] sm:$0xf]
    %v6323 = vunpack.c.l.b16 %v6251
    %v6324 = vunpack.c.l.b16 %v6252
    %v6325 = vunpack.c.l.b16 %v6253
    %v6326 = vunpack.c.l.b16 %v6254
    %v6327 = vunpack.c.l.b16 %v6255
    %v6328 = vunpack.c.l.b16 %v6256
    %v6329 = vunpack.c.l.b16 %v6257
    %v6330 = vunpack.c.l.b16 %v6258
    %v6331 = vunpack.c.l.b16 %v6259
    %v6332 = vunpack.c.l.b16 %v6260
    %v6333 = vunpack.c.l.b16 %v6261
    %v6334 = vunpack.c.l.b16 %v6262
    %v6335 = vunpack.c.l.b16 %v6263
    %v6336 = vunpack.c.l.b16 %v6264
    %v6337 = vunpack.c.l.b16 %v6265
    %v6338 = vunpack.c.l.b16 %v6266
    %v6339 = vunpack.c.l.b16 %v6267
    %v6340 = vunpack.c.l.b16 %v6268
    %v6341 = vunpack.c.l.b16 %v6269
    %v6342 = vunpack.c.l.b16 %v6270
    %v6343 = vunpack.c.l.b16 %v6271
    %v6344 = vunpack.c.l.b16 %v6272
    %v6345 = vunpack.c.l.b16 %v6273
    %v6346 = vunpack.c.l.b16 %v6274
    %v6347 = vunpack.c.l.b16 %v6275
    %v6348 = vunpack.c.l.b16 %v6276
    %v6349 = vunpack.c.l.b16 %v6277
    %v6350 = vunpack.c.l.b16 %v6278
    %v6351 = vunpack.c.l.b16 %v6279
    %v6352 = vunpack.c.l.b16 %v6280
    %v6353 = vunpack.c.l.b16 %v6281
    %v6354 = vunpack.c.l.b16 %v6282
    %v6355 = vunpack.c.l.b16 %v6283
    %v6356 = vunpack.c.l.b16 %v6284
    %v6357 = vunpack.c.l.b16 %v6285
    %v6358 = vunpack.c.l.b16 %v6286
    %v6359 = vpack.c.b16 %v6324, %v6323
    %v6360 = vpack.c.b16 %v6326, %v6325
    %v6361 = vpack.c.b16 %v6328, %v6327
    %v6362 = vpack.c.b16 %v6330, %v6329
    %v6363 = vpack.c.b16 %v6332, %v6331
    %v6364 = vpack.c.b16 %v6334, %v6333
    %v6365 = vpack.c.b16 %v6336, %v6335
    %v6366 = vpack.c.b16 %v6338, %v6337
    %v6367 = vpack.c.b16 %v6340, %v6339
    %v6368 = vpack.c.b16 %v6342, %v6341
    %v6369 = vpack.c.b16 %v6344, %v6343
    %v6370 = vpack.c.b16 %v6346, %v6345
    %v6371 = vpack.c.b16 %v6348, %v6347
    %v6372 = vpack.c.b16 %v6350, %v6349
    %v6373 = vpack.c.b16 %v6352, %v6351
    %v6374 = vpack.c.b16 %v6354, %v6353
    %v6375 = vpack.c.b16 %v6356, %v6355
    %v6376 = vpack.c.b16 %v6358, %v6357
    %v6396 = vsel %vm2483, %v5964, 0
    %v6399 = vsel %vm2483, %v5967, 0
    %v6402 = vsel %vm2483, %v5970, 0
    %v6405 = vsel %vm2483, %v5973, 0
    %v6408 = vsel %vm2483, %v5976, 0
    %v6411 = vsel %vm2483, %v5979, 0
    %v6414 = vsel %vm2483, %v5982, 0
    %v6417 = vsel %vm2483, %v5985, 0
    %v6420 = vsel %vm2483, %v5988, 0
    %v6423 = vsel %vm2483, %v5991, 0
    %v6426 = vsel %vm2483, %v5994, 0
    %v6429 = vsel %vm2483, %v5997, 0
    %v6432 = vsel %vm2483, %v6000, 0
    %v6435 = vsel %vm2483, %v6003, 0
    %v6438 = vsel %vm2483, %v6006, 0
    %v6441 = vsel %vm2483, %v6009, 0
    %6443 = vmatprep.subr.bf16.mxu0 0
    %6444 = vmatpush1.bf16.msra.mxu0 %v6359
    %6445 = vmatprep.subr.bf16.mxu0 0
    %6446 = vmatpush1.bf16.msra.mxu0 %v6360
    %6447 = vmatprep.subr.bf16.mxu0 0
    %6448 = vmatpush1.bf16.msra.mxu0 %v6361
    %6449 = vmatprep.subr.bf16.mxu0 0
    %6450 = vmatpush1.bf16.msra.mxu0 %v6362
    %6451 = vmatprep.subr.bf16.mxu0 0
    %6452 = vmatpush1.bf16.msra.mxu0 %v6363
    %6453 = vmatprep.subr.bf16.mxu0 0
    %6454 = vmatpush1.bf16.msra.mxu0 %v6364
    %6455 = vmatprep.subr.bf16.mxu0 0
    %6456 = vmatpush1.bf16.msra.mxu0 %v6365
    %6457 = vmatprep.subr.bf16.mxu0 0
    %6458 = vmatpush1.bf16.msra.mxu0 %v6366
    %6459 = vmatprep.subr.bf16.mxu0 0
    %6460 = vmatpush1.bf16.msra.mxu0 %v6367
    %6461 = vmatprep.subr.bf16.mxu0 0
    %6462 = vmatpush1.bf16.msra.mxu0 %v6368
    %6463 = vmatprep.subr.bf16.mxu0 0
    %6464 = vmatpush1.bf16.msra.mxu0 %v6369
    %6465 = vmatprep.subr.bf16.mxu0 0
    %6466 = vmatpush1.bf16.msra.mxu0 %v6370
    %6467 = vmatprep.subr.bf16.mxu0 0
    %6468 = vmatpush1.bf16.msra.mxu0 %v6371
    %6469 = vmatprep.subr.bf16.mxu0 0
    %6470 = vmatpush1.bf16.msra.mxu0 %v6372
    %6471 = vmatprep.subr.bf16.mxu0 0
    %6472 = vmatpush1.bf16.msra.mxu0 %v6373
    %6473 = vmatprep.subr.bf16.mxu0 0
    %6474 = vmatpush1.bf16.msra.mxu0 %v6374
    %6475 = vmatprep.mubr.bf16.mxu0 %v6203
    %6476 = vmatmul.mubr.bf16.gmra.mrb[0].mxu0 %v6075
    %v6477 = vpop.f32.mrb[0].mxu0
    %v6478 = vadd.f32 0.0, %v6477
    %v6479 = vpop.f32.mrb[0].mxu0
    %v6480 = vpop.f32.mrb[0].mxu0
    %v6481 = vadd.f32 0.0, %v6480
    %v6482 = vpop.f32.mrb[0].mxu0
    %6483 = vmatprep.mubr.bf16.mxu0 %v6206
    %6484 = vmatmul.mubr.bf16.gmra.mrb[0].mxu0 %v6078
    %v6485 = vpop.f32.mrb[0].mxu0
    %v6486 = vadd.f32 0.0, %v6485
    %v6487 = vpop.f32.mrb[0].mxu0
    %v6488 = vpop.f32.mrb[0].mxu0
    %v6489 = vadd.f32 0.0, %v6488
    %v6490 = vpop.f32.mrb[0].mxu0
    %6491 = vmatprep.mubr.bf16.mxu0 %v6209
    %6492 = vmatmul.mubr.bf16.gmra.mrb[0].mxu0 %v6081
    %v6493 = vpop.f32.mrb[0].mxu0
    %v6494 = vadd.f32 0.0, %v6493
    %v6495 = vpop.f32.mrb[0].mxu0
    %v6496 = vpop.f32.mrb[0].mxu0
    %v6497 = vadd.f32 0.0, %v6496
    %v6498 = vpop.f32.mrb[0].mxu0
    %6499 = vmatprep.mubr.bf16.mxu0 %v6212
    %6500 = vmatmul.mubr.bf16.gmra.mrb[0].mxu0 %v6084
    %v6501 = vpop.f32.mrb[0].mxu0
    %v6502 = vadd.f32 0.0, %v6501
    %v6503 = vpop.f32.mrb[0].mxu0
    %v6504 = vpop.f32.mrb[0].mxu0
    %v6505 = vadd.f32 0.0, %v6504
    %v6506 = vpop.f32.mrb[0].mxu0
    %6507 = vmatprep.mubr.bf16.mxu0 %v6215
    %6508 = vmatmul.mubr.bf16.gmra.mrb[0].mxu0 %v6087
    %v6509 = vpop.f32.mrb[0].mxu0
    %v6510 = vadd.f32 0.0, %v6509
    %v6511 = vpop.f32.mrb[0].mxu0
    %v6512 = vpop.f32.mrb[0].mxu0
    %v6513 = vadd.f32 0.0, %v6512
    %v6514 = vpop.f32.mrb[0].mxu0
    %6515 = vmatprep.mubr.bf16.mxu0 %v6218
    %6516 = vmatmul.mubr.bf16.gmra.mrb[0].mxu0 %v6090
    %v6517 = vpop.f32.mrb[0].mxu0
    %v6518 = vadd.f32 0.0, %v6517
    %v6519 = vpop.f32.mrb[0].mxu0
    %v6520 = vpop.f32.mrb[0].mxu0
    %v6521 = vadd.f32 0.0, %v6520
    %v6522 = vpop.f32.mrb[0].mxu0
    %6523 = vmatprep.mubr.bf16.mxu0 %v6221
    %6524 = vmatmul.mubr.bf16.gmra.mrb[0].mxu0 %v6093
    %v6525 = vpop.f32.mrb[0].mxu0
    %v6526 = vadd.f32 0.0, %v6525
    %v6527 = vpop.f32.mrb[0].mxu0
    %v6528 = vpop.f32.mrb[0].mxu0
    %v6529 = vadd.f32 0.0, %v6528
    %v6530 = vpop.f32.mrb[0].mxu0
    %6531 = vmatprep.mubr.bf16.mxu0 %v6224
    %6532 = vmatmul.mubr.bf16.gmra.mrb[0].mxu0 %v6096
    %v6533 = vpop.f32.mrb[0].mxu0
    %v6534 = vadd.f32 0.0, %v6533
    %v6535 = vpop.f32.mrb[0].mxu0
    %v6536 = vpop.f32.mrb[0].mxu0
    %v6537 = vadd.f32 0.0, %v6536
    %v6538 = vpop.f32.mrb[0].mxu0
    %6539 = vmatprep.mubr.bf16.mxu0 %v6227
    %6540 = vmatmul.mubr.bf16.gmra.mrb[0].mxu0 %v6099
    %v6541 = vpop.f32.mrb[0].mxu0
    %v6542 = vadd.f32 0.0, %v6541
    %v6543 = vpop.f32.mrb[0].mxu0
    %v6544 = vpop.f32.mrb[0].mxu0
    %v6545 = vadd.f32 0.0, %v6544
    %v6546 = vpop.f32.mrb[0].mxu0
    %6547 = vmatprep.mubr.bf16.mxu0 %v6230
    %6548 = vmatmul.mubr.bf16.gmra.mrb[0].mxu0 %v6102
    %v6549 = vpop.f32.mrb[0].mxu0
    %v6550 = vadd.f32 0.0, %v6549
    %v6551 = vpop.f32.mrb[0].mxu0
    %v6552 = vpop.f32.mrb[0].mxu0
    %v6553 = vadd.f32 0.0, %v6552
    %v6554 = vpop.f32.mrb[0].mxu0
    %6555 = vmatprep.mubr.bf16.mxu0 %v6233
    %6556 = vmatmul.mubr.bf16.gmra.mrb[0].mxu0 %v6105
    %v6557 = vpop.f32.mrb[0].mxu0
    %v6558 = vadd.f32 0.0, %v6557
    %v6559 = vpop.f32.mrb[0].mxu0
    %v6560 = vpop.f32.mrb[0].mxu0
    %v6561 = vadd.f32 0.0, %v6560
    %v6562 = vpop.f32.mrb[0].mxu0
    %6563 = vmatprep.mubr.bf16.mxu0 %v6236
    %6564 = vmatmul.mubr.bf16.gmra.mrb[0].mxu0 %v6108
    %v6565 = vpop.f32.mrb[0].mxu0
    %v6566 = vadd.f32 0.0, %v6565
    %v6567 = vpop.f32.mrb[0].mxu0
    %v6568 = vpop.f32.mrb[0].mxu0
    %v6569 = vadd.f32 0.0, %v6568
    %v6570 = vpop.f32.mrb[0].mxu0
    %6571 = vmatprep.mubr.bf16.mxu0 %v6239
    %6572 = vmatmul.mubr.bf16.gmra.mrb[0].mxu0 %v6111
    %v6573 = vpop.f32.mrb[0].mxu0
    %v6574 = vadd.f32 0.0, %v6573
    %v6575 = vpop.f32.mrb[0].mxu0
    %v6576 = vpop.f32.mrb[0].mxu0
    %v6577 = vadd.f32 0.0, %v6576
    %v6578 = vpop.f32.mrb[0].mxu0
    %6579 = vmatprep.mubr.bf16.mxu0 %v6242
    %6580 = vmatmul.mubr.bf16.gmra.mrb[0].mxu0 %v6114
    %v6581 = vpop.f32.mrb[0].mxu0
    %v6582 = vadd.f32 0.0, %v6581
    %v6583 = vpop.f32.mrb[0].mxu0
    %v6584 = vpop.f32.mrb[0].mxu0
    %v6585 = vadd.f32 0.0, %v6584
    %v6586 = vpop.f32.mrb[0].mxu0
    %6587 = vmatprep.mubr.bf16.mxu0 %v6245
    %6588 = vmatmul.mubr.bf16.gmra.mrb[0].mxu0 %v6117
    %v6589 = vpop.f32.mrb[0].mxu0
    %v6590 = vadd.f32 0.0, %v6589
    %v6591 = vpop.f32.mrb[0].mxu0
    %v6592 = vpop.f32.mrb[0].mxu0
    %v6593 = vadd.f32 0.0, %v6592
    %v6594 = vpop.f32.mrb[0].mxu0
    %6595 = vmatprep.mubr.bf16.mxu0 %v6248
    %6596 = vmatmul.mubr.bf16.gmra.mrb[0].mxu0 %v6120
    %v6597 = vpop.f32.mrb[0].mxu0
    %v6598 = vadd.f32 0.0, %v6597
    %v6599 = vpop.f32.mrb[0].mxu0
    %v6600 = vpop.f32.mrb[0].mxu0
    %v6601 = vadd.f32 0.0, %v6600
    %v6602 = vpop.f32.mrb[0].mxu0
    %6603 = vdwg.mxu0
    %6604 = vmatprep.subr.bf16.mxu0 0
    %6605 = vmatpush1.bf16.msra.mxu0 %v6375
    %6606 = vmatprep.subr.bf16.mxu0 0
    %6607 = vmatpush1.bf16.msra.mxu0 %v6376
    %6608 = vmatprep.subr.bf16.mxu0 0
    %6609 = vmatpush1.bf16.msra.mxu0 0
    %6610 = vmatprep.subr.bf16.mxu0 0
    %6611 = vmatpush1.bf16.msra.mxu0 0
    %6612 = vmatprep.subr.bf16.mxu0 0
    %6613 = vmatpush1.bf16.msra.mxu0 0
    %6614 = vmatprep.subr.bf16.mxu0 0
    %6615 = vmatpush1.bf16.msra.mxu0 0
    %6616 = vmatprep.subr.bf16.mxu0 0
    %6617 = vmatpush1.bf16.msra.mxu0 0
    %6618 = vmatprep.subr.bf16.mxu0 0
    %6619 = vmatpush1.bf16.msra.mxu0 0
    %6620 = vmatprep.subr.bf16.mxu0 0
    %6621 = vmatpush1.bf16.msra.mxu0 0
    %6622 = vmatprep.subr.bf16.mxu0 0
    %6623 = vmatpush1.bf16.msra.mxu0 0
    %6624 = vmatprep.subr.bf16.mxu0 0
    %6625 = vmatpush1.bf16.msra.mxu0 0
    %6626 = vmatprep.subr.bf16.mxu0 0
    %6627 = vmatpush1.bf16.msra.mxu0 0
    %6628 = vmatprep.subr.bf16.mxu0 0
    %6629 = vmatpush1.bf16.msra.mxu0 0
    %6630 = vmatprep.subr.bf16.mxu0 0
    %6631 = vmatpush1.bf16.msra.mxu0 0
    %6632 = vmatprep.subr.bf16.mxu0 0
    %6633 = vmatpush1.bf16.msra.mxu0 0
    %6634 = vmatprep.subr.bf16.mxu0 0
    %6635 = vmatpush1.bf16.msra.mxu0 0
    %6636 = vmatprep.mubr.bf16.mxu0 0
    %6637 = vmatmul.mubr.bf16.gmra.mrb[0].mxu0 %v6396
    %v6638 = vpop.f32.mrb[0].mxu0
    %v6639 = vadd.f32 %v6478, %v6638
    %v6640 = vpop.f32.mrb[0].mxu0
    %v6641 = vpop.f32.mrb[0].mxu0
    %v6642 = vadd.f32 %v6481, %v6641
    %v6643 = vpop.f32.mrb[0].mxu0
    %6644 = vmatprep.mubr.bf16.mxu0 0
    %6645 = vmatmul.mubr.bf16.gmra.mrb[0].mxu0 %v6399
    %v6646 = vpop.f32.mrb[0].mxu0
    %v6647 = vadd.f32 %v6486, %v6646
    %v6648 = vpop.f32.mrb[0].mxu0
    %v6649 = vpop.f32.mrb[0].mxu0
    %v6650 = vadd.f32 %v6489, %v6649
    %v6651 = vpop.f32.mrb[0].mxu0
    %6652 = vmatprep.mubr.bf16.mxu0 0
    %6653 = vmatmul.mubr.bf16.gmra.mrb[0].mxu0 %v6402
    %v6654 = vpop.f32.mrb[0].mxu0
    %v6655 = vadd.f32 %v6494, %v6654
    %v6656 = vpop.f32.mrb[0].mxu0
    %v6657 = vpop.f32.mrb[0].mxu0
    %v6658 = vadd.f32 %v6497, %v6657
    %v6659 = vpop.f32.mrb[0].mxu0
    %6660 = vmatprep.mubr.bf16.mxu0 0
    %6661 = vmatmul.mubr.bf16.gmra.mrb[0].mxu0 %v6405
    %v6662 = vpop.f32.mrb[0].mxu0
    %v6663 = vadd.f32 %v6502, %v6662
    %v6664 = vpop.f32.mrb[0].mxu0
    %v6665 = vpop.f32.mrb[0].mxu0
    %v6666 = vadd.f32 %v6505, %v6665
    %v6667 = vpop.f32.mrb[0].mxu0
    %6668 = vmatprep.mubr.bf16.mxu0 0
    %6669 = vmatmul.mubr.bf16.gmra.mrb[0].mxu0 %v6408
    %v6670 = vpop.f32.mrb[0].mxu0
    %v6671 = vadd.f32 %v6510, %v6670
    %v6672 = vpop.f32.mrb[0].mxu0
    %v6673 = vpop.f32.mrb[0].mxu0
    %v6674 = vadd.f32 %v6513, %v6673
    %v6675 = vpop.f32.mrb[0].mxu0
    %6676 = vmatprep.mubr.bf16.mxu0 0
    %6677 = vmatmul.mubr.bf16.gmra.mrb[0].mxu0 %v6411
    %v6678 = vpop.f32.mrb[0].mxu0
    %v6679 = vadd.f32 %v6518, %v6678
    %v6680 = vpop.f32.mrb[0].mxu0
    %v6681 = vpop.f32.mrb[0].mxu0
    %v6682 = vadd.f32 %v6521, %v6681
    %v6683 = vpop.f32.mrb[0].mxu0
    %6684 = vmatprep.mubr.bf16.mxu0 0
    %6685 = vmatmul.mubr.bf16.gmra.mrb[0].mxu0 %v6414
    %v6686 = vpop.f32.mrb[0].mxu0
    %v6687 = vadd.f32 %v6526, %v6686
    %v6688 = vpop.f32.mrb[0].mxu0
    %v6689 = vpop.f32.mrb[0].mxu0
    %v6690 = vadd.f32 %v6529, %v6689
    %v6691 = vpop.f32.mrb[0].mxu0
    %6692 = vmatprep.mubr.bf16.mxu0 0
    %6693 = vmatmul.mubr.bf16.gmra.mrb[0].mxu0 %v6417
    %v6694 = vpop.f32.mrb[0].mxu0
    %v6695 = vadd.f32 %v6534, %v6694
    %v6696 = vpop.f32.mrb[0].mxu0
    %v6697 = vpop.f32.mrb[0].mxu0
    %v6698 = vadd.f32 %v6537, %v6697
    %v6699 = vpop.f32.mrb[0].mxu0
    %6700 = vmatprep.mubr.bf16.mxu0 0
    %6701 = vmatmul.mubr.bf16.gmra.mrb[0].mxu0 %v6420
    %v6702 = vpop.f32.mrb[0].mxu0
    %v6703 = vadd.f32 %v6542, %v6702
    %v6704 = vpop.f32.mrb[0].mxu0
    %v6705 = vpop.f32.mrb[0].mxu0
    %v6706 = vadd.f32 %v6545, %v6705
    %v6707 = vpop.f32.mrb[0].mxu0
    %6708 = vmatprep.mubr.bf16.mxu0 0
    %6709 = vmatmul.mubr.bf16.gmra.mrb[0].mxu0 %v6423
    %v6710 = vpop.f32.mrb[0].mxu0
    %v6711 = vadd.f32 %v6550, %v6710
    %v6712 = vpop.f32.mrb[0].mxu0
    %v6713 = vpop.f32.mrb[0].mxu0
    %v6714 = vadd.f32 %v6553, %v6713
    %v6715 = vpop.f32.mrb[0].mxu0
    %6716 = vmatprep.mubr.bf16.mxu0 0
    %6717 = vmatmul.mubr.bf16.gmra.mrb[0].mxu0 %v6426
    %v6718 = vpop.f32.mrb[0].mxu0
    %v6719 = vadd.f32 %v6558, %v6718
    %v6720 = vpop.f32.mrb[0].mxu0
    %v6721 = vpop.f32.mrb[0].mxu0
    %v6722 = vadd.f32 %v6561, %v6721
    %v6723 = vpop.f32.mrb[0].mxu0
    %6724 = vmatprep.mubr.bf16.mxu0 0
    %6725 = vmatmul.mubr.bf16.gmra.mrb[0].mxu0 %v6429
    %v6726 = vpop.f32.mrb[0].mxu0
    %v6727 = vadd.f32 %v6566, %v6726
    %v6728 = vpop.f32.mrb[0].mxu0
    %v6729 = vpop.f32.mrb[0].mxu0
    %v6730 = vadd.f32 %v6569, %v6729
    %v6731 = vpop.f32.mrb[0].mxu0
    %6732 = vmatprep.mubr.bf16.mxu0 0
    %6733 = vmatmul.mubr.bf16.gmra.mrb[0].mxu0 %v6432
    %v6734 = vpop.f32.mrb[0].mxu0
    %v6735 = vadd.f32 %v6574, %v6734
    %v6736 = vpop.f32.mrb[0].mxu0
    %v6737 = vpop.f32.mrb[0].mxu0
    %v6738 = vadd.f32 %v6577, %v6737
    %v6739 = vpop.f32.mrb[0].mxu0
    %6740 = vmatprep.mubr.bf16.mxu0 0
    %6741 = vmatmul.mubr.bf16.gmra.mrb[0].mxu0 %v6435
    %v6742 = vpop.f32.mrb[0].mxu0
    %v6743 = vadd.f32 %v6582, %v6742
    %v6744 = vpop.f32.mrb[0].mxu0
    %v6745 = vpop.f32.mrb[0].mxu0
    %v6746 = vadd.f32 %v6585, %v6745
    %v6747 = vpop.f32.mrb[0].mxu0
    %6748 = vmatprep.mubr.bf16.mxu0 0
    %6749 = vmatmul.mubr.bf16.gmra.mrb[0].mxu0 %v6438
    %v6750 = vpop.f32.mrb[0].mxu0
    %v6751 = vadd.f32 %v6590, %v6750
    %v6752 = vpop.f32.mrb[0].mxu0
    %v6753 = vpop.f32.mrb[0].mxu0
    %v6754 = vadd.f32 %v6593, %v6753
    %v6755 = vpop.f32.mrb[0].mxu0
    %6756 = vmatprep.mubr.bf16.mxu0 0
    %6757 = vmatmul.mubr.bf16.gmra.mrb[0].mxu0 %v6441
    %v6758 = vpop.f32.mrb[0].mxu0
    %v6759 = vadd.f32 %v6598, %v6758
    %v6760 = vpop.f32.mrb[0].mxu0
    %v6761 = vpop.f32.mrb[0].mxu0
    %v6762 = vadd.f32 %v6601, %v6761
    %v6763 = vpop.f32.mrb[0].mxu0
    %6764 = vdwg.mxu0
    %vm6765 = vcmp.gt.f32.partialorder %v6639, 0.0
    %vm6766 = vcmp.gt.f32.partialorder %v6642, 0.0
    %vm6767 = vcmp.gt.f32.partialorder %v6647, 0.0
    %vm6768 = vcmp.gt.f32.partialorder %v6650, 0.0
    %vm6769 = vcmp.gt.f32.partialorder %v6655, 0.0
    %vm6770 = vcmp.gt.f32.partialorder %v6658, 0.0
    %vm6771 = vcmp.gt.f32.partialorder %v6663, 0.0
    %vm6772 = vcmp.gt.f32.partialorder %v6666, 0.0
    %vm6773 = vcmp.gt.f32.partialorder %v6671, 0.0
    %vm6774 = vcmp.gt.f32.partialorder %v6674, 0.0
    %vm6775 = vcmp.gt.f32.partialorder %v6679, 0.0
    %vm6776 = vcmp.gt.f32.partialorder %v6682, 0.0
    %vm6777 = vcmp.gt.f32.partialorder %v6687, 0.0
    %vm6778 = vcmp.gt.f32.partialorder %v6690, 0.0
    %vm6779 = vcmp.gt.f32.partialorder %v6695, 0.0
    %vm6780 = vcmp.gt.f32.partialorder %v6698, 0.0
    %vm6781 = vcmp.gt.f32.partialorder %v6703, 0.0
    %vm6782 = vcmp.gt.f32.partialorder %v6706, 0.0
    %vm6783 = vcmp.gt.f32.partialorder %v6711, 0.0
    %vm6784 = vcmp.gt.f32.partialorder %v6714, 0.0
    %vm6785 = vcmp.gt.f32.partialorder %v6719, 0.0
    %vm6786 = vcmp.gt.f32.partialorder %v6722, 0.0
    %vm6787 = vcmp.gt.f32.partialorder %v6727, 0.0
    %vm6788 = vcmp.gt.f32.partialorder %v6730, 0.0
    %vm6789 = vcmp.gt.f32.partialorder %v6735, 0.0
    %vm6790 = vcmp.gt.f32.partialorder %v6738, 0.0
    %vm6791 = vcmp.gt.f32.partialorder %v6743, 0.0
    %vm6792 = vcmp.gt.f32.partialorder %v6746, 0.0
    %vm6793 = vcmp.gt.f32.partialorder %v6751, 0.0
    %vm6794 = vcmp.gt.f32.partialorder %v6754, 0.0
    %vm6795 = vcmp.gt.f32.partialorder %v6759, 0.0
    %vm6796 = vcmp.gt.f32.partialorder %v6762, 0.0
    %v6797 = vmul.f32 %v6639, 0.2
    %v6798 = vmul.f32 %v6642, 0.2
    %v6799 = vmul.f32 %v6647, 0.2
    %v6800 = vmul.f32 %v6650, 0.2
    %v6801 = vmul.f32 %v6655, 0.2
    %v6802 = vmul.f32 %v6658, 0.2
    %v6803 = vmul.f32 %v6663, 0.2
    %v6804 = vmul.f32 %v6666, 0.2
    %v6805 = vmul.f32 %v6671, 0.2
    %v6806 = vmul.f32 %v6674, 0.2
    %v6807 = vmul.f32 %v6679, 0.2
    %v6808 = vmul.f32 %v6682, 0.2
    %v6809 = vmul.f32 %v6687, 0.2
    %v6810 = vmul.f32 %v6690, 0.2
    %v6811 = vmul.f32 %v6695, 0.2
    %v6812 = vmul.f32 %v6698, 0.2
    %v6813 = vmul.f32 %v6703, 0.2
    %v6814 = vmul.f32 %v6706, 0.2
    %v6815 = vmul.f32 %v6711, 0.2
    %v6816 = vmul.f32 %v6714, 0.2
    %v6817 = vmul.f32 %v6719, 0.2
    %v6818 = vmul.f32 %v6722, 0.2
    %v6819 = vmul.f32 %v6727, 0.2
    %v6820 = vmul.f32 %v6730, 0.2
    %v6821 = vmul.f32 %v6735, 0.2
    %v6822 = vmul.f32 %v6738, 0.2
    %v6823 = vmul.f32 %v6743, 0.2
    %v6824 = vmul.f32 %v6746, 0.2
    %v6825 = vmul.f32 %v6751, 0.2
    %v6826 = vmul.f32 %v6754, 0.2
    %v6827 = vmul.f32 %v6759, 0.2
    %v6828 = vmul.f32 %v6762, 0.2
    %v6829 = vsel %vm6765, %v6639, %v6797
    %v6830 = vsel %vm6766, %v6642, %v6798
    %v6831 = vsel %vm6767, %v6647, %v6799
    %v6832 = vsel %vm6768, %v6650, %v6800
    %v6833 = vsel %vm6769, %v6655, %v6801
    %v6834 = vsel %vm6770, %v6658, %v6802
    %v6835 = vsel %vm6771, %v6663, %v6803
    %v6836 = vsel %vm6772, %v6666, %v6804
    %v6837 = vsel %vm6773, %v6671, %v6805
    %v6838 = vsel %vm6774, %v6674, %v6806
    %v6839 = vsel %vm6775, %v6679, %v6807
    %v6840 = vsel %vm6776, %v6682, %v6808
    %v6841 = vsel %vm6777, %v6687, %v6809
    %v6842 = vsel %vm6778, %v6690, %v6810
    %v6843 = vsel %vm6779, %v6695, %v6811
    %v6844 = vsel %vm6780, %v6698, %v6812
    %v6845 = vsel %vm6781, %v6703, %v6813
    %v6846 = vsel %vm6782, %v6706, %v6814
    %v6847 = vsel %vm6783, %v6711, %v6815
    %v6848 = vsel %vm6784, %v6714, %v6816
    %v6849 = vsel %vm6785, %v6719, %v6817
    %v6850 = vsel %vm6786, %v6722, %v6818
    %v6851 = vsel %vm6787, %v6727, %v6819
    %v6852 = vsel %vm6788, %v6730, %v6820
    %v6853 = vsel %vm6789, %v6735, %v6821
    %v6854 = vsel %vm6790, %v6738, %v6822
    %v6855 = vsel %vm6791, %v6743, %v6823
    %v6856 = vsel %vm6792, %v6746, %v6824
    %v6857 = vsel %vm6793, %v6751, %v6825
    %v6858 = vsel %vm6794, %v6754, %v6826
    %v6859 = vsel %vm6795, %v6759, %v6827
    %v6860 = vsel %vm6796, %v6762, %v6828
    %v6861 = vpack.c.bf16 %v6830, %v6829
    %v6862 = vpack.c.bf16 %v6832, %v6831
    %v6863 = vpack.c.bf16 %v6834, %v6833
    %v6864 = vpack.c.bf16 %v6836, %v6835
    %v6865 = vpack.c.bf16 %v6838, %v6837
    %v6866 = vpack.c.bf16 %v6840, %v6839
    %v6867 = vpack.c.bf16 %v6842, %v6841
    %v6868 = vpack.c.bf16 %v6844, %v6843
    %v6869 = vpack.c.bf16 %v6846, %v6845
    %v6870 = vpack.c.bf16 %v6848, %v6847
    %v6871 = vpack.c.bf16 %v6850, %v6849
    %v6872 = vpack.c.bf16 %v6852, %v6851
    %v6873 = vpack.c.bf16 %v6854, %v6853
    %v6874 = vpack.c.bf16 %v6856, %v6855
    %v6875 = vpack.c.bf16 %v6858, %v6857
    %v6876 = vpack.c.bf16 %v6860, %v6859
    %s6877 = scalar_lea.vmem %s3, 16
    %v6878 = vld [vmem:[%s6877] sm:$0xf]
    %v6879 = vld [vmem:[%s6877 + $0x4] sm:$0xf]
    %v6880 = vld [vmem:[%s6877 + $0x8] sm:$0xf]
    %v6881 = vld [vmem:[%s6877 + $0xc] sm:$0xf]
    %v6886 = vunpack.c.l.b16 %v6878
    %v6887 = vunpack.c.l.b16 %v6879
    %v6888 = vunpack.c.l.b16 %v6880
    %v6889 = vunpack.c.l.b16 %v6881
    %v6890 = vpack.c.b16 %v6887, %v6886
    %v6891 = vpack.c.b16 %v6889, %v6888
    %v6895 = vsel %vm2483, %v6861, 0
    %v6898 = vsel %vm2483, %v6862, 0
    %v6901 = vsel %vm2483, %v6863, 0
    %v6904 = vsel %vm2483, %v6864, 0
    %v6907 = vsel %vm2483, %v6865, 0
    %v6910 = vsel %vm2483, %v6866, 0
    %v6913 = vsel %vm2483, %v6867, 0
    %v6916 = vsel %vm2483, %v6868, 0
    %v6919 = vsel %vm2483, %v6869, 0
    %v6922 = vsel %vm2483, %v6870, 0
    %v6925 = vsel %vm2483, %v6871, 0
    %v6928 = vsel %vm2483, %v6872, 0
    %v6931 = vsel %vm2483, %v6873, 0
    %v6934 = vsel %vm2483, %v6874, 0
    %v6937 = vsel %vm2483, %v6875, 0
    %v6940 = vsel %vm2483, %v6876, 0
    %6942 = vmatprep.subr.bf16.mxu0 0
    %6943 = vmatpush1.bf16.msra.mxu0 %v6890
    %6944 = vmatprep.subr.bf16.mxu0 0
    %6945 = vmatpush1.bf16.msra.mxu0 %v6891
    %6946 = vmatprep.subr.bf16.mxu0 0
    %6947 = vmatpush1.bf16.msra.mxu0 0
    %6948 = vmatprep.subr.bf16.mxu0 0
    %6949 = vmatpush1.bf16.msra.mxu0 0
    %6950 = vmatprep.subr.bf16.mxu0 0
    %6951 = vmatpush1.bf16.msra.mxu0 0
    %6952 = vmatprep.subr.bf16.mxu0 0
    %6953 = vmatpush1.bf16.msra.mxu0 0
    %6954 = vmatprep.subr.bf16.mxu0 0
    %6955 = vmatpush1.bf16.msra.mxu0 0
    %6956 = vmatprep.subr.bf16.mxu0 0
    %6957 = vmatpush1.bf16.msra.mxu0 0
    %6958 = vmatprep.subr.bf16.mxu0 0
    %6959 = vmatpush1.bf16.msra.mxu0 0
    %6960 = vmatprep.subr.bf16.mxu0 0
    %6961 = vmatpush1.bf16.msra.mxu0 0
    %6962 = vmatprep.subr.bf16.mxu0 0
    %6963 = vmatpush1.bf16.msra.mxu0 0
    %6964 = vmatprep.subr.bf16.mxu0 0
    %6965 = vmatpush1.bf16.msra.mxu0 0
    %6966 = vmatprep.subr.bf16.mxu0 0
    %6967 = vmatpush1.bf16.msra.mxu0 0
    %6968 = vmatprep.subr.bf16.mxu0 0
    %6969 = vmatpush1.bf16.msra.mxu0 0
    %6970 = vmatprep.subr.bf16.mxu0 0
    %6971 = vmatpush1.bf16.msra.mxu0 0
    %6972 = vmatprep.subr.bf16.mxu0 0
    %6973 = vmatpush1.bf16.msra.mxu0 0
    %6974 = vmatprep.mubr.bf16.mxu0 0
    %6975 = vmatmul.mubr.bf16.gmra.mrb[0].mxu0 %v6895
    %v6976 = vpop.f32.mrb[0].mxu0
    %v6977 = vadd.f32 0.0, %v6976
    %v6978 = vpop.f32.mrb[0].mxu0
    %v6979 = vpop.f32.mrb[0].mxu0
    %v6980 = vadd.f32 0.0, %v6979
    %v6981 = vpop.f32.mrb[0].mxu0
    %6982 = vmatprep.mubr.bf16.mxu0 0
    %6983 = vmatmul.mubr.bf16.gmra.mrb[0].mxu0 %v6898
    %v6984 = vpop.f32.mrb[0].mxu0
    %v6985 = vadd.f32 0.0, %v6984
    %v6986 = vpop.f32.mrb[0].mxu0
    %v6987 = vpop.f32.mrb[0].mxu0
    %v6988 = vadd.f32 0.0, %v6987
    %v6989 = vpop.f32.mrb[0].mxu0
    %6990 = vmatprep.mubr.bf16.mxu0 0
    %6991 = vmatmul.mubr.bf16.gmra.mrb[0].mxu0 %v6901
    %v6992 = vpop.f32.mrb[0].mxu0
    %v6993 = vadd.f32 0.0, %v6992
    %v6994 = vpop.f32.mrb[0].mxu0
    %v6995 = vpop.f32.mrb[0].mxu0
    %v6996 = vadd.f32 0.0, %v6995
    %v6997 = vpop.f32.mrb[0].mxu0
    %6998 = vmatprep.mubr.bf16.mxu0 0
    %6999 = vmatmul.mubr.bf16.gmra.mrb[0].mxu0 %v6904
    %v7000 = vpop.f32.mrb[0].mxu0
    %v7001 = vadd.f32 0.0, %v7000
    %v7002 = vpop.f32.mrb[0].mxu0
    %v7003 = vpop.f32.mrb[0].mxu0
    %v7004 = vadd.f32 0.0, %v7003
    %v7005 = vpop.f32.mrb[0].mxu0
    %7006 = vmatprep.mubr.bf16.mxu0 0
    %7007 = vmatmul.mubr.bf16.gmra.mrb[0].mxu0 %v6907
    %v7008 = vpop.f32.mrb[0].mxu0
    %v7009 = vadd.f32 0.0, %v7008
    %v7010 = vpop.f32.mrb[0].mxu0
    %v7011 = vpop.f32.mrb[0].mxu0
    %v7012 = vadd.f32 0.0, %v7011
    %v7013 = vpop.f32.mrb[0].mxu0
    %7014 = vmatprep.mubr.bf16.mxu0 0
    %7015 = vmatmul.mubr.bf16.gmra.mrb[0].mxu0 %v6910
    %v7016 = vpop.f32.mrb[0].mxu0
    %v7017 = vadd.f32 0.0, %v7016
    %v7018 = vpop.f32.mrb[0].mxu0
    %v7019 = vpop.f32.mrb[0].mxu0
    %v7020 = vadd.f32 0.0, %v7019
    %v7021 = vpop.f32.mrb[0].mxu0
    %7022 = vmatprep.mubr.bf16.mxu0 0
    %7023 = vmatmul.mubr.bf16.gmra.mrb[0].mxu0 %v6913
    %v7024 = vpop.f32.mrb[0].mxu0
    %v7025 = vadd.f32 0.0, %v7024
    %v7026 = vpop.f32.mrb[0].mxu0
    %v7027 = vpop.f32.mrb[0].mxu0
    %v7028 = vadd.f32 0.0, %v7027
    %v7029 = vpop.f32.mrb[0].mxu0
    %7030 = vmatprep.mubr.bf16.mxu0 0
    %7031 = vmatmul.mubr.bf16.gmra.mrb[0].mxu0 %v6916
    %v7032 = vpop.f32.mrb[0].mxu0
    %v7033 = vadd.f32 0.0, %v7032
    %v7034 = vpop.f32.mrb[0].mxu0
    %v7035 = vpop.f32.mrb[0].mxu0
    %v7036 = vadd.f32 0.0, %v7035
    %v7037 = vpop.f32.mrb[0].mxu0
    %7038 = vmatprep.mubr.bf16.mxu0 0
    %7039 = vmatmul.mubr.bf16.gmra.mrb[0].mxu0 %v6919
    %v7040 = vpop.f32.mrb[0].mxu0
    %v7041 = vadd.f32 0.0, %v7040
    %v7042 = vpop.f32.mrb[0].mxu0
    %v7043 = vpop.f32.mrb[0].mxu0
    %v7044 = vadd.f32 0.0, %v7043
    %v7045 = vpop.f32.mrb[0].mxu0
    %7046 = vmatprep.mubr.bf16.mxu0 0
    %7047 = vmatmul.mubr.bf16.gmra.mrb[0].mxu0 %v6922
    %v7048 = vpop.f32.mrb[0].mxu0
    %v7049 = vadd.f32 0.0, %v7048
    %v7050 = vpop.f32.mrb[0].mxu0
    %v7051 = vpop.f32.mrb[0].mxu0
    %v7052 = vadd.f32 0.0, %v7051
    %v7053 = vpop.f32.mrb[0].mxu0
    %7054 = vmatprep.mubr.bf16.mxu0 0
    %7055 = vmatmul.mubr.bf16.gmra.mrb[0].mxu0 %v6925
    %v7056 = vpop.f32.mrb[0].mxu0
    %v7057 = vadd.f32 0.0, %v7056
    %v7058 = vpop.f32.mrb[0].mxu0
    %v7059 = vpop.f32.mrb[0].mxu0
    %v7060 = vadd.f32 0.0, %v7059
    %v7061 = vpop.f32.mrb[0].mxu0
    %7062 = vmatprep.mubr.bf16.mxu0 0
    %7063 = vmatmul.mubr.bf16.gmra.mrb[0].mxu0 %v6928
    %v7064 = vpop.f32.mrb[0].mxu0
    %v7065 = vadd.f32 0.0, %v7064
    %v7066 = vpop.f32.mrb[0].mxu0
    %v7067 = vpop.f32.mrb[0].mxu0
    %v7068 = vadd.f32 0.0, %v7067
    %v7069 = vpop.f32.mrb[0].mxu0
    %7070 = vmatprep.mubr.bf16.mxu0 0
    %7071 = vmatmul.mubr.bf16.gmra.mrb[0].mxu0 %v6931
    %v7072 = vpop.f32.mrb[0].mxu0
    %v7073 = vadd.f32 0.0, %v7072
    %v7074 = vpop.f32.mrb[0].mxu0
    %v7075 = vpop.f32.mrb[0].mxu0
    %v7076 = vadd.f32 0.0, %v7075
    %v7077 = vpop.f32.mrb[0].mxu0
    %7078 = vmatprep.mubr.bf16.mxu0 0
    %7079 = vmatmul.mubr.bf16.gmra.mrb[0].mxu0 %v6934
    %v7080 = vpop.f32.mrb[0].mxu0
    %v7081 = vadd.f32 0.0, %v7080
    %v7082 = vpop.f32.mrb[0].mxu0
    %v7083 = vpop.f32.mrb[0].mxu0
    %v7084 = vadd.f32 0.0, %v7083
    %v7085 = vpop.f32.mrb[0].mxu0
    %7086 = vmatprep.mubr.bf16.mxu0 0
    %7087 = vmatmul.mubr.bf16.gmra.mrb[0].mxu0 %v6937
    %v7088 = vpop.f32.mrb[0].mxu0
    %v7089 = vadd.f32 0.0, %v7088
    %v7090 = vpop.f32.mrb[0].mxu0
    %v7091 = vpop.f32.mrb[0].mxu0
    %v7092 = vadd.f32 0.0, %v7091
    %v7093 = vpop.f32.mrb[0].mxu0
    %7094 = vmatprep.mubr.bf16.mxu0 0
    %7095 = vmatmul.mubr.bf16.gmra.mrb[0].mxu0 %v6940
    %v7096 = vpop.f32.mrb[0].mxu0
    %v7097 = vadd.f32 0.0, %v7096
    %v7098 = vpop.f32.mrb[0].mxu0
    %v7099 = vpop.f32.mrb[0].mxu0
    %v7100 = vadd.f32 0.0, %v7099
    %v7101 = vpop.f32.mrb[0].mxu0
    %7102 = vdwg.mxu0
    %v7103 = vadd.f32 %v3576, %v6977
    %v7104 = vadd.f32 %v3577, %v6980
    %v7105 = vadd.f32 %v3578, %v6985
    %v7106 = vadd.f32 %v3579, %v6988
    %v7107 = vadd.f32 %v3580, %v6993
    %v7108 = vadd.f32 %v3581, %v6996
    %v7109 = vadd.f32 %v3582, %v7001
    %v7110 = vadd.f32 %v3583, %v7004
    %v7111 = vadd.f32 %v3584, %v7009
    %v7112 = vadd.f32 %v3585, %v7012
    %v7113 = vadd.f32 %v3586, %v7017
    %v7114 = vadd.f32 %v3587, %v7020
    %v7115 = vadd.f32 %v3588, %v7025
    %v7116 = vadd.f32 %v3589, %v7028
    %v7117 = vadd.f32 %v3590, %v7033
    %v7118 = vadd.f32 %v3591, %v7036
    %v7119 = vadd.f32 %v3592, %v7041
    %v7120 = vadd.f32 %v3593, %v7044
    %v7121 = vadd.f32 %v3594, %v7049
    %v7122 = vadd.f32 %v3595, %v7052
    %v7123 = vadd.f32 %v3596, %v7057
    %v7124 = vadd.f32 %v3597, %v7060
    %v7125 = vadd.f32 %v3598, %v7065
    %v7126 = vadd.f32 %v3599, %v7068
    %v7127 = vadd.f32 %v3600, %v7073
    %v7128 = vadd.f32 %v3601, %v7076
    %v7129 = vadd.f32 %v3602, %v7081
    %v7130 = vadd.f32 %v3603, %v7084
    %v7131 = vadd.f32 %v3604, %v7089
    %v7132 = vadd.f32 %v3605, %v7092
    %v7133 = vadd.f32 %v3606, %v7097
    %v7134 = vadd.f32 %v3607, %v7100
    %7135 = vst.msk [vmem:[#allocation6] sm:$0xff] %vm122, %v7103
    %7136 = vst.msk [vmem:[#allocation6 + $0x8] sm:$0xff] %vm122, %v7104
    %7137 = vst.msk [vmem:[#allocation6 + $0x10] sm:$0xff] %vm122, %v7105
    %7138 = vst.msk [vmem:[#allocation6 + $0x18] sm:$0xff] %vm122, %v7106
    %7139 = vst.msk [vmem:[#allocation6 + $0x20] sm:$0xff] %vm122, %v7107
    %7140 = vst.msk [vmem:[#allocation6 + $0x28] sm:$0xff] %vm122, %v7108
    %7141 = vst.msk [vmem:[#allocation6 + $0x30] sm:$0xff] %vm122, %v7109
    %7142 = vst.msk [vmem:[#allocation6 + $0x38] sm:$0xff] %vm122, %v7110
    %7143 = vst.msk [vmem:[#allocation6 + $0x40] sm:$0xff] %vm122, %v7111
    %7144 = vst.msk [vmem:[#allocation6 + $0x48] sm:$0xff] %vm122, %v7112
    %7145 = vst.msk [vmem:[#allocation6 + $0x50] sm:$0xff] %vm122, %v7113
    %7146 = vst.msk [vmem:[#allocation6 + $0x58] sm:$0xff] %vm122, %v7114
    %7147 = vst.msk [vmem:[#allocation6 + $0x60] sm:$0xff] %vm122, %v7115
    %7148 = vst.msk [vmem:[#allocation6 + $0x68] sm:$0xff] %vm122, %v7116
    %7149 = vst.msk [vmem:[#allocation6 + $0x70] sm:$0xff] %vm122, %v7117
    %7150 = vst.msk [vmem:[#allocation6 + $0x78] sm:$0xff] %vm122, %v7118
    %7151 = vst.msk [vmem:[#allocation6 + $0x80] sm:$0xff] %vm122, %v7119
    %7152 = vst.msk [vmem:[#allocation6 + $0x88] sm:$0xff] %vm122, %v7120
    %7153 = vst.msk [vmem:[#allocation6 + $0x90] sm:$0xff] %vm122, %v7121
    %7154 = vst.msk [vmem:[#allocation6 + $0x98] sm:$0xff] %vm122, %v7122
    %7155 = vst.msk [vmem:[#allocation6 + $0xa0] sm:$0xff] %vm122, %v7123
    %7156 = vst.msk [vmem:[#allocation6 + $0xa8] sm:$0xff] %vm122, %v7124
    %7157 = vst.msk [vmem:[#allocation6 + $0xb0] sm:$0xff] %vm122, %v7125
    %7158 = vst.msk [vmem:[#allocation6 + $0xb8] sm:$0xff] %vm122, %v7126
    %7159 = vst.msk [vmem:[#allocation6 + $0xc0] sm:$0xff] %vm122, %v7127
    %7160 = vst.msk [vmem:[#allocation6 + $0xc8] sm:$0xff] %vm122, %v7128
    %7161 = vst.msk [vmem:[#allocation6 + $0xd0] sm:$0xff] %vm122, %v7129
    %7162 = vst.msk [vmem:[#allocation6 + $0xd8] sm:$0xff] %vm122, %v7130
    %7163 = vst.msk [vmem:[#allocation6 + $0xe0] sm:$0xff] %vm122, %v7131
    %7164 = vst.msk [vmem:[#allocation6 + $0xe8] sm:$0xff] %vm122, %v7132
    %7165 = vst.msk [vmem:[#allocation6 + $0xf0] sm:$0xff] %vm122, %v7133
    %7166 = vst.msk [vmem:[#allocation6 + $0xf8] sm:$0xff] %vm122, %v7134
    %s7167 = scalar_lea.vmem [#allocation3], 256
    %v7168 = vld [vmem:[%s7167] sm:$0xff]
    %v7169 = vld [vmem:[%s7167 + $0x8] sm:$0xff]
    %v7170 = vld [vmem:[%s7167 + $0x10] sm:$0xff]
    %v7171 = vld [vmem:[%s7167 + $0x18] sm:$0xff]
    %v7172 = vld [vmem:[%s7167 + $0x20] sm:$0xff]
    %v7173 = vld [vmem:[%s7167 + $0x28] sm:$0xff]
    %v7174 = vld [vmem:[%s7167 + $0x30] sm:$0xff]
    %v7175 = vld [vmem:[%s7167 + $0x38] sm:$0xff]
    %v7176 = vld [vmem:[%s7167 + $0x40] sm:$0xff]
    %v7177 = vld [vmem:[%s7167 + $0x48] sm:$0xff]
    %v7178 = vld [vmem:[%s7167 + $0x50] sm:$0xff]
    %v7179 = vld [vmem:[%s7167 + $0x58] sm:$0xff]
    %v7180 = vld [vmem:[%s7167 + $0x60] sm:$0xff]
    %v7181 = vld [vmem:[%s7167 + $0x68] sm:$0xff]
    %v7182 = vld [vmem:[%s7167 + $0x70] sm:$0xff]
    %v7183 = vld [vmem:[%s7167 + $0x78] sm:$0xff]
    %v7184 = vld [vmem:[%s7167 + $0x80] sm:$0xff]
    %v7185 = vld [vmem:[%s7167 + $0x88] sm:$0xff]
    %v7186 = vld [vmem:[%s7167 + $0x90] sm:$0xff]
    %v7187 = vld [vmem:[%s7167 + $0x98] sm:$0xff]
    %v7188 = vld [vmem:[%s7167 + $0xa0] sm:$0xff]
    %v7189 = vld [vmem:[%s7167 + $0xa8] sm:$0xff]
    %v7190 = vld [vmem:[%s7167 + $0xb0] sm:$0xff]
    %v7191 = vld [vmem:[%s7167 + $0xb8] sm:$0xff]
    %v7192 = vld [vmem:[%s7167 + $0xc0] sm:$0xff]
    %v7193 = vld [vmem:[%s7167 + $0xc8] sm:$0xff]
    %v7194 = vld [vmem:[%s7167 + $0xd0] sm:$0xff]
    %v7195 = vld [vmem:[%s7167 + $0xd8] sm:$0xff]
    %v7196 = vld [vmem:[%s7167 + $0xe0] sm:$0xff]
    %v7197 = vld [vmem:[%s7167 + $0xe8] sm:$0xff]
    %v7198 = vld [vmem:[%s7167 + $0xf0] sm:$0xff]
    %v7199 = vld [vmem:[%s7167 + $0xf8] sm:$0xff]
    %v7200 = vpack.c.bf16 %v7169, %v7168
    %v7201 = vpack.c.bf16 %v7171, %v7170
    %v7202 = vpack.c.bf16 %v7173, %v7172
    %v7203 = vpack.c.bf16 %v7175, %v7174
    %v7204 = vpack.c.bf16 %v7177, %v7176
    %v7205 = vpack.c.bf16 %v7179, %v7178
    %v7206 = vpack.c.bf16 %v7181, %v7180
    %v7207 = vpack.c.bf16 %v7183, %v7182
    %v7208 = vpack.c.bf16 %v7185, %v7184
    %v7209 = vpack.c.bf16 %v7187, %v7186
    %v7210 = vpack.c.bf16 %v7189, %v7188
    %v7211 = vpack.c.bf16 %v7191, %v7190
    %v7212 = vpack.c.bf16 %v7193, %v7192
    %v7213 = vpack.c.bf16 %v7195, %v7194
    %v7214 = vpack.c.bf16 %v7197, %v7196
    %v7215 = vpack.c.bf16 %v7199, %v7198
    %v7216 = vld [vmem:[%s1] sm:$0xf]
    %v7217 = vld [vmem:[%s1 + $0x4] sm:$0xf]
    %v7218 = vld [vmem:[%s1 + $0x8] sm:$0xf]
    %v7219 = vld [vmem:[%s1 + $0xc] sm:$0xf]
    %v7220 = vld [vmem:[%s1 + $0x10] sm:$0xf]
    %v7221 = vld [vmem:[%s1 + $0x14] sm:$0xf]
    %v7222 = vld [vmem:[%s1 + $0x18] sm:$0xf]
    %v7223 = vld [vmem:[%s1 + $0x1c] sm:$0xf]
    %v7232 = vunpack.c.l.b16 %v7216
    %v7233 = vunpack.c.l.b16 %v7217
    %v7234 = vunpack.c.l.b16 %v7218
    %v7235 = vunpack.c.l.b16 %v7219
    %v7236 = vunpack.c.l.b16 %v7220
    %v7237 = vunpack.c.l.b16 %v7221
    %v7238 = vunpack.c.l.b16 %v7222
    %v7239 = vunpack.c.l.b16 %v7223
    %v7240 = vpack.c.b16 %v7233, %v7232
    %v7241 = vpack.c.b16 %v7235, %v7234
    %v7242 = vpack.c.b16 %v7237, %v7236
    %v7243 = vpack.c.b16 %v7239, %v7238
    %v7249 = vsel %vm122, %v7200, 0
    %v7252 = vsel %vm122, %v7201, 0
    %v7255 = vsel %vm122, %v7202, 0
    %v7258 = vsel %vm122, %v7203, 0
    %v7261 = vsel %vm122, %v7204, 0
    %v7264 = vsel %vm122, %v7205, 0
    %v7267 = vsel %vm122, %v7206, 0
    %v7270 = vsel %vm122, %v7207, 0
    %v7273 = vsel %vm122, %v7208, 0
    %v7276 = vsel %vm122, %v7209, 0
    %v7279 = vsel %vm122, %v7210, 0
    %v7282 = vsel %vm122, %v7211, 0
    %v7285 = vsel %vm122, %v7212, 0
    %v7288 = vsel %vm122, %v7213, 0
    %v7291 = vsel %vm122, %v7214, 0
    %v7294 = vsel %vm122, %v7215, 0
    %7296 = vmatprep.subr.bf16.mxu0 0
    %7297 = vmatpush1.bf16.msra.mxu0 %v7240
    %7298 = vmatprep.subr.bf16.mxu0 0
    %7299 = vmatpush1.bf16.msra.mxu0 %v7241
    %7300 = vmatprep.subr.bf16.mxu0 0
    %7301 = vmatpush1.bf16.msra.mxu0 %v7242
    %7302 = vmatprep.subr.bf16.mxu0 0
    %7303 = vmatpush1.bf16.msra.mxu0 %v7243
    %7304 = vmatprep.subr.bf16.mxu0 0
    %7305 = vmatpush1.bf16.msra.mxu0 0
    %7306 = vmatprep.subr.bf16.mxu0 0
    %7307 = vmatpush1.bf16.msra.mxu0 0
    %7308 = vmatprep.subr.bf16.mxu0 0
    %7309 = vmatpush1.bf16.msra.mxu0 0
    %7310 = vmatprep.subr.bf16.mxu0 0
    %7311 = vmatpush1.bf16.msra.mxu0 0
    %7312 = vmatprep.subr.bf16.mxu0 0
    %7313 = vmatpush1.bf16.msra.mxu0 0
    %7314 = vmatprep.subr.bf16.mxu0 0
    %7315 = vmatpush1.bf16.msra.mxu0 0
    %7316 = vmatprep.subr.bf16.mxu0 0
    %7317 = vmatpush1.bf16.msra.mxu0 0
    %7318 = vmatprep.subr.bf16.mxu0 0
    %7319 = vmatpush1.bf16.msra.mxu0 0
    %7320 = vmatprep.subr.bf16.mxu0 0
    %7321 = vmatpush1.bf16.msra.mxu0 0
    %7322 = vmatprep.subr.bf16.mxu0 0
    %7323 = vmatpush1.bf16.msra.mxu0 0
    %7324 = vmatprep.subr.bf16.mxu0 0
    %7325 = vmatpush1.bf16.msra.mxu0 0
    %7326 = vmatprep.subr.bf16.mxu0 0
    %7327 = vmatpush1.bf16.msra.mxu0 0
    %7328 = vmatprep.mubr.bf16.mxu0 0
    %7329 = vmatmul.mubr.bf16.gmra.mrb[0].mxu0 %v7249
    %v7330 = vpop.f32.mrb[0].mxu0
    %v7331 = vadd.f32 0.0, %v7330
    %v7332 = vpop.f32.mrb[0].mxu0
    %v7333 = vpop.f32.mrb[0].mxu0
    %v7334 = vadd.f32 0.0, %v7333
    %v7335 = vpop.f32.mrb[0].mxu0
    %7336 = vmatprep.mubr.bf16.mxu0 0
    %7337 = vmatmul.mubr.bf16.gmra.mrb[0].mxu0 %v7252
    %v7338 = vpop.f32.mrb[0].mxu0
    %v7339 = vadd.f32 0.0, %v7338
    %v7340 = vpop.f32.mrb[0].mxu0
    %v7341 = vpop.f32.mrb[0].mxu0
    %v7342 = vadd.f32 0.0, %v7341
    %v7343 = vpop.f32.mrb[0].mxu0
    %7344 = vmatprep.mubr.bf16.mxu0 0
    %7345 = vmatmul.mubr.bf16.gmra.mrb[0].mxu0 %v7255
    %v7346 = vpop.f32.mrb[0].mxu0
    %v7347 = vadd.f32 0.0, %v7346
    %v7348 = vpop.f32.mrb[0].mxu0
    %v7349 = vpop.f32.mrb[0].mxu0
    %v7350 = vadd.f32 0.0, %v7349
    %v7351 = vpop.f32.mrb[0].mxu0
    %7352 = vmatprep.mubr.bf16.mxu0 0
    %7353 = vmatmul.mubr.bf16.gmra.mrb[0].mxu0 %v7258
    %v7354 = vpop.f32.mrb[0].mxu0
    %v7355 = vadd.f32 0.0, %v7354
    %v7356 = vpop.f32.mrb[0].mxu0
    %v7357 = vpop.f32.mrb[0].mxu0
    %v7358 = vadd.f32 0.0, %v7357
    %v7359 = vpop.f32.mrb[0].mxu0
    %7360 = vmatprep.mubr.bf16.mxu0 0
    %7361 = vmatmul.mubr.bf16.gmra.mrb[0].mxu0 %v7261
    %v7362 = vpop.f32.mrb[0].mxu0
    %v7363 = vadd.f32 0.0, %v7362
    %v7364 = vpop.f32.mrb[0].mxu0
    %v7365 = vpop.f32.mrb[0].mxu0
    %v7366 = vadd.f32 0.0, %v7365
    %v7367 = vpop.f32.mrb[0].mxu0
    %7368 = vmatprep.mubr.bf16.mxu0 0
    %7369 = vmatmul.mubr.bf16.gmra.mrb[0].mxu0 %v7264
    %v7370 = vpop.f32.mrb[0].mxu0
    %v7371 = vadd.f32 0.0, %v7370
    %v7372 = vpop.f32.mrb[0].mxu0
    %v7373 = vpop.f32.mrb[0].mxu0
    %v7374 = vadd.f32 0.0, %v7373
    %v7375 = vpop.f32.mrb[0].mxu0
    %7376 = vmatprep.mubr.bf16.mxu0 0
    %7377 = vmatmul.mubr.bf16.gmra.mrb[0].mxu0 %v7267
    %v7378 = vpop.f32.mrb[0].mxu0
    %v7379 = vadd.f32 0.0, %v7378
    %v7380 = vpop.f32.mrb[0].mxu0
    %v7381 = vpop.f32.mrb[0].mxu0
    %v7382 = vadd.f32 0.0, %v7381
    %v7383 = vpop.f32.mrb[0].mxu0
    %7384 = vmatprep.mubr.bf16.mxu0 0
    %7385 = vmatmul.mubr.bf16.gmra.mrb[0].mxu0 %v7270
    %v7386 = vpop.f32.mrb[0].mxu0
    %v7387 = vadd.f32 0.0, %v7386
    %v7388 = vpop.f32.mrb[0].mxu0
    %v7389 = vpop.f32.mrb[0].mxu0
    %v7390 = vadd.f32 0.0, %v7389
    %v7391 = vpop.f32.mrb[0].mxu0
    %7392 = vmatprep.mubr.bf16.mxu0 0
    %7393 = vmatmul.mubr.bf16.gmra.mrb[0].mxu0 %v7273
    %v7394 = vpop.f32.mrb[0].mxu0
    %v7395 = vadd.f32 0.0, %v7394
    %v7396 = vpop.f32.mrb[0].mxu0
    %v7397 = vpop.f32.mrb[0].mxu0
    %v7398 = vadd.f32 0.0, %v7397
    %v7399 = vpop.f32.mrb[0].mxu0
    %7400 = vmatprep.mubr.bf16.mxu0 0
    %7401 = vmatmul.mubr.bf16.gmra.mrb[0].mxu0 %v7276
    %v7402 = vpop.f32.mrb[0].mxu0
    %v7403 = vadd.f32 0.0, %v7402
    %v7404 = vpop.f32.mrb[0].mxu0
    %v7405 = vpop.f32.mrb[0].mxu0
    %v7406 = vadd.f32 0.0, %v7405
    %v7407 = vpop.f32.mrb[0].mxu0
    %7408 = vmatprep.mubr.bf16.mxu0 0
    %7409 = vmatmul.mubr.bf16.gmra.mrb[0].mxu0 %v7279
    %v7410 = vpop.f32.mrb[0].mxu0
    %v7411 = vadd.f32 0.0, %v7410
    %v7412 = vpop.f32.mrb[0].mxu0
    %v7413 = vpop.f32.mrb[0].mxu0
    %v7414 = vadd.f32 0.0, %v7413
    %v7415 = vpop.f32.mrb[0].mxu0
    %7416 = vmatprep.mubr.bf16.mxu0 0
    %7417 = vmatmul.mubr.bf16.gmra.mrb[0].mxu0 %v7282
    %v7418 = vpop.f32.mrb[0].mxu0
    %v7419 = vadd.f32 0.0, %v7418
    %v7420 = vpop.f32.mrb[0].mxu0
    %v7421 = vpop.f32.mrb[0].mxu0
    %v7422 = vadd.f32 0.0, %v7421
    %v7423 = vpop.f32.mrb[0].mxu0
    %7424 = vmatprep.mubr.bf16.mxu0 0
    %7425 = vmatmul.mubr.bf16.gmra.mrb[0].mxu0 %v7285
    %v7426 = vpop.f32.mrb[0].mxu0
    %v7427 = vadd.f32 0.0, %v7426
    %v7428 = vpop.f32.mrb[0].mxu0
    %v7429 = vpop.f32.mrb[0].mxu0
    %v7430 = vadd.f32 0.0, %v7429
    %v7431 = vpop.f32.mrb[0].mxu0
    %7432 = vmatprep.mubr.bf16.mxu0 0
    %7433 = vmatmul.mubr.bf16.gmra.mrb[0].mxu0 %v7288
    %v7434 = vpop.f32.mrb[0].mxu0
    %v7435 = vadd.f32 0.0, %v7434
    %v7436 = vpop.f32.mrb[0].mxu0
    %v7437 = vpop.f32.mrb[0].mxu0
    %v7438 = vadd.f32 0.0, %v7437
    %v7439 = vpop.f32.mrb[0].mxu0
    %7440 = vmatprep.mubr.bf16.mxu0 0
    %7441 = vmatmul.mubr.bf16.gmra.mrb[0].mxu0 %v7291
    %v7442 = vpop.f32.mrb[0].mxu0
    %v7443 = vadd.f32 0.0, %v7442
    %v7444 = vpop.f32.mrb[0].mxu0
    %v7445 = vpop.f32.mrb[0].mxu0
    %v7446 = vadd.f32 0.0, %v7445
    %v7447 = vpop.f32.mrb[0].mxu0
    %7448 = vmatprep.mubr.bf16.mxu0 0
    %7449 = vmatmul.mubr.bf16.gmra.mrb[0].mxu0 %v7294
    %v7450 = vpop.f32.mrb[0].mxu0
    %v7451 = vadd.f32 0.0, %v7450
    %v7452 = vpop.f32.mrb[0].mxu0
    %v7453 = vpop.f32.mrb[0].mxu0
    %v7454 = vadd.f32 0.0, %v7453
    %v7455 = vpop.f32.mrb[0].mxu0
    %7456 = vdwg.mxu0
    %vm7457 = vcmp.gt.f32.partialorder %v7331, 0.0
    %vm7458 = vcmp.gt.f32.partialorder %v7334, 0.0
    %vm7459 = vcmp.gt.f32.partialorder %v7339, 0.0
    %vm7460 = vcmp.gt.f32.partialorder %v7342, 0.0
    %vm7461 = vcmp.gt.f32.partialorder %v7347, 0.0
    %vm7462 = vcmp.gt.f32.partialorder %v7350, 0.0
    %vm7463 = vcmp.gt.f32.partialorder %v7355, 0.0
    %vm7464 = vcmp.gt.f32.partialorder %v7358, 0.0
    %vm7465 = vcmp.gt.f32.partialorder %v7363, 0.0
    %vm7466 = vcmp.gt.f32.partialorder %v7366, 0.0
    %vm7467 = vcmp.gt.f32.partialorder %v7371, 0.0
    %vm7468 = vcmp.gt.f32.partialorder %v7374, 0.0
    %vm7469 = vcmp.gt.f32.partialorder %v7379, 0.0
    %vm7470 = vcmp.gt.f32.partialorder %v7382, 0.0
    %vm7471 = vcmp.gt.f32.partialorder %v7387, 0.0
    %vm7472 = vcmp.gt.f32.partialorder %v7390, 0.0
    %vm7473 = vcmp.gt.f32.partialorder %v7395, 0.0
    %vm7474 = vcmp.gt.f32.partialorder %v7398, 0.0
    %vm7475 = vcmp.gt.f32.partialorder %v7403, 0.0
    %vm7476 = vcmp.gt.f32.partialorder %v7406, 0.0
    %vm7477 = vcmp.gt.f32.partialorder %v7411, 0.0
    %vm7478 = vcmp.gt.f32.partialorder %v7414, 0.0
    %vm7479 = vcmp.gt.f32.partialorder %v7419, 0.0
    %vm7480 = vcmp.gt.f32.partialorder %v7422, 0.0
    %vm7481 = vcmp.gt.f32.partialorder %v7427, 0.0
    %vm7482 = vcmp.gt.f32.partialorder %v7430, 0.0
    %vm7483 = vcmp.gt.f32.partialorder %v7435, 0.0
    %vm7484 = vcmp.gt.f32.partialorder %v7438, 0.0
    %vm7485 = vcmp.gt.f32.partialorder %v7443, 0.0
    %vm7486 = vcmp.gt.f32.partialorder %v7446, 0.0
    %vm7487 = vcmp.gt.f32.partialorder %v7451, 0.0
    %vm7488 = vcmp.gt.f32.partialorder %v7454, 0.0
    %v7489 = vmul.f32 %v7331, 0.2
    %v7490 = vmul.f32 %v7334, 0.2
    %v7491 = vmul.f32 %v7339, 0.2
    %v7492 = vmul.f32 %v7342, 0.2
    %v7493 = vmul.f32 %v7347, 0.2
    %v7494 = vmul.f32 %v7350, 0.2
    %v7495 = vmul.f32 %v7355, 0.2
    %v7496 = vmul.f32 %v7358, 0.2
    %v7497 = vmul.f32 %v7363, 0.2
    %v7498 = vmul.f32 %v7366, 0.2
    %v7499 = vmul.f32 %v7371, 0.2
    %v7500 = vmul.f32 %v7374, 0.2
    %v7501 = vmul.f32 %v7379, 0.2
    %v7502 = vmul.f32 %v7382, 0.2
    %v7503 = vmul.f32 %v7387, 0.2
    %v7504 = vmul.f32 %v7390, 0.2
    %v7505 = vmul.f32 %v7395, 0.2
    %v7506 = vmul.f32 %v7398, 0.2
    %v7507 = vmul.f32 %v7403, 0.2
    %v7508 = vmul.f32 %v7406, 0.2
    %v7509 = vmul.f32 %v7411, 0.2
    %v7510 = vmul.f32 %v7414, 0.2
    %v7511 = vmul.f32 %v7419, 0.2
    %v7512 = vmul.f32 %v7422, 0.2
    %v7513 = vmul.f32 %v7427, 0.2
    %v7514 = vmul.f32 %v7430, 0.2
    %v7515 = vmul.f32 %v7435, 0.2
    %v7516 = vmul.f32 %v7438, 0.2
    %v7517 = vmul.f32 %v7443, 0.2
    %v7518 = vmul.f32 %v7446, 0.2
    %v7519 = vmul.f32 %v7451, 0.2
    %v7520 = vmul.f32 %v7454, 0.2
    %v7521 = vsel %vm7457, %v7331, %v7489
    %v7522 = vsel %vm7458, %v7334, %v7490
    %v7523 = vsel %vm7459, %v7339, %v7491
    %v7524 = vsel %vm7460, %v7342, %v7492
    %v7525 = vsel %vm7461, %v7347, %v7493
    %v7526 = vsel %vm7462, %v7350, %v7494
    %v7527 = vsel %vm7463, %v7355, %v7495
    %v7528 = vsel %vm7464, %v7358, %v7496
    %v7529 = vsel %vm7465, %v7363, %v7497
    %v7530 = vsel %vm7466, %v7366, %v7498
    %v7531 = vsel %vm7467, %v7371, %v7499
    %v7532 = vsel %vm7468, %v7374, %v7500
    %v7533 = vsel %vm7469, %v7379, %v7501
    %v7534 = vsel %vm7470, %v7382, %v7502
    %v7535 = vsel %vm7471, %v7387, %v7503
    %v7536 = vsel %vm7472, %v7390, %v7504
    %v7537 = vsel %vm7473, %v7395, %v7505
    %v7538 = vsel %vm7474, %v7398, %v7506
    %v7539 = vsel %vm7475, %v7403, %v7507
    %v7540 = vsel %vm7476, %v7406, %v7508
    %v7541 = vsel %vm7477, %v7411, %v7509
    %v7542 = vsel %vm7478, %v7414, %v7510
    %v7543 = vsel %vm7479, %v7419, %v7511
    %v7544 = vsel %vm7480, %v7422, %v7512
    %v7545 = vsel %vm7481, %v7427, %v7513
    %v7546 = vsel %vm7482, %v7430, %v7514
    %v7547 = vsel %vm7483, %v7435, %v7515
    %v7548 = vsel %vm7484, %v7438, %v7516
    %v7549 = vsel %vm7485, %v7443, %v7517
    %v7550 = vsel %vm7486, %v7446, %v7518
    %v7551 = vsel %vm7487, %v7451, %v7519
    %v7552 = vsel %vm7488, %v7454, %v7520
    %v7553 = vpack.c.bf16 %v7522, %v7521
    %v7554 = vpack.c.bf16 %v7524, %v7523
    %v7555 = vpack.c.bf16 %v7526, %v7525
    %v7556 = vpack.c.bf16 %v7528, %v7527
    %v7557 = vpack.c.bf16 %v7530, %v7529
    %v7558 = vpack.c.bf16 %v7532, %v7531
    %v7559 = vpack.c.bf16 %v7534, %v7533
    %v7560 = vpack.c.bf16 %v7536, %v7535
    %v7561 = vpack.c.bf16 %v7538, %v7537
    %v7562 = vpack.c.bf16 %v7540, %v7539
    %v7563 = vpack.c.bf16 %v7542, %v7541
    %v7564 = vpack.c.bf16 %v7544, %v7543
    %v7565 = vpack.c.bf16 %v7546, %v7545
    %v7566 = vpack.c.bf16 %v7548, %v7547
    %v7567 = vpack.c.bf16 %v7550, %v7549
    %v7568 = vpack.c.bf16 %v7552, %v7551
    %v7570 = vshrl.u32 %v7553, 16
    %v7572 = vrot.slane %v7570, 7
    %v7573 = vshll.u32 %v7553, 16
    %v7575 = vor.u32 %v7572, %v7573
    %v7577 = vshrl.u32 %v7554, 16
    %v7579 = vrot.slane %v7577, 7
    %v7580 = vshll.u32 %v7554, 16
    %v7582 = vor.u32 %v7579, %v7580
    %v7584 = vshrl.u32 %v7555, 16
    %v7586 = vrot.slane %v7584, 7
    %v7587 = vshll.u32 %v7555, 16
    %v7589 = vor.u32 %v7586, %v7587
    %v7591 = vshrl.u32 %v7556, 16
    %v7593 = vrot.slane %v7591, 7
    %v7594 = vshll.u32 %v7556, 16
    %v7596 = vor.u32 %v7593, %v7594
    %v7598 = vshrl.u32 %v7557, 16
    %v7600 = vrot.slane %v7598, 7
    %v7601 = vshll.u32 %v7557, 16
    %v7603 = vor.u32 %v7600, %v7601
    %v7605 = vshrl.u32 %v7558, 16
    %v7607 = vrot.slane %v7605, 7
    %v7608 = vshll.u32 %v7558, 16
    %v7610 = vor.u32 %v7607, %v7608
    %v7612 = vshrl.u32 %v7559, 16
    %v7614 = vrot.slane %v7612, 7
    %v7615 = vshll.u32 %v7559, 16
    %v7617 = vor.u32 %v7614, %v7615
    %v7619 = vshrl.u32 %v7560, 16
    %v7621 = vrot.slane %v7619, 7
    %v7622 = vshll.u32 %v7560, 16
    %v7624 = vor.u32 %v7621, %v7622
    %v7626 = vshrl.u32 %v7561, 16
    %v7628 = vrot.slane %v7626, 7
    %v7629 = vshll.u32 %v7561, 16
    %v7631 = vor.u32 %v7628, %v7629
    %v7633 = vshrl.u32 %v7562, 16
    %v7635 = vrot.slane %v7633, 7
    %v7636 = vshll.u32 %v7562, 16
    %v7638 = vor.u32 %v7635, %v7636
    %v7640 = vshrl.u32 %v7563, 16
    %v7642 = vrot.slane %v7640, 7
    %v7643 = vshll.u32 %v7563, 16
    %v7645 = vor.u32 %v7642, %v7643
    %v7647 = vshrl.u32 %v7564, 16
    %v7649 = vrot.slane %v7647, 7
    %v7650 = vshll.u32 %v7564, 16
    %v7652 = vor.u32 %v7649, %v7650
    %v7654 = vshrl.u32 %v7565, 16
    %v7656 = vrot.slane %v7654, 7
    %v7657 = vshll.u32 %v7565, 16
    %v7659 = vor.u32 %v7656, %v7657
    %v7661 = vshrl.u32 %v7566, 16
    %v7663 = vrot.slane %v7661, 7
    %v7664 = vshll.u32 %v7566, 16
    %v7666 = vor.u32 %v7663, %v7664
    %v7668 = vshrl.u32 %v7567, 16
    %v7670 = vrot.slane %v7668, 7
    %v7671 = vshll.u32 %v7567, 16
    %v7673 = vor.u32 %v7670, %v7671
    %v7675 = vshrl.u32 %v7568, 16
    %v7677 = vrot.slane %v7675, 7
    %v7678 = vshll.u32 %v7568, 16
    %v7680 = vor.u32 %v7677, %v7678
    %v7713 = vsel %vm590, 0, %v7575
    %v7714 = vsel %vm590, 0, %v7582
    %v7715 = vsel %vm590, 0, %v7589
    %v7716 = vsel %vm590, 0, %v7596
    %v7717 = vsel %vm590, 0, %v7603
    %v7718 = vsel %vm590, 0, %v7610
    %v7719 = vsel %vm590, 0, %v7617
    %v7720 = vsel %vm590, 0, %v7624
    %v7721 = vsel %vm590, 0, %v7631
    %v7722 = vsel %vm590, 0, %v7638
    %v7723 = vsel %vm590, 0, %v7645
    %v7724 = vsel %vm590, 0, %v7652
    %v7725 = vsel %vm590, 0, %v7659
    %v7726 = vsel %vm590, 0, %v7666
    %v7727 = vsel %vm590, 0, %v7673
    %v7728 = vsel %vm590, 0, %v7680
    %v7729 = vsel %vm590, %v7572, 0
    %v7730 = vsel %vm590, %v7579, 0
    %v7731 = vsel %vm590, %v7586, 0
    %v7732 = vsel %vm590, %v7593, 0
    %v7733 = vsel %vm590, %v7600, 0
    %v7734 = vsel %vm590, %v7607, 0
    %v7735 = vsel %vm590, %v7614, 0
    %v7736 = vsel %vm590, %v7621, 0
    %v7737 = vsel %vm590, %v7628, 0
    %v7738 = vsel %vm590, %v7635, 0
    %v7739 = vsel %vm590, %v7642, 0
    %v7740 = vsel %vm590, %v7649, 0
    %v7741 = vsel %vm590, %v7656, 0
    %v7742 = vsel %vm590, %v7663, 0
    %v7743 = vsel %vm590, %v7670, 0
    %v7744 = vsel %vm590, %v7677, 0
    %v7777 = vunpack.c.l.b16 %v7713
    %v7778 = vunpack.c.h.b16 %v7713
    %v7779 = vunpack.c.l.b16 %v7729
    %v7780 = vunpack.c.l.b16 %v7714
    %v7781 = vunpack.c.h.b16 %v7714
    %v7782 = vunpack.c.l.b16 %v7730
    %v7783 = vunpack.c.l.b16 %v7715
    %v7784 = vunpack.c.h.b16 %v7715
    %v7785 = vunpack.c.l.b16 %v7731
    %v7786 = vunpack.c.l.b16 %v7716
    %v7787 = vunpack.c.h.b16 %v7716
    %v7788 = vunpack.c.l.b16 %v7732
    %v7789 = vunpack.c.l.b16 %v7717
    %v7790 = vunpack.c.h.b16 %v7717
    %v7791 = vunpack.c.l.b16 %v7733
    %v7792 = vunpack.c.l.b16 %v7718
    %v7793 = vunpack.c.h.b16 %v7718
    %v7794 = vunpack.c.l.b16 %v7734
    %v7795 = vunpack.c.l.b16 %v7719
    %v7796 = vunpack.c.h.b16 %v7719
    %v7797 = vunpack.c.l.b16 %v7735
    %v7798 = vunpack.c.l.b16 %v7720
    %v7799 = vunpack.c.h.b16 %v7720
    %v7800 = vunpack.c.l.b16 %v7736
    %v7801 = vunpack.c.l.b16 %v7721
    %v7802 = vunpack.c.h.b16 %v7721
    %v7803 = vunpack.c.l.b16 %v7737
    %v7804 = vunpack.c.l.b16 %v7722
    %v7805 = vunpack.c.h.b16 %v7722
    %v7806 = vunpack.c.l.b16 %v7738
    %v7807 = vunpack.c.l.b16 %v7723
    %v7808 = vunpack.c.h.b16 %v7723
    %v7809 = vunpack.c.l.b16 %v7739
    %v7810 = vunpack.c.l.b16 %v7724
    %v7811 = vunpack.c.h.b16 %v7724
    %v7812 = vunpack.c.l.b16 %v7740
    %v7813 = vunpack.c.l.b16 %v7725
    %v7814 = vunpack.c.h.b16 %v7725
    %v7815 = vunpack.c.l.b16 %v7741
    %v7816 = vunpack.c.l.b16 %v7726
    %v7817 = vunpack.c.h.b16 %v7726
    %v7818 = vunpack.c.l.b16 %v7742
    %v7819 = vunpack.c.l.b16 %v7727
    %v7820 = vunpack.c.h.b16 %v7727
    %v7821 = vunpack.c.l.b16 %v7743
    %v7822 = vunpack.c.l.b16 %v7728
    %v7823 = vunpack.c.h.b16 %v7728
    %v7824 = vunpack.c.l.b16 %v7744
    %v7825 = vpack.c.b16 %v7777, %v7777
    %v7826 = vpack.c.b16 %v7778, %v7778
    %v7827 = vpack.c.b16 %v7779, %v7779
    %v7828 = vpack.c.b16 %v7780, %v7780
    %v7829 = vpack.c.b16 %v7781, %v7781
    %v7830 = vpack.c.b16 %v7782, %v7782
    %v7831 = vpack.c.b16 %v7783, %v7783
    %v7832 = vpack.c.b16 %v7784, %v7784
    %v7833 = vpack.c.b16 %v7785, %v7785
    %v7834 = vpack.c.b16 %v7786, %v7786
    %v7835 = vpack.c.b16 %v7787, %v7787
    %v7836 = vpack.c.b16 %v7788, %v7788
    %v7837 = vpack.c.b16 %v7789, %v7789
    %v7838 = vpack.c.b16 %v7790, %v7790
    %v7839 = vpack.c.b16 %v7791, %v7791
    %v7840 = vpack.c.b16 %v7792, %v7792
    %v7841 = vpack.c.b16 %v7793, %v7793
    %v7842 = vpack.c.b16 %v7794, %v7794
    %v7843 = vpack.c.b16 %v7795, %v7795
    %v7844 = vpack.c.b16 %v7796, %v7796
    %v7845 = vpack.c.b16 %v7797, %v7797
    %v7846 = vpack.c.b16 %v7798, %v7798
    %v7847 = vpack.c.b16 %v7799, %v7799
    %v7848 = vpack.c.b16 %v7800, %v7800
    %v7849 = vpack.c.b16 %v7801, %v7801
    %v7850 = vpack.c.b16 %v7802, %v7802
    %v7851 = vpack.c.b16 %v7803, %v7803
    %v7852 = vpack.c.b16 %v7804, %v7804
    %v7853 = vpack.c.b16 %v7805, %v7805
    %v7854 = vpack.c.b16 %v7806, %v7806
    %v7855 = vpack.c.b16 %v7807, %v7807
    %v7856 = vpack.c.b16 %v7808, %v7808
    %v7857 = vpack.c.b16 %v7809, %v7809
    %v7858 = vpack.c.b16 %v7810, %v7810
    %v7859 = vpack.c.b16 %v7811, %v7811
    %v7860 = vpack.c.b16 %v7812, %v7812
    %v7861 = vpack.c.b16 %v7813, %v7813
    %v7862 = vpack.c.b16 %v7814, %v7814
    %v7863 = vpack.c.b16 %v7815, %v7815
    %v7864 = vpack.c.b16 %v7816, %v7816
    %v7865 = vpack.c.b16 %v7817, %v7817
    %v7866 = vpack.c.b16 %v7818, %v7818
    %v7867 = vpack.c.b16 %v7819, %v7819
    %v7868 = vpack.c.b16 %v7820, %v7820
    %v7869 = vpack.c.b16 %v7821, %v7821
    %v7870 = vpack.c.b16 %v7822, %v7822
    %v7871 = vpack.c.b16 %v7823, %v7823
    %v7872 = vpack.c.b16 %v7824, %v7824
    %7921 = vst.msk [vmem:[%s799] sm:$0xf] %vm33, %v7825
    %7922 = vst.msk [vmem:[%s799 + $0x4] sm:$0xf] %vm33, %v7826
    %7923 = vst.msk [vmem:[%s799 + $0x8] sm:$0x1] %vm36, %v7827
    %7924 = vst.msk [vmem:[%s799 + $0xc] sm:$0xf] %vm33, %v7828
    %7925 = vst.msk [vmem:[%s799 + $0x10] sm:$0xf] %vm33, %v7829
    %7926 = vst.msk [vmem:[%s799 + $0x14] sm:$0x1] %vm36, %v7830
    %7927 = vst.msk [vmem:[%s799 + $0x18] sm:$0xf] %vm33, %v7831
    %7928 = vst.msk [vmem:[%s799 + $0x1c] sm:$0xf] %vm33, %v7832
    %7929 = vst.msk [vmem:[%s799 + $0x20] sm:$0x1] %vm36, %v7833
    %7930 = vst.msk [vmem:[%s799 + $0x24] sm:$0xf] %vm33, %v7834
    %7931 = vst.msk [vmem:[%s799 + $0x28] sm:$0xf] %vm33, %v7835
    %7932 = vst.msk [vmem:[%s799 + $0x2c] sm:$0x1] %vm36, %v7836
    %7933 = vst.msk [vmem:[%s799 + $0x30] sm:$0xf] %vm33, %v7837
    %7934 = vst.msk [vmem:[%s799 + $0x34] sm:$0xf] %vm33, %v7838
    %7935 = vst.msk [vmem:[%s799 + $0x38] sm:$0x1] %vm36, %v7839
    %7936 = vst.msk [vmem:[%s799 + $0x3c] sm:$0xf] %vm33, %v7840
    %7937 = vst.msk [vmem:[%s799 + $0x40] sm:$0xf] %vm33, %v7841
    %7938 = vst.msk [vmem:[%s799 + $0x44] sm:$0x1] %vm36, %v7842
    %7939 = vst.msk [vmem:[%s799 + $0x48] sm:$0xf] %vm33, %v7843
    %7940 = vst.msk [vmem:[%s799 + $0x4c] sm:$0xf] %vm33, %v7844
    %7941 = vst.msk [vmem:[%s799 + $0x50] sm:$0x1] %vm36, %v7845
    %7942 = vst.msk [vmem:[%s799 + $0x54] sm:$0xf] %vm33, %v7846
    %7943 = vst.msk [vmem:[%s799 + $0x58] sm:$0xf] %vm33, %v7847
    %7944 = vst.msk [vmem:[%s799 + $0x5c] sm:$0x1] %vm36, %v7848
    %7945 = vst.msk [vmem:[%s799 + $0x60] sm:$0xf] %vm33, %v7849
    %7946 = vst.msk [vmem:[%s799 + $0x64] sm:$0xf] %vm33, %v7850
    %7947 = vst.msk [vmem:[%s799 + $0x68] sm:$0x1] %vm36, %v7851
    %7948 = vst.msk [vmem:[%s799 + $0x6c] sm:$0xf] %vm33, %v7852
    %7949 = vst.msk [vmem:[%s799 + $0x70] sm:$0xf] %vm33, %v7853
    %7950 = vst.msk [vmem:[%s799 + $0x74] sm:$0x1] %vm36, %v7854
    %7951 = vst.msk [vmem:[%s799 + $0x78] sm:$0xf] %vm33, %v7855
    %7952 = vst.msk [vmem:[%s799 + $0x7c] sm:$0xf] %vm33, %v7856
    %7953 = vst.msk [vmem:[%s799 + $0x80] sm:$0x1] %vm36, %v7857
    %7954 = vst.msk [vmem:[%s799 + $0x84] sm:$0xf] %vm33, %v7858
    %7955 = vst.msk [vmem:[%s799 + $0x88] sm:$0xf] %vm33, %v7859
    %7956 = vst.msk [vmem:[%s799 + $0x8c] sm:$0x1] %vm36, %v7860
    %7957 = vst.msk [vmem:[%s799 + $0x90] sm:$0xf] %vm33, %v7861
    %7958 = vst.msk [vmem:[%s799 + $0x94] sm:$0xf] %vm33, %v7862
    %7959 = vst.msk [vmem:[%s799 + $0x98] sm:$0x1] %vm36, %v7863
    %7960 = vst.msk [vmem:[%s799 + $0x9c] sm:$0xf] %vm33, %v7864
    %7961 = vst.msk [vmem:[%s799 + $0xa0] sm:$0xf] %vm33, %v7865
    %7962 = vst.msk [vmem:[%s799 + $0xa4] sm:$0x1] %vm36, %v7866
    %7963 = vst.msk [vmem:[%s799 + $0xa8] sm:$0xf] %vm33, %v7867
    %7964 = vst.msk [vmem:[%s799 + $0xac] sm:$0xf] %vm33, %v7868
    %7965 = vst.msk [vmem:[%s799 + $0xb0] sm:$0x1] %vm36, %v7869
    %7966 = vst.msk [vmem:[%s799 + $0xb4] sm:$0xf] %vm33, %v7870
    %7967 = vst.msk [vmem:[%s799 + $0xb8] sm:$0xf] %vm33, %v7871
    %7968 = vst.msk [vmem:[%s799 + $0xbc] sm:$0x1] %vm36, %v7872
    %v7969 = vld [vmem:[#allocation2] sm:$0xf]
    %v7970 = vld [vmem:[#allocation2 + $0x4] sm:$0xf]
    %v7971 = vld [vmem:[#allocation2 + $0xc] sm:$0xf]
    %v7972 = vld [vmem:[#allocation2 + $0x10] sm:$0xf]
    %v7973 = vld [vmem:[#allocation2 + $0x18] sm:$0xf]
    %v7974 = vld [vmem:[#allocation2 + $0x1c] sm:$0xf]
    %v7975 = vld [vmem:[#allocation2 + $0x24] sm:$0xf]
    %v7976 = vld [vmem:[#allocation2 + $0x28] sm:$0xf]
    %v7977 = vld [vmem:[#allocation2 + $0x30] sm:$0xf]
    %v7978 = vld [vmem:[#allocation2 + $0x34] sm:$0xf]
    %v7979 = vld [vmem:[#allocation2 + $0x3c] sm:$0xf]
    %v7980 = vld [vmem:[#allocation2 + $0x40] sm:$0xf]
    %v7981 = vld [vmem:[#allocation2 + $0x48] sm:$0xf]
    %v7982 = vld [vmem:[#allocation2 + $0x4c] sm:$0xf]
    %v7983 = vld [vmem:[#allocation2 + $0x54] sm:$0xf]
    %v7984 = vld [vmem:[#allocation2 + $0x58] sm:$0xf]
    %v7985 = vld [vmem:[#allocation2 + $0x60] sm:$0xf]
    %v7986 = vld [vmem:[#allocation2 + $0x64] sm:$0xf]
    %v7987 = vld [vmem:[#allocation2 + $0x6c] sm:$0xf]
    %v7988 = vld [vmem:[#allocation2 + $0x70] sm:$0xf]
    %v7989 = vld [vmem:[#allocation2 + $0x78] sm:$0xf]
    %v7990 = vld [vmem:[#allocation2 + $0x7c] sm:$0xf]
    %v7991 = vld [vmem:[#allocation2 + $0x84] sm:$0xf]
    %v7992 = vld [vmem:[#allocation2 + $0x88] sm:$0xf]
    %v7993 = vld [vmem:[#allocation2 + $0x90] sm:$0xf]
    %v7994 = vld [vmem:[#allocation2 + $0x94] sm:$0xf]
    %v7995 = vld [vmem:[#allocation2 + $0x9c] sm:$0xf]
    %v7996 = vld [vmem:[#allocation2 + $0xa0] sm:$0xf]
    %v7997 = vld [vmem:[#allocation2 + $0xa8] sm:$0xf]
    %v7998 = vld [vmem:[#allocation2 + $0xac] sm:$0xf]
    %v7999 = vld [vmem:[#allocation2 + $0xb4] sm:$0xf]
    %v8000 = vld [vmem:[#allocation2 + $0xb8] sm:$0xf]
    %v8001 = vld [vmem:[#allocation2 + $0x8] sm:$0x1]
    %v8002 = vld [vmem:[#allocation2 + $0x14] sm:$0x1]
    %v8003 = vld [vmem:[#allocation2 + $0x20] sm:$0x1]
    %v8004 = vld [vmem:[#allocation2 + $0x2c] sm:$0x1]
    %v8005 = vld [vmem:[#allocation2 + $0x38] sm:$0x1]
    %v8006 = vld [vmem:[#allocation2 + $0x44] sm:$0x1]
    %v8007 = vld [vmem:[#allocation2 + $0x50] sm:$0x1]
    %v8008 = vld [vmem:[#allocation2 + $0x5c] sm:$0x1]
    %v8009 = vld [vmem:[#allocation2 + $0x68] sm:$0x1]
    %v8010 = vld [vmem:[#allocation2 + $0x74] sm:$0x1]
    %v8011 = vld [vmem:[#allocation2 + $0x80] sm:$0x1]
    %v8012 = vld [vmem:[#allocation2 + $0x8c] sm:$0x1]
    %v8013 = vld [vmem:[#allocation2 + $0x98] sm:$0x1]
    %v8014 = vld [vmem:[#allocation2 + $0xa4] sm:$0x1]
    %v8015 = vld [vmem:[#allocation2 + $0xb0] sm:$0x1]
    %v8016 = vld [vmem:[#allocation2 + $0xbc] sm:$0x1]
    %v8017 = vld [vmem:[#allocation2] sm:$0xe]
    %v8018 = vld [vmem:[#allocation2 + $0xc] sm:$0xe]
    %v8019 = vld [vmem:[#allocation2 + $0x18] sm:$0xe]
    %v8020 = vld [vmem:[#allocation2 + $0x24] sm:$0xe]
    %v8021 = vld [vmem:[#allocation2 + $0x30] sm:$0xe]
    %v8022 = vld [vmem:[#allocation2 + $0x3c] sm:$0xe]
    %v8023 = vld [vmem:[#allocation2 + $0x48] sm:$0xe]
    %v8024 = vld [vmem:[#allocation2 + $0x54] sm:$0xe]
    %v8025 = vld [vmem:[#allocation2 + $0x60] sm:$0xe]
    %v8026 = vld [vmem:[#allocation2 + $0x6c] sm:$0xe]
    %v8027 = vld [vmem:[#allocation2 + $0x78] sm:$0xe]
    %v8028 = vld [vmem:[#allocation2 + $0x84] sm:$0xe]
    %v8029 = vld [vmem:[#allocation2 + $0x90] sm:$0xe]
    %v8030 = vld [vmem:[#allocation2 + $0x9c] sm:$0xe]
    %v8031 = vld [vmem:[#allocation2 + $0xa8] sm:$0xe]
    %v8032 = vld [vmem:[#allocation2 + $0xb4] sm:$0xe]
    %v8033 = vld [vmem:[%s799] sm:$0xf]
    %v8034 = vld [vmem:[%s799 + $0x4] sm:$0xf]
    %v8035 = vld [vmem:[%s799 + $0xc] sm:$0xf]
    %v8036 = vld [vmem:[%s799 + $0x10] sm:$0xf]
    %v8037 = vld [vmem:[%s799 + $0x18] sm:$0xf]
    %v8038 = vld [vmem:[%s799 + $0x1c] sm:$0xf]
    %v8039 = vld [vmem:[%s799 + $0x24] sm:$0xf]
    %v8040 = vld [vmem:[%s799 + $0x28] sm:$0xf]
    %v8041 = vld [vmem:[%s799 + $0x30] sm:$0xf]
    %v8042 = vld [vmem:[%s799 + $0x34] sm:$0xf]
    %v8043 = vld [vmem:[%s799 + $0x3c] sm:$0xf]
    %v8044 = vld [vmem:[%s799 + $0x40] sm:$0xf]
    %v8045 = vld [vmem:[%s799 + $0x48] sm:$0xf]
    %v8046 = vld [vmem:[%s799 + $0x4c] sm:$0xf]
    %v8047 = vld [vmem:[%s799 + $0x54] sm:$0xf]
    %v8048 = vld [vmem:[%s799 + $0x58] sm:$0xf]
    %v8049 = vld [vmem:[%s799 + $0x60] sm:$0xf]
    %v8050 = vld [vmem:[%s799 + $0x64] sm:$0xf]
    %v8051 = vld [vmem:[%s799 + $0x6c] sm:$0xf]
    %v8052 = vld [vmem:[%s799 + $0x70] sm:$0xf]
    %v8053 = vld [vmem:[%s799 + $0x78] sm:$0xf]
    %v8054 = vld [vmem:[%s799 + $0x7c] sm:$0xf]
    %v8055 = vld [vmem:[%s799 + $0x84] sm:$0xf]
    %v8056 = vld [vmem:[%s799 + $0x88] sm:$0xf]
    %v8057 = vld [vmem:[%s799 + $0x90] sm:$0xf]
    %v8058 = vld [vmem:[%s799 + $0x94] sm:$0xf]
    %v8059 = vld [vmem:[%s799 + $0x9c] sm:$0xf]
    %v8060 = vld [vmem:[%s799 + $0xa0] sm:$0xf]
    %v8061 = vld [vmem:[%s799 + $0xa8] sm:$0xf]
    %v8062 = vld [vmem:[%s799 + $0xac] sm:$0xf]
    %v8063 = vld [vmem:[%s799 + $0xb4] sm:$0xf]
    %v8064 = vld [vmem:[%s799 + $0xb8] sm:$0xf]
    %v8065 = vld [vmem:[%s799 + $0x8] sm:$0x1]
    %v8066 = vld [vmem:[%s799 + $0x14] sm:$0x1]
    %v8067 = vld [vmem:[%s799 + $0x20] sm:$0x1]
    %v8068 = vld [vmem:[%s799 + $0x2c] sm:$0x1]
    %v8069 = vld [vmem:[%s799 + $0x38] sm:$0x1]
    %v8070 = vld [vmem:[%s799 + $0x44] sm:$0x1]
    %v8071 = vld [vmem:[%s799 + $0x50] sm:$0x1]
    %v8072 = vld [vmem:[%s799 + $0x5c] sm:$0x1]
    %v8073 = vld [vmem:[%s799 + $0x68] sm:$0x1]
    %v8074 = vld [vmem:[%s799 + $0x74] sm:$0x1]
    %v8075 = vld [vmem:[%s799 + $0x80] sm:$0x1]
    %v8076 = vld [vmem:[%s799 + $0x8c] sm:$0x1]
    %v8077 = vld [vmem:[%s799 + $0x98] sm:$0x1]
    %v8078 = vld [vmem:[%s799 + $0xa4] sm:$0x1]
    %v8079 = vld [vmem:[%s799 + $0xb0] sm:$0x1]
    %v8080 = vld [vmem:[%s799 + $0xbc] sm:$0x1]
    %v8081 = vld [vmem:[%s799] sm:$0xe]
    %v8082 = vld [vmem:[%s799 + $0xc] sm:$0xe]
    %v8083 = vld [vmem:[%s799 + $0x18] sm:$0xe]
    %v8084 = vld [vmem:[%s799 + $0x24] sm:$0xe]
    %v8085 = vld [vmem:[%s799 + $0x30] sm:$0xe]
    %v8086 = vld [vmem:[%s799 + $0x3c] sm:$0xe]
    %v8087 = vld [vmem:[%s799 + $0x48] sm:$0xe]
    %v8088 = vld [vmem:[%s799 + $0x54] sm:$0xe]
    %v8089 = vld [vmem:[%s799 + $0x60] sm:$0xe]
    %v8090 = vld [vmem:[%s799 + $0x6c] sm:$0xe]
    %v8091 = vld [vmem:[%s799 + $0x78] sm:$0xe]
    %v8092 = vld [vmem:[%s799 + $0x84] sm:$0xe]
    %v8093 = vld [vmem:[%s799 + $0x90] sm:$0xe]
    %v8094 = vld [vmem:[%s799 + $0x9c] sm:$0xe]
    %v8095 = vld [vmem:[%s799 + $0xa8] sm:$0xe]
    %v8096 = vld [vmem:[%s799 + $0xb4] sm:$0xe]
    %v8097 = vld [vmem:[%s976] sm:$0xf]
    %v8098 = vld [vmem:[%s976 + $0x4] sm:$0xf]
    %v8099 = vld [vmem:[%s976 + $0xc] sm:$0xf]
    %v8100 = vld [vmem:[%s976 + $0x10] sm:$0xf]
    %v8101 = vld [vmem:[%s976 + $0x18] sm:$0xf]
    %v8102 = vld [vmem:[%s976 + $0x1c] sm:$0xf]
    %v8103 = vld [vmem:[%s976 + $0x24] sm:$0xf]
    %v8104 = vld [vmem:[%s976 + $0x28] sm:$0xf]
    %v8105 = vld [vmem:[%s976 + $0x30] sm:$0xf]
    %v8106 = vld [vmem:[%s976 + $0x34] sm:$0xf]
    %v8107 = vld [vmem:[%s976 + $0x3c] sm:$0xf]
    %v8108 = vld [vmem:[%s976 + $0x40] sm:$0xf]
    %v8109 = vld [vmem:[%s976 + $0x48] sm:$0xf]
    %v8110 = vld [vmem:[%s976 + $0x4c] sm:$0xf]
    %v8111 = vld [vmem:[%s976 + $0x54] sm:$0xf]
    %v8112 = vld [vmem:[%s976 + $0x58] sm:$0xf]
    %v8113 = vld [vmem:[%s976 + $0x60] sm:$0xf]
    %v8114 = vld [vmem:[%s976 + $0x64] sm:$0xf]
    %v8115 = vld [vmem:[%s976 + $0x6c] sm:$0xf]
    %v8116 = vld [vmem:[%s976 + $0x70] sm:$0xf]
    %v8117 = vld [vmem:[%s976 + $0x78] sm:$0xf]
    %v8118 = vld [vmem:[%s976 + $0x7c] sm:$0xf]
    %v8119 = vld [vmem:[%s976 + $0x84] sm:$0xf]
    %v8120 = vld [vmem:[%s976 + $0x88] sm:$0xf]
    %v8121 = vld [vmem:[%s976 + $0x90] sm:$0xf]
    %v8122 = vld [vmem:[%s976 + $0x94] sm:$0xf]
    %v8123 = vld [vmem:[%s976 + $0x9c] sm:$0xf]
    %v8124 = vld [vmem:[%s976 + $0xa0] sm:$0xf]
    %v8125 = vld [vmem:[%s976 + $0xa8] sm:$0xf]
    %v8126 = vld [vmem:[%s976 + $0xac] sm:$0xf]
    %v8127 = vld [vmem:[%s976 + $0xb4] sm:$0xf]
    %v8128 = vld [vmem:[%s976 + $0xb8] sm:$0xf]
    %v8129 = vld [vmem:[%s976 + $0x8] sm:$0x1]
    %v8130 = vld [vmem:[%s976 + $0x14] sm:$0x1]
    %v8131 = vld [vmem:[%s976 + $0x20] sm:$0x1]
    %v8132 = vld [vmem:[%s976 + $0x2c] sm:$0x1]
    %v8133 = vld [vmem:[%s976 + $0x38] sm:$0x1]
    %v8134 = vld [vmem:[%s976 + $0x44] sm:$0x1]
    %v8135 = vld [vmem:[%s976 + $0x50] sm:$0x1]
    %v8136 = vld [vmem:[%s976 + $0x5c] sm:$0x1]
    %v8137 = vld [vmem:[%s976 + $0x68] sm:$0x1]
    %v8138 = vld [vmem:[%s976 + $0x74] sm:$0x1]
    %v8139 = vld [vmem:[%s976 + $0x80] sm:$0x1]
    %v8140 = vld [vmem:[%s976 + $0x8c] sm:$0x1]
    %v8141 = vld [vmem:[%s976 + $0x98] sm:$0x1]
    %v8142 = vld [vmem:[%s976 + $0xa4] sm:$0x1]
    %v8143 = vld [vmem:[%s976 + $0xb0] sm:$0x1]
    %v8144 = vld [vmem:[%s976 + $0xbc] sm:$0x1]
    %v8145 = vld [vmem:[%s976] sm:$0xe]
    %v8146 = vld [vmem:[%s976 + $0xc] sm:$0xe]
    %v8147 = vld [vmem:[%s976 + $0x18] sm:$0xe]
    %v8148 = vld [vmem:[%s976 + $0x24] sm:$0xe]
    %v8149 = vld [vmem:[%s976 + $0x30] sm:$0xe]
    %v8150 = vld [vmem:[%s976 + $0x3c] sm:$0xe]
    %v8151 = vld [vmem:[%s976 + $0x48] sm:$0xe]
    %v8152 = vld [vmem:[%s976 + $0x54] sm:$0xe]
    %v8153 = vld [vmem:[%s976 + $0x60] sm:$0xe]
    %v8154 = vld [vmem:[%s976 + $0x6c] sm:$0xe]
    %v8155 = vld [vmem:[%s976 + $0x78] sm:$0xe]
    %v8156 = vld [vmem:[%s976 + $0x84] sm:$0xe]
    %v8157 = vld [vmem:[%s976 + $0x90] sm:$0xe]
    %v8158 = vld [vmem:[%s976 + $0x9c] sm:$0xe]
    %v8159 = vld [vmem:[%s976 + $0xa8] sm:$0xe]
    %v8160 = vld [vmem:[%s976 + $0xb4] sm:$0xe]
    %v8193 = vunpack.c.l.b16 %v7969
    %v8194 = vunpack.c.l.b16 %v7970
    %v8195 = vunpack.c.l.b16 %v7971
    %v8196 = vunpack.c.l.b16 %v7972
    %v8197 = vunpack.c.l.b16 %v7973
    %v8198 = vunpack.c.l.b16 %v7974
    %v8199 = vunpack.c.l.b16 %v7975
    %v8200 = vunpack.c.l.b16 %v7976
    %v8201 = vunpack.c.l.b16 %v7977
    %v8202 = vunpack.c.l.b16 %v7978
    %v8203 = vunpack.c.l.b16 %v7979
    %v8204 = vunpack.c.l.b16 %v7980
    %v8205 = vunpack.c.l.b16 %v7981
    %v8206 = vunpack.c.l.b16 %v7982
    %v8207 = vunpack.c.l.b16 %v7983
    %v8208 = vunpack.c.l.b16 %v7984
    %v8209 = vunpack.c.l.b16 %v7985
    %v8210 = vunpack.c.l.b16 %v7986
    %v8211 = vunpack.c.l.b16 %v7987
    %v8212 = vunpack.c.l.b16 %v7988
    %v8213 = vunpack.c.l.b16 %v7989
    %v8214 = vunpack.c.l.b16 %v7990
    %v8215 = vunpack.c.l.b16 %v7991
    %v8216 = vunpack.c.l.b16 %v7992
    %v8217 = vunpack.c.l.b16 %v7993
    %v8218 = vunpack.c.l.b16 %v7994
    %v8219 = vunpack.c.l.b16 %v7995
    %v8220 = vunpack.c.l.b16 %v7996
    %v8221 = vunpack.c.l.b16 %v7997
    %v8222 = vunpack.c.l.b16 %v7998
    %v8223 = vunpack.c.l.b16 %v7999
    %v8224 = vunpack.c.l.b16 %v8000
    %v8225 = vpack.c.b16 %v8194, %v8193
    %v8226 = vpack.c.b16 %v8196, %v8195
    %v8227 = vpack.c.b16 %v8198, %v8197
    %v8228 = vpack.c.b16 %v8200, %v8199
    %v8229 = vpack.c.b16 %v8202, %v8201
    %v8230 = vpack.c.b16 %v8204, %v8203
    %v8231 = vpack.c.b16 %v8206, %v8205
    %v8232 = vpack.c.b16 %v8208, %v8207
    %v8233 = vpack.c.b16 %v8210, %v8209
    %v8234 = vpack.c.b16 %v8212, %v8211
    %v8235 = vpack.c.b16 %v8214, %v8213
    %v8236 = vpack.c.b16 %v8216, %v8215
    %v8237 = vpack.c.b16 %v8218, %v8217
    %v8238 = vpack.c.b16 %v8220, %v8219
    %v8239 = vpack.c.b16 %v8222, %v8221
    %v8240 = vpack.c.b16 %v8224, %v8223
    %v8257 = vunpack.c.l.b16 %v8001
    %v8258 = vunpack.c.l.b16 %v8002
    %v8259 = vunpack.c.l.b16 %v8003
    %v8260 = vunpack.c.l.b16 %v8004
    %v8261 = vunpack.c.l.b16 %v8005
    %v8262 = vunpack.c.l.b16 %v8006
    %v8263 = vunpack.c.l.b16 %v8007
    %v8264 = vunpack.c.l.b16 %v8008
    %v8265 = vunpack.c.l.b16 %v8009
    %v8266 = vunpack.c.l.b16 %v8010
    %v8267 = vunpack.c.l.b16 %v8011
    %v8268 = vunpack.c.l.b16 %v8012
    %v8269 = vunpack.c.l.b16 %v8013
    %v8270 = vunpack.c.l.b16 %v8014
    %v8271 = vunpack.c.l.b16 %v8015
    %v8272 = vunpack.c.l.b16 %v8016
    %v8273 = vpack.c.b16 %v8257, %v8257
    %v8274 = vpack.c.b16 %v8258, %v8258
    %v8275 = vpack.c.b16 %v8259, %v8259
    %v8276 = vpack.c.b16 %v8260, %v8260
    %v8277 = vpack.c.b16 %v8261, %v8261
    %v8278 = vpack.c.b16 %v8262, %v8262
    %v8279 = vpack.c.b16 %v8263, %v8263
    %v8280 = vpack.c.b16 %v8264, %v8264
    %v8281 = vpack.c.b16 %v8265, %v8265
    %v8282 = vpack.c.b16 %v8266, %v8266
    %v8283 = vpack.c.b16 %v8267, %v8267
    %v8284 = vpack.c.b16 %v8268, %v8268
    %v8285 = vpack.c.b16 %v8269, %v8269
    %v8286 = vpack.c.b16 %v8270, %v8270
    %v8287 = vpack.c.b16 %v8271, %v8271
    %v8288 = vpack.c.b16 %v8272, %v8272
    %v8290 = vshrl.u32 %v8225, 16
    %v8292 = vshll.u32 %v8225, 16
    %v8294 = vrot.slane %v8292, 1
    %v8295 = vor.u32 %v8290, %v8294
    %v8297 = vshll.u32 %v8273, 16
    %v8299 = vrot.slane %v8297, 1
    %v8300 = vsel %vm1169, %v8295, %v8299
    %v8302 = vshrl.u32 %v8226, 16
    %v8304 = vshll.u32 %v8226, 16
    %v8306 = vrot.slane %v8304, 1
    %v8307 = vor.u32 %v8302, %v8306
    %v8309 = vshll.u32 %v8274, 16
    %v8311 = vrot.slane %v8309, 1
    %v8312 = vsel %vm1169, %v8307, %v8311
    %v8314 = vshrl.u32 %v8227, 16
    %v8316 = vshll.u32 %v8227, 16
    %v8318 = vrot.slane %v8316, 1
    %v8319 = vor.u32 %v8314, %v8318
    %v8321 = vshll.u32 %v8275, 16
    %v8323 = vrot.slane %v8321, 1
    %v8324 = vsel %vm1169, %v8319, %v8323
    %v8326 = vshrl.u32 %v8228, 16
    %v8328 = vshll.u32 %v8228, 16
    %v8330 = vrot.slane %v8328, 1
    %v8331 = vor.u32 %v8326, %v8330
    %v8333 = vshll.u32 %v8276, 16
    %v8335 = vrot.slane %v8333, 1
    %v8336 = vsel %vm1169, %v8331, %v8335
    %v8338 = vshrl.u32 %v8229, 16
    %v8340 = vshll.u32 %v8229, 16
    %v8342 = vrot.slane %v8340, 1
    %v8343 = vor.u32 %v8338, %v8342
    %v8345 = vshll.u32 %v8277, 16
    %v8347 = vrot.slane %v8345, 1
    %v8348 = vsel %vm1169, %v8343, %v8347
    %v8350 = vshrl.u32 %v8230, 16
    %v8352 = vshll.u32 %v8230, 16
    %v8354 = vrot.slane %v8352, 1
    %v8355 = vor.u32 %v8350, %v8354
    %v8357 = vshll.u32 %v8278, 16
    %v8359 = vrot.slane %v8357, 1
    %v8360 = vsel %vm1169, %v8355, %v8359
    %v8362 = vshrl.u32 %v8231, 16
    %v8364 = vshll.u32 %v8231, 16
    %v8366 = vrot.slane %v8364, 1
    %v8367 = vor.u32 %v8362, %v8366
    %v8369 = vshll.u32 %v8279, 16
    %v8371 = vrot.slane %v8369, 1
    %v8372 = vsel %vm1169, %v8367, %v8371
    %v8374 = vshrl.u32 %v8232, 16
    %v8376 = vshll.u32 %v8232, 16
    %v8378 = vrot.slane %v8376, 1
    %v8379 = vor.u32 %v8374, %v8378
    %v8381 = vshll.u32 %v8280, 16
    %v8383 = vrot.slane %v8381, 1
    %v8384 = vsel %vm1169, %v8379, %v8383
    %v8386 = vshrl.u32 %v8233, 16
    %v8388 = vshll.u32 %v8233, 16
    %v8390 = vrot.slane %v8388, 1
    %v8391 = vor.u32 %v8386, %v8390
    %v8393 = vshll.u32 %v8281, 16
    %v8395 = vrot.slane %v8393, 1
    %v8396 = vsel %vm1169, %v8391, %v8395
    %v8398 = vshrl.u32 %v8234, 16
    %v8400 = vshll.u32 %v8234, 16
    %v8402 = vrot.slane %v8400, 1
    %v8403 = vor.u32 %v8398, %v8402
    %v8405 = vshll.u32 %v8282, 16
    %v8407 = vrot.slane %v8405, 1
    %v8408 = vsel %vm1169, %v8403, %v8407
    %v8410 = vshrl.u32 %v8235, 16
    %v8412 = vshll.u32 %v8235, 16
    %v8414 = vrot.slane %v8412, 1
    %v8415 = vor.u32 %v8410, %v8414
    %v8417 = vshll.u32 %v8283, 16
    %v8419 = vrot.slane %v8417, 1
    %v8420 = vsel %vm1169, %v8415, %v8419
    %v8422 = vshrl.u32 %v8236, 16
    %v8424 = vshll.u32 %v8236, 16
    %v8426 = vrot.slane %v8424, 1
    %v8427 = vor.u32 %v8422, %v8426
    %v8429 = vshll.u32 %v8284, 16
    %v8431 = vrot.slane %v8429, 1
    %v8432 = vsel %vm1169, %v8427, %v8431
    %v8434 = vshrl.u32 %v8237, 16
    %v8436 = vshll.u32 %v8237, 16
    %v8438 = vrot.slane %v8436, 1
    %v8439 = vor.u32 %v8434, %v8438
    %v8441 = vshll.u32 %v8285, 16
    %v8443 = vrot.slane %v8441, 1
    %v8444 = vsel %vm1169, %v8439, %v8443
    %v8446 = vshrl.u32 %v8238, 16
    %v8448 = vshll.u32 %v8238, 16
    %v8450 = vrot.slane %v8448, 1
    %v8451 = vor.u32 %v8446, %v8450
    %v8453 = vshll.u32 %v8286, 16
    %v8455 = vrot.slane %v8453, 1
    %v8456 = vsel %vm1169, %v8451, %v8455
    %v8458 = vshrl.u32 %v8239, 16
    %v8460 = vshll.u32 %v8239, 16
    %v8462 = vrot.slane %v8460, 1
    %v8463 = vor.u32 %v8458, %v8462
    %v8465 = vshll.u32 %v8287, 16
    %v8467 = vrot.slane %v8465, 1
    %v8468 = vsel %vm1169, %v8463, %v8467
    %v8470 = vshrl.u32 %v8240, 16
    %v8472 = vshll.u32 %v8240, 16
    %v8474 = vrot.slane %v8472, 1
    %v8475 = vor.u32 %v8470, %v8474
    %v8477 = vshll.u32 %v8288, 16
    %v8479 = vrot.slane %v8477, 1
    %v8480 = vsel %vm1169, %v8475, %v8479
    %8481 = vrot.lane.b32.xlu0 %v8300, 32
    %v8482 = vpop.permute.xlu0 %8481
    %8483 = vrot.lane.b32.xlu0 %v8312, 32
    %v8484 = vpop.permute.xlu0 %8483
    %8485 = vrot.lane.b32.xlu0 %v8324, 32
    %v8486 = vpop.permute.xlu0 %8485
    %8487 = vrot.lane.b32.xlu0 %v8336, 32
    %v8488 = vpop.permute.xlu0 %8487
    %8489 = vrot.lane.b32.xlu0 %v8348, 32
    %v8490 = vpop.permute.xlu0 %8489
    %8491 = vrot.lane.b32.xlu0 %v8360, 32
    %v8492 = vpop.permute.xlu0 %8491
    %8493 = vrot.lane.b32.xlu0 %v8372, 32
    %v8494 = vpop.permute.xlu0 %8493
    %8495 = vrot.lane.b32.xlu0 %v8384, 32
    %v8496 = vpop.permute.xlu0 %8495
    %8497 = vrot.lane.b32.xlu0 %v8396, 32
    %v8498 = vpop.permute.xlu0 %8497
    %8499 = vrot.lane.b32.xlu0 %v8408, 32
    %v8500 = vpop.permute.xlu0 %8499
    %8501 = vrot.lane.b32.xlu0 %v8420, 32
    %v8502 = vpop.permute.xlu0 %8501
    %8503 = vrot.lane.b32.xlu0 %v8432, 32
    %v8504 = vpop.permute.xlu0 %8503
    %8505 = vrot.lane.b32.xlu0 %v8444, 32
    %v8506 = vpop.permute.xlu0 %8505
    %8507 = vrot.lane.b32.xlu0 %v8456, 32
    %v8508 = vpop.permute.xlu0 %8507
    %8509 = vrot.lane.b32.xlu0 %v8468, 32
    %v8510 = vpop.permute.xlu0 %8509
    %8511 = vrot.lane.b32.xlu0 %v8480, 32
    %v8512 = vpop.permute.xlu0 %8511
    %v8529 = vunpack.c.l.b16 %v8017
    %v8530 = vunpack.c.l.b16 %v8018
    %v8531 = vunpack.c.l.b16 %v8019
    %v8532 = vunpack.c.l.b16 %v8020
    %v8533 = vunpack.c.l.b16 %v8021
    %v8534 = vunpack.c.l.b16 %v8022
    %v8535 = vunpack.c.l.b16 %v8023
    %v8536 = vunpack.c.l.b16 %v8024
    %v8537 = vunpack.c.l.b16 %v8025
    %v8538 = vunpack.c.l.b16 %v8026
    %v8539 = vunpack.c.l.b16 %v8027
    %v8540 = vunpack.c.l.b16 %v8028
    %v8541 = vunpack.c.l.b16 %v8029
    %v8542 = vunpack.c.l.b16 %v8030
    %v8543 = vunpack.c.l.b16 %v8031
    %v8544 = vunpack.c.l.b16 %v8032
    %v8545 = vpack.c.b16 %v8194, %v8529
    %v8546 = vpack.c.b16 %v8196, %v8530
    %v8547 = vpack.c.b16 %v8198, %v8531
    %v8548 = vpack.c.b16 %v8200, %v8532
    %v8549 = vpack.c.b16 %v8202, %v8533
    %v8550 = vpack.c.b16 %v8204, %v8534
    %v8551 = vpack.c.b16 %v8206, %v8535
    %v8552 = vpack.c.b16 %v8208, %v8536
    %v8553 = vpack.c.b16 %v8210, %v8537
    %v8554 = vpack.c.b16 %v8212, %v8538
    %v8555 = vpack.c.b16 %v8214, %v8539
    %v8556 = vpack.c.b16 %v8216, %v8540
    %v8557 = vpack.c.b16 %v8218, %v8541
    %v8558 = vpack.c.b16 %v8220, %v8542
    %v8559 = vpack.c.b16 %v8222, %v8543
    %v8560 = vpack.c.b16 %v8224, %v8544
    %v8561 = vrot.slane %v8545, 1
    %v8562 = vrot.slane %v8273, 1
    %v8563 = vsel %vm1442, %v8561, %v8562
    %v8564 = vrot.slane %v8546, 1
    %v8565 = vrot.slane %v8274, 1
    %v8566 = vsel %vm1442, %v8564, %v8565
    %v8567 = vrot.slane %v8547, 1
    %v8568 = vrot.slane %v8275, 1
    %v8569 = vsel %vm1442, %v8567, %v8568
    %v8570 = vrot.slane %v8548, 1
    %v8571 = vrot.slane %v8276, 1
    %v8572 = vsel %vm1442, %v8570, %v8571
    %v8573 = vrot.slane %v8549, 1
    %v8574 = vrot.slane %v8277, 1
    %v8575 = vsel %vm1442, %v8573, %v8574
    %v8576 = vrot.slane %v8550, 1
    %v8577 = vrot.slane %v8278, 1
    %v8578 = vsel %vm1442, %v8576, %v8577
    %v8579 = vrot.slane %v8551, 1
    %v8580 = vrot.slane %v8279, 1
    %v8581 = vsel %vm1442, %v8579, %v8580
    %v8582 = vrot.slane %v8552, 1
    %v8583 = vrot.slane %v8280, 1
    %v8584 = vsel %vm1442, %v8582, %v8583
    %v8585 = vrot.slane %v8553, 1
    %v8586 = vrot.slane %v8281, 1
    %v8587 = vsel %vm1442, %v8585, %v8586
    %v8588 = vrot.slane %v8554, 1
    %v8589 = vrot.slane %v8282, 1
    %v8590 = vsel %vm1442, %v8588, %v8589
    %v8591 = vrot.slane %v8555, 1
    %v8592 = vrot.slane %v8283, 1
    %v8593 = vsel %vm1442, %v8591, %v8592
    %v8594 = vrot.slane %v8556, 1
    %v8595 = vrot.slane %v8284, 1
    %v8596 = vsel %vm1442, %v8594, %v8595
    %v8597 = vrot.slane %v8557, 1
    %v8598 = vrot.slane %v8285, 1
    %v8599 = vsel %vm1442, %v8597, %v8598
    %v8600 = vrot.slane %v8558, 1
    %v8601 = vrot.slane %v8286, 1
    %v8602 = vsel %vm1442, %v8600, %v8601
    %v8603 = vrot.slane %v8559, 1
    %v8604 = vrot.slane %v8287, 1
    %v8605 = vsel %vm1442, %v8603, %v8604
    %v8606 = vrot.slane %v8560, 1
    %v8607 = vrot.slane %v8288, 1
    %v8608 = vsel %vm1442, %v8606, %v8607
    %8609 = vrot.lane.b32.xlu0 %v8563, 64
    %v8610 = vpop.permute.xlu0 %8609
    %8611 = vrot.lane.b32.xlu0 %v8566, 64
    %v8612 = vpop.permute.xlu0 %8611
    %8613 = vrot.lane.b32.xlu0 %v8569, 64
    %v8614 = vpop.permute.xlu0 %8613
    %8615 = vrot.lane.b32.xlu0 %v8572, 64
    %v8616 = vpop.permute.xlu0 %8615
    %8617 = vrot.lane.b32.xlu0 %v8575, 64
    %v8618 = vpop.permute.xlu0 %8617
    %8619 = vrot.lane.b32.xlu0 %v8578, 64
    %v8620 = vpop.permute.xlu0 %8619
    %8621 = vrot.lane.b32.xlu0 %v8581, 64
    %v8622 = vpop.permute.xlu0 %8621
    %8623 = vrot.lane.b32.xlu0 %v8584, 64
    %v8624 = vpop.permute.xlu0 %8623
    %8625 = vrot.lane.b32.xlu0 %v8587, 64
    %v8626 = vpop.permute.xlu0 %8625
    %8627 = vrot.lane.b32.xlu0 %v8590, 64
    %v8628 = vpop.permute.xlu0 %8627
    %8629 = vrot.lane.b32.xlu0 %v8593, 64
    %v8630 = vpop.permute.xlu0 %8629
    %8631 = vrot.lane.b32.xlu0 %v8596, 64
    %v8632 = vpop.permute.xlu0 %8631
    %8633 = vrot.lane.b32.xlu0 %v8599, 64
    %v8634 = vpop.permute.xlu0 %8633
    %8635 = vrot.lane.b32.xlu0 %v8602, 64
    %v8636 = vpop.permute.xlu0 %8635
    %8637 = vrot.lane.b32.xlu0 %v8605, 64
    %v8638 = vpop.permute.xlu0 %8637
    %8639 = vrot.lane.b32.xlu0 %v8608, 64
    %v8640 = vpop.permute.xlu0 %8639
    %v8673 = vunpack.c.l.b16 %v8033
    %v8674 = vunpack.c.l.b16 %v8034
    %v8675 = vunpack.c.l.b16 %v8035
    %v8676 = vunpack.c.l.b16 %v8036
    %v8677 = vunpack.c.l.b16 %v8037
    %v8678 = vunpack.c.l.b16 %v8038
    %v8679 = vunpack.c.l.b16 %v8039
    %v8680 = vunpack.c.l.b16 %v8040
    %v8681 = vunpack.c.l.b16 %v8041
    %v8682 = vunpack.c.l.b16 %v8042
    %v8683 = vunpack.c.l.b16 %v8043
    %v8684 = vunpack.c.l.b16 %v8044
    %v8685 = vunpack.c.l.b16 %v8045
    %v8686 = vunpack.c.l.b16 %v8046
    %v8687 = vunpack.c.l.b16 %v8047
    %v8688 = vunpack.c.l.b16 %v8048
    %v8689 = vunpack.c.l.b16 %v8049
    %v8690 = vunpack.c.l.b16 %v8050
    %v8691 = vunpack.c.l.b16 %v8051
    %v8692 = vunpack.c.l.b16 %v8052
    %v8693 = vunpack.c.l.b16 %v8053
    %v8694 = vunpack.c.l.b16 %v8054
    %v8695 = vunpack.c.l.b16 %v8055
    %v8696 = vunpack.c.l.b16 %v8056
    %v8697 = vunpack.c.l.b16 %v8057
    %v8698 = vunpack.c.l.b16 %v8058
    %v8699 = vunpack.c.l.b16 %v8059
    %v8700 = vunpack.c.l.b16 %v8060
    %v8701 = vunpack.c.l.b16 %v8061
    %v8702 = vunpack.c.l.b16 %v8062
    %v8703 = vunpack.c.l.b16 %v8063
    %v8704 = vunpack.c.l.b16 %v8064
    %v8705 = vpack.c.b16 %v8674, %v8673
    %v8706 = vpack.c.b16 %v8676, %v8675
    %v8707 = vpack.c.b16 %v8678, %v8677
    %v8708 = vpack.c.b16 %v8680, %v8679
    %v8709 = vpack.c.b16 %v8682, %v8681
    %v8710 = vpack.c.b16 %v8684, %v8683
    %v8711 = vpack.c.b16 %v8686, %v8685
    %v8712 = vpack.c.b16 %v8688, %v8687
    %v8713 = vpack.c.b16 %v8690, %v8689
    %v8714 = vpack.c.b16 %v8692, %v8691
    %v8715 = vpack.c.b16 %v8694, %v8693
    %v8716 = vpack.c.b16 %v8696, %v8695
    %v8717 = vpack.c.b16 %v8698, %v8697
    %v8718 = vpack.c.b16 %v8700, %v8699
    %v8719 = vpack.c.b16 %v8702, %v8701
    %v8720 = vpack.c.b16 %v8704, %v8703
    %8721 = vrot.lane.b32.xlu0 %v8705, 96
    %v8722 = vpop.permute.xlu0 %8721
    %8723 = vrot.lane.b32.xlu0 %v8706, 96
    %v8724 = vpop.permute.xlu0 %8723
    %8725 = vrot.lane.b32.xlu0 %v8707, 96
    %v8726 = vpop.permute.xlu0 %8725
    %8727 = vrot.lane.b32.xlu0 %v8708, 96
    %v8728 = vpop.permute.xlu0 %8727
    %8729 = vrot.lane.b32.xlu0 %v8709, 96
    %v8730 = vpop.permute.xlu0 %8729
    %8731 = vrot.lane.b32.xlu0 %v8710, 96
    %v8732 = vpop.permute.xlu0 %8731
    %8733 = vrot.lane.b32.xlu0 %v8711, 96
    %v8734 = vpop.permute.xlu0 %8733
    %8735 = vrot.lane.b32.xlu0 %v8712, 96
    %v8736 = vpop.permute.xlu0 %8735
    %8737 = vrot.lane.b32.xlu0 %v8713, 96
    %v8738 = vpop.permute.xlu0 %8737
    %8739 = vrot.lane.b32.xlu0 %v8714, 96
    %v8740 = vpop.permute.xlu0 %8739
    %8741 = vrot.lane.b32.xlu0 %v8715, 96
    %v8742 = vpop.permute.xlu0 %8741
    %8743 = vrot.lane.b32.xlu0 %v8716, 96
    %v8744 = vpop.permute.xlu0 %8743
    %8745 = vrot.lane.b32.xlu0 %v8717, 96
    %v8746 = vpop.permute.xlu0 %8745
    %8747 = vrot.lane.b32.xlu0 %v8718, 96
    %v8748 = vpop.permute.xlu0 %8747
    %8749 = vrot.lane.b32.xlu0 %v8719, 96
    %v8750 = vpop.permute.xlu0 %8749
    %8751 = vrot.lane.b32.xlu0 %v8720, 96
    %v8752 = vpop.permute.xlu0 %8751
    %v8769 = vunpack.c.l.b16 %v8065
    %v8770 = vunpack.c.l.b16 %v8066
    %v8771 = vunpack.c.l.b16 %v8067
    %v8772 = vunpack.c.l.b16 %v8068
    %v8773 = vunpack.c.l.b16 %v8069
    %v8774 = vunpack.c.l.b16 %v8070
    %v8775 = vunpack.c.l.b16 %v8071
    %v8776 = vunpack.c.l.b16 %v8072
    %v8777 = vunpack.c.l.b16 %v8073
    %v8778 = vunpack.c.l.b16 %v8074
    %v8779 = vunpack.c.l.b16 %v8075
    %v8780 = vunpack.c.l.b16 %v8076
    %v8781 = vunpack.c.l.b16 %v8077
    %v8782 = vunpack.c.l.b16 %v8078
    %v8783 = vunpack.c.l.b16 %v8079
    %v8784 = vunpack.c.l.b16 %v8080
    %v8785 = vpack.c.b16 %v8769, %v8769
    %v8786 = vpack.c.b16 %v8770, %v8770
    %v8787 = vpack.c.b16 %v8771, %v8771
    %v8788 = vpack.c.b16 %v8772, %v8772
    %v8789 = vpack.c.b16 %v8773, %v8773
    %v8790 = vpack.c.b16 %v8774, %v8774
    %v8791 = vpack.c.b16 %v8775, %v8775
    %v8792 = vpack.c.b16 %v8776, %v8776
    %v8793 = vpack.c.b16 %v8777, %v8777
    %v8794 = vpack.c.b16 %v8778, %v8778
    %v8795 = vpack.c.b16 %v8779, %v8779
    %v8796 = vpack.c.b16 %v8780, %v8780
    %v8797 = vpack.c.b16 %v8781, %v8781
    %v8798 = vpack.c.b16 %v8782, %v8782
    %v8799 = vpack.c.b16 %v8783, %v8783
    %v8800 = vpack.c.b16 %v8784, %v8784
    %v8802 = vshrl.u32 %v8705, 16
    %v8804 = vshll.u32 %v8705, 16
    %v8806 = vrot.slane %v8804, 1
    %v8807 = vor.u32 %v8802, %v8806
    %v8809 = vshll.u32 %v8785, 16
    %v8811 = vrot.slane %v8809, 1
    %v8812 = vsel %vm1169, %v8807, %v8811
    %v8814 = vshrl.u32 %v8706, 16
    %v8816 = vshll.u32 %v8706, 16
    %v8818 = vrot.slane %v8816, 1
    %v8819 = vor.u32 %v8814, %v8818
    %v8821 = vshll.u32 %v8786, 16
    %v8823 = vrot.slane %v8821, 1
    %v8824 = vsel %vm1169, %v8819, %v8823
    %v8826 = vshrl.u32 %v8707, 16
    %v8828 = vshll.u32 %v8707, 16
    %v8830 = vrot.slane %v8828, 1
    %v8831 = vor.u32 %v8826, %v8830
    %v8833 = vshll.u32 %v8787, 16
    %v8835 = vrot.slane %v8833, 1
    %v8836 = vsel %vm1169, %v8831, %v8835
    %v8838 = vshrl.u32 %v8708, 16
    %v8840 = vshll.u32 %v8708, 16
    %v8842 = vrot.slane %v8840, 1
    %v8843 = vor.u32 %v8838, %v8842
    %v8845 = vshll.u32 %v8788, 16
    %v8847 = vrot.slane %v8845, 1
    %v8848 = vsel %vm1169, %v8843, %v8847
    %v8850 = vshrl.u32 %v8709, 16
    %v8852 = vshll.u32 %v8709, 16
    %v8854 = vrot.slane %v8852, 1
    %v8855 = vor.u32 %v8850, %v8854
    %v8857 = vshll.u32 %v8789, 16
    %v8859 = vrot.slane %v8857, 1
    %v8860 = vsel %vm1169, %v8855, %v8859
    %v8862 = vshrl.u32 %v8710, 16
    %v8864 = vshll.u32 %v8710, 16
    %v8866 = vrot.slane %v8864, 1
    %v8867 = vor.u32 %v8862, %v8866
    %v8869 = vshll.u32 %v8790, 16
    %v8871 = vrot.slane %v8869, 1
    %v8872 = vsel %vm1169, %v8867, %v8871
    %v8874 = vshrl.u32 %v8711, 16
    %v8876 = vshll.u32 %v8711, 16
    %v8878 = vrot.slane %v8876, 1
    %v8879 = vor.u32 %v8874, %v8878
    %v8881 = vshll.u32 %v8791, 16
    %v8883 = vrot.slane %v8881, 1
    %v8884 = vsel %vm1169, %v8879, %v8883
    %v8886 = vshrl.u32 %v8712, 16
    %v8888 = vshll.u32 %v8712, 16
    %v8890 = vrot.slane %v8888, 1
    %v8891 = vor.u32 %v8886, %v8890
    %v8893 = vshll.u32 %v8792, 16
    %v8895 = vrot.slane %v8893, 1
    %v8896 = vsel %vm1169, %v8891, %v8895
    %v8898 = vshrl.u32 %v8713, 16
    %v8900 = vshll.u32 %v8713, 16
    %v8902 = vrot.slane %v8900, 1
    %v8903 = vor.u32 %v8898, %v8902
    %v8905 = vshll.u32 %v8793, 16
    %v8907 = vrot.slane %v8905, 1
    %v8908 = vsel %vm1169, %v8903, %v8907
    %v8910 = vshrl.u32 %v8714, 16
    %v8912 = vshll.u32 %v8714, 16
    %v8914 = vrot.slane %v8912, 1
    %v8915 = vor.u32 %v8910, %v8914
    %v8917 = vshll.u32 %v8794, 16
    %v8919 = vrot.slane %v8917, 1
    %v8920 = vsel %vm1169, %v8915, %v8919
    %v8922 = vshrl.u32 %v8715, 16
    %v8924 = vshll.u32 %v8715, 16
    %v8926 = vrot.slane %v8924, 1
    %v8927 = vor.u32 %v8922, %v8926
    %v8929 = vshll.u32 %v8795, 16
    %v8931 = vrot.slane %v8929, 1
    %v8932 = vsel %vm1169, %v8927, %v8931
    %v8934 = vshrl.u32 %v8716, 16
    %v8936 = vshll.u32 %v8716, 16
    %v8938 = vrot.slane %v8936, 1
    %v8939 = vor.u32 %v8934, %v8938
    %v8941 = vshll.u32 %v8796, 16
    %v8943 = vrot.slane %v8941, 1
    %v8944 = vsel %vm1169, %v8939, %v8943
    %v8946 = vshrl.u32 %v8717, 16
    %v8948 = vshll.u32 %v8717, 16
    %v8950 = vrot.slane %v8948, 1
    %v8951 = vor.u32 %v8946, %v8950
    %v8953 = vshll.u32 %v8797, 16
    %v8955 = vrot.slane %v8953, 1
    %v8956 = vsel %vm1169, %v8951, %v8955
    %v8958 = vshrl.u32 %v8718, 16
    %v8960 = vshll.u32 %v8718, 16
    %v8962 = vrot.slane %v8960, 1
    %v8963 = vor.u32 %v8958, %v8962
    %v8965 = vshll.u32 %v8798, 16
    %v8967 = vrot.slane %v8965, 1
    %v8968 = vsel %vm1169, %v8963, %v8967
    %v8970 = vshrl.u32 %v8719, 16
    %v8972 = vshll.u32 %v8719, 16
    %v8974 = vrot.slane %v8972, 1
    %v8975 = vor.u32 %v8970, %v8974
    %v8977 = vshll.u32 %v8799, 16
    %v8979 = vrot.slane %v8977, 1
    %v8980 = vsel %vm1169, %v8975, %v8979
    %v8982 = vshrl.u32 %v8720, 16
    %v8984 = vshll.u32 %v8720, 16
    %v8986 = vrot.slane %v8984, 1
    %v8987 = vor.u32 %v8982, %v8986
    %v8989 = vshll.u32 %v8800, 16
    %v8991 = vrot.slane %v8989, 1
    %v8992 = vsel %vm1169, %v8987, %v8991
    %v9009 = vunpack.c.l.b16 %v8081
    %v9010 = vunpack.c.l.b16 %v8082
    %v9011 = vunpack.c.l.b16 %v8083
    %v9012 = vunpack.c.l.b16 %v8084
    %v9013 = vunpack.c.l.b16 %v8085
    %v9014 = vunpack.c.l.b16 %v8086
    %v9015 = vunpack.c.l.b16 %v8087
    %v9016 = vunpack.c.l.b16 %v8088
    %v9017 = vunpack.c.l.b16 %v8089
    %v9018 = vunpack.c.l.b16 %v8090
    %v9019 = vunpack.c.l.b16 %v8091
    %v9020 = vunpack.c.l.b16 %v8092
    %v9021 = vunpack.c.l.b16 %v8093
    %v9022 = vunpack.c.l.b16 %v8094
    %v9023 = vunpack.c.l.b16 %v8095
    %v9024 = vunpack.c.l.b16 %v8096
    %v9025 = vpack.c.b16 %v8674, %v9009
    %v9026 = vpack.c.b16 %v8676, %v9010
    %v9027 = vpack.c.b16 %v8678, %v9011
    %v9028 = vpack.c.b16 %v8680, %v9012
    %v9029 = vpack.c.b16 %v8682, %v9013
    %v9030 = vpack.c.b16 %v8684, %v9014
    %v9031 = vpack.c.b16 %v8686, %v9015
    %v9032 = vpack.c.b16 %v8688, %v9016
    %v9033 = vpack.c.b16 %v8690, %v9017
    %v9034 = vpack.c.b16 %v8692, %v9018
    %v9035 = vpack.c.b16 %v8694, %v9019
    %v9036 = vpack.c.b16 %v8696, %v9020
    %v9037 = vpack.c.b16 %v8698, %v9021
    %v9038 = vpack.c.b16 %v8700, %v9022
    %v9039 = vpack.c.b16 %v8702, %v9023
    %v9040 = vpack.c.b16 %v8704, %v9024
    %v9041 = vrot.slane %v9025, 1
    %v9042 = vrot.slane %v8785, 1
    %v9043 = vsel %vm1442, %v9041, %v9042
    %v9044 = vrot.slane %v9026, 1
    %v9045 = vrot.slane %v8786, 1
    %v9046 = vsel %vm1442, %v9044, %v9045
    %v9047 = vrot.slane %v9027, 1
    %v9048 = vrot.slane %v8787, 1
    %v9049 = vsel %vm1442, %v9047, %v9048
    %v9050 = vrot.slane %v9028, 1
    %v9051 = vrot.slane %v8788, 1
    %v9052 = vsel %vm1442, %v9050, %v9051
    %v9053 = vrot.slane %v9029, 1
    %v9054 = vrot.slane %v8789, 1
    %v9055 = vsel %vm1442, %v9053, %v9054
    %v9056 = vrot.slane %v9030, 1
    %v9057 = vrot.slane %v8790, 1
    %v9058 = vsel %vm1442, %v9056, %v9057
    %v9059 = vrot.slane %v9031, 1
    %v9060 = vrot.slane %v8791, 1
    %v9061 = vsel %vm1442, %v9059, %v9060
    %v9062 = vrot.slane %v9032, 1
    %v9063 = vrot.slane %v8792, 1
    %v9064 = vsel %vm1442, %v9062, %v9063
    %v9065 = vrot.slane %v9033, 1
    %v9066 = vrot.slane %v8793, 1
    %v9067 = vsel %vm1442, %v9065, %v9066
    %v9068 = vrot.slane %v9034, 1
    %v9069 = vrot.slane %v8794, 1
    %v9070 = vsel %vm1442, %v9068, %v9069
    %v9071 = vrot.slane %v9035, 1
    %v9072 = vrot.slane %v8795, 1
    %v9073 = vsel %vm1442, %v9071, %v9072
    %v9074 = vrot.slane %v9036, 1
    %v9075 = vrot.slane %v8796, 1
    %v9076 = vsel %vm1442, %v9074, %v9075
    %v9077 = vrot.slane %v9037, 1
    %v9078 = vrot.slane %v8797, 1
    %v9079 = vsel %vm1442, %v9077, %v9078
    %v9080 = vrot.slane %v9038, 1
    %v9081 = vrot.slane %v8798, 1
    %v9082 = vsel %vm1442, %v9080, %v9081
    %v9083 = vrot.slane %v9039, 1
    %v9084 = vrot.slane %v8799, 1
    %v9085 = vsel %vm1442, %v9083, %v9084
    %v9086 = vrot.slane %v9040, 1
    %v9087 = vrot.slane %v8800, 1
    %v9088 = vsel %vm1442, %v9086, %v9087
    %9089 = vrot.lane.b32.xlu0 %v9043, 32
    %v9090 = vpop.permute.xlu0 %9089
    %9091 = vrot.lane.b32.xlu0 %v9046, 32
    %v9092 = vpop.permute.xlu0 %9091
    %9093 = vrot.lane.b32.xlu0 %v9049, 32
    %v9094 = vpop.permute.xlu0 %9093
    %9095 = vrot.lane.b32.xlu0 %v9052, 32
    %v9096 = vpop.permute.xlu0 %9095
    %9097 = vrot.lane.b32.xlu0 %v9055, 32
    %v9098 = vpop.permute.xlu0 %9097
    %9099 = vrot.lane.b32.xlu0 %v9058, 32
    %v9100 = vpop.permute.xlu0 %9099
    %9101 = vrot.lane.b32.xlu0 %v9061, 32
    %v9102 = vpop.permute.xlu0 %9101
    %9103 = vrot.lane.b32.xlu0 %v9064, 32
    %v9104 = vpop.permute.xlu0 %9103
    %9105 = vrot.lane.b32.xlu0 %v9067, 32
    %v9106 = vpop.permute.xlu0 %9105
    %9107 = vrot.lane.b32.xlu0 %v9070, 32
    %v9108 = vpop.permute.xlu0 %9107
    %9109 = vrot.lane.b32.xlu0 %v9073, 32
    %v9110 = vpop.permute.xlu0 %9109
    %9111 = vrot.lane.b32.xlu0 %v9076, 32
    %v9112 = vpop.permute.xlu0 %9111
    %9113 = vrot.lane.b32.xlu0 %v9079, 32
    %v9114 = vpop.permute.xlu0 %9113
    %9115 = vrot.lane.b32.xlu0 %v9082, 32
    %v9116 = vpop.permute.xlu0 %9115
    %9117 = vrot.lane.b32.xlu0 %v9085, 32
    %v9118 = vpop.permute.xlu0 %9117
    %9119 = vrot.lane.b32.xlu0 %v9088, 32
    %v9120 = vpop.permute.xlu0 %9119
    %v9153 = vunpack.c.l.b16 %v8097
    %v9154 = vunpack.c.l.b16 %v8098
    %v9155 = vunpack.c.l.b16 %v8099
    %v9156 = vunpack.c.l.b16 %v8100
    %v9157 = vunpack.c.l.b16 %v8101
    %v9158 = vunpack.c.l.b16 %v8102
    %v9159 = vunpack.c.l.b16 %v8103
    %v9160 = vunpack.c.l.b16 %v8104
    %v9161 = vunpack.c.l.b16 %v8105
    %v9162 = vunpack.c.l.b16 %v8106
    %v9163 = vunpack.c.l.b16 %v8107
    %v9164 = vunpack.c.l.b16 %v8108
    %v9165 = vunpack.c.l.b16 %v8109
    %v9166 = vunpack.c.l.b16 %v8110
    %v9167 = vunpack.c.l.b16 %v8111
    %v9168 = vunpack.c.l.b16 %v8112
    %v9169 = vunpack.c.l.b16 %v8113
    %v9170 = vunpack.c.l.b16 %v8114
    %v9171 = vunpack.c.l.b16 %v8115
    %v9172 = vunpack.c.l.b16 %v8116
    %v9173 = vunpack.c.l.b16 %v8117
    %v9174 = vunpack.c.l.b16 %v8118
    %v9175 = vunpack.c.l.b16 %v8119
    %v9176 = vunpack.c.l.b16 %v8120
    %v9177 = vunpack.c.l.b16 %v8121
    %v9178 = vunpack.c.l.b16 %v8122
    %v9179 = vunpack.c.l.b16 %v8123
    %v9180 = vunpack.c.l.b16 %v8124
    %v9181 = vunpack.c.l.b16 %v8125
    %v9182 = vunpack.c.l.b16 %v8126
    %v9183 = vunpack.c.l.b16 %v8127
    %v9184 = vunpack.c.l.b16 %v8128
    %v9185 = vpack.c.b16 %v9154, %v9153
    %v9186 = vpack.c.b16 %v9156, %v9155
    %v9187 = vpack.c.b16 %v9158, %v9157
    %v9188 = vpack.c.b16 %v9160, %v9159
    %v9189 = vpack.c.b16 %v9162, %v9161
    %v9190 = vpack.c.b16 %v9164, %v9163
    %v9191 = vpack.c.b16 %v9166, %v9165
    %v9192 = vpack.c.b16 %v9168, %v9167
    %v9193 = vpack.c.b16 %v9170, %v9169
    %v9194 = vpack.c.b16 %v9172, %v9171
    %v9195 = vpack.c.b16 %v9174, %v9173
    %v9196 = vpack.c.b16 %v9176, %v9175
    %v9197 = vpack.c.b16 %v9178, %v9177
    %v9198 = vpack.c.b16 %v9180, %v9179
    %v9199 = vpack.c.b16 %v9182, %v9181
    %v9200 = vpack.c.b16 %v9184, %v9183
    %9201 = vrot.lane.b32.xlu0 %v9185, 64
    %v9202 = vpop.permute.xlu0 %9201
    %9203 = vrot.lane.b32.xlu0 %v9186, 64
    %v9204 = vpop.permute.xlu0 %9203
    %9205 = vrot.lane.b32.xlu0 %v9187, 64
    %v9206 = vpop.permute.xlu0 %9205
    %9207 = vrot.lane.b32.xlu0 %v9188, 64
    %v9208 = vpop.permute.xlu0 %9207
    %9209 = vrot.lane.b32.xlu0 %v9189, 64
    %v9210 = vpop.permute.xlu0 %9209
    %9211 = vrot.lane.b32.xlu0 %v9190, 64
    %v9212 = vpop.permute.xlu0 %9211
    %9213 = vrot.lane.b32.xlu0 %v9191, 64
    %v9214 = vpop.permute.xlu0 %9213
    %9215 = vrot.lane.b32.xlu0 %v9192, 64
    %v9216 = vpop.permute.xlu0 %9215
    %9217 = vrot.lane.b32.xlu0 %v9193, 64
    %v9218 = vpop.permute.xlu0 %9217
    %9219 = vrot.lane.b32.xlu0 %v9194, 64
    %v9220 = vpop.permute.xlu0 %9219
    %9221 = vrot.lane.b32.xlu0 %v9195, 64
    %v9222 = vpop.permute.xlu0 %9221
    %9223 = vrot.lane.b32.xlu0 %v9196, 64
    %v9224 = vpop.permute.xlu0 %9223
    %9225 = vrot.lane.b32.xlu0 %v9197, 64
    %v9226 = vpop.permute.xlu0 %9225
    %9227 = vrot.lane.b32.xlu0 %v9198, 64
    %v9228 = vpop.permute.xlu0 %9227
    %9229 = vrot.lane.b32.xlu0 %v9199, 64
    %v9230 = vpop.permute.xlu0 %9229
    %9231 = vrot.lane.b32.xlu0 %v9200, 64
    %v9232 = vpop.permute.xlu0 %9231
    %v9249 = vunpack.c.l.b16 %v8129
    %v9250 = vunpack.c.l.b16 %v8130
    %v9251 = vunpack.c.l.b16 %v8131
    %v9252 = vunpack.c.l.b16 %v8132
    %v9253 = vunpack.c.l.b16 %v8133
    %v9254 = vunpack.c.l.b16 %v8134
    %v9255 = vunpack.c.l.b16 %v8135
    %v9256 = vunpack.c.l.b16 %v8136
    %v9257 = vunpack.c.l.b16 %v8137
    %v9258 = vunpack.c.l.b16 %v8138
    %v9259 = vunpack.c.l.b16 %v8139
    %v9260 = vunpack.c.l.b16 %v8140
    %v9261 = vunpack.c.l.b16 %v8141
    %v9262 = vunpack.c.l.b16 %v8142
    %v9263 = vunpack.c.l.b16 %v8143
    %v9264 = vunpack.c.l.b16 %v8144
    %v9265 = vpack.c.b16 %v9249, %v9249
    %v9266 = vpack.c.b16 %v9250, %v9250
    %v9267 = vpack.c.b16 %v9251, %v9251
    %v9268 = vpack.c.b16 %v9252, %v9252
    %v9269 = vpack.c.b16 %v9253, %v9253
    %v9270 = vpack.c.b16 %v9254, %v9254
    %v9271 = vpack.c.b16 %v9255, %v9255
    %v9272 = vpack.c.b16 %v9256, %v9256
    %v9273 = vpack.c.b16 %v9257, %v9257
    %v9274 = vpack.c.b16 %v9258, %v9258
    %v9275 = vpack.c.b16 %v9259, %v9259
    %v9276 = vpack.c.b16 %v9260, %v9260
    %v9277 = vpack.c.b16 %v9261, %v9261
    %v9278 = vpack.c.b16 %v9262, %v9262
    %v9279 = vpack.c.b16 %v9263, %v9263
    %v9280 = vpack.c.b16 %v9264, %v9264
    %v9282 = vshrl.u32 %v9185, 16
    %v9284 = vshll.u32 %v9185, 16
    %v9286 = vrot.slane %v9284, 1
    %v9287 = vor.u32 %v9282, %v9286
    %v9289 = vshll.u32 %v9265, 16
    %v9291 = vrot.slane %v9289, 1
    %v9292 = vsel %vm1169, %v9287, %v9291
    %v9294 = vshrl.u32 %v9186, 16
    %v9296 = vshll.u32 %v9186, 16
    %v9298 = vrot.slane %v9296, 1
    %v9299 = vor.u32 %v9294, %v9298
    %v9301 = vshll.u32 %v9266, 16
    %v9303 = vrot.slane %v9301, 1
    %v9304 = vsel %vm1169, %v9299, %v9303
    %v9306 = vshrl.u32 %v9187, 16
    %v9308 = vshll.u32 %v9187, 16
    %v9310 = vrot.slane %v9308, 1
    %v9311 = vor.u32 %v9306, %v9310
    %v9313 = vshll.u32 %v9267, 16
    %v9315 = vrot.slane %v9313, 1
    %v9316 = vsel %vm1169, %v9311, %v9315
    %v9318 = vshrl.u32 %v9188, 16
    %v9320 = vshll.u32 %v9188, 16
    %v9322 = vrot.slane %v9320, 1
    %v9323 = vor.u32 %v9318, %v9322
    %v9325 = vshll.u32 %v9268, 16
    %v9327 = vrot.slane %v9325, 1
    %v9328 = vsel %vm1169, %v9323, %v9327
    %v9330 = vshrl.u32 %v9189, 16
    %v9332 = vshll.u32 %v9189, 16
    %v9334 = vrot.slane %v9332, 1
    %v9335 = vor.u32 %v9330, %v9334
    %v9337 = vshll.u32 %v9269, 16
    %v9339 = vrot.slane %v9337, 1
    %v9340 = vsel %vm1169, %v9335, %v9339
    %v9342 = vshrl.u32 %v9190, 16
    %v9344 = vshll.u32 %v9190, 16
    %v9346 = vrot.slane %v9344, 1
    %v9347 = vor.u32 %v9342, %v9346
    %v9349 = vshll.u32 %v9270, 16
    %v9351 = vrot.slane %v9349, 1
    %v9352 = vsel %vm1169, %v9347, %v9351
    %v9354 = vshrl.u32 %v9191, 16
    %v9356 = vshll.u32 %v9191, 16
    %v9358 = vrot.slane %v9356, 1
    %v9359 = vor.u32 %v9354, %v9358
    %v9361 = vshll.u32 %v9271, 16
    %v9363 = vrot.slane %v9361, 1
    %v9364 = vsel %vm1169, %v9359, %v9363
    %v9366 = vshrl.u32 %v9192, 16
    %v9368 = vshll.u32 %v9192, 16
    %v9370 = vrot.slane %v9368, 1
    %v9371 = vor.u32 %v9366, %v9370
    %v9373 = vshll.u32 %v9272, 16
    %v9375 = vrot.slane %v9373, 1
    %v9376 = vsel %vm1169, %v9371, %v9375
    %v9378 = vshrl.u32 %v9193, 16
    %v9380 = vshll.u32 %v9193, 16
    %v9382 = vrot.slane %v9380, 1
    %v9383 = vor.u32 %v9378, %v9382
    %v9385 = vshll.u32 %v9273, 16
    %v9387 = vrot.slane %v9385, 1
    %v9388 = vsel %vm1169, %v9383, %v9387
    %v9390 = vshrl.u32 %v9194, 16
    %v9392 = vshll.u32 %v9194, 16
    %v9394 = vrot.slane %v9392, 1
    %v9395 = vor.u32 %v9390, %v9394
    %v9397 = vshll.u32 %v9274, 16
    %v9399 = vrot.slane %v9397, 1
    %v9400 = vsel %vm1169, %v9395, %v9399
    %v9402 = vshrl.u32 %v9195, 16
    %v9404 = vshll.u32 %v9195, 16
    %v9406 = vrot.slane %v9404, 1
    %v9407 = vor.u32 %v9402, %v9406
    %v9409 = vshll.u32 %v9275, 16
    %v9411 = vrot.slane %v9409, 1
    %v9412 = vsel %vm1169, %v9407, %v9411
    %v9414 = vshrl.u32 %v9196, 16
    %v9416 = vshll.u32 %v9196, 16
    %v9418 = vrot.slane %v9416, 1
    %v9419 = vor.u32 %v9414, %v9418
    %v9421 = vshll.u32 %v9276, 16
    %v9423 = vrot.slane %v9421, 1
    %v9424 = vsel %vm1169, %v9419, %v9423
    %v9426 = vshrl.u32 %v9197, 16
    %v9428 = vshll.u32 %v9197, 16
    %v9430 = vrot.slane %v9428, 1
    %v9431 = vor.u32 %v9426, %v9430
    %v9433 = vshll.u32 %v9277, 16
    %v9435 = vrot.slane %v9433, 1
    %v9436 = vsel %vm1169, %v9431, %v9435
    %v9438 = vshrl.u32 %v9198, 16
    %v9440 = vshll.u32 %v9198, 16
    %v9442 = vrot.slane %v9440, 1
    %v9443 = vor.u32 %v9438, %v9442
    %v9445 = vshll.u32 %v9278, 16
    %v9447 = vrot.slane %v9445, 1
    %v9448 = vsel %vm1169, %v9443, %v9447
    %v9450 = vshrl.u32 %v9199, 16
    %v9452 = vshll.u32 %v9199, 16
    %v9454 = vrot.slane %v9452, 1
    %v9455 = vor.u32 %v9450, %v9454
    %v9457 = vshll.u32 %v9279, 16
    %v9459 = vrot.slane %v9457, 1
    %v9460 = vsel %vm1169, %v9455, %v9459
    %v9462 = vshrl.u32 %v9200, 16
    %v9464 = vshll.u32 %v9200, 16
    %v9466 = vrot.slane %v9464, 1
    %v9467 = vor.u32 %v9462, %v9466
    %v9469 = vshll.u32 %v9280, 16
    %v9471 = vrot.slane %v9469, 1
    %v9472 = vsel %vm1169, %v9467, %v9471
    %9473 = vrot.lane.b32.xlu0 %v9292, 96
    %v9474 = vpop.permute.xlu0 %9473
    %9475 = vrot.lane.b32.xlu0 %v9304, 96
    %v9476 = vpop.permute.xlu0 %9475
    %9477 = vrot.lane.b32.xlu0 %v9316, 96
    %v9478 = vpop.permute.xlu0 %9477
    %9479 = vrot.lane.b32.xlu0 %v9328, 96
    %v9480 = vpop.permute.xlu0 %9479
    %9481 = vrot.lane.b32.xlu0 %v9340, 96
    %v9482 = vpop.permute.xlu0 %9481
    %9483 = vrot.lane.b32.xlu0 %v9352, 96
    %v9484 = vpop.permute.xlu0 %9483
    %9485 = vrot.lane.b32.xlu0 %v9364, 96
    %v9486 = vpop.permute.xlu0 %9485
    %9487 = vrot.lane.b32.xlu0 %v9376, 96
    %v9488 = vpop.permute.xlu0 %9487
    %9489 = vrot.lane.b32.xlu0 %v9388, 96
    %v9490 = vpop.permute.xlu0 %9489
    %9491 = vrot.lane.b32.xlu0 %v9400, 96
    %v9492 = vpop.permute.xlu0 %9491
    %9493 = vrot.lane.b32.xlu0 %v9412, 96
    %v9494 = vpop.permute.xlu0 %9493
    %9495 = vrot.lane.b32.xlu0 %v9424, 96
    %v9496 = vpop.permute.xlu0 %9495
    %9497 = vrot.lane.b32.xlu0 %v9436, 96
    %v9498 = vpop.permute.xlu0 %9497
    %9499 = vrot.lane.b32.xlu0 %v9448, 96
    %v9500 = vpop.permute.xlu0 %9499
    %9501 = vrot.lane.b32.xlu0 %v9460, 96
    %v9502 = vpop.permute.xlu0 %9501
    %9503 = vrot.lane.b32.xlu0 %v9472, 96
    %v9504 = vpop.permute.xlu0 %9503
    %v9521 = vunpack.c.l.b16 %v8145
    %v9522 = vunpack.c.l.b16 %v8146
    %v9523 = vunpack.c.l.b16 %v8147
    %v9524 = vunpack.c.l.b16 %v8148
    %v9525 = vunpack.c.l.b16 %v8149
    %v9526 = vunpack.c.l.b16 %v8150
    %v9527 = vunpack.c.l.b16 %v8151
    %v9528 = vunpack.c.l.b16 %v8152
    %v9529 = vunpack.c.l.b16 %v8153
    %v9530 = vunpack.c.l.b16 %v8154
    %v9531 = vunpack.c.l.b16 %v8155
    %v9532 = vunpack.c.l.b16 %v8156
    %v9533 = vunpack.c.l.b16 %v8157
    %v9534 = vunpack.c.l.b16 %v8158
    %v9535 = vunpack.c.l.b16 %v8159
    %v9536 = vunpack.c.l.b16 %v8160
    %v9537 = vpack.c.b16 %v9154, %v9521
    %v9538 = vpack.c.b16 %v9156, %v9522
    %v9539 = vpack.c.b16 %v9158, %v9523
    %v9540 = vpack.c.b16 %v9160, %v9524
    %v9541 = vpack.c.b16 %v9162, %v9525
    %v9542 = vpack.c.b16 %v9164, %v9526
    %v9543 = vpack.c.b16 %v9166, %v9527
    %v9544 = vpack.c.b16 %v9168, %v9528
    %v9545 = vpack.c.b16 %v9170, %v9529
    %v9546 = vpack.c.b16 %v9172, %v9530
    %v9547 = vpack.c.b16 %v9174, %v9531
    %v9548 = vpack.c.b16 %v9176, %v9532
    %v9549 = vpack.c.b16 %v9178, %v9533
    %v9550 = vpack.c.b16 %v9180, %v9534
    %v9551 = vpack.c.b16 %v9182, %v9535
    %v9552 = vpack.c.b16 %v9184, %v9536
    %v9553 = vrot.slane %v9537, 1
    %v9554 = vrot.slane %v9265, 1
    %v9555 = vsel %vm1442, %v9553, %v9554
    %v9556 = vrot.slane %v9538, 1
    %v9557 = vrot.slane %v9266, 1
    %v9558 = vsel %vm1442, %v9556, %v9557
    %v9559 = vrot.slane %v9539, 1
    %v9560 = vrot.slane %v9267, 1
    %v9561 = vsel %vm1442, %v9559, %v9560
    %v9562 = vrot.slane %v9540, 1
    %v9563 = vrot.slane %v9268, 1
    %v9564 = vsel %vm1442, %v9562, %v9563
    %v9565 = vrot.slane %v9541, 1
    %v9566 = vrot.slane %v9269, 1
    %v9567 = vsel %vm1442, %v9565, %v9566
    %v9568 = vrot.slane %v9542, 1
    %v9569 = vrot.slane %v9270, 1
    %v9570 = vsel %vm1442, %v9568, %v9569
    %v9571 = vrot.slane %v9543, 1
    %v9572 = vrot.slane %v9271, 1
    %v9573 = vsel %vm1442, %v9571, %v9572
    %v9574 = vrot.slane %v9544, 1
    %v9575 = vrot.slane %v9272, 1
    %v9576 = vsel %vm1442, %v9574, %v9575
    %v9577 = vrot.slane %v9545, 1
    %v9578 = vrot.slane %v9273, 1
    %v9579 = vsel %vm1442, %v9577, %v9578
    %v9580 = vrot.slane %v9546, 1
    %v9581 = vrot.slane %v9274, 1
    %v9582 = vsel %vm1442, %v9580, %v9581
    %v9583 = vrot.slane %v9547, 1
    %v9584 = vrot.slane %v9275, 1
    %v9585 = vsel %vm1442, %v9583, %v9584
    %v9586 = vrot.slane %v9548, 1
    %v9587 = vrot.slane %v9276, 1
    %v9588 = vsel %vm1442, %v9586, %v9587
    %v9589 = vrot.slane %v9549, 1
    %v9590 = vrot.slane %v9277, 1
    %v9591 = vsel %vm1442, %v9589, %v9590
    %v9592 = vrot.slane %v9550, 1
    %v9593 = vrot.slane %v9278, 1
    %v9594 = vsel %vm1442, %v9592, %v9593
    %v9595 = vrot.slane %v9551, 1
    %v9596 = vrot.slane %v9279, 1
    %v9597 = vsel %vm1442, %v9595, %v9596
    %v9598 = vrot.slane %v9552, 1
    %v9599 = vrot.slane %v9280, 1
    %v9600 = vsel %vm1442, %v9598, %v9599
    %v9602 = vsel %vm2483, %v8225, %v8482
    %v9604 = vsel %vm2483, %v8226, %v8484
    %v9606 = vsel %vm2483, %v8227, %v8486
    %v9608 = vsel %vm2483, %v8228, %v8488
    %v9610 = vsel %vm2483, %v8229, %v8490
    %v9612 = vsel %vm2483, %v8230, %v8492
    %v9614 = vsel %vm2483, %v8231, %v8494
    %v9616 = vsel %vm2483, %v8232, %v8496
    %v9618 = vsel %vm2483, %v8233, %v8498
    %v9620 = vsel %vm2483, %v8234, %v8500
    %v9622 = vsel %vm2483, %v8235, %v8502
    %v9624 = vsel %vm2483, %v8236, %v8504
    %v9626 = vsel %vm2483, %v8237, %v8506
    %v9628 = vsel %vm2483, %v8238, %v8508
    %v9630 = vsel %vm2483, %v8239, %v8510
    %v9632 = vsel %vm2483, %v8240, %v8512
    %v9634 = vsel %vm122, %v9602, %v8610
    %v9636 = vsel %vm122, %v9604, %v8612
    %v9638 = vsel %vm122, %v9606, %v8614
    %v9640 = vsel %vm122, %v9608, %v8616
    %v9642 = vsel %vm122, %v9610, %v8618
    %v9644 = vsel %vm122, %v9612, %v8620
    %v9646 = vsel %vm122, %v9614, %v8622
    %v9648 = vsel %vm122, %v9616, %v8624
    %v9650 = vsel %vm122, %v9618, %v8626
    %v9652 = vsel %vm122, %v9620, %v8628
    %v9654 = vsel %vm122, %v9622, %v8630
    %v9656 = vsel %vm122, %v9624, %v8632
    %v9658 = vsel %vm122, %v9626, %v8634
    %v9660 = vsel %vm122, %v9628, %v8636
    %v9662 = vsel %vm122, %v9630, %v8638
    %v9664 = vsel %vm122, %v9632, %v8640
    %v9666 = vsel %vm2548, %v9634, %v8722
    %v9669 = vsel %vm2548, %v9636, %v8724
    %v9672 = vsel %vm2548, %v9638, %v8726
    %v9675 = vsel %vm2548, %v9640, %v8728
    %v9678 = vsel %vm2548, %v9642, %v8730
    %v9681 = vsel %vm2548, %v9644, %v8732
    %v9684 = vsel %vm2548, %v9646, %v8734
    %v9687 = vsel %vm2548, %v9648, %v8736
    %v9690 = vsel %vm2548, %v9650, %v8738
    %v9693 = vsel %vm2548, %v9652, %v8740
    %v9696 = vsel %vm2548, %v9654, %v8742
    %v9699 = vsel %vm2548, %v9656, %v8744
    %v9702 = vsel %vm2548, %v9658, %v8746
    %v9705 = vsel %vm2548, %v9660, %v8748
    %v9708 = vsel %vm2548, %v9662, %v8750
    %v9711 = vsel %vm2548, %v9664, %v8752
    %v9715 = vsel %vm2483, %v8812, %v9090
    %v9718 = vsel %vm2483, %v8824, %v9092
    %v9721 = vsel %vm2483, %v8836, %v9094
    %v9724 = vsel %vm2483, %v8848, %v9096
    %v9727 = vsel %vm2483, %v8860, %v9098
    %v9730 = vsel %vm2483, %v8872, %v9100
    %v9733 = vsel %vm2483, %v8884, %v9102
    %v9736 = vsel %vm2483, %v8896, %v9104
    %v9739 = vsel %vm2483, %v8908, %v9106
    %v9742 = vsel %vm2483, %v8920, %v9108
    %v9745 = vsel %vm2483, %v8932, %v9110
    %v9748 = vsel %vm2483, %v8944, %v9112
    %v9751 = vsel %vm2483, %v8956, %v9114
    %v9754 = vsel %vm2483, %v8968, %v9116
    %v9757 = vsel %vm2483, %v8980, %v9118
    %v9760 = vsel %vm2483, %v8992, %v9120
    %v9762 = vsel %vm122, %v9715, %v9202
    %v9764 = vsel %vm122, %v9718, %v9204
    %v9766 = vsel %vm122, %v9721, %v9206
    %v9768 = vsel %vm122, %v9724, %v9208
    %v9770 = vsel %vm122, %v9727, %v9210
    %v9772 = vsel %vm122, %v9730, %v9212
    %v9774 = vsel %vm122, %v9733, %v9214
    %v9776 = vsel %vm122, %v9736, %v9216
    %v9778 = vsel %vm122, %v9739, %v9218
    %v9780 = vsel %vm122, %v9742, %v9220
    %v9782 = vsel %vm122, %v9745, %v9222
    %v9784 = vsel %vm122, %v9748, %v9224
    %v9786 = vsel %vm122, %v9751, %v9226
    %v9788 = vsel %vm122, %v9754, %v9228
    %v9790 = vsel %vm122, %v9757, %v9230
    %v9792 = vsel %vm122, %v9760, %v9232
    %v9794 = vsel %vm2548, %v9762, %v9474
    %v9797 = vsel %vm2548, %v9764, %v9476
    %v9800 = vsel %vm2548, %v9766, %v9478
    %v9803 = vsel %vm2548, %v9768, %v9480
    %v9806 = vsel %vm2548, %v9770, %v9482
    %v9809 = vsel %vm2548, %v9772, %v9484
    %v9812 = vsel %vm2548, %v9774, %v9486
    %v9815 = vsel %vm2548, %v9776, %v9488
    %v9818 = vsel %vm2548, %v9778, %v9490
    %v9821 = vsel %vm2548, %v9780, %v9492
    %v9824 = vsel %vm2548, %v9782, %v9494
    %v9827 = vsel %vm2548, %v9784, %v9496
    %v9830 = vsel %vm2548, %v9786, %v9498
    %v9833 = vsel %vm2548, %v9788, %v9500
    %v9836 = vsel %vm2548, %v9790, %v9502
    %v9839 = vsel %vm2548, %v9792, %v9504
    %v9841 = vld [vmem:[%s2] sm:$0xf]
    %v9842 = vld [vmem:[%s2 + $0x4] sm:$0xf]
    %v9843 = vld [vmem:[%s2 + $0x8] sm:$0xf]
    %v9844 = vld [vmem:[%s2 + $0xc] sm:$0xf]
    %v9845 = vld [vmem:[%s2 + $0x10] sm:$0xf]
    %v9846 = vld [vmem:[%s2 + $0x14] sm:$0xf]
    %v9847 = vld [vmem:[%s2 + $0x18] sm:$0xf]
    %v9848 = vld [vmem:[%s2 + $0x1c] sm:$0xf]
    %v9849 = vld [vmem:[%s2 + $0x20] sm:$0xf]
    %v9850 = vld [vmem:[%s2 + $0x24] sm:$0xf]
    %v9851 = vld [vmem:[%s2 + $0x28] sm:$0xf]
    %v9852 = vld [vmem:[%s2 + $0x2c] sm:$0xf]
    %v9853 = vld [vmem:[%s2 + $0x30] sm:$0xf]
    %v9854 = vld [vmem:[%s2 + $0x34] sm:$0xf]
    %v9855 = vld [vmem:[%s2 + $0x38] sm:$0xf]
    %v9856 = vld [vmem:[%s2 + $0x3c] sm:$0xf]
    %v9857 = vld [vmem:[%s2 + $0x40] sm:$0xf]
    %v9858 = vld [vmem:[%s2 + $0x44] sm:$0xf]
    %v9859 = vld [vmem:[%s2 + $0x48] sm:$0xf]
    %v9860 = vld [vmem:[%s2 + $0x4c] sm:$0xf]
    %v9861 = vld [vmem:[%s2 + $0x50] sm:$0xf]
    %v9862 = vld [vmem:[%s2 + $0x54] sm:$0xf]
    %v9863 = vld [vmem:[%s2 + $0x58] sm:$0xf]
    %v9864 = vld [vmem:[%s2 + $0x5c] sm:$0xf]
    %v9865 = vld [vmem:[%s2 + $0x60] sm:$0xf]
    %v9866 = vld [vmem:[%s2 + $0x64] sm:$0xf]
    %v9867 = vld [vmem:[%s2 + $0x68] sm:$0xf]
    %v9868 = vld [vmem:[%s2 + $0x6c] sm:$0xf]
    %v9869 = vld [vmem:[%s2 + $0x70] sm:$0xf]
    %v9870 = vld [vmem:[%s2 + $0x74] sm:$0xf]
    %v9871 = vld [vmem:[%s2 + $0x78] sm:$0xf]
    %v9872 = vld [vmem:[%s2 + $0x7c] sm:$0xf]
    %v9873 = vld [vmem:[%s2 + $0x80] sm:$0xf]
    %v9874 = vld [vmem:[%s2 + $0x84] sm:$0xf]
    %v9875 = vld [vmem:[%s2 + $0x88] sm:$0xf]
    %v9876 = vld [vmem:[%s2 + $0x8c] sm:$0xf]
    %v9913 = vunpack.c.l.b16 %v9841
    %v9914 = vunpack.c.l.b16 %v9842
    %v9915 = vunpack.c.l.b16 %v9843
    %v9916 = vunpack.c.l.b16 %v9844
    %v9917 = vunpack.c.l.b16 %v9845
    %v9918 = vunpack.c.l.b16 %v9846
    %v9919 = vunpack.c.l.b16 %v9847
    %v9920 = vunpack.c.l.b16 %v9848
    %v9921 = vunpack.c.l.b16 %v9849
    %v9922 = vunpack.c.l.b16 %v9850
    %v9923 = vunpack.c.l.b16 %v9851
    %v9924 = vunpack.c.l.b16 %v9852
    %v9925 = vunpack.c.l.b16 %v9853
    %v9926 = vunpack.c.l.b16 %v9854
    %v9927 = vunpack.c.l.b16 %v9855
    %v9928 = vunpack.c.l.b16 %v9856
    %v9929 = vunpack.c.l.b16 %v9857
    %v9930 = vunpack.c.l.b16 %v9858
    %v9931 = vunpack.c.l.b16 %v9859
    %v9932 = vunpack.c.l.b16 %v9860
    %v9933 = vunpack.c.l.b16 %v9861
    %v9934 = vunpack.c.l.b16 %v9862
    %v9935 = vunpack.c.l.b16 %v9863
    %v9936 = vunpack.c.l.b16 %v9864
    %v9937 = vunpack.c.l.b16 %v9865
    %v9938 = vunpack.c.l.b16 %v9866
    %v9939 = vunpack.c.l.b16 %v9867
    %v9940 = vunpack.c.l.b16 %v9868
    %v9941 = vunpack.c.l.b16 %v9869
    %v9942 = vunpack.c.l.b16 %v9870
    %v9943 = vunpack.c.l.b16 %v9871
    %v9944 = vunpack.c.l.b16 %v9872
    %v9945 = vunpack.c.l.b16 %v9873
    %v9946 = vunpack.c.l.b16 %v9874
    %v9947 = vunpack.c.l.b16 %v9875
    %v9948 = vunpack.c.l.b16 %v9876
    %v9949 = vpack.c.b16 %v9914, %v9913
    %v9950 = vpack.c.b16 %v9916, %v9915
    %v9951 = vpack.c.b16 %v9918, %v9917
    %v9952 = vpack.c.b16 %v9920, %v9919
    %v9953 = vpack.c.b16 %v9922, %v9921
    %v9954 = vpack.c.b16 %v9924, %v9923
    %v9955 = vpack.c.b16 %v9926, %v9925
    %v9956 = vpack.c.b16 %v9928, %v9927
    %v9957 = vpack.c.b16 %v9930, %v9929
    %v9958 = vpack.c.b16 %v9932, %v9931
    %v9959 = vpack.c.b16 %v9934, %v9933
    %v9960 = vpack.c.b16 %v9936, %v9935
    %v9961 = vpack.c.b16 %v9938, %v9937
    %v9962 = vpack.c.b16 %v9940, %v9939
    %v9963 = vpack.c.b16 %v9942, %v9941
    %v9964 = vpack.c.b16 %v9944, %v9943
    %v9965 = vpack.c.b16 %v9946, %v9945
    %v9966 = vpack.c.b16 %v9948, %v9947
    %v9986 = vsel %vm2483, %v9555, 0
    %v9989 = vsel %vm2483, %v9558, 0
    %v9992 = vsel %vm2483, %v9561, 0
    %v9995 = vsel %vm2483, %v9564, 0
    %v9998 = vsel %vm2483, %v9567, 0
    %v10001 = vsel %vm2483, %v9570, 0
    %v10004 = vsel %vm2483, %v9573, 0
    %v10007 = vsel %vm2483, %v9576, 0
    %v10010 = vsel %vm2483, %v9579, 0
    %v10013 = vsel %vm2483, %v9582, 0
    %v10016 = vsel %vm2483, %v9585, 0
    %v10019 = vsel %vm2483, %v9588, 0
    %v10022 = vsel %vm2483, %v9591, 0
    %v10025 = vsel %vm2483, %v9594, 0
    %v10028 = vsel %vm2483, %v9597, 0
    %v10031 = vsel %vm2483, %v9600, 0
    %10033 = vmatprep.subr.bf16.mxu0 0
    %10034 = vmatpush1.bf16.msra.mxu0 %v9949
    %10035 = vmatprep.subr.bf16.mxu0 0
    %10036 = vmatpush1.bf16.msra.mxu0 %v9950
    %10037 = vmatprep.subr.bf16.mxu0 0
    %10038 = vmatpush1.bf16.msra.mxu0 %v9951
    %10039 = vmatprep.subr.bf16.mxu0 0
    %10040 = vmatpush1.bf16.msra.mxu0 %v9952
    %10041 = vmatprep.subr.bf16.mxu0 0
    %10042 = vmatpush1.bf16.msra.mxu0 %v9953
    %10043 = vmatprep.subr.bf16.mxu0 0
    %10044 = vmatpush1.bf16.msra.mxu0 %v9954
    %10045 = vmatprep.subr.bf16.mxu0 0
    %10046 = vmatpush1.bf16.msra.mxu0 %v9955
    %10047 = vmatprep.subr.bf16.mxu0 0
    %10048 = vmatpush1.bf16.msra.mxu0 %v9956
    %10049 = vmatprep.subr.bf16.mxu0 0
    %10050 = vmatpush1.bf16.msra.mxu0 %v9957
    %10051 = vmatprep.subr.bf16.mxu0 0
    %10052 = vmatpush1.bf16.msra.mxu0 %v9958
    %10053 = vmatprep.subr.bf16.mxu0 0
    %10054 = vmatpush1.bf16.msra.mxu0 %v9959
    %10055 = vmatprep.subr.bf16.mxu0 0
    %10056 = vmatpush1.bf16.msra.mxu0 %v9960
    %10057 = vmatprep.subr.bf16.mxu0 0
    %10058 = vmatpush1.bf16.msra.mxu0 %v9961
    %10059 = vmatprep.subr.bf16.mxu0 0
    %10060 = vmatpush1.bf16.msra.mxu0 %v9962
    %10061 = vmatprep.subr.bf16.mxu0 0
    %10062 = vmatpush1.bf16.msra.mxu0 %v9963
    %10063 = vmatprep.subr.bf16.mxu0 0
    %10064 = vmatpush1.bf16.msra.mxu0 %v9964
    %10065 = vmatprep.mubr.bf16.mxu0 %v9794
    %10066 = vmatmul.mubr.bf16.gmra.mrb[0].mxu0 %v9666
    %v10067 = vpop.f32.mrb[0].mxu0
    %v10068 = vadd.f32 0.0, %v10067
    %v10069 = vpop.f32.mrb[0].mxu0
    %v10070 = vpop.f32.mrb[0].mxu0
    %v10071 = vadd.f32 0.0, %v10070
    %v10072 = vpop.f32.mrb[0].mxu0
    %10073 = vmatprep.mubr.bf16.mxu0 %v9797
    %10074 = vmatmul.mubr.bf16.gmra.mrb[0].mxu0 %v9669
    %v10075 = vpop.f32.mrb[0].mxu0
    %v10076 = vadd.f32 0.0, %v10075
    %v10077 = vpop.f32.mrb[0].mxu0
    %v10078 = vpop.f32.mrb[0].mxu0
    %v10079 = vadd.f32 0.0, %v10078
    %v10080 = vpop.f32.mrb[0].mxu0
    %10081 = vmatprep.mubr.bf16.mxu0 %v9800
    %10082 = vmatmul.mubr.bf16.gmra.mrb[0].mxu0 %v9672
    %v10083 = vpop.f32.mrb[0].mxu0
    %v10084 = vadd.f32 0.0, %v10083
    %v10085 = vpop.f32.mrb[0].mxu0
    %v10086 = vpop.f32.mrb[0].mxu0
    %v10087 = vadd.f32 0.0, %v10086
    %v10088 = vpop.f32.mrb[0].mxu0
    %10089 = vmatprep.mubr.bf16.mxu0 %v9803
    %10090 = vmatmul.mubr.bf16.gmra.mrb[0].mxu0 %v9675
    %v10091 = vpop.f32.mrb[0].mxu0
    %v10092 = vadd.f32 0.0, %v10091
    %v10093 = vpop.f32.mrb[0].mxu0
    %v10094 = vpop.f32.mrb[0].mxu0
    %v10095 = vadd.f32 0.0, %v10094
    %v10096 = vpop.f32.mrb[0].mxu0
    %10097 = vmatprep.mubr.bf16.mxu0 %v9806
    %10098 = vmatmul.mubr.bf16.gmra.mrb[0].mxu0 %v9678
    %v10099 = vpop.f32.mrb[0].mxu0
    %v10100 = vadd.f32 0.0, %v10099
    %v10101 = vpop.f32.mrb[0].mxu0
    %v10102 = vpop.f32.mrb[0].mxu0
    %v10103 = vadd.f32 0.0, %v10102
    %v10104 = vpop.f32.mrb[0].mxu0
    %10105 = vmatprep.mubr.bf16.mxu0 %v9809
    %10106 = vmatmul.mubr.bf16.gmra.mrb[0].mxu0 %v9681
    %v10107 = vpop.f32.mrb[0].mxu0
    %v10108 = vadd.f32 0.0, %v10107
    %v10109 = vpop.f32.mrb[0].mxu0
    %v10110 = vpop.f32.mrb[0].mxu0
    %v10111 = vadd.f32 0.0, %v10110
    %v10112 = vpop.f32.mrb[0].mxu0
    %10113 = vmatprep.mubr.bf16.mxu0 %v9812
    %10114 = vmatmul.mubr.bf16.gmra.mrb[0].mxu0 %v9684
    %v10115 = vpop.f32.mrb[0].mxu0
    %v10116 = vadd.f32 0.0, %v10115
    %v10117 = vpop.f32.mrb[0].mxu0
    %v10118 = vpop.f32.mrb[0].mxu0
    %v10119 = vadd.f32 0.0, %v10118
    %v10120 = vpop.f32.mrb[0].mxu0
    %10121 = vmatprep.mubr.bf16.mxu0 %v9815
    %10122 = vmatmul.mubr.bf16.gmra.mrb[0].mxu0 %v9687
    %v10123 = vpop.f32.mrb[0].mxu0
    %v10124 = vadd.f32 0.0, %v10123
    %v10125 = vpop.f32.mrb[0].mxu0
    %v10126 = vpop.f32.mrb[0].mxu0
    %v10127 = vadd.f32 0.0, %v10126
    %v10128 = vpop.f32.mrb[0].mxu0
    %10129 = vmatprep.mubr.bf16.mxu0 %v9818
    %10130 = vmatmul.mubr.bf16.gmra.mrb[0].mxu0 %v9690
    %v10131 = vpop.f32.mrb[0].mxu0
    %v10132 = vadd.f32 0.0, %v10131
    %v10133 = vpop.f32.mrb[0].mxu0
    %v10134 = vpop.f32.mrb[0].mxu0
    %v10135 = vadd.f32 0.0, %v10134
    %v10136 = vpop.f32.mrb[0].mxu0
    %10137 = vmatprep.mubr.bf16.mxu0 %v9821
    %10138 = vmatmul.mubr.bf16.gmra.mrb[0].mxu0 %v9693
    %v10139 = vpop.f32.mrb[0].mxu0
    %v10140 = vadd.f32 0.0, %v10139
    %v10141 = vpop.f32.mrb[0].mxu0
    %v10142 = vpop.f32.mrb[0].mxu0
    %v10143 = vadd.f32 0.0, %v10142
    %v10144 = vpop.f32.mrb[0].mxu0
    %10145 = vmatprep.mubr.bf16.mxu0 %v9824
    %10146 = vmatmul.mubr.bf16.gmra.mrb[0].mxu0 %v9696
    %v10147 = vpop.f32.mrb[0].mxu0
    %v10148 = vadd.f32 0.0, %v10147
    %v10149 = vpop.f32.mrb[0].mxu0
    %v10150 = vpop.f32.mrb[0].mxu0
    %v10151 = vadd.f32 0.0, %v10150
    %v10152 = vpop.f32.mrb[0].mxu0
    %10153 = vmatprep.mubr.bf16.mxu0 %v9827
    %10154 = vmatmul.mubr.bf16.gmra.mrb[0].mxu0 %v9699
    %v10155 = vpop.f32.mrb[0].mxu0
    %v10156 = vadd.f32 0.0, %v10155
    %v10157 = vpop.f32.mrb[0].mxu0
    %v10158 = vpop.f32.mrb[0].mxu0
    %v10159 = vadd.f32 0.0, %v10158
    %v10160 = vpop.f32.mrb[0].mxu0
    %10161 = vmatprep.mubr.bf16.mxu0 %v9830
    %10162 = vmatmul.mubr.bf16.gmra.mrb[0].mxu0 %v9702
    %v10163 = vpop.f32.mrb[0].mxu0
    %v10164 = vadd.f32 0.0, %v10163
    %v10165 = vpop.f32.mrb[0].mxu0
    %v10166 = vpop.f32.mrb[0].mxu0
    %v10167 = vadd.f32 0.0, %v10166
    %v10168 = vpop.f32.mrb[0].mxu0
    %10169 = vmatprep.mubr.bf16.mxu0 %v9833
    %10170 = vmatmul.mubr.bf16.gmra.mrb[0].mxu0 %v9705
    %v10171 = vpop.f32.mrb[0].mxu0
    %v10172 = vadd.f32 0.0, %v10171
    %v10173 = vpop.f32.mrb[0].mxu0
    %v10174 = vpop.f32.mrb[0].mxu0
    %v10175 = vadd.f32 0.0, %v10174
    %v10176 = vpop.f32.mrb[0].mxu0
    %10177 = vmatprep.mubr.bf16.mxu0 %v9836
    %10178 = vmatmul.mubr.bf16.gmra.mrb[0].mxu0 %v9708
    %v10179 = vpop.f32.mrb[0].mxu0
    %v10180 = vadd.f32 0.0, %v10179
    %v10181 = vpop.f32.mrb[0].mxu0
    %v10182 = vpop.f32.mrb[0].mxu0
    %v10183 = vadd.f32 0.0, %v10182
    %v10184 = vpop.f32.mrb[0].mxu0
    %10185 = vmatprep.mubr.bf16.mxu0 %v9839
    %10186 = vmatmul.mubr.bf16.gmra.mrb[0].mxu0 %v9711
    %v10187 = vpop.f32.mrb[0].mxu0
    %v10188 = vadd.f32 0.0, %v10187
    %v10189 = vpop.f32.mrb[0].mxu0
    %v10190 = vpop.f32.mrb[0].mxu0
    %v10191 = vadd.f32 0.0, %v10190
    %v10192 = vpop.f32.mrb[0].mxu0
    %10193 = vdwg.mxu0
    %10194 = vmatprep.subr.bf16.mxu0 0
    %10195 = vmatpush1.bf16.msra.mxu0 %v9965
    %10196 = vmatprep.subr.bf16.mxu0 0
    %10197 = vmatpush1.bf16.msra.mxu0 %v9966
    %10198 = vmatprep.subr.bf16.mxu0 0
    %10199 = vmatpush1.bf16.msra.mxu0 0
    %10200 = vmatprep.subr.bf16.mxu0 0
    %10201 = vmatpush1.bf16.msra.mxu0 0
    %10202 = vmatprep.subr.bf16.mxu0 0
    %10203 = vmatpush1.bf16.msra.mxu0 0
    %10204 = vmatprep.subr.bf16.mxu0 0
    %10205 = vmatpush1.bf16.msra.mxu0 0
    %10206 = vmatprep.subr.bf16.mxu0 0
    %10207 = vmatpush1.bf16.msra.mxu0 0
    %10208 = vmatprep.subr.bf16.mxu0 0
    %10209 = vmatpush1.bf16.msra.mxu0 0
    %10210 = vmatprep.subr.bf16.mxu0 0
    %10211 = vmatpush1.bf16.msra.mxu0 0
    %10212 = vmatprep.subr.bf16.mxu0 0
    %10213 = vmatpush1.bf16.msra.mxu0 0
    %10214 = vmatprep.subr.bf16.mxu0 0
    %10215 = vmatpush1.bf16.msra.mxu0 0
    %10216 = vmatprep.subr.bf16.mxu0 0
    %10217 = vmatpush1.bf16.msra.mxu0 0
    %10218 = vmatprep.subr.bf16.mxu0 0
    %10219 = vmatpush1.bf16.msra.mxu0 0
    %10220 = vmatprep.subr.bf16.mxu0 0
    %10221 = vmatpush1.bf16.msra.mxu0 0
    %10222 = vmatprep.subr.bf16.mxu0 0
    %10223 = vmatpush1.bf16.msra.mxu0 0
    %10224 = vmatprep.subr.bf16.mxu0 0
    %10225 = vmatpush1.bf16.msra.mxu0 0
    %10226 = vmatprep.mubr.bf16.mxu0 0
    %10227 = vmatmul.mubr.bf16.gmra.mrb[0].mxu0 %v9986
    %v10228 = vpop.f32.mrb[0].mxu0
    %v10229 = vadd.f32 %v10068, %v10228
    %v10230 = vpop.f32.mrb[0].mxu0
    %v10231 = vpop.f32.mrb[0].mxu0
    %v10232 = vadd.f32 %v10071, %v10231
    %v10233 = vpop.f32.mrb[0].mxu0
    %10234 = vmatprep.mubr.bf16.mxu0 0
    %10235 = vmatmul.mubr.bf16.gmra.mrb[0].mxu0 %v9989
    %v10236 = vpop.f32.mrb[0].mxu0
    %v10237 = vadd.f32 %v10076, %v10236
    %v10238 = vpop.f32.mrb[0].mxu0
    %v10239 = vpop.f32.mrb[0].mxu0
    %v10240 = vadd.f32 %v10079, %v10239
    %v10241 = vpop.f32.mrb[0].mxu0
    %10242 = vmatprep.mubr.bf16.mxu0 0
    %10243 = vmatmul.mubr.bf16.gmra.mrb[0].mxu0 %v9992
    %v10244 = vpop.f32.mrb[0].mxu0
    %v10245 = vadd.f32 %v10084, %v10244
    %v10246 = vpop.f32.mrb[0].mxu0
    %v10247 = vpop.f32.mrb[0].mxu0
    %v10248 = vadd.f32 %v10087, %v10247
    %v10249 = vpop.f32.mrb[0].mxu0
    %10250 = vmatprep.mubr.bf16.mxu0 0
    %10251 = vmatmul.mubr.bf16.gmra.mrb[0].mxu0 %v9995
    %v10252 = vpop.f32.mrb[0].mxu0
    %v10253 = vadd.f32 %v10092, %v10252
    %v10254 = vpop.f32.mrb[0].mxu0
    %v10255 = vpop.f32.mrb[0].mxu0
    %v10256 = vadd.f32 %v10095, %v10255
    %v10257 = vpop.f32.mrb[0].mxu0
    %10258 = vmatprep.mubr.bf16.mxu0 0
    %10259 = vmatmul.mubr.bf16.gmra.mrb[0].mxu0 %v9998
    %v10260 = vpop.f32.mrb[0].mxu0
    %v10261 = vadd.f32 %v10100, %v10260
    %v10262 = vpop.f32.mrb[0].mxu0
    %v10263 = vpop.f32.mrb[0].mxu0
    %v10264 = vadd.f32 %v10103, %v10263
    %v10265 = vpop.f32.mrb[0].mxu0
    %10266 = vmatprep.mubr.bf16.mxu0 0
    %10267 = vmatmul.mubr.bf16.gmra.mrb[0].mxu0 %v10001
    %v10268 = vpop.f32.mrb[0].mxu0
    %v10269 = vadd.f32 %v10108, %v10268
    %v10270 = vpop.f32.mrb[0].mxu0
    %v10271 = vpop.f32.mrb[0].mxu0
    %v10272 = vadd.f32 %v10111, %v10271
    %v10273 = vpop.f32.mrb[0].mxu0
    %10274 = vmatprep.mubr.bf16.mxu0 0
    %10275 = vmatmul.mubr.bf16.gmra.mrb[0].mxu0 %v10004
    %v10276 = vpop.f32.mrb[0].mxu0
    %v10277 = vadd.f32 %v10116, %v10276
    %v10278 = vpop.f32.mrb[0].mxu0
    %v10279 = vpop.f32.mrb[0].mxu0
    %v10280 = vadd.f32 %v10119, %v10279
    %v10281 = vpop.f32.mrb[0].mxu0
    %10282 = vmatprep.mubr.bf16.mxu0 0
    %10283 = vmatmul.mubr.bf16.gmra.mrb[0].mxu0 %v10007
    %v10284 = vpop.f32.mrb[0].mxu0
    %v10285 = vadd.f32 %v10124, %v10284
    %v10286 = vpop.f32.mrb[0].mxu0
    %v10287 = vpop.f32.mrb[0].mxu0
    %v10288 = vadd.f32 %v10127, %v10287
    %v10289 = vpop.f32.mrb[0].mxu0
    %10290 = vmatprep.mubr.bf16.mxu0 0
    %10291 = vmatmul.mubr.bf16.gmra.mrb[0].mxu0 %v10010
    %v10292 = vpop.f32.mrb[0].mxu0
    %v10293 = vadd.f32 %v10132, %v10292
    %v10294 = vpop.f32.mrb[0].mxu0
    %v10295 = vpop.f32.mrb[0].mxu0
    %v10296 = vadd.f32 %v10135, %v10295
    %v10297 = vpop.f32.mrb[0].mxu0
    %10298 = vmatprep.mubr.bf16.mxu0 0
    %10299 = vmatmul.mubr.bf16.gmra.mrb[0].mxu0 %v10013
    %v10300 = vpop.f32.mrb[0].mxu0
    %v10301 = vadd.f32 %v10140, %v10300
    %v10302 = vpop.f32.mrb[0].mxu0
    %v10303 = vpop.f32.mrb[0].mxu0
    %v10304 = vadd.f32 %v10143, %v10303
    %v10305 = vpop.f32.mrb[0].mxu0
    %10306 = vmatprep.mubr.bf16.mxu0 0
    %10307 = vmatmul.mubr.bf16.gmra.mrb[0].mxu0 %v10016
    %v10308 = vpop.f32.mrb[0].mxu0
    %v10309 = vadd.f32 %v10148, %v10308
    %v10310 = vpop.f32.mrb[0].mxu0
    %v10311 = vpop.f32.mrb[0].mxu0
    %v10312 = vadd.f32 %v10151, %v10311
    %v10313 = vpop.f32.mrb[0].mxu0
    %10314 = vmatprep.mubr.bf16.mxu0 0
    %10315 = vmatmul.mubr.bf16.gmra.mrb[0].mxu0 %v10019
    %v10316 = vpop.f32.mrb[0].mxu0
    %v10317 = vadd.f32 %v10156, %v10316
    %v10318 = vpop.f32.mrb[0].mxu0
    %v10319 = vpop.f32.mrb[0].mxu0
    %v10320 = vadd.f32 %v10159, %v10319
    %v10321 = vpop.f32.mrb[0].mxu0
    %10322 = vmatprep.mubr.bf16.mxu0 0
    %10323 = vmatmul.mubr.bf16.gmra.mrb[0].mxu0 %v10022
    %v10324 = vpop.f32.mrb[0].mxu0
    %v10325 = vadd.f32 %v10164, %v10324
    %v10326 = vpop.f32.mrb[0].mxu0
    %v10327 = vpop.f32.mrb[0].mxu0
    %v10328 = vadd.f32 %v10167, %v10327
    %v10329 = vpop.f32.mrb[0].mxu0
    %10330 = vmatprep.mubr.bf16.mxu0 0
    %10331 = vmatmul.mubr.bf16.gmra.mrb[0].mxu0 %v10025
    %v10332 = vpop.f32.mrb[0].mxu0
    %v10333 = vadd.f32 %v10172, %v10332
    %v10334 = vpop.f32.mrb[0].mxu0
    %v10335 = vpop.f32.mrb[0].mxu0
    %v10336 = vadd.f32 %v10175, %v10335
    %v10337 = vpop.f32.mrb[0].mxu0
    %10338 = vmatprep.mubr.bf16.mxu0 0
    %10339 = vmatmul.mubr.bf16.gmra.mrb[0].mxu0 %v10028
    %v10340 = vpop.f32.mrb[0].mxu0
    %v10341 = vadd.f32 %v10180, %v10340
    %v10342 = vpop.f32.mrb[0].mxu0
    %v10343 = vpop.f32.mrb[0].mxu0
    %v10344 = vadd.f32 %v10183, %v10343
    %v10345 = vpop.f32.mrb[0].mxu0
    %10346 = vmatprep.mubr.bf16.mxu0 0
    %10347 = vmatmul.mubr.bf16.gmra.mrb[0].mxu0 %v10031
    %v10348 = vpop.f32.mrb[0].mxu0
    %v10349 = vadd.f32 %v10188, %v10348
    %v10350 = vpop.f32.mrb[0].mxu0
    %v10351 = vpop.f32.mrb[0].mxu0
    %v10352 = vadd.f32 %v10191, %v10351
    %v10353 = vpop.f32.mrb[0].mxu0
    %10354 = vdwg.mxu0
    %vm10355 = vcmp.gt.f32.partialorder %v10229, 0.0
    %vm10356 = vcmp.gt.f32.partialorder %v10232, 0.0
    %vm10357 = vcmp.gt.f32.partialorder %v10237, 0.0
    %vm10358 = vcmp.gt.f32.partialorder %v10240, 0.0
    %vm10359 = vcmp.gt.f32.partialorder %v10245, 0.0
    %vm10360 = vcmp.gt.f32.partialorder %v10248, 0.0
    %vm10361 = vcmp.gt.f32.partialorder %v10253, 0.0
    %vm10362 = vcmp.gt.f32.partialorder %v10256, 0.0
    %vm10363 = vcmp.gt.f32.partialorder %v10261, 0.0
    %vm10364 = vcmp.gt.f32.partialorder %v10264, 0.0
    %vm10365 = vcmp.gt.f32.partialorder %v10269, 0.0
    %vm10366 = vcmp.gt.f32.partialorder %v10272, 0.0
    %vm10367 = vcmp.gt.f32.partialorder %v10277, 0.0
    %vm10368 = vcmp.gt.f32.partialorder %v10280, 0.0
    %vm10369 = vcmp.gt.f32.partialorder %v10285, 0.0
    %vm10370 = vcmp.gt.f32.partialorder %v10288, 0.0
    %vm10371 = vcmp.gt.f32.partialorder %v10293, 0.0
    %vm10372 = vcmp.gt.f32.partialorder %v10296, 0.0
    %vm10373 = vcmp.gt.f32.partialorder %v10301, 0.0
    %vm10374 = vcmp.gt.f32.partialorder %v10304, 0.0
    %vm10375 = vcmp.gt.f32.partialorder %v10309, 0.0
    %vm10376 = vcmp.gt.f32.partialorder %v10312, 0.0
    %vm10377 = vcmp.gt.f32.partialorder %v10317, 0.0
    %vm10378 = vcmp.gt.f32.partialorder %v10320, 0.0
    %vm10379 = vcmp.gt.f32.partialorder %v10325, 0.0
    %vm10380 = vcmp.gt.f32.partialorder %v10328, 0.0
    %vm10381 = vcmp.gt.f32.partialorder %v10333, 0.0
    %vm10382 = vcmp.gt.f32.partialorder %v10336, 0.0
    %vm10383 = vcmp.gt.f32.partialorder %v10341, 0.0
    %vm10384 = vcmp.gt.f32.partialorder %v10344, 0.0
    %vm10385 = vcmp.gt.f32.partialorder %v10349, 0.0
    %vm10386 = vcmp.gt.f32.partialorder %v10352, 0.0
    %v10387 = vmul.f32 %v10229, 0.2
    %v10388 = vmul.f32 %v10232, 0.2
    %v10389 = vmul.f32 %v10237, 0.2
    %v10390 = vmul.f32 %v10240, 0.2
    %v10391 = vmul.f32 %v10245, 0.2
    %v10392 = vmul.f32 %v10248, 0.2
    %v10393 = vmul.f32 %v10253, 0.2
    %v10394 = vmul.f32 %v10256, 0.2
    %v10395 = vmul.f32 %v10261, 0.2
    %v10396 = vmul.f32 %v10264, 0.2
    %v10397 = vmul.f32 %v10269, 0.2
    %v10398 = vmul.f32 %v10272, 0.2
    %v10399 = vmul.f32 %v10277, 0.2
    %v10400 = vmul.f32 %v10280, 0.2
    %v10401 = vmul.f32 %v10285, 0.2
    %v10402 = vmul.f32 %v10288, 0.2
    %v10403 = vmul.f32 %v10293, 0.2
    %v10404 = vmul.f32 %v10296, 0.2
    %v10405 = vmul.f32 %v10301, 0.2
    %v10406 = vmul.f32 %v10304, 0.2
    %v10407 = vmul.f32 %v10309, 0.2
    %v10408 = vmul.f32 %v10312, 0.2
    %v10409 = vmul.f32 %v10317, 0.2
    %v10410 = vmul.f32 %v10320, 0.2
    %v10411 = vmul.f32 %v10325, 0.2
    %v10412 = vmul.f32 %v10328, 0.2
    %v10413 = vmul.f32 %v10333, 0.2
    %v10414 = vmul.f32 %v10336, 0.2
    %v10415 = vmul.f32 %v10341, 0.2
    %v10416 = vmul.f32 %v10344, 0.2
    %v10417 = vmul.f32 %v10349, 0.2
    %v10418 = vmul.f32 %v10352, 0.2
    %v10419 = vsel %vm10355, %v10229, %v10387
    %v10420 = vsel %vm10356, %v10232, %v10388
    %v10421 = vsel %vm10357, %v10237, %v10389
    %v10422 = vsel %vm10358, %v10240, %v10390
    %v10423 = vsel %vm10359, %v10245, %v10391
    %v10424 = vsel %vm10360, %v10248, %v10392
    %v10425 = vsel %vm10361, %v10253, %v10393
    %v10426 = vsel %vm10362, %v10256, %v10394
    %v10427 = vsel %vm10363, %v10261, %v10395
    %v10428 = vsel %vm10364, %v10264, %v10396
    %v10429 = vsel %vm10365, %v10269, %v10397
    %v10430 = vsel %vm10366, %v10272, %v10398
    %v10431 = vsel %vm10367, %v10277, %v10399
    %v10432 = vsel %vm10368, %v10280, %v10400
    %v10433 = vsel %vm10369, %v10285, %v10401
    %v10434 = vsel %vm10370, %v10288, %v10402
    %v10435 = vsel %vm10371, %v10293, %v10403
    %v10436 = vsel %vm10372, %v10296, %v10404
    %v10437 = vsel %vm10373, %v10301, %v10405
    %v10438 = vsel %vm10374, %v10304, %v10406
    %v10439 = vsel %vm10375, %v10309, %v10407
    %v10440 = vsel %vm10376, %v10312, %v10408
    %v10441 = vsel %vm10377, %v10317, %v10409
    %v10442 = vsel %vm10378, %v10320, %v10410
    %v10443 = vsel %vm10379, %v10325, %v10411
    %v10444 = vsel %vm10380, %v10328, %v10412
    %v10445 = vsel %vm10381, %v10333, %v10413
    %v10446 = vsel %vm10382, %v10336, %v10414
    %v10447 = vsel %vm10383, %v10341, %v10415
    %v10448 = vsel %vm10384, %v10344, %v10416
    %v10449 = vsel %vm10385, %v10349, %v10417
    %v10450 = vsel %vm10386, %v10352, %v10418
    %v10451 = vpack.c.bf16 %v10420, %v10419
    %v10452 = vpack.c.bf16 %v10422, %v10421
    %v10453 = vpack.c.bf16 %v10424, %v10423
    %v10454 = vpack.c.bf16 %v10426, %v10425
    %v10455 = vpack.c.bf16 %v10428, %v10427
    %v10456 = vpack.c.bf16 %v10430, %v10429
    %v10457 = vpack.c.bf16 %v10432, %v10431
    %v10458 = vpack.c.bf16 %v10434, %v10433
    %v10459 = vpack.c.bf16 %v10436, %v10435
    %v10460 = vpack.c.bf16 %v10438, %v10437
    %v10461 = vpack.c.bf16 %v10440, %v10439
    %v10462 = vpack.c.bf16 %v10442, %v10441
    %v10463 = vpack.c.bf16 %v10444, %v10443
    %v10464 = vpack.c.bf16 %v10446, %v10445
    %v10465 = vpack.c.bf16 %v10448, %v10447
    %v10466 = vpack.c.bf16 %v10450, %v10449
    %v10467 = vld [vmem:[%s3] sm:$0xf]
    %v10468 = vld [vmem:[%s3 + $0x4] sm:$0xf]
    %v10469 = vld [vmem:[%s3 + $0x8] sm:$0xf]
    %v10470 = vld [vmem:[%s3 + $0xc] sm:$0xf]
    %v10475 = vunpack.c.l.b16 %v10467
    %v10476 = vunpack.c.l.b16 %v10468
    %v10477 = vunpack.c.l.b16 %v10469
    %v10478 = vunpack.c.l.b16 %v10470
    %v10479 = vpack.c.b16 %v10476, %v10475
    %v10480 = vpack.c.b16 %v10478, %v10477
    %v10484 = vsel %vm2483, %v10451, 0
    %v10487 = vsel %vm2483, %v10452, 0
    %v10490 = vsel %vm2483, %v10453, 0
    %v10493 = vsel %vm2483, %v10454, 0
    %v10496 = vsel %vm2483, %v10455, 0
    %v10499 = vsel %vm2483, %v10456, 0
    %v10502 = vsel %vm2483, %v10457, 0
    %v10505 = vsel %vm2483, %v10458, 0
    %v10508 = vsel %vm2483, %v10459, 0
    %v10511 = vsel %vm2483, %v10460, 0
    %v10514 = vsel %vm2483, %v10461, 0
    %v10517 = vsel %vm2483, %v10462, 0
    %v10520 = vsel %vm2483, %v10463, 0
    %v10523 = vsel %vm2483, %v10464, 0
    %v10526 = vsel %vm2483, %v10465, 0
    %v10529 = vsel %vm2483, %v10466, 0
    %10531 = vmatprep.subr.bf16.mxu0 0
    %10532 = vmatpush1.bf16.msra.mxu0 %v10479
    %10533 = vmatprep.subr.bf16.mxu0 0
    %10534 = vmatpush1.bf16.msra.mxu0 %v10480
    %10535 = vmatprep.subr.bf16.mxu0 0
    %10536 = vmatpush1.bf16.msra.mxu0 0
    %10537 = vmatprep.subr.bf16.mxu0 0
    %10538 = vmatpush1.bf16.msra.mxu0 0
    %10539 = vmatprep.subr.bf16.mxu0 0
    %10540 = vmatpush1.bf16.msra.mxu0 0
    %10541 = vmatprep.subr.bf16.mxu0 0
    %10542 = vmatpush1.bf16.msra.mxu0 0
    %10543 = vmatprep.subr.bf16.mxu0 0
    %10544 = vmatpush1.bf16.msra.mxu0 0
    %10545 = vmatprep.subr.bf16.mxu0 0
    %10546 = vmatpush1.bf16.msra.mxu0 0
    %10547 = vmatprep.subr.bf16.mxu0 0
    %10548 = vmatpush1.bf16.msra.mxu0 0
    %10549 = vmatprep.subr.bf16.mxu0 0
    %10550 = vmatpush1.bf16.msra.mxu0 0
    %10551 = vmatprep.subr.bf16.mxu0 0
    %10552 = vmatpush1.bf16.msra.mxu0 0
    %10553 = vmatprep.subr.bf16.mxu0 0
    %10554 = vmatpush1.bf16.msra.mxu0 0
    %10555 = vmatprep.subr.bf16.mxu0 0
    %10556 = vmatpush1.bf16.msra.mxu0 0
    %10557 = vmatprep.subr.bf16.mxu0 0
    %10558 = vmatpush1.bf16.msra.mxu0 0
    %10559 = vmatprep.subr.bf16.mxu0 0
    %10560 = vmatpush1.bf16.msra.mxu0 0
    %10561 = vmatprep.subr.bf16.mxu0 0
    %10562 = vmatpush1.bf16.msra.mxu0 0
    %10563 = vmatprep.mubr.bf16.mxu0 0
    %10564 = vmatmul.mubr.bf16.gmra.mrb[0].mxu0 %v10484
    %v10565 = vpop.f32.mrb[0].mxu0
    %v10566 = vadd.f32 0.0, %v10565
    %v10567 = vpop.f32.mrb[0].mxu0
    %v10568 = vpop.f32.mrb[0].mxu0
    %v10569 = vadd.f32 0.0, %v10568
    %v10570 = vpop.f32.mrb[0].mxu0
    %10571 = vmatprep.mubr.bf16.mxu0 0
    %10572 = vmatmul.mubr.bf16.gmra.mrb[0].mxu0 %v10487
    %v10573 = vpop.f32.mrb[0].mxu0
    %v10574 = vadd.f32 0.0, %v10573
    %v10575 = vpop.f32.mrb[0].mxu0
    %v10576 = vpop.f32.mrb[0].mxu0
    %v10577 = vadd.f32 0.0, %v10576
    %v10578 = vpop.f32.mrb[0].mxu0
    %10579 = vmatprep.mubr.bf16.mxu0 0
    %10580 = vmatmul.mubr.bf16.gmra.mrb[0].mxu0 %v10490
    %v10581 = vpop.f32.mrb[0].mxu0
    %v10582 = vadd.f32 0.0, %v10581
    %v10583 = vpop.f32.mrb[0].mxu0
    %v10584 = vpop.f32.mrb[0].mxu0
    %v10585 = vadd.f32 0.0, %v10584
    %v10586 = vpop.f32.mrb[0].mxu0
    %10587 = vmatprep.mubr.bf16.mxu0 0
    %10588 = vmatmul.mubr.bf16.gmra.mrb[0].mxu0 %v10493
    %v10589 = vpop.f32.mrb[0].mxu0
    %v10590 = vadd.f32 0.0, %v10589
    %v10591 = vpop.f32.mrb[0].mxu0
    %v10592 = vpop.f32.mrb[0].mxu0
    %v10593 = vadd.f32 0.0, %v10592
    %v10594 = vpop.f32.mrb[0].mxu0
    %10595 = vmatprep.mubr.bf16.mxu0 0
    %10596 = vmatmul.mubr.bf16.gmra.mrb[0].mxu0 %v10496
    %v10597 = vpop.f32.mrb[0].mxu0
    %v10598 = vadd.f32 0.0, %v10597
    %v10599 = vpop.f32.mrb[0].mxu0
    %v10600 = vpop.f32.mrb[0].mxu0
    %v10601 = vadd.f32 0.0, %v10600
    %v10602 = vpop.f32.mrb[0].mxu0
    %10603 = vmatprep.mubr.bf16.mxu0 0
    %10604 = vmatmul.mubr.bf16.gmra.mrb[0].mxu0 %v10499
    %v10605 = vpop.f32.mrb[0].mxu0
    %v10606 = vadd.f32 0.0, %v10605
    %v10607 = vpop.f32.mrb[0].mxu0
    %v10608 = vpop.f32.mrb[0].mxu0
    %v10609 = vadd.f32 0.0, %v10608
    %v10610 = vpop.f32.mrb[0].mxu0
    %10611 = vmatprep.mubr.bf16.mxu0 0
    %10612 = vmatmul.mubr.bf16.gmra.mrb[0].mxu0 %v10502
    %v10613 = vpop.f32.mrb[0].mxu0
    %v10614 = vadd.f32 0.0, %v10613
    %v10615 = vpop.f32.mrb[0].mxu0
    %v10616 = vpop.f32.mrb[0].mxu0
    %v10617 = vadd.f32 0.0, %v10616
    %v10618 = vpop.f32.mrb[0].mxu0
    %10619 = vmatprep.mubr.bf16.mxu0 0
    %10620 = vmatmul.mubr.bf16.gmra.mrb[0].mxu0 %v10505
    %v10621 = vpop.f32.mrb[0].mxu0
    %v10622 = vadd.f32 0.0, %v10621
    %v10623 = vpop.f32.mrb[0].mxu0
    %v10624 = vpop.f32.mrb[0].mxu0
    %v10625 = vadd.f32 0.0, %v10624
    %v10626 = vpop.f32.mrb[0].mxu0
    %10627 = vmatprep.mubr.bf16.mxu0 0
    %10628 = vmatmul.mubr.bf16.gmra.mrb[0].mxu0 %v10508
    %v10629 = vpop.f32.mrb[0].mxu0
    %v10630 = vadd.f32 0.0, %v10629
    %v10631 = vpop.f32.mrb[0].mxu0
    %v10632 = vpop.f32.mrb[0].mxu0
    %v10633 = vadd.f32 0.0, %v10632
    %v10634 = vpop.f32.mrb[0].mxu0
    %10635 = vmatprep.mubr.bf16.mxu0 0
    %10636 = vmatmul.mubr.bf16.gmra.mrb[0].mxu0 %v10511
    %v10637 = vpop.f32.mrb[0].mxu0
    %v10638 = vadd.f32 0.0, %v10637
    %v10639 = vpop.f32.mrb[0].mxu0
    %v10640 = vpop.f32.mrb[0].mxu0
    %v10641 = vadd.f32 0.0, %v10640
    %v10642 = vpop.f32.mrb[0].mxu0
    %10643 = vmatprep.mubr.bf16.mxu0 0
    %10644 = vmatmul.mubr.bf16.gmra.mrb[0].mxu0 %v10514
    %v10645 = vpop.f32.mrb[0].mxu0
    %v10646 = vadd.f32 0.0, %v10645
    %v10647 = vpop.f32.mrb[0].mxu0
    %v10648 = vpop.f32.mrb[0].mxu0
    %v10649 = vadd.f32 0.0, %v10648
    %v10650 = vpop.f32.mrb[0].mxu0
    %10651 = vmatprep.mubr.bf16.mxu0 0
    %10652 = vmatmul.mubr.bf16.gmra.mrb[0].mxu0 %v10517
    %v10653 = vpop.f32.mrb[0].mxu0
    %v10654 = vadd.f32 0.0, %v10653
    %v10655 = vpop.f32.mrb[0].mxu0
    %v10656 = vpop.f32.mrb[0].mxu0
    %v10657 = vadd.f32 0.0, %v10656
    %v10658 = vpop.f32.mrb[0].mxu0
    %10659 = vmatprep.mubr.bf16.mxu0 0
    %10660 = vmatmul.mubr.bf16.gmra.mrb[0].mxu0 %v10520
    %v10661 = vpop.f32.mrb[0].mxu0
    %v10662 = vadd.f32 0.0, %v10661
    %v10663 = vpop.f32.mrb[0].mxu0
    %v10664 = vpop.f32.mrb[0].mxu0
    %v10665 = vadd.f32 0.0, %v10664
    %v10666 = vpop.f32.mrb[0].mxu0
    %10667 = vmatprep.mubr.bf16.mxu0 0
    %10668 = vmatmul.mubr.bf16.gmra.mrb[0].mxu0 %v10523
    %v10669 = vpop.f32.mrb[0].mxu0
    %v10670 = vadd.f32 0.0, %v10669
    %v10671 = vpop.f32.mrb[0].mxu0
    %v10672 = vpop.f32.mrb[0].mxu0
    %v10673 = vadd.f32 0.0, %v10672
    %v10674 = vpop.f32.mrb[0].mxu0
    %10675 = vmatprep.mubr.bf16.mxu0 0
    %10676 = vmatmul.mubr.bf16.gmra.mrb[0].mxu0 %v10526
    %v10677 = vpop.f32.mrb[0].mxu0
    %v10678 = vadd.f32 0.0, %v10677
    %v10679 = vpop.f32.mrb[0].mxu0
    %v10680 = vpop.f32.mrb[0].mxu0
    %v10681 = vadd.f32 0.0, %v10680
    %v10682 = vpop.f32.mrb[0].mxu0
    %10683 = vmatprep.mubr.bf16.mxu0 0
    %10684 = vmatmul.mubr.bf16.gmra.mrb[0].mxu0 %v10529
    %v10685 = vpop.f32.mrb[0].mxu0
    %v10686 = vadd.f32 0.0, %v10685
    %v10687 = vpop.f32.mrb[0].mxu0
    %v10688 = vpop.f32.mrb[0].mxu0
    %v10689 = vadd.f32 0.0, %v10688
    %v10690 = vpop.f32.mrb[0].mxu0
    %10691 = vdwg.mxu0
    %v10692 = vadd.f32 %v7168, %v10566
    %v10693 = vadd.f32 %v7169, %v10569
    %v10694 = vadd.f32 %v7170, %v10574
    %v10695 = vadd.f32 %v7171, %v10577
    %v10696 = vadd.f32 %v7172, %v10582
    %v10697 = vadd.f32 %v7173, %v10585
    %v10698 = vadd.f32 %v7174, %v10590
    %v10699 = vadd.f32 %v7175, %v10593
    %v10700 = vadd.f32 %v7176, %v10598
    %v10701 = vadd.f32 %v7177, %v10601
    %v10702 = vadd.f32 %v7178, %v10606
    %v10703 = vadd.f32 %v7179, %v10609
    %v10704 = vadd.f32 %v7180, %v10614
    %v10705 = vadd.f32 %v7181, %v10617
    %v10706 = vadd.f32 %v7182, %v10622
    %v10707 = vadd.f32 %v7183, %v10625
    %v10708 = vadd.f32 %v7184, %v10630
    %v10709 = vadd.f32 %v7185, %v10633
    %v10710 = vadd.f32 %v7186, %v10638
    %v10711 = vadd.f32 %v7187, %v10641
    %v10712 = vadd.f32 %v7188, %v10646
    %v10713 = vadd.f32 %v7189, %v10649
    %v10714 = vadd.f32 %v7190, %v10654
    %v10715 = vadd.f32 %v7191, %v10657
    %v10716 = vadd.f32 %v7192, %v10662
    %v10717 = vadd.f32 %v7193, %v10665
    %v10718 = vadd.f32 %v7194, %v10670
    %v10719 = vadd.f32 %v7195, %v10673
    %v10720 = vadd.f32 %v7196, %v10678
    %v10721 = vadd.f32 %v7197, %v10681
    %v10722 = vadd.f32 %v7198, %v10686
    %v10723 = vadd.f32 %v7199, %v10689
    %v10724 = vpack.c.bf16 %v10693, %v10692
    %v10725 = vpack.c.bf16 %v10695, %v10694
    %v10726 = vpack.c.bf16 %v10697, %v10696
    %v10727 = vpack.c.bf16 %v10699, %v10698
    %v10728 = vpack.c.bf16 %v10701, %v10700
    %v10729 = vpack.c.bf16 %v10703, %v10702
    %v10730 = vpack.c.bf16 %v10705, %v10704
    %v10731 = vpack.c.bf16 %v10707, %v10706
    %v10732 = vpack.c.bf16 %v10709, %v10708
    %v10733 = vpack.c.bf16 %v10711, %v10710
    %v10734 = vpack.c.bf16 %v10713, %v10712
    %v10735 = vpack.c.bf16 %v10715, %v10714
    %v10736 = vpack.c.bf16 %v10717, %v10716
    %v10737 = vpack.c.bf16 %v10719, %v10718
    %v10738 = vpack.c.bf16 %v10721, %v10720
    %v10739 = vpack.c.bf16 %v10723, %v10722
    %v10740 = vld [vmem:[%s3624] sm:$0xf]
    %v10741 = vld [vmem:[%s3624 + $0x4] sm:$0xf]
    %v10742 = vld [vmem:[%s3624 + $0x8] sm:$0xf]
    %v10743 = vld [vmem:[%s3624 + $0xc] sm:$0xf]
    %v10744 = vld [vmem:[%s3624 + $0x10] sm:$0xf]
    %v10745 = vld [vmem:[%s3624 + $0x14] sm:$0xf]
    %v10746 = vld [vmem:[%s3624 + $0x18] sm:$0xf]
    %v10747 = vld [vmem:[%s3624 + $0x1c] sm:$0xf]
    %v10756 = vunpack.c.l.b16 %v10740
    %v10757 = vunpack.c.l.b16 %v10741
    %v10758 = vunpack.c.l.b16 %v10742
    %v10759 = vunpack.c.l.b16 %v10743
    %v10760 = vunpack.c.l.b16 %v10744
    %v10761 = vunpack.c.l.b16 %v10745
    %v10762 = vunpack.c.l.b16 %v10746
    %v10763 = vunpack.c.l.b16 %v10747
    %v10764 = vpack.c.b16 %v10757, %v10756
    %v10765 = vpack.c.b16 %v10759, %v10758
    %v10766 = vpack.c.b16 %v10761, %v10760
    %v10767 = vpack.c.b16 %v10763, %v10762
    %v10773 = vsel %vm122, %v10724, 0
    %v10776 = vsel %vm122, %v10725, 0
    %v10779 = vsel %vm122, %v10726, 0
    %v10782 = vsel %vm122, %v10727, 0
    %v10785 = vsel %vm122, %v10728, 0
    %v10788 = vsel %vm122, %v10729, 0
    %v10791 = vsel %vm122, %v10730, 0
    %v10794 = vsel %vm122, %v10731, 0
    %v10797 = vsel %vm122, %v10732, 0
    %v10800 = vsel %vm122, %v10733, 0
    %v10803 = vsel %vm122, %v10734, 0
    %v10806 = vsel %vm122, %v10735, 0
    %v10809 = vsel %vm122, %v10736, 0
    %v10812 = vsel %vm122, %v10737, 0
    %v10815 = vsel %vm122, %v10738, 0
    %v10818 = vsel %vm122, %v10739, 0
    %10820 = vmatprep.subr.bf16.mxu0 0
    %10821 = vmatpush1.bf16.msra.mxu0 %v10764
    %10822 = vmatprep.subr.bf16.mxu0 0
    %10823 = vmatpush1.bf16.msra.mxu0 %v10765
    %10824 = vmatprep.subr.bf16.mxu0 0
    %10825 = vmatpush1.bf16.msra.mxu0 %v10766
    %10826 = vmatprep.subr.bf16.mxu0 0
    %10827 = vmatpush1.bf16.msra.mxu0 %v10767
    %10828 = vmatprep.subr.bf16.mxu0 0
    %10829 = vmatpush1.bf16.msra.mxu0 0
    %10830 = vmatprep.subr.bf16.mxu0 0
    %10831 = vmatpush1.bf16.msra.mxu0 0
    %10832 = vmatprep.subr.bf16.mxu0 0
    %10833 = vmatpush1.bf16.msra.mxu0 0
    %10834 = vmatprep.subr.bf16.mxu0 0
    %10835 = vmatpush1.bf16.msra.mxu0 0
    %10836 = vmatprep.subr.bf16.mxu0 0
    %10837 = vmatpush1.bf16.msra.mxu0 0
    %10838 = vmatprep.subr.bf16.mxu0 0
    %10839 = vmatpush1.bf16.msra.mxu0 0
    %10840 = vmatprep.subr.bf16.mxu0 0
    %10841 = vmatpush1.bf16.msra.mxu0 0
    %10842 = vmatprep.subr.bf16.mxu0 0
    %10843 = vmatpush1.bf16.msra.mxu0 0
    %10844 = vmatprep.subr.bf16.mxu0 0
    %10845 = vmatpush1.bf16.msra.mxu0 0
    %10846 = vmatprep.subr.bf16.mxu0 0
    %10847 = vmatpush1.bf16.msra.mxu0 0
    %10848 = vmatprep.subr.bf16.mxu0 0
    %10849 = vmatpush1.bf16.msra.mxu0 0
    %10850 = vmatprep.subr.bf16.mxu0 0
    %10851 = vmatpush1.bf16.msra.mxu0 0
    %10852 = vmatprep.mubr.bf16.mxu0 0
    %10853 = vmatmul.mubr.bf16.gmra.mrb[0].mxu0 %v10773
    %v10854 = vpop.f32.mrb[0].mxu0
    %v10855 = vadd.f32 0.0, %v10854
    %v10856 = vpop.f32.mrb[0].mxu0
    %v10857 = vpop.f32.mrb[0].mxu0
    %v10858 = vadd.f32 0.0, %v10857
    %v10859 = vpop.f32.mrb[0].mxu0
    %10860 = vmatprep.mubr.bf16.mxu0 0
    %10861 = vmatmul.mubr.bf16.gmra.mrb[0].mxu0 %v10776
    %v10862 = vpop.f32.mrb[0].mxu0
    %v10863 = vadd.f32 0.0, %v10862
    %v10864 = vpop.f32.mrb[0].mxu0
    %v10865 = vpop.f32.mrb[0].mxu0
    %v10866 = vadd.f32 0.0, %v10865
    %v10867 = vpop.f32.mrb[0].mxu0
    %10868 = vmatprep.mubr.bf16.mxu0 0
    %10869 = vmatmul.mubr.bf16.gmra.mrb[0].mxu0 %v10779
    %v10870 = vpop.f32.mrb[0].mxu0
    %v10871 = vadd.f32 0.0, %v10870
    %v10872 = vpop.f32.mrb[0].mxu0
    %v10873 = vpop.f32.mrb[0].mxu0
    %v10874 = vadd.f32 0.0, %v10873
    %v10875 = vpop.f32.mrb[0].mxu0
    %10876 = vmatprep.mubr.bf16.mxu0 0
    %10877 = vmatmul.mubr.bf16.gmra.mrb[0].mxu0 %v10782
    %v10878 = vpop.f32.mrb[0].mxu0
    %v10879 = vadd.f32 0.0, %v10878
    %v10880 = vpop.f32.mrb[0].mxu0
    %v10881 = vpop.f32.mrb[0].mxu0
    %v10882 = vadd.f32 0.0, %v10881
    %v10883 = vpop.f32.mrb[0].mxu0
    %10884 = vmatprep.mubr.bf16.mxu0 0
    %10885 = vmatmul.mubr.bf16.gmra.mrb[0].mxu0 %v10785
    %v10886 = vpop.f32.mrb[0].mxu0
    %v10887 = vadd.f32 0.0, %v10886
    %v10888 = vpop.f32.mrb[0].mxu0
    %v10889 = vpop.f32.mrb[0].mxu0
    %v10890 = vadd.f32 0.0, %v10889
    %v10891 = vpop.f32.mrb[0].mxu0
    %10892 = vmatprep.mubr.bf16.mxu0 0
    %10893 = vmatmul.mubr.bf16.gmra.mrb[0].mxu0 %v10788
    %v10894 = vpop.f32.mrb[0].mxu0
    %v10895 = vadd.f32 0.0, %v10894
    %v10896 = vpop.f32.mrb[0].mxu0
    %v10897 = vpop.f32.mrb[0].mxu0
    %v10898 = vadd.f32 0.0, %v10897
    %v10899 = vpop.f32.mrb[0].mxu0
    %10900 = vmatprep.mubr.bf16.mxu0 0
    %10901 = vmatmul.mubr.bf16.gmra.mrb[0].mxu0 %v10791
    %v10902 = vpop.f32.mrb[0].mxu0
    %v10903 = vadd.f32 0.0, %v10902
    %v10904 = vpop.f32.mrb[0].mxu0
    %v10905 = vpop.f32.mrb[0].mxu0
    %v10906 = vadd.f32 0.0, %v10905
    %v10907 = vpop.f32.mrb[0].mxu0
    %10908 = vmatprep.mubr.bf16.mxu0 0
    %10909 = vmatmul.mubr.bf16.gmra.mrb[0].mxu0 %v10794
    %v10910 = vpop.f32.mrb[0].mxu0
    %v10911 = vadd.f32 0.0, %v10910
    %v10912 = vpop.f32.mrb[0].mxu0
    %v10913 = vpop.f32.mrb[0].mxu0
    %v10914 = vadd.f32 0.0, %v10913
    %v10915 = vpop.f32.mrb[0].mxu0
    %10916 = vmatprep.mubr.bf16.mxu0 0
    %10917 = vmatmul.mubr.bf16.gmra.mrb[0].mxu0 %v10797
    %v10918 = vpop.f32.mrb[0].mxu0
    %v10919 = vadd.f32 0.0, %v10918
    %v10920 = vpop.f32.mrb[0].mxu0
    %v10921 = vpop.f32.mrb[0].mxu0
    %v10922 = vadd.f32 0.0, %v10921
    %v10923 = vpop.f32.mrb[0].mxu0
    %10924 = vmatprep.mubr.bf16.mxu0 0
    %10925 = vmatmul.mubr.bf16.gmra.mrb[0].mxu0 %v10800
    %v10926 = vpop.f32.mrb[0].mxu0
    %v10927 = vadd.f32 0.0, %v10926
    %v10928 = vpop.f32.mrb[0].mxu0
    %v10929 = vpop.f32.mrb[0].mxu0
    %v10930 = vadd.f32 0.0, %v10929
    %v10931 = vpop.f32.mrb[0].mxu0
    %10932 = vmatprep.mubr.bf16.mxu0 0
    %10933 = vmatmul.mubr.bf16.gmra.mrb[0].mxu0 %v10803
    %v10934 = vpop.f32.mrb[0].mxu0
    %v10935 = vadd.f32 0.0, %v10934
    %v10936 = vpop.f32.mrb[0].mxu0
    %v10937 = vpop.f32.mrb[0].mxu0
    %v10938 = vadd.f32 0.0, %v10937
    %v10939 = vpop.f32.mrb[0].mxu0
    %10940 = vmatprep.mubr.bf16.mxu0 0
    %10941 = vmatmul.mubr.bf16.gmra.mrb[0].mxu0 %v10806
    %v10942 = vpop.f32.mrb[0].mxu0
    %v10943 = vadd.f32 0.0, %v10942
    %v10944 = vpop.f32.mrb[0].mxu0
    %v10945 = vpop.f32.mrb[0].mxu0
    %v10946 = vadd.f32 0.0, %v10945
    %v10947 = vpop.f32.mrb[0].mxu0
    %10948 = vmatprep.mubr.bf16.mxu0 0
    %10949 = vmatmul.mubr.bf16.gmra.mrb[0].mxu0 %v10809
    %v10950 = vpop.f32.mrb[0].mxu0
    %v10951 = vadd.f32 0.0, %v10950
    %v10952 = vpop.f32.mrb[0].mxu0
    %v10953 = vpop.f32.mrb[0].mxu0
    %v10954 = vadd.f32 0.0, %v10953
    %v10955 = vpop.f32.mrb[0].mxu0
    %10956 = vmatprep.mubr.bf16.mxu0 0
    %10957 = vmatmul.mubr.bf16.gmra.mrb[0].mxu0 %v10812
    %v10958 = vpop.f32.mrb[0].mxu0
    %v10959 = vadd.f32 0.0, %v10958
    %v10960 = vpop.f32.mrb[0].mxu0
    %v10961 = vpop.f32.mrb[0].mxu0
    %v10962 = vadd.f32 0.0, %v10961
    %v10963 = vpop.f32.mrb[0].mxu0
    %10964 = vmatprep.mubr.bf16.mxu0 0
    %10965 = vmatmul.mubr.bf16.gmra.mrb[0].mxu0 %v10815
    %v10966 = vpop.f32.mrb[0].mxu0
    %v10967 = vadd.f32 0.0, %v10966
    %v10968 = vpop.f32.mrb[0].mxu0
    %v10969 = vpop.f32.mrb[0].mxu0
    %v10970 = vadd.f32 0.0, %v10969
    %v10971 = vpop.f32.mrb[0].mxu0
    %10972 = vmatprep.mubr.bf16.mxu0 0
    %10973 = vmatmul.mubr.bf16.gmra.mrb[0].mxu0 %v10818
    %v10974 = vpop.f32.mrb[0].mxu0
    %v10975 = vadd.f32 0.0, %v10974
    %v10976 = vpop.f32.mrb[0].mxu0
    %v10977 = vpop.f32.mrb[0].mxu0
    %v10978 = vadd.f32 0.0, %v10977
    %v10979 = vpop.f32.mrb[0].mxu0
    %10980 = vdwg.mxu0
    %vm10981 = vcmp.gt.f32.partialorder %v10855, 0.0
    %vm10982 = vcmp.gt.f32.partialorder %v10858, 0.0
    %vm10983 = vcmp.gt.f32.partialorder %v10863, 0.0
    %vm10984 = vcmp.gt.f32.partialorder %v10866, 0.0
    %vm10985 = vcmp.gt.f32.partialorder %v10871, 0.0
    %vm10986 = vcmp.gt.f32.partialorder %v10874, 0.0
    %vm10987 = vcmp.gt.f32.partialorder %v10879, 0.0
    %vm10988 = vcmp.gt.f32.partialorder %v10882, 0.0
    %vm10989 = vcmp.gt.f32.partialorder %v10887, 0.0
    %vm10990 = vcmp.gt.f32.partialorder %v10890, 0.0
    %vm10991 = vcmp.gt.f32.partialorder %v10895, 0.0
    %vm10992 = vcmp.gt.f32.partialorder %v10898, 0.0
    %vm10993 = vcmp.gt.f32.partialorder %v10903, 0.0
    %vm10994 = vcmp.gt.f32.partialorder %v10906, 0.0
    %vm10995 = vcmp.gt.f32.partialorder %v10911, 0.0
    %vm10996 = vcmp.gt.f32.partialorder %v10914, 0.0
    %vm10997 = vcmp.gt.f32.partialorder %v10919, 0.0
    %vm10998 = vcmp.gt.f32.partialorder %v10922, 0.0
    %vm10999 = vcmp.gt.f32.partialorder %v10927, 0.0
    %vm11000 = vcmp.gt.f32.partialorder %v10930, 0.0
    %vm11001 = vcmp.gt.f32.partialorder %v10935, 0.0
    %vm11002 = vcmp.gt.f32.partialorder %v10938, 0.0
    %vm11003 = vcmp.gt.f32.partialorder %v10943, 0.0
    %vm11004 = vcmp.gt.f32.partialorder %v10946, 0.0
    %vm11005 = vcmp.gt.f32.partialorder %v10951, 0.0
    %vm11006 = vcmp.gt.f32.partialorder %v10954, 0.0
    %vm11007 = vcmp.gt.f32.partialorder %v10959, 0.0
    %vm11008 = vcmp.gt.f32.partialorder %v10962, 0.0
    %vm11009 = vcmp.gt.f32.partialorder %v10967, 0.0
    %vm11010 = vcmp.gt.f32.partialorder %v10970, 0.0
    %vm11011 = vcmp.gt.f32.partialorder %v10975, 0.0
    %vm11012 = vcmp.gt.f32.partialorder %v10978, 0.0
    %v11013 = vmul.f32 %v10855, 0.2
    %v11014 = vmul.f32 %v10858, 0.2
    %v11015 = vmul.f32 %v10863, 0.2
    %v11016 = vmul.f32 %v10866, 0.2
    %v11017 = vmul.f32 %v10871, 0.2
    %v11018 = vmul.f32 %v10874, 0.2
    %v11019 = vmul.f32 %v10879, 0.2
    %v11020 = vmul.f32 %v10882, 0.2
    %v11021 = vmul.f32 %v10887, 0.2
    %v11022 = vmul.f32 %v10890, 0.2
    %v11023 = vmul.f32 %v10895, 0.2
    %v11024 = vmul.f32 %v10898, 0.2
    %v11025 = vmul.f32 %v10903, 0.2
    %v11026 = vmul.f32 %v10906, 0.2
    %v11027 = vmul.f32 %v10911, 0.2
    %v11028 = vmul.f32 %v10914, 0.2
    %v11029 = vmul.f32 %v10919, 0.2
    %v11030 = vmul.f32 %v10922, 0.2
    %v11031 = vmul.f32 %v10927, 0.2
    %v11032 = vmul.f32 %v10930, 0.2
    %v11033 = vmul.f32 %v10935, 0.2
    %v11034 = vmul.f32 %v10938, 0.2
    %v11035 = vmul.f32 %v10943, 0.2
    %v11036 = vmul.f32 %v10946, 0.2
    %v11037 = vmul.f32 %v10951, 0.2
    %v11038 = vmul.f32 %v10954, 0.2
    %v11039 = vmul.f32 %v10959, 0.2
    %v11040 = vmul.f32 %v10962, 0.2
    %v11041 = vmul.f32 %v10967, 0.2
    %v11042 = vmul.f32 %v10970, 0.2
    %v11043 = vmul.f32 %v10975, 0.2
    %v11044 = vmul.f32 %v10978, 0.2
    %v11045 = vsel %vm10981, %v10855, %v11013
    %v11046 = vsel %vm10982, %v10858, %v11014
    %v11047 = vsel %vm10983, %v10863, %v11015
    %v11048 = vsel %vm10984, %v10866, %v11016
    %v11049 = vsel %vm10985, %v10871, %v11017
    %v11050 = vsel %vm10986, %v10874, %v11018
    %v11051 = vsel %vm10987, %v10879, %v11019
    %v11052 = vsel %vm10988, %v10882, %v11020
    %v11053 = vsel %vm10989, %v10887, %v11021
    %v11054 = vsel %vm10990, %v10890, %v11022
    %v11055 = vsel %vm10991, %v10895, %v11023
    %v11056 = vsel %vm10992, %v10898, %v11024
    %v11057 = vsel %vm10993, %v10903, %v11025
    %v11058 = vsel %vm10994, %v10906, %v11026
    %v11059 = vsel %vm10995, %v10911, %v11027
    %v11060 = vsel %vm10996, %v10914, %v11028
    %v11061 = vsel %vm10997, %v10919, %v11029
    %v11062 = vsel %vm10998, %v10922, %v11030
    %v11063 = vsel %vm10999, %v10927, %v11031
    %v11064 = vsel %vm11000, %v10930, %v11032
    %v11065 = vsel %vm11001, %v10935, %v11033
    %v11066 = vsel %vm11002, %v10938, %v11034
    %v11067 = vsel %vm11003, %v10943, %v11035
    %v11068 = vsel %vm11004, %v10946, %v11036
    %v11069 = vsel %vm11005, %v10951, %v11037
    %v11070 = vsel %vm11006, %v10954, %v11038
    %v11071 = vsel %vm11007, %v10959, %v11039
    %v11072 = vsel %vm11008, %v10962, %v11040
    %v11073 = vsel %vm11009, %v10967, %v11041
    %v11074 = vsel %vm11010, %v10970, %v11042
    %v11075 = vsel %vm11011, %v10975, %v11043
    %v11076 = vsel %vm11012, %v10978, %v11044
    %v11077 = vpack.c.bf16 %v11046, %v11045
    %v11078 = vpack.c.bf16 %v11048, %v11047
    %v11079 = vpack.c.bf16 %v11050, %v11049
    %v11080 = vpack.c.bf16 %v11052, %v11051
    %v11081 = vpack.c.bf16 %v11054, %v11053
    %v11082 = vpack.c.bf16 %v11056, %v11055
    %v11083 = vpack.c.bf16 %v11058, %v11057
    %v11084 = vpack.c.bf16 %v11060, %v11059
    %v11085 = vpack.c.bf16 %v11062, %v11061
    %v11086 = vpack.c.bf16 %v11064, %v11063
    %v11087 = vpack.c.bf16 %v11066, %v11065
    %v11088 = vpack.c.bf16 %v11068, %v11067
    %v11089 = vpack.c.bf16 %v11070, %v11069
    %v11090 = vpack.c.bf16 %v11072, %v11071
    %v11091 = vpack.c.bf16 %v11074, %v11073
    %v11092 = vpack.c.bf16 %v11076, %v11075
    %v11094 = vshrl.u32 %v11077, 16
    %v11096 = vrot.slane %v11094, 7
    %v11097 = vshll.u32 %v11077, 16
    %v11099 = vor.u32 %v11096, %v11097
    %v11101 = vshrl.u32 %v11078, 16
    %v11103 = vrot.slane %v11101, 7
    %v11104 = vshll.u32 %v11078, 16
    %v11106 = vor.u32 %v11103, %v11104
    %v11108 = vshrl.u32 %v11079, 16
    %v11110 = vrot.slane %v11108, 7
    %v11111 = vshll.u32 %v11079, 16
    %v11113 = vor.u32 %v11110, %v11111
    %v11115 = vshrl.u32 %v11080, 16
    %v11117 = vrot.slane %v11115, 7
    %v11118 = vshll.u32 %v11080, 16
    %v11120 = vor.u32 %v11117, %v11118
    %v11122 = vshrl.u32 %v11081, 16
    %v11124 = vrot.slane %v11122, 7
    %v11125 = vshll.u32 %v11081, 16
    %v11127 = vor.u32 %v11124, %v11125
    %v11129 = vshrl.u32 %v11082, 16
    %v11131 = vrot.slane %v11129, 7
    %v11132 = vshll.u32 %v11082, 16
    %v11134 = vor.u32 %v11131, %v11132
    %v11136 = vshrl.u32 %v11083, 16
    %v11138 = vrot.slane %v11136, 7
    %v11139 = vshll.u32 %v11083, 16
    %v11141 = vor.u32 %v11138, %v11139
    %v11143 = vshrl.u32 %v11084, 16
    %v11145 = vrot.slane %v11143, 7
    %v11146 = vshll.u32 %v11084, 16
    %v11148 = vor.u32 %v11145, %v11146
    %v11150 = vshrl.u32 %v11085, 16
    %v11152 = vrot.slane %v11150, 7
    %v11153 = vshll.u32 %v11085, 16
    %v11155 = vor.u32 %v11152, %v11153
    %v11157 = vshrl.u32 %v11086, 16
    %v11159 = vrot.slane %v11157, 7
    %v11160 = vshll.u32 %v11086, 16
    %v11162 = vor.u32 %v11159, %v11160
    %v11164 = vshrl.u32 %v11087, 16
    %v11166 = vrot.slane %v11164, 7
    %v11167 = vshll.u32 %v11087, 16
    %v11169 = vor.u32 %v11166, %v11167
    %v11171 = vshrl.u32 %v11088, 16
    %v11173 = vrot.slane %v11171, 7
    %v11174 = vshll.u32 %v11088, 16
    %v11176 = vor.u32 %v11173, %v11174
    %v11178 = vshrl.u32 %v11089, 16
    %v11180 = vrot.slane %v11178, 7
    %v11181 = vshll.u32 %v11089, 16
    %v11183 = vor.u32 %v11180, %v11181
    %v11185 = vshrl.u32 %v11090, 16
    %v11187 = vrot.slane %v11185, 7
    %v11188 = vshll.u32 %v11090, 16
    %v11190 = vor.u32 %v11187, %v11188
    %v11192 = vshrl.u32 %v11091, 16
    %v11194 = vrot.slane %v11192, 7
    %v11195 = vshll.u32 %v11091, 16
    %v11197 = vor.u32 %v11194, %v11195
    %v11199 = vshrl.u32 %v11092, 16
    %v11201 = vrot.slane %v11199, 7
    %v11202 = vshll.u32 %v11092, 16
    %v11204 = vor.u32 %v11201, %v11202
    %v11237 = vsel %vm590, 0, %v11099
    %v11238 = vsel %vm590, 0, %v11106
    %v11239 = vsel %vm590, 0, %v11113
    %v11240 = vsel %vm590, 0, %v11120
    %v11241 = vsel %vm590, 0, %v11127
    %v11242 = vsel %vm590, 0, %v11134
    %v11243 = vsel %vm590, 0, %v11141
    %v11244 = vsel %vm590, 0, %v11148
    %v11245 = vsel %vm590, 0, %v11155
    %v11246 = vsel %vm590, 0, %v11162
    %v11247 = vsel %vm590, 0, %v11169
    %v11248 = vsel %vm590, 0, %v11176
    %v11249 = vsel %vm590, 0, %v11183
    %v11250 = vsel %vm590, 0, %v11190
    %v11251 = vsel %vm590, 0, %v11197
    %v11252 = vsel %vm590, 0, %v11204
    %v11253 = vsel %vm590, %v11096, 0
    %v11254 = vsel %vm590, %v11103, 0
    %v11255 = vsel %vm590, %v11110, 0
    %v11256 = vsel %vm590, %v11117, 0
    %v11257 = vsel %vm590, %v11124, 0
    %v11258 = vsel %vm590, %v11131, 0
    %v11259 = vsel %vm590, %v11138, 0
    %v11260 = vsel %vm590, %v11145, 0
    %v11261 = vsel %vm590, %v11152, 0
    %v11262 = vsel %vm590, %v11159, 0
    %v11263 = vsel %vm590, %v11166, 0
    %v11264 = vsel %vm590, %v11173, 0
    %v11265 = vsel %vm590, %v11180, 0
    %v11266 = vsel %vm590, %v11187, 0
    %v11267 = vsel %vm590, %v11194, 0
    %v11268 = vsel %vm590, %v11201, 0
    %v11301 = vunpack.c.l.b16 %v11237
    %v11302 = vunpack.c.h.b16 %v11237
    %v11303 = vunpack.c.l.b16 %v11253
    %v11304 = vunpack.c.l.b16 %v11238
    %v11305 = vunpack.c.h.b16 %v11238
    %v11306 = vunpack.c.l.b16 %v11254
    %v11307 = vunpack.c.l.b16 %v11239
    %v11308 = vunpack.c.h.b16 %v11239
    %v11309 = vunpack.c.l.b16 %v11255
    %v11310 = vunpack.c.l.b16 %v11240
    %v11311 = vunpack.c.h.b16 %v11240
    %v11312 = vunpack.c.l.b16 %v11256
    %v11313 = vunpack.c.l.b16 %v11241
    %v11314 = vunpack.c.h.b16 %v11241
    %v11315 = vunpack.c.l.b16 %v11257
    %v11316 = vunpack.c.l.b16 %v11242
    %v11317 = vunpack.c.h.b16 %v11242
    %v11318 = vunpack.c.l.b16 %v11258
    %v11319 = vunpack.c.l.b16 %v11243
    %v11320 = vunpack.c.h.b16 %v11243
    %v11321 = vunpack.c.l.b16 %v11259
    %v11322 = vunpack.c.l.b16 %v11244
    %v11323 = vunpack.c.h.b16 %v11244
    %v11324 = vunpack.c.l.b16 %v11260
    %v11325 = vunpack.c.l.b16 %v11245
    %v11326 = vunpack.c.h.b16 %v11245
    %v11327 = vunpack.c.l.b16 %v11261
    %v11328 = vunpack.c.l.b16 %v11246
    %v11329 = vunpack.c.h.b16 %v11246
    %v11330 = vunpack.c.l.b16 %v11262
    %v11331 = vunpack.c.l.b16 %v11247
    %v11332 = vunpack.c.h.b16 %v11247
    %v11333 = vunpack.c.l.b16 %v11263
    %v11334 = vunpack.c.l.b16 %v11248
    %v11335 = vunpack.c.h.b16 %v11248
    %v11336 = vunpack.c.l.b16 %v11264
    %v11337 = vunpack.c.l.b16 %v11249
    %v11338 = vunpack.c.h.b16 %v11249
    %v11339 = vunpack.c.l.b16 %v11265
    %v11340 = vunpack.c.l.b16 %v11250
    %v11341 = vunpack.c.h.b16 %v11250
    %v11342 = vunpack.c.l.b16 %v11266
    %v11343 = vunpack.c.l.b16 %v11251
    %v11344 = vunpack.c.h.b16 %v11251
    %v11345 = vunpack.c.l.b16 %v11267
    %v11346 = vunpack.c.l.b16 %v11252
    %v11347 = vunpack.c.h.b16 %v11252
    %v11348 = vunpack.c.l.b16 %v11268
    %v11349 = vpack.c.b16 %v11301, %v11301
    %v11350 = vpack.c.b16 %v11302, %v11302
    %v11351 = vpack.c.b16 %v11303, %v11303
    %v11352 = vpack.c.b16 %v11304, %v11304
    %v11353 = vpack.c.b16 %v11305, %v11305
    %v11354 = vpack.c.b16 %v11306, %v11306
    %v11355 = vpack.c.b16 %v11307, %v11307
    %v11356 = vpack.c.b16 %v11308, %v11308
    %v11357 = vpack.c.b16 %v11309, %v11309
    %v11358 = vpack.c.b16 %v11310, %v11310
    %v11359 = vpack.c.b16 %v11311, %v11311
    %v11360 = vpack.c.b16 %v11312, %v11312
    %v11361 = vpack.c.b16 %v11313, %v11313
    %v11362 = vpack.c.b16 %v11314, %v11314
    %v11363 = vpack.c.b16 %v11315, %v11315
    %v11364 = vpack.c.b16 %v11316, %v11316
    %v11365 = vpack.c.b16 %v11317, %v11317
    %v11366 = vpack.c.b16 %v11318, %v11318
    %v11367 = vpack.c.b16 %v11319, %v11319
    %v11368 = vpack.c.b16 %v11320, %v11320
    %v11369 = vpack.c.b16 %v11321, %v11321
    %v11370 = vpack.c.b16 %v11322, %v11322
    %v11371 = vpack.c.b16 %v11323, %v11323
    %v11372 = vpack.c.b16 %v11324, %v11324
    %v11373 = vpack.c.b16 %v11325, %v11325
    %v11374 = vpack.c.b16 %v11326, %v11326
    %v11375 = vpack.c.b16 %v11327, %v11327
    %v11376 = vpack.c.b16 %v11328, %v11328
    %v11377 = vpack.c.b16 %v11329, %v11329
    %v11378 = vpack.c.b16 %v11330, %v11330
    %v11379 = vpack.c.b16 %v11331, %v11331
    %v11380 = vpack.c.b16 %v11332, %v11332
    %v11381 = vpack.c.b16 %v11333, %v11333
    %v11382 = vpack.c.b16 %v11334, %v11334
    %v11383 = vpack.c.b16 %v11335, %v11335
    %v11384 = vpack.c.b16 %v11336, %v11336
    %v11385 = vpack.c.b16 %v11337, %v11337
    %v11386 = vpack.c.b16 %v11338, %v11338
    %v11387 = vpack.c.b16 %v11339, %v11339
    %v11388 = vpack.c.b16 %v11340, %v11340
    %v11389 = vpack.c.b16 %v11341, %v11341
    %v11390 = vpack.c.b16 %v11342, %v11342
    %v11391 = vpack.c.b16 %v11343, %v11343
    %v11392 = vpack.c.b16 %v11344, %v11344
    %v11393 = vpack.c.b16 %v11345, %v11345
    %v11394 = vpack.c.b16 %v11346, %v11346
    %v11395 = vpack.c.b16 %v11347, %v11347
    %v11396 = vpack.c.b16 %v11348, %v11348
    %11445 = vst.msk [vmem:[%s799] sm:$0xf] %vm33, %v11349
    %11446 = vst.msk [vmem:[%s799 + $0x4] sm:$0xf] %vm33, %v11350
    %11447 = vst.msk [vmem:[%s799 + $0x8] sm:$0x1] %vm36, %v11351
    %11448 = vst.msk [vmem:[%s799 + $0xc] sm:$0xf] %vm33, %v11352
    %11449 = vst.msk [vmem:[%s799 + $0x10] sm:$0xf] %vm33, %v11353
    %11450 = vst.msk [vmem:[%s799 + $0x14] sm:$0x1] %vm36, %v11354
    %11451 = vst.msk [vmem:[%s799 + $0x18] sm:$0xf] %vm33, %v11355
    %11452 = vst.msk [vmem:[%s799 + $0x1c] sm:$0xf] %vm33, %v11356
    %11453 = vst.msk [vmem:[%s799 + $0x20] sm:$0x1] %vm36, %v11357
    %11454 = vst.msk [vmem:[%s799 + $0x24] sm:$0xf] %vm33, %v11358
    %11455 = vst.msk [vmem:[%s799 + $0x28] sm:$0xf] %vm33, %v11359
    %11456 = vst.msk [vmem:[%s799 + $0x2c] sm:$0x1] %vm36, %v11360
    %11457 = vst.msk [vmem:[%s799 + $0x30] sm:$0xf] %vm33, %v11361
    %11458 = vst.msk [vmem:[%s799 + $0x34] sm:$0xf] %vm33, %v11362
    %11459 = vst.msk [vmem:[%s799 + $0x38] sm:$0x1] %vm36, %v11363
    %11460 = vst.msk [vmem:[%s799 + $0x3c] sm:$0xf] %vm33, %v11364
    %11461 = vst.msk [vmem:[%s799 + $0x40] sm:$0xf] %vm33, %v11365
    %11462 = vst.msk [vmem:[%s799 + $0x44] sm:$0x1] %vm36, %v11366
    %11463 = vst.msk [vmem:[%s799 + $0x48] sm:$0xf] %vm33, %v11367
    %11464 = vst.msk [vmem:[%s799 + $0x4c] sm:$0xf] %vm33, %v11368
    %11465 = vst.msk [vmem:[%s799 + $0x50] sm:$0x1] %vm36, %v11369
    %11466 = vst.msk [vmem:[%s799 + $0x54] sm:$0xf] %vm33, %v11370
    %11467 = vst.msk [vmem:[%s799 + $0x58] sm:$0xf] %vm33, %v11371
    %11468 = vst.msk [vmem:[%s799 + $0x5c] sm:$0x1] %vm36, %v11372
    %11469 = vst.msk [vmem:[%s799 + $0x60] sm:$0xf] %vm33, %v11373
    %11470 = vst.msk [vmem:[%s799 + $0x64] sm:$0xf] %vm33, %v11374
    %11471 = vst.msk [vmem:[%s799 + $0x68] sm:$0x1] %vm36, %v11375
    %11472 = vst.msk [vmem:[%s799 + $0x6c] sm:$0xf] %vm33, %v11376
    %11473 = vst.msk [vmem:[%s799 + $0x70] sm:$0xf] %vm33, %v11377
    %11474 = vst.msk [vmem:[%s799 + $0x74] sm:$0x1] %vm36, %v11378
    %11475 = vst.msk [vmem:[%s799 + $0x78] sm:$0xf] %vm33, %v11379
    %11476 = vst.msk [vmem:[%s799 + $0x7c] sm:$0xf] %vm33, %v11380
    %11477 = vst.msk [vmem:[%s799 + $0x80] sm:$0x1] %vm36, %v11381
    %11478 = vst.msk [vmem:[%s799 + $0x84] sm:$0xf] %vm33, %v11382
    %11479 = vst.msk [vmem:[%s799 + $0x88] sm:$0xf] %vm33, %v11383
    %11480 = vst.msk [vmem:[%s799 + $0x8c] sm:$0x1] %vm36, %v11384
    %11481 = vst.msk [vmem:[%s799 + $0x90] sm:$0xf] %vm33, %v11385
    %11482 = vst.msk [vmem:[%s799 + $0x94] sm:$0xf] %vm33, %v11386
    %11483 = vst.msk [vmem:[%s799 + $0x98] sm:$0x1] %vm36, %v11387
    %11484 = vst.msk [vmem:[%s799 + $0x9c] sm:$0xf] %vm33, %v11388
    %11485 = vst.msk [vmem:[%s799 + $0xa0] sm:$0xf] %vm33, %v11389
    %11486 = vst.msk [vmem:[%s799 + $0xa4] sm:$0x1] %vm36, %v11390
    %11487 = vst.msk [vmem:[%s799 + $0xa8] sm:$0xf] %vm33, %v11391
    %11488 = vst.msk [vmem:[%s799 + $0xac] sm:$0xf] %vm33, %v11392
    %11489 = vst.msk [vmem:[%s799 + $0xb0] sm:$0x1] %vm36, %v11393
    %11490 = vst.msk [vmem:[%s799 + $0xb4] sm:$0xf] %vm33, %v11394
    %11491 = vst.msk [vmem:[%s799 + $0xb8] sm:$0xf] %vm33, %v11395
    %11492 = vst.msk [vmem:[%s799 + $0xbc] sm:$0x1] %vm36, %v11396
    %v11493 = vld [vmem:[#allocation2] sm:$0xf]
    %v11494 = vld [vmem:[#allocation2 + $0x4] sm:$0xf]
    %v11495 = vld [vmem:[#allocation2 + $0xc] sm:$0xf]
    %v11496 = vld [vmem:[#allocation2 + $0x10] sm:$0xf]
    %v11497 = vld [vmem:[#allocation2 + $0x18] sm:$0xf]
    %v11498 = vld [vmem:[#allocation2 + $0x1c] sm:$0xf]
    %v11499 = vld [vmem:[#allocation2 + $0x24] sm:$0xf]
    %v11500 = vld [vmem:[#allocation2 + $0x28] sm:$0xf]
    %v11501 = vld [vmem:[#allocation2 + $0x30] sm:$0xf]
    %v11502 = vld [vmem:[#allocation2 + $0x34] sm:$0xf]
    %v11503 = vld [vmem:[#allocation2 + $0x3c] sm:$0xf]
    %v11504 = vld [vmem:[#allocation2 + $0x40] sm:$0xf]
    %v11505 = vld [vmem:[#allocation2 + $0x48] sm:$0xf]
    %v11506 = vld [vmem:[#allocation2 + $0x4c] sm:$0xf]
    %v11507 = vld [vmem:[#allocation2 + $0x54] sm:$0xf]
    %v11508 = vld [vmem:[#allocation2 + $0x58] sm:$0xf]
    %v11509 = vld [vmem:[#allocation2 + $0x60] sm:$0xf]
    %v11510 = vld [vmem:[#allocation2 + $0x64] sm:$0xf]
    %v11511 = vld [vmem:[#allocation2 + $0x6c] sm:$0xf]
    %v11512 = vld [vmem:[#allocation2 + $0x70] sm:$0xf]
    %v11513 = vld [vmem:[#allocation2 + $0x78] sm:$0xf]
    %v11514 = vld [vmem:[#allocation2 + $0x7c] sm:$0xf]
    %v11515 = vld [vmem:[#allocation2 + $0x84] sm:$0xf]
    %v11516 = vld [vmem:[#allocation2 + $0x88] sm:$0xf]
    %v11517 = vld [vmem:[#allocation2 + $0x90] sm:$0xf]
    %v11518 = vld [vmem:[#allocation2 + $0x94] sm:$0xf]
    %v11519 = vld [vmem:[#allocation2 + $0x9c] sm:$0xf]
    %v11520 = vld [vmem:[#allocation2 + $0xa0] sm:$0xf]
    %v11521 = vld [vmem:[#allocation2 + $0xa8] sm:$0xf]
    %v11522 = vld [vmem:[#allocation2 + $0xac] sm:$0xf]
    %v11523 = vld [vmem:[#allocation2 + $0xb4] sm:$0xf]
    %v11524 = vld [vmem:[#allocation2 + $0xb8] sm:$0xf]
    %v11525 = vld [vmem:[#allocation2 + $0x8] sm:$0x1]
    %v11526 = vld [vmem:[#allocation2 + $0x14] sm:$0x1]
    %v11527 = vld [vmem:[#allocation2 + $0x20] sm:$0x1]
    %v11528 = vld [vmem:[#allocation2 + $0x2c] sm:$0x1]
    %v11529 = vld [vmem:[#allocation2 + $0x38] sm:$0x1]
    %v11530 = vld [vmem:[#allocation2 + $0x44] sm:$0x1]
    %v11531 = vld [vmem:[#allocation2 + $0x50] sm:$0x1]
    %v11532 = vld [vmem:[#allocation2 + $0x5c] sm:$0x1]
    %v11533 = vld [vmem:[#allocation2 + $0x68] sm:$0x1]
    %v11534 = vld [vmem:[#allocation2 + $0x74] sm:$0x1]
    %v11535 = vld [vmem:[#allocation2 + $0x80] sm:$0x1]
    %v11536 = vld [vmem:[#allocation2 + $0x8c] sm:$0x1]
    %v11537 = vld [vmem:[#allocation2 + $0x98] sm:$0x1]
    %v11538 = vld [vmem:[#allocation2 + $0xa4] sm:$0x1]
    %v11539 = vld [vmem:[#allocation2 + $0xb0] sm:$0x1]
    %v11540 = vld [vmem:[#allocation2 + $0xbc] sm:$0x1]
    %v11541 = vld [vmem:[#allocation2] sm:$0xe]
    %v11542 = vld [vmem:[#allocation2 + $0xc] sm:$0xe]
    %v11543 = vld [vmem:[#allocation2 + $0x18] sm:$0xe]
    %v11544 = vld [vmem:[#allocation2 + $0x24] sm:$0xe]
    %v11545 = vld [vmem:[#allocation2 + $0x30] sm:$0xe]
    %v11546 = vld [vmem:[#allocation2 + $0x3c] sm:$0xe]
    %v11547 = vld [vmem:[#allocation2 + $0x48] sm:$0xe]
    %v11548 = vld [vmem:[#allocation2 + $0x54] sm:$0xe]
    %v11549 = vld [vmem:[#allocation2 + $0x60] sm:$0xe]
    %v11550 = vld [vmem:[#allocation2 + $0x6c] sm:$0xe]
    %v11551 = vld [vmem:[#allocation2 + $0x78] sm:$0xe]
    %v11552 = vld [vmem:[#allocation2 + $0x84] sm:$0xe]
    %v11553 = vld [vmem:[#allocation2 + $0x90] sm:$0xe]
    %v11554 = vld [vmem:[#allocation2 + $0x9c] sm:$0xe]
    %v11555 = vld [vmem:[#allocation2 + $0xa8] sm:$0xe]
    %v11556 = vld [vmem:[#allocation2 + $0xb4] sm:$0xe]
    %v11557 = vld [vmem:[%s799] sm:$0xf]
    %v11558 = vld [vmem:[%s799 + $0x4] sm:$0xf]
    %v11559 = vld [vmem:[%s799 + $0xc] sm:$0xf]
    %v11560 = vld [vmem:[%s799 + $0x10] sm:$0xf]
    %v11561 = vld [vmem:[%s799 + $0x18] sm:$0xf]
    %v11562 = vld [vmem:[%s799 + $0x1c] sm:$0xf]
    %v11563 = vld [vmem:[%s799 + $0x24] sm:$0xf]
    %v11564 = vld [vmem:[%s799 + $0x28] sm:$0xf]
    %v11565 = vld [vmem:[%s799 + $0x30] sm:$0xf]
    %v11566 = vld [vmem:[%s799 + $0x34] sm:$0xf]
    %v11567 = vld [vmem:[%s799 + $0x3c] sm:$0xf]
    %v11568 = vld [vmem:[%s799 + $0x40] sm:$0xf]
    %v11569 = vld [vmem:[%s799 + $0x48] sm:$0xf]
    %v11570 = vld [vmem:[%s799 + $0x4c] sm:$0xf]
    %v11571 = vld [vmem:[%s799 + $0x54] sm:$0xf]
    %v11572 = vld [vmem:[%s799 + $0x58] sm:$0xf]
    %v11573 = vld [vmem:[%s799 + $0x60] sm:$0xf]
    %v11574 = vld [vmem:[%s799 + $0x64] sm:$0xf]
    %v11575 = vld [vmem:[%s799 + $0x6c] sm:$0xf]
    %v11576 = vld [vmem:[%s799 + $0x70] sm:$0xf]
    %v11577 = vld [vmem:[%s799 + $0x78] sm:$0xf]
    %v11578 = vld [vmem:[%s799 + $0x7c] sm:$0xf]
    %v11579 = vld [vmem:[%s799 + $0x84] sm:$0xf]
    %v11580 = vld [vmem:[%s799 + $0x88] sm:$0xf]
    %v11581 = vld [vmem:[%s799 + $0x90] sm:$0xf]
    %v11582 = vld [vmem:[%s799 + $0x94] sm:$0xf]
    %v11583 = vld [vmem:[%s799 + $0x9c] sm:$0xf]
    %v11584 = vld [vmem:[%s799 + $0xa0] sm:$0xf]
    %v11585 = vld [vmem:[%s799 + $0xa8] sm:$0xf]
    %v11586 = vld [vmem:[%s799 + $0xac] sm:$0xf]
    %v11587 = vld [vmem:[%s799 + $0xb4] sm:$0xf]
    %v11588 = vld [vmem:[%s799 + $0xb8] sm:$0xf]
    %v11589 = vld [vmem:[%s799 + $0x8] sm:$0x1]
    %v11590 = vld [vmem:[%s799 + $0x14] sm:$0x1]
    %v11591 = vld [vmem:[%s799 + $0x20] sm:$0x1]
    %v11592 = vld [vmem:[%s799 + $0x2c] sm:$0x1]
    %v11593 = vld [vmem:[%s799 + $0x38] sm:$0x1]
    %v11594 = vld [vmem:[%s799 + $0x44] sm:$0x1]
    %v11595 = vld [vmem:[%s799 + $0x50] sm:$0x1]
    %v11596 = vld [vmem:[%s799 + $0x5c] sm:$0x1]
    %v11597 = vld [vmem:[%s799 + $0x68] sm:$0x1]
    %v11598 = vld [vmem:[%s799 + $0x74] sm:$0x1]
    %v11599 = vld [vmem:[%s799 + $0x80] sm:$0x1]
    %v11600 = vld [vmem:[%s799 + $0x8c] sm:$0x1]
    %v11601 = vld [vmem:[%s799 + $0x98] sm:$0x1]
    %v11602 = vld [vmem:[%s799 + $0xa4] sm:$0x1]
    %v11603 = vld [vmem:[%s799 + $0xb0] sm:$0x1]
    %v11604 = vld [vmem:[%s799 + $0xbc] sm:$0x1]
    %v11605 = vld [vmem:[%s799] sm:$0xe]
    %v11606 = vld [vmem:[%s799 + $0xc] sm:$0xe]
    %v11607 = vld [vmem:[%s799 + $0x18] sm:$0xe]
    %v11608 = vld [vmem:[%s799 + $0x24] sm:$0xe]
    %v11609 = vld [vmem:[%s799 + $0x30] sm:$0xe]
    %v11610 = vld [vmem:[%s799 + $0x3c] sm:$0xe]
    %v11611 = vld [vmem:[%s799 + $0x48] sm:$0xe]
    %v11612 = vld [vmem:[%s799 + $0x54] sm:$0xe]
    %v11613 = vld [vmem:[%s799 + $0x60] sm:$0xe]
    %v11614 = vld [vmem:[%s799 + $0x6c] sm:$0xe]
    %v11615 = vld [vmem:[%s799 + $0x78] sm:$0xe]
    %v11616 = vld [vmem:[%s799 + $0x84] sm:$0xe]
    %v11617 = vld [vmem:[%s799 + $0x90] sm:$0xe]
    %v11618 = vld [vmem:[%s799 + $0x9c] sm:$0xe]
    %v11619 = vld [vmem:[%s799 + $0xa8] sm:$0xe]
    %v11620 = vld [vmem:[%s799 + $0xb4] sm:$0xe]
    %v11621 = vld [vmem:[%s976] sm:$0xf]
    %v11622 = vld [vmem:[%s976 + $0x4] sm:$0xf]
    %v11623 = vld [vmem:[%s976 + $0xc] sm:$0xf]
    %v11624 = vld [vmem:[%s976 + $0x10] sm:$0xf]
    %v11625 = vld [vmem:[%s976 + $0x18] sm:$0xf]
    %v11626 = vld [vmem:[%s976 + $0x1c] sm:$0xf]
    %v11627 = vld [vmem:[%s976 + $0x24] sm:$0xf]
    %v11628 = vld [vmem:[%s976 + $0x28] sm:$0xf]
    %v11629 = vld [vmem:[%s976 + $0x30] sm:$0xf]
    %v11630 = vld [vmem:[%s976 + $0x34] sm:$0xf]
    %v11631 = vld [vmem:[%s976 + $0x3c] sm:$0xf]
    %v11632 = vld [vmem:[%s976 + $0x40] sm:$0xf]
    %v11633 = vld [vmem:[%s976 + $0x48] sm:$0xf]
    %v11634 = vld [vmem:[%s976 + $0x4c] sm:$0xf]
    %v11635 = vld [vmem:[%s976 + $0x54] sm:$0xf]
    %v11636 = vld [vmem:[%s976 + $0x58] sm:$0xf]
    %v11637 = vld [vmem:[%s976 + $0x60] sm:$0xf]
    %v11638 = vld [vmem:[%s976 + $0x64] sm:$0xf]
    %v11639 = vld [vmem:[%s976 + $0x6c] sm:$0xf]
    %v11640 = vld [vmem:[%s976 + $0x70] sm:$0xf]
    %v11641 = vld [vmem:[%s976 + $0x78] sm:$0xf]
    %v11642 = vld [vmem:[%s976 + $0x7c] sm:$0xf]
    %v11643 = vld [vmem:[%s976 + $0x84] sm:$0xf]
    %v11644 = vld [vmem:[%s976 + $0x88] sm:$0xf]
    %v11645 = vld [vmem:[%s976 + $0x90] sm:$0xf]
    %v11646 = vld [vmem:[%s976 + $0x94] sm:$0xf]
    %v11647 = vld [vmem:[%s976 + $0x9c] sm:$0xf]
    %v11648 = vld [vmem:[%s976 + $0xa0] sm:$0xf]
    %v11649 = vld [vmem:[%s976 + $0xa8] sm:$0xf]
    %v11650 = vld [vmem:[%s976 + $0xac] sm:$0xf]
    %v11651 = vld [vmem:[%s976 + $0xb4] sm:$0xf]
    %v11652 = vld [vmem:[%s976 + $0xb8] sm:$0xf]
    %v11653 = vld [vmem:[%s976 + $0x8] sm:$0x1]
    %v11654 = vld [vmem:[%s976 + $0x14] sm:$0x1]
    %v11655 = vld [vmem:[%s976 + $0x20] sm:$0x1]
    %v11656 = vld [vmem:[%s976 + $0x2c] sm:$0x1]
    %v11657 = vld [vmem:[%s976 + $0x38] sm:$0x1]
    %v11658 = vld [vmem:[%s976 + $0x44] sm:$0x1]
    %v11659 = vld [vmem:[%s976 + $0x50] sm:$0x1]
    %v11660 = vld [vmem:[%s976 + $0x5c] sm:$0x1]
    %v11661 = vld [vmem:[%s976 + $0x68] sm:$0x1]
    %v11662 = vld [vmem:[%s976 + $0x74] sm:$0x1]
    %v11663 = vld [vmem:[%s976 + $0x80] sm:$0x1]
    %v11664 = vld [vmem:[%s976 + $0x8c] sm:$0x1]
    %v11665 = vld [vmem:[%s976 + $0x98] sm:$0x1]
    %v11666 = vld [vmem:[%s976 + $0xa4] sm:$0x1]
    %v11667 = vld [vmem:[%s976 + $0xb0] sm:$0x1]
    %v11668 = vld [vmem:[%s976 + $0xbc] sm:$0x1]
    %v11669 = vld [vmem:[%s976] sm:$0xe]
    %v11670 = vld [vmem:[%s976 + $0xc] sm:$0xe]
    %v11671 = vld [vmem:[%s976 + $0x18] sm:$0xe]
    %v11672 = vld [vmem:[%s976 + $0x24] sm:$0xe]
    %v11673 = vld [vmem:[%s976 + $0x30] sm:$0xe]
    %v11674 = vld [vmem:[%s976 + $0x3c] sm:$0xe]
    %v11675 = vld [vmem:[%s976 + $0x48] sm:$0xe]
    %v11676 = vld [vmem:[%s976 + $0x54] sm:$0xe]
    %v11677 = vld [vmem:[%s976 + $0x60] sm:$0xe]
    %v11678 = vld [vmem:[%s976 + $0x6c] sm:$0xe]
    %v11679 = vld [vmem:[%s976 + $0x78] sm:$0xe]
    %v11680 = vld [vmem:[%s976 + $0x84] sm:$0xe]
    %v11681 = vld [vmem:[%s976 + $0x90] sm:$0xe]
    %v11682 = vld [vmem:[%s976 + $0x9c] sm:$0xe]
    %v11683 = vld [vmem:[%s976 + $0xa8] sm:$0xe]
    %v11684 = vld [vmem:[%s976 + $0xb4] sm:$0xe]
    %v11717 = vunpack.c.l.b16 %v11493
    %v11718 = vunpack.c.l.b16 %v11494
    %v11719 = vunpack.c.l.b16 %v11495
    %v11720 = vunpack.c.l.b16 %v11496
    %v11721 = vunpack.c.l.b16 %v11497
    %v11722 = vunpack.c.l.b16 %v11498
    %v11723 = vunpack.c.l.b16 %v11499
    %v11724 = vunpack.c.l.b16 %v11500
    %v11725 = vunpack.c.l.b16 %v11501
    %v11726 = vunpack.c.l.b16 %v11502
    %v11727 = vunpack.c.l.b16 %v11503
    %v11728 = vunpack.c.l.b16 %v11504
    %v11729 = vunpack.c.l.b16 %v11505
    %v11730 = vunpack.c.l.b16 %v11506
    %v11731 = vunpack.c.l.b16 %v11507
    %v11732 = vunpack.c.l.b16 %v11508
    %v11733 = vunpack.c.l.b16 %v11509
    %v11734 = vunpack.c.l.b16 %v11510
    %v11735 = vunpack.c.l.b16 %v11511
    %v11736 = vunpack.c.l.b16 %v11512
    %v11737 = vunpack.c.l.b16 %v11513
    %v11738 = vunpack.c.l.b16 %v11514
    %v11739 = vunpack.c.l.b16 %v11515
    %v11740 = vunpack.c.l.b16 %v11516
    %v11741 = vunpack.c.l.b16 %v11517
    %v11742 = vunpack.c.l.b16 %v11518
    %v11743 = vunpack.c.l.b16 %v11519
    %v11744 = vunpack.c.l.b16 %v11520
    %v11745 = vunpack.c.l.b16 %v11521
    %v11746 = vunpack.c.l.b16 %v11522
    %v11747 = vunpack.c.l.b16 %v11523
    %v11748 = vunpack.c.l.b16 %v11524
    %v11749 = vpack.c.b16 %v11718, %v11717
    %v11750 = vpack.c.b16 %v11720, %v11719
    %v11751 = vpack.c.b16 %v11722, %v11721
    %v11752 = vpack.c.b16 %v11724, %v11723
    %v11753 = vpack.c.b16 %v11726, %v11725
    %v11754 = vpack.c.b16 %v11728, %v11727
    %v11755 = vpack.c.b16 %v11730, %v11729
    %v11756 = vpack.c.b16 %v11732, %v11731
    %v11757 = vpack.c.b16 %v11734, %v11733
    %v11758 = vpack.c.b16 %v11736, %v11735
    %v11759 = vpack.c.b16 %v11738, %v11737
    %v11760 = vpack.c.b16 %v11740, %v11739
    %v11761 = vpack.c.b16 %v11742, %v11741
    %v11762 = vpack.c.b16 %v11744, %v11743
    %v11763 = vpack.c.b16 %v11746, %v11745
    %v11764 = vpack.c.b16 %v11748, %v11747
    %v11781 = vunpack.c.l.b16 %v11525
    %v11782 = vunpack.c.l.b16 %v11526
    %v11783 = vunpack.c.l.b16 %v11527
    %v11784 = vunpack.c.l.b16 %v11528
    %v11785 = vunpack.c.l.b16 %v11529
    %v11786 = vunpack.c.l.b16 %v11530
    %v11787 = vunpack.c.l.b16 %v11531
    %v11788 = vunpack.c.l.b16 %v11532
    %v11789 = vunpack.c.l.b16 %v11533
    %v11790 = vunpack.c.l.b16 %v11534
    %v11791 = vunpack.c.l.b16 %v11535
    %v11792 = vunpack.c.l.b16 %v11536
    %v11793 = vunpack.c.l.b16 %v11537
    %v11794 = vunpack.c.l.b16 %v11538
    %v11795 = vunpack.c.l.b16 %v11539
    %v11796 = vunpack.c.l.b16 %v11540
    %v11797 = vpack.c.b16 %v11781, %v11781
    %v11798 = vpack.c.b16 %v11782, %v11782
    %v11799 = vpack.c.b16 %v11783, %v11783
    %v11800 = vpack.c.b16 %v11784, %v11784
    %v11801 = vpack.c.b16 %v11785, %v11785
    %v11802 = vpack.c.b16 %v11786, %v11786
    %v11803 = vpack.c.b16 %v11787, %v11787
    %v11804 = vpack.c.b16 %v11788, %v11788
    %v11805 = vpack.c.b16 %v11789, %v11789
    %v11806 = vpack.c.b16 %v11790, %v11790
    %v11807 = vpack.c.b16 %v11791, %v11791
    %v11808 = vpack.c.b16 %v11792, %v11792
    %v11809 = vpack.c.b16 %v11793, %v11793
    %v11810 = vpack.c.b16 %v11794, %v11794
    %v11811 = vpack.c.b16 %v11795, %v11795
    %v11812 = vpack.c.b16 %v11796, %v11796
    %v11814 = vshrl.u32 %v11749, 16
    %v11816 = vshll.u32 %v11749, 16
    %v11818 = vrot.slane %v11816, 1
    %v11819 = vor.u32 %v11814, %v11818
    %v11821 = vshll.u32 %v11797, 16
    %v11823 = vrot.slane %v11821, 1
    %v11824 = vsel %vm1169, %v11819, %v11823
    %v11826 = vshrl.u32 %v11750, 16
    %v11828 = vshll.u32 %v11750, 16
    %v11830 = vrot.slane %v11828, 1
    %v11831 = vor.u32 %v11826, %v11830
    %v11833 = vshll.u32 %v11798, 16
    %v11835 = vrot.slane %v11833, 1
    %v11836 = vsel %vm1169, %v11831, %v11835
    %v11838 = vshrl.u32 %v11751, 16
    %v11840 = vshll.u32 %v11751, 16
    %v11842 = vrot.slane %v11840, 1
    %v11843 = vor.u32 %v11838, %v11842
    %v11845 = vshll.u32 %v11799, 16
    %v11847 = vrot.slane %v11845, 1
    %v11848 = vsel %vm1169, %v11843, %v11847
    %v11850 = vshrl.u32 %v11752, 16
    %v11852 = vshll.u32 %v11752, 16
    %v11854 = vrot.slane %v11852, 1
    %v11855 = vor.u32 %v11850, %v11854
    %v11857 = vshll.u32 %v11800, 16
    %v11859 = vrot.slane %v11857, 1
    %v11860 = vsel %vm1169, %v11855, %v11859
    %v11862 = vshrl.u32 %v11753, 16
    %v11864 = vshll.u32 %v11753, 16
    %v11866 = vrot.slane %v11864, 1
    %v11867 = vor.u32 %v11862, %v11866
    %v11869 = vshll.u32 %v11801, 16
    %v11871 = vrot.slane %v11869, 1
    %v11872 = vsel %vm1169, %v11867, %v11871
    %v11874 = vshrl.u32 %v11754, 16
    %v11876 = vshll.u32 %v11754, 16
    %v11878 = vrot.slane %v11876, 1
    %v11879 = vor.u32 %v11874, %v11878
    %v11881 = vshll.u32 %v11802, 16
    %v11883 = vrot.slane %v11881, 1
    %v11884 = vsel %vm1169, %v11879, %v11883
    %v11886 = vshrl.u32 %v11755, 16
    %v11888 = vshll.u32 %v11755, 16
    %v11890 = vrot.slane %v11888, 1
    %v11891 = vor.u32 %v11886, %v11890
    %v11893 = vshll.u32 %v11803, 16
    %v11895 = vrot.slane %v11893, 1
    %v11896 = vsel %vm1169, %v11891, %v11895
    %v11898 = vshrl.u32 %v11756, 16
    %v11900 = vshll.u32 %v11756, 16
    %v11902 = vrot.slane %v11900, 1
    %v11903 = vor.u32 %v11898, %v11902
    %v11905 = vshll.u32 %v11804, 16
    %v11907 = vrot.slane %v11905, 1
    %v11908 = vsel %vm1169, %v11903, %v11907
    %v11910 = vshrl.u32 %v11757, 16
    %v11912 = vshll.u32 %v11757, 16
    %v11914 = vrot.slane %v11912, 1
    %v11915 = vor.u32 %v11910, %v11914
    %v11917 = vshll.u32 %v11805, 16
    %v11919 = vrot.slane %v11917, 1
    %v11920 = vsel %vm1169, %v11915, %v11919
    %v11922 = vshrl.u32 %v11758, 16
    %v11924 = vshll.u32 %v11758, 16
    %v11926 = vrot.slane %v11924, 1
    %v11927 = vor.u32 %v11922, %v11926
    %v11929 = vshll.u32 %v11806, 16
    %v11931 = vrot.slane %v11929, 1
    %v11932 = vsel %vm1169, %v11927, %v11931
    %v11934 = vshrl.u32 %v11759, 16
    %v11936 = vshll.u32 %v11759, 16
    %v11938 = vrot.slane %v11936, 1
    %v11939 = vor.u32 %v11934, %v11938
    %v11941 = vshll.u32 %v11807, 16
    %v11943 = vrot.slane %v11941, 1
    %v11944 = vsel %vm1169, %v11939, %v11943
    %v11946 = vshrl.u32 %v11760, 16
    %v11948 = vshll.u32 %v11760, 16
    %v11950 = vrot.slane %v11948, 1
    %v11951 = vor.u32 %v11946, %v11950
    %v11953 = vshll.u32 %v11808, 16
    %v11955 = vrot.slane %v11953, 1
    %v11956 = vsel %vm1169, %v11951, %v11955
    %v11958 = vshrl.u32 %v11761, 16
    %v11960 = vshll.u32 %v11761, 16
    %v11962 = vrot.slane %v11960, 1
    %v11963 = vor.u32 %v11958, %v11962
    %v11965 = vshll.u32 %v11809, 16
    %v11967 = vrot.slane %v11965, 1
    %v11968 = vsel %vm1169, %v11963, %v11967
    %v11970 = vshrl.u32 %v11762, 16
    %v11972 = vshll.u32 %v11762, 16
    %v11974 = vrot.slane %v11972, 1
    %v11975 = vor.u32 %v11970, %v11974
    %v11977 = vshll.u32 %v11810, 16
    %v11979 = vrot.slane %v11977, 1
    %v11980 = vsel %vm1169, %v11975, %v11979
    %v11982 = vshrl.u32 %v11763, 16
    %v11984 = vshll.u32 %v11763, 16
    %v11986 = vrot.slane %v11984, 1
    %v11987 = vor.u32 %v11982, %v11986
    %v11989 = vshll.u32 %v11811, 16
    %v11991 = vrot.slane %v11989, 1
    %v11992 = vsel %vm1169, %v11987, %v11991
    %v11994 = vshrl.u32 %v11764, 16
    %v11996 = vshll.u32 %v11764, 16
    %v11998 = vrot.slane %v11996, 1
    %v11999 = vor.u32 %v11994, %v11998
    %v12001 = vshll.u32 %v11812, 16
    %v12003 = vrot.slane %v12001, 1
    %v12004 = vsel %vm1169, %v11999, %v12003
    %12005 = vrot.lane.b32.xlu0 %v11824, 32
    %v12006 = vpop.permute.xlu0 %12005
    %12007 = vrot.lane.b32.xlu0 %v11836, 32
    %v12008 = vpop.permute.xlu0 %12007
    %12009 = vrot.lane.b32.xlu0 %v11848, 32
    %v12010 = vpop.permute.xlu0 %12009
    %12011 = vrot.lane.b32.xlu0 %v11860, 32
    %v12012 = vpop.permute.xlu0 %12011
    %12013 = vrot.lane.b32.xlu0 %v11872, 32
    %v12014 = vpop.permute.xlu0 %12013
    %12015 = vrot.lane.b32.xlu0 %v11884, 32
    %v12016 = vpop.permute.xlu0 %12015
    %12017 = vrot.lane.b32.xlu0 %v11896, 32
    %v12018 = vpop.permute.xlu0 %12017
    %12019 = vrot.lane.b32.xlu0 %v11908, 32
    %v12020 = vpop.permute.xlu0 %12019
    %12021 = vrot.lane.b32.xlu0 %v11920, 32
    %v12022 = vpop.permute.xlu0 %12021
    %12023 = vrot.lane.b32.xlu0 %v11932, 32
    %v12024 = vpop.permute.xlu0 %12023
    %12025 = vrot.lane.b32.xlu0 %v11944, 32
    %v12026 = vpop.permute.xlu0 %12025
    %12027 = vrot.lane.b32.xlu0 %v11956, 32
    %v12028 = vpop.permute.xlu0 %12027
    %12029 = vrot.lane.b32.xlu0 %v11968, 32
    %v12030 = vpop.permute.xlu0 %12029
    %12031 = vrot.lane.b32.xlu0 %v11980, 32
    %v12032 = vpop.permute.xlu0 %12031
    %12033 = vrot.lane.b32.xlu0 %v11992, 32
    %v12034 = vpop.permute.xlu0 %12033
    %12035 = vrot.lane.b32.xlu0 %v12004, 32
    %v12036 = vpop.permute.xlu0 %12035
    %v12053 = vunpack.c.l.b16 %v11541
    %v12054 = vunpack.c.l.b16 %v11542
    %v12055 = vunpack.c.l.b16 %v11543
    %v12056 = vunpack.c.l.b16 %v11544
    %v12057 = vunpack.c.l.b16 %v11545
    %v12058 = vunpack.c.l.b16 %v11546
    %v12059 = vunpack.c.l.b16 %v11547
    %v12060 = vunpack.c.l.b16 %v11548
    %v12061 = vunpack.c.l.b16 %v11549
    %v12062 = vunpack.c.l.b16 %v11550
    %v12063 = vunpack.c.l.b16 %v11551
    %v12064 = vunpack.c.l.b16 %v11552
    %v12065 = vunpack.c.l.b16 %v11553
    %v12066 = vunpack.c.l.b16 %v11554
    %v12067 = vunpack.c.l.b16 %v11555
    %v12068 = vunpack.c.l.b16 %v11556
    %v12069 = vpack.c.b16 %v11718, %v12053
    %v12070 = vpack.c.b16 %v11720, %v12054
    %v12071 = vpack.c.b16 %v11722, %v12055
    %v12072 = vpack.c.b16 %v11724, %v12056
    %v12073 = vpack.c.b16 %v11726, %v12057
    %v12074 = vpack.c.b16 %v11728, %v12058
    %v12075 = vpack.c.b16 %v11730, %v12059
    %v12076 = vpack.c.b16 %v11732, %v12060
    %v12077 = vpack.c.b16 %v11734, %v12061
    %v12078 = vpack.c.b16 %v11736, %v12062
    %v12079 = vpack.c.b16 %v11738, %v12063
    %v12080 = vpack.c.b16 %v11740, %v12064
    %v12081 = vpack.c.b16 %v11742, %v12065
    %v12082 = vpack.c.b16 %v11744, %v12066
    %v12083 = vpack.c.b16 %v11746, %v12067
    %v12084 = vpack.c.b16 %v11748, %v12068
    %v12085 = vrot.slane %v12069, 1
    %v12086 = vrot.slane %v11797, 1
    %v12087 = vsel %vm1442, %v12085, %v12086
    %v12088 = vrot.slane %v12070, 1
    %v12089 = vrot.slane %v11798, 1
    %v12090 = vsel %vm1442, %v12088, %v12089
    %v12091 = vrot.slane %v12071, 1
    %v12092 = vrot.slane %v11799, 1
    %v12093 = vsel %vm1442, %v12091, %v12092
    %v12094 = vrot.slane %v12072, 1
    %v12095 = vrot.slane %v11800, 1
    %v12096 = vsel %vm1442, %v12094, %v12095
    %v12097 = vrot.slane %v12073, 1
    %v12098 = vrot.slane %v11801, 1
    %v12099 = vsel %vm1442, %v12097, %v12098
    %v12100 = vrot.slane %v12074, 1
    %v12101 = vrot.slane %v11802, 1
    %v12102 = vsel %vm1442, %v12100, %v12101
    %v12103 = vrot.slane %v12075, 1
    %v12104 = vrot.slane %v11803, 1
    %v12105 = vsel %vm1442, %v12103, %v12104
    %v12106 = vrot.slane %v12076, 1
    %v12107 = vrot.slane %v11804, 1
    %v12108 = vsel %vm1442, %v12106, %v12107
    %v12109 = vrot.slane %v12077, 1
    %v12110 = vrot.slane %v11805, 1
    %v12111 = vsel %vm1442, %v12109, %v12110
    %v12112 = vrot.slane %v12078, 1
    %v12113 = vrot.slane %v11806, 1
    %v12114 = vsel %vm1442, %v12112, %v12113
    %v12115 = vrot.slane %v12079, 1
    %v12116 = vrot.slane %v11807, 1
    %v12117 = vsel %vm1442, %v12115, %v12116
    %v12118 = vrot.slane %v12080, 1
    %v12119 = vrot.slane %v11808, 1
    %v12120 = vsel %vm1442, %v12118, %v12119
    %v12121 = vrot.slane %v12081, 1
    %v12122 = vrot.slane %v11809, 1
    %v12123 = vsel %vm1442, %v12121, %v12122
    %v12124 = vrot.slane %v12082, 1
    %v12125 = vrot.slane %v11810, 1
    %v12126 = vsel %vm1442, %v12124, %v12125
    %v12127 = vrot.slane %v12083, 1
    %v12128 = vrot.slane %v11811, 1
    %v12129 = vsel %vm1442, %v12127, %v12128
    %v12130 = vrot.slane %v12084, 1
    %v12131 = vrot.slane %v11812, 1
    %v12132 = vsel %vm1442, %v12130, %v12131
    %12133 = vrot.lane.b32.xlu0 %v12087, 64
    %v12134 = vpop.permute.xlu0 %12133
    %12135 = vrot.lane.b32.xlu0 %v12090, 64
    %v12136 = vpop.permute.xlu0 %12135
    %12137 = vrot.lane.b32.xlu0 %v12093, 64
    %v12138 = vpop.permute.xlu0 %12137
    %12139 = vrot.lane.b32.xlu0 %v12096, 64
    %v12140 = vpop.permute.xlu0 %12139
    %12141 = vrot.lane.b32.xlu0 %v12099, 64
    %v12142 = vpop.permute.xlu0 %12141
    %12143 = vrot.lane.b32.xlu0 %v12102, 64
    %v12144 = vpop.permute.xlu0 %12143
    %12145 = vrot.lane.b32.xlu0 %v12105, 64
    %v12146 = vpop.permute.xlu0 %12145
    %12147 = vrot.lane.b32.xlu0 %v12108, 64
    %v12148 = vpop.permute.xlu0 %12147
    %12149 = vrot.lane.b32.xlu0 %v12111, 64
    %v12150 = vpop.permute.xlu0 %12149
    %12151 = vrot.lane.b32.xlu0 %v12114, 64
    %v12152 = vpop.permute.xlu0 %12151
    %12153 = vrot.lane.b32.xlu0 %v12117, 64
    %v12154 = vpop.permute.xlu0 %12153
    %12155 = vrot.lane.b32.xlu0 %v12120, 64
    %v12156 = vpop.permute.xlu0 %12155
    %12157 = vrot.lane.b32.xlu0 %v12123, 64
    %v12158 = vpop.permute.xlu0 %12157
    %12159 = vrot.lane.b32.xlu0 %v12126, 64
    %v12160 = vpop.permute.xlu0 %12159
    %12161 = vrot.lane.b32.xlu0 %v12129, 64
    %v12162 = vpop.permute.xlu0 %12161
    %12163 = vrot.lane.b32.xlu0 %v12132, 64
    %v12164 = vpop.permute.xlu0 %12163
    %v12197 = vunpack.c.l.b16 %v11557
    %v12198 = vunpack.c.l.b16 %v11558
    %v12199 = vunpack.c.l.b16 %v11559
    %v12200 = vunpack.c.l.b16 %v11560
    %v12201 = vunpack.c.l.b16 %v11561
    %v12202 = vunpack.c.l.b16 %v11562
    %v12203 = vunpack.c.l.b16 %v11563
    %v12204 = vunpack.c.l.b16 %v11564
    %v12205 = vunpack.c.l.b16 %v11565
    %v12206 = vunpack.c.l.b16 %v11566
    %v12207 = vunpack.c.l.b16 %v11567
    %v12208 = vunpack.c.l.b16 %v11568
    %v12209 = vunpack.c.l.b16 %v11569
    %v12210 = vunpack.c.l.b16 %v11570
    %v12211 = vunpack.c.l.b16 %v11571
    %v12212 = vunpack.c.l.b16 %v11572
    %v12213 = vunpack.c.l.b16 %v11573
    %v12214 = vunpack.c.l.b16 %v11574
    %v12215 = vunpack.c.l.b16 %v11575
    %v12216 = vunpack.c.l.b16 %v11576
    %v12217 = vunpack.c.l.b16 %v11577
    %v12218 = vunpack.c.l.b16 %v11578
    %v12219 = vunpack.c.l.b16 %v11579
    %v12220 = vunpack.c.l.b16 %v11580
    %v12221 = vunpack.c.l.b16 %v11581
    %v12222 = vunpack.c.l.b16 %v11582
    %v12223 = vunpack.c.l.b16 %v11583
    %v12224 = vunpack.c.l.b16 %v11584
    %v12225 = vunpack.c.l.b16 %v11585
    %v12226 = vunpack.c.l.b16 %v11586
    %v12227 = vunpack.c.l.b16 %v11587
    %v12228 = vunpack.c.l.b16 %v11588
    %v12229 = vpack.c.b16 %v12198, %v12197
    %v12230 = vpack.c.b16 %v12200, %v12199
    %v12231 = vpack.c.b16 %v12202, %v12201
    %v12232 = vpack.c.b16 %v12204, %v12203
    %v12233 = vpack.c.b16 %v12206, %v12205
    %v12234 = vpack.c.b16 %v12208, %v12207
    %v12235 = vpack.c.b16 %v12210, %v12209
    %v12236 = vpack.c.b16 %v12212, %v12211
    %v12237 = vpack.c.b16 %v12214, %v12213
    %v12238 = vpack.c.b16 %v12216, %v12215
    %v12239 = vpack.c.b16 %v12218, %v12217
    %v12240 = vpack.c.b16 %v12220, %v12219
    %v12241 = vpack.c.b16 %v12222, %v12221
    %v12242 = vpack.c.b16 %v12224, %v12223
    %v12243 = vpack.c.b16 %v12226, %v12225
    %v12244 = vpack.c.b16 %v12228, %v12227
    %12245 = vrot.lane.b32.xlu0 %v12229, 96
    %v12246 = vpop.permute.xlu0 %12245
    %12247 = vrot.lane.b32.xlu0 %v12230, 96
    %v12248 = vpop.permute.xlu0 %12247
    %12249 = vrot.lane.b32.xlu0 %v12231, 96
    %v12250 = vpop.permute.xlu0 %12249
    %12251 = vrot.lane.b32.xlu0 %v12232, 96
    %v12252 = vpop.permute.xlu0 %12251
    %12253 = vrot.lane.b32.xlu0 %v12233, 96
    %v12254 = vpop.permute.xlu0 %12253
    %12255 = vrot.lane.b32.xlu0 %v12234, 96
    %v12256 = vpop.permute.xlu0 %12255
    %12257 = vrot.lane.b32.xlu0 %v12235, 96
    %v12258 = vpop.permute.xlu0 %12257
    %12259 = vrot.lane.b32.xlu0 %v12236, 96
    %v12260 = vpop.permute.xlu0 %12259
    %12261 = vrot.lane.b32.xlu0 %v12237, 96
    %v12262 = vpop.permute.xlu0 %12261
    %12263 = vrot.lane.b32.xlu0 %v12238, 96
    %v12264 = vpop.permute.xlu0 %12263
    %12265 = vrot.lane.b32.xlu0 %v12239, 96
    %v12266 = vpop.permute.xlu0 %12265
    %12267 = vrot.lane.b32.xlu0 %v12240, 96
    %v12268 = vpop.permute.xlu0 %12267
    %12269 = vrot.lane.b32.xlu0 %v12241, 96
    %v12270 = vpop.permute.xlu0 %12269
    %12271 = vrot.lane.b32.xlu0 %v12242, 96
    %v12272 = vpop.permute.xlu0 %12271
    %12273 = vrot.lane.b32.xlu0 %v12243, 96
    %v12274 = vpop.permute.xlu0 %12273
    %12275 = vrot.lane.b32.xlu0 %v12244, 96
    %v12276 = vpop.permute.xlu0 %12275
    %v12293 = vunpack.c.l.b16 %v11589
    %v12294 = vunpack.c.l.b16 %v11590
    %v12295 = vunpack.c.l.b16 %v11591
    %v12296 = vunpack.c.l.b16 %v11592
    %v12297 = vunpack.c.l.b16 %v11593
    %v12298 = vunpack.c.l.b16 %v11594
    %v12299 = vunpack.c.l.b16 %v11595
    %v12300 = vunpack.c.l.b16 %v11596
    %v12301 = vunpack.c.l.b16 %v11597
    %v12302 = vunpack.c.l.b16 %v11598
    %v12303 = vunpack.c.l.b16 %v11599
    %v12304 = vunpack.c.l.b16 %v11600
    %v12305 = vunpack.c.l.b16 %v11601
    %v12306 = vunpack.c.l.b16 %v11602
    %v12307 = vunpack.c.l.b16 %v11603
    %v12308 = vunpack.c.l.b16 %v11604
    %v12309 = vpack.c.b16 %v12293, %v12293
    %v12310 = vpack.c.b16 %v12294, %v12294
    %v12311 = vpack.c.b16 %v12295, %v12295
    %v12312 = vpack.c.b16 %v12296, %v12296
    %v12313 = vpack.c.b16 %v12297, %v12297
    %v12314 = vpack.c.b16 %v12298, %v12298
    %v12315 = vpack.c.b16 %v12299, %v12299
    %v12316 = vpack.c.b16 %v12300, %v12300
    %v12317 = vpack.c.b16 %v12301, %v12301
    %v12318 = vpack.c.b16 %v12302, %v12302
    %v12319 = vpack.c.b16 %v12303, %v12303
    %v12320 = vpack.c.b16 %v12304, %v12304
    %v12321 = vpack.c.b16 %v12305, %v12305
    %v12322 = vpack.c.b16 %v12306, %v12306
    %v12323 = vpack.c.b16 %v12307, %v12307
    %v12324 = vpack.c.b16 %v12308, %v12308
    %v12326 = vshrl.u32 %v12229, 16
    %v12328 = vshll.u32 %v12229, 16
    %v12330 = vrot.slane %v12328, 1
    %v12331 = vor.u32 %v12326, %v12330
    %v12333 = vshll.u32 %v12309, 16
    %v12335 = vrot.slane %v12333, 1
    %v12336 = vsel %vm1169, %v12331, %v12335
    %v12338 = vshrl.u32 %v12230, 16
    %v12340 = vshll.u32 %v12230, 16
    %v12342 = vrot.slane %v12340, 1
    %v12343 = vor.u32 %v12338, %v12342
    %v12345 = vshll.u32 %v12310, 16
    %v12347 = vrot.slane %v12345, 1
    %v12348 = vsel %vm1169, %v12343, %v12347
    %v12350 = vshrl.u32 %v12231, 16
    %v12352 = vshll.u32 %v12231, 16
    %v12354 = vrot.slane %v12352, 1
    %v12355 = vor.u32 %v12350, %v12354
    %v12357 = vshll.u32 %v12311, 16
    %v12359 = vrot.slane %v12357, 1
    %v12360 = vsel %vm1169, %v12355, %v12359
    %v12362 = vshrl.u32 %v12232, 16
    %v12364 = vshll.u32 %v12232, 16
    %v12366 = vrot.slane %v12364, 1
    %v12367 = vor.u32 %v12362, %v12366
    %v12369 = vshll.u32 %v12312, 16
    %v12371 = vrot.slane %v12369, 1
    %v12372 = vsel %vm1169, %v12367, %v12371
    %v12374 = vshrl.u32 %v12233, 16
    %v12376 = vshll.u32 %v12233, 16
    %v12378 = vrot.slane %v12376, 1
    %v12379 = vor.u32 %v12374, %v12378
    %v12381 = vshll.u32 %v12313, 16
    %v12383 = vrot.slane %v12381, 1
    %v12384 = vsel %vm1169, %v12379, %v12383
    %v12386 = vshrl.u32 %v12234, 16
    %v12388 = vshll.u32 %v12234, 16
    %v12390 = vrot.slane %v12388, 1
    %v12391 = vor.u32 %v12386, %v12390
    %v12393 = vshll.u32 %v12314, 16
    %v12395 = vrot.slane %v12393, 1
    %v12396 = vsel %vm1169, %v12391, %v12395
    %v12398 = vshrl.u32 %v12235, 16
    %v12400 = vshll.u32 %v12235, 16
    %v12402 = vrot.slane %v12400, 1
    %v12403 = vor.u32 %v12398, %v12402
    %v12405 = vshll.u32 %v12315, 16
    %v12407 = vrot.slane %v12405, 1
    %v12408 = vsel %vm1169, %v12403, %v12407
    %v12410 = vshrl.u32 %v12236, 16
    %v12412 = vshll.u32 %v12236, 16
    %v12414 = vrot.slane %v12412, 1
    %v12415 = vor.u32 %v12410, %v12414
    %v12417 = vshll.u32 %v12316, 16
    %v12419 = vrot.slane %v12417, 1
    %v12420 = vsel %vm1169, %v12415, %v12419
    %v12422 = vshrl.u32 %v12237, 16
    %v12424 = vshll.u32 %v12237, 16
    %v12426 = vrot.slane %v12424, 1
    %v12427 = vor.u32 %v12422, %v12426
    %v12429 = vshll.u32 %v12317, 16
    %v12431 = vrot.slane %v12429, 1
    %v12432 = vsel %vm1169, %v12427, %v12431
    %v12434 = vshrl.u32 %v12238, 16
    %v12436 = vshll.u32 %v12238, 16
    %v12438 = vrot.slane %v12436, 1
    %v12439 = vor.u32 %v12434, %v12438
    %v12441 = vshll.u32 %v12318, 16
    %v12443 = vrot.slane %v12441, 1
    %v12444 = vsel %vm1169, %v12439, %v12443
    %v12446 = vshrl.u32 %v12239, 16
    %v12448 = vshll.u32 %v12239, 16
    %v12450 = vrot.slane %v12448, 1
    %v12451 = vor.u32 %v12446, %v12450
    %v12453 = vshll.u32 %v12319, 16
    %v12455 = vrot.slane %v12453, 1
    %v12456 = vsel %vm1169, %v12451, %v12455
    %v12458 = vshrl.u32 %v12240, 16
    %v12460 = vshll.u32 %v12240, 16
    %v12462 = vrot.slane %v12460, 1
    %v12463 = vor.u32 %v12458, %v12462
    %v12465 = vshll.u32 %v12320, 16
    %v12467 = vrot.slane %v12465, 1
    %v12468 = vsel %vm1169, %v12463, %v12467
    %v12470 = vshrl.u32 %v12241, 16
    %v12472 = vshll.u32 %v12241, 16
    %v12474 = vrot.slane %v12472, 1
    %v12475 = vor.u32 %v12470, %v12474
    %v12477 = vshll.u32 %v12321, 16
    %v12479 = vrot.slane %v12477, 1
    %v12480 = vsel %vm1169, %v12475, %v12479
    %v12482 = vshrl.u32 %v12242, 16
    %v12484 = vshll.u32 %v12242, 16
    %v12486 = vrot.slane %v12484, 1
    %v12487 = vor.u32 %v12482, %v12486
    %v12489 = vshll.u32 %v12322, 16
    %v12491 = vrot.slane %v12489, 1
    %v12492 = vsel %vm1169, %v12487, %v12491
    %v12494 = vshrl.u32 %v12243, 16
    %v12496 = vshll.u32 %v12243, 16
    %v12498 = vrot.slane %v12496, 1
    %v12499 = vor.u32 %v12494, %v12498
    %v12501 = vshll.u32 %v12323, 16
    %v12503 = vrot.slane %v12501, 1
    %v12504 = vsel %vm1169, %v12499, %v12503
    %v12506 = vshrl.u32 %v12244, 16
    %v12508 = vshll.u32 %v12244, 16
    %v12510 = vrot.slane %v12508, 1
    %v12511 = vor.u32 %v12506, %v12510
    %v12513 = vshll.u32 %v12324, 16
    %v12515 = vrot.slane %v12513, 1
    %v12516 = vsel %vm1169, %v12511, %v12515
    %v12533 = vunpack.c.l.b16 %v11605
    %v12534 = vunpack.c.l.b16 %v11606
    %v12535 = vunpack.c.l.b16 %v11607
    %v12536 = vunpack.c.l.b16 %v11608
    %v12537 = vunpack.c.l.b16 %v11609
    %v12538 = vunpack.c.l.b16 %v11610
    %v12539 = vunpack.c.l.b16 %v11611
    %v12540 = vunpack.c.l.b16 %v11612
    %v12541 = vunpack.c.l.b16 %v11613
    %v12542 = vunpack.c.l.b16 %v11614
    %v12543 = vunpack.c.l.b16 %v11615
    %v12544 = vunpack.c.l.b16 %v11616
    %v12545 = vunpack.c.l.b16 %v11617
    %v12546 = vunpack.c.l.b16 %v11618
    %v12547 = vunpack.c.l.b16 %v11619
    %v12548 = vunpack.c.l.b16 %v11620
    %v12549 = vpack.c.b16 %v12198, %v12533
    %v12550 = vpack.c.b16 %v12200, %v12534
    %v12551 = vpack.c.b16 %v12202, %v12535
    %v12552 = vpack.c.b16 %v12204, %v12536
    %v12553 = vpack.c.b16 %v12206, %v12537
    %v12554 = vpack.c.b16 %v12208, %v12538
    %v12555 = vpack.c.b16 %v12210, %v12539
    %v12556 = vpack.c.b16 %v12212, %v12540
    %v12557 = vpack.c.b16 %v12214, %v12541
    %v12558 = vpack.c.b16 %v12216, %v12542
    %v12559 = vpack.c.b16 %v12218, %v12543
    %v12560 = vpack.c.b16 %v12220, %v12544
    %v12561 = vpack.c.b16 %v12222, %v12545
    %v12562 = vpack.c.b16 %v12224, %v12546
    %v12563 = vpack.c.b16 %v12226, %v12547
    %v12564 = vpack.c.b16 %v12228, %v12548
    %v12565 = vrot.slane %v12549, 1
    %v12566 = vrot.slane %v12309, 1
    %v12567 = vsel %vm1442, %v12565, %v12566
    %v12568 = vrot.slane %v12550, 1
    %v12569 = vrot.slane %v12310, 1
    %v12570 = vsel %vm1442, %v12568, %v12569
    %v12571 = vrot.slane %v12551, 1
    %v12572 = vrot.slane %v12311, 1
    %v12573 = vsel %vm1442, %v12571, %v12572
    %v12574 = vrot.slane %v12552, 1
    %v12575 = vrot.slane %v12312, 1
    %v12576 = vsel %vm1442, %v12574, %v12575
    %v12577 = vrot.slane %v12553, 1
    %v12578 = vrot.slane %v12313, 1
    %v12579 = vsel %vm1442, %v12577, %v12578
    %v12580 = vrot.slane %v12554, 1
    %v12581 = vrot.slane %v12314, 1
    %v12582 = vsel %vm1442, %v12580, %v12581
    %v12583 = vrot.slane %v12555, 1
    %v12584 = vrot.slane %v12315, 1
    %v12585 = vsel %vm1442, %v12583, %v12584
    %v12586 = vrot.slane %v12556, 1
    %v12587 = vrot.slane %v12316, 1
    %v12588 = vsel %vm1442, %v12586, %v12587
    %v12589 = vrot.slane %v12557, 1
    %v12590 = vrot.slane %v12317, 1
    %v12591 = vsel %vm1442, %v12589, %v12590
    %v12592 = vrot.slane %v12558, 1
    %v12593 = vrot.slane %v12318, 1
    %v12594 = vsel %vm1442, %v12592, %v12593
    %v12595 = vrot.slane %v12559, 1
    %v12596 = vrot.slane %v12319, 1
    %v12597 = vsel %vm1442, %v12595, %v12596
    %v12598 = vrot.slane %v12560, 1
    %v12599 = vrot.slane %v12320, 1
    %v12600 = vsel %vm1442, %v12598, %v12599
    %v12601 = vrot.slane %v12561, 1
    %v12602 = vrot.slane %v12321, 1
    %v12603 = vsel %vm1442, %v12601, %v12602
    %v12604 = vrot.slane %v12562, 1
    %v12605 = vrot.slane %v12322, 1
    %v12606 = vsel %vm1442, %v12604, %v12605
    %v12607 = vrot.slane %v12563, 1
    %v12608 = vrot.slane %v12323, 1
    %v12609 = vsel %vm1442, %v12607, %v12608
    %v12610 = vrot.slane %v12564, 1
    %v12611 = vrot.slane %v12324, 1
    %v12612 = vsel %vm1442, %v12610, %v12611
    %12613 = vrot.lane.b32.xlu0 %v12567, 32
    %v12614 = vpop.permute.xlu0 %12613
    %12615 = vrot.lane.b32.xlu0 %v12570, 32
    %v12616 = vpop.permute.xlu0 %12615
    %12617 = vrot.lane.b32.xlu0 %v12573, 32
    %v12618 = vpop.permute.xlu0 %12617
    %12619 = vrot.lane.b32.xlu0 %v12576, 32
    %v12620 = vpop.permute.xlu0 %12619
    %12621 = vrot.lane.b32.xlu0 %v12579, 32
    %v12622 = vpop.permute.xlu0 %12621
    %12623 = vrot.lane.b32.xlu0 %v12582, 32
    %v12624 = vpop.permute.xlu0 %12623
    %12625 = vrot.lane.b32.xlu0 %v12585, 32
    %v12626 = vpop.permute.xlu0 %12625
    %12627 = vrot.lane.b32.xlu0 %v12588, 32
    %v12628 = vpop.permute.xlu0 %12627
    %12629 = vrot.lane.b32.xlu0 %v12591, 32
    %v12630 = vpop.permute.xlu0 %12629
    %12631 = vrot.lane.b32.xlu0 %v12594, 32
    %v12632 = vpop.permute.xlu0 %12631
    %12633 = vrot.lane.b32.xlu0 %v12597, 32
    %v12634 = vpop.permute.xlu0 %12633
    %12635 = vrot.lane.b32.xlu0 %v12600, 32
    %v12636 = vpop.permute.xlu0 %12635
    %12637 = vrot.lane.b32.xlu0 %v12603, 32
    %v12638 = vpop.permute.xlu0 %12637
    %12639 = vrot.lane.b32.xlu0 %v12606, 32
    %v12640 = vpop.permute.xlu0 %12639
    %12641 = vrot.lane.b32.xlu0 %v12609, 32
    %v12642 = vpop.permute.xlu0 %12641
    %12643 = vrot.lane.b32.xlu0 %v12612, 32
    %v12644 = vpop.permute.xlu0 %12643
    %v12677 = vunpack.c.l.b16 %v11621
    %v12678 = vunpack.c.l.b16 %v11622
    %v12679 = vunpack.c.l.b16 %v11623
    %v12680 = vunpack.c.l.b16 %v11624
    %v12681 = vunpack.c.l.b16 %v11625
    %v12682 = vunpack.c.l.b16 %v11626
    %v12683 = vunpack.c.l.b16 %v11627
    %v12684 = vunpack.c.l.b16 %v11628
    %v12685 = vunpack.c.l.b16 %v11629
    %v12686 = vunpack.c.l.b16 %v11630
    %v12687 = vunpack.c.l.b16 %v11631
    %v12688 = vunpack.c.l.b16 %v11632
    %v12689 = vunpack.c.l.b16 %v11633
    %v12690 = vunpack.c.l.b16 %v11634
    %v12691 = vunpack.c.l.b16 %v11635
    %v12692 = vunpack.c.l.b16 %v11636
    %v12693 = vunpack.c.l.b16 %v11637
    %v12694 = vunpack.c.l.b16 %v11638
    %v12695 = vunpack.c.l.b16 %v11639
    %v12696 = vunpack.c.l.b16 %v11640
    %v12697 = vunpack.c.l.b16 %v11641
    %v12698 = vunpack.c.l.b16 %v11642
    %v12699 = vunpack.c.l.b16 %v11643
    %v12700 = vunpack.c.l.b16 %v11644
    %v12701 = vunpack.c.l.b16 %v11645
    %v12702 = vunpack.c.l.b16 %v11646
    %v12703 = vunpack.c.l.b16 %v11647
    %v12704 = vunpack.c.l.b16 %v11648
    %v12705 = vunpack.c.l.b16 %v11649
    %v12706 = vunpack.c.l.b16 %v11650
    %v12707 = vunpack.c.l.b16 %v11651
    %v12708 = vunpack.c.l.b16 %v11652
    %v12709 = vpack.c.b16 %v12678, %v12677
    %v12710 = vpack.c.b16 %v12680, %v12679
    %v12711 = vpack.c.b16 %v12682, %v12681
    %v12712 = vpack.c.b16 %v12684, %v12683
    %v12713 = vpack.c.b16 %v12686, %v12685
    %v12714 = vpack.c.b16 %v12688, %v12687
    %v12715 = vpack.c.b16 %v12690, %v12689
    %v12716 = vpack.c.b16 %v12692, %v12691
    %v12717 = vpack.c.b16 %v12694, %v12693
    %v12718 = vpack.c.b16 %v12696, %v12695
    %v12719 = vpack.c.b16 %v12698, %v12697
    %v12720 = vpack.c.b16 %v12700, %v12699
    %v12721 = vpack.c.b16 %v12702, %v12701
    %v12722 = vpack.c.b16 %v12704, %v12703
    %v12723 = vpack.c.b16 %v12706, %v12705
    %v12724 = vpack.c.b16 %v12708, %v12707
    %12725 = vrot.lane.b32.xlu0 %v12709, 64
    %v12726 = vpop.permute.xlu0 %12725
    %12727 = vrot.lane.b32.xlu0 %v12710, 64
    %v12728 = vpop.permute.xlu0 %12727
    %12729 = vrot.lane.b32.xlu0 %v12711, 64
    %v12730 = vpop.permute.xlu0 %12729
    %12731 = vrot.lane.b32.xlu0 %v12712, 64
    %v12732 = vpop.permute.xlu0 %12731
    %12733 = vrot.lane.b32.xlu0 %v12713, 64
    %v12734 = vpop.permute.xlu0 %12733
    %12735 = vrot.lane.b32.xlu0 %v12714, 64
    %v12736 = vpop.permute.xlu0 %12735
    %12737 = vrot.lane.b32.xlu0 %v12715, 64
    %v12738 = vpop.permute.xlu0 %12737
    %12739 = vrot.lane.b32.xlu0 %v12716, 64
    %v12740 = vpop.permute.xlu0 %12739
    %12741 = vrot.lane.b32.xlu0 %v12717, 64
    %v12742 = vpop.permute.xlu0 %12741
    %12743 = vrot.lane.b32.xlu0 %v12718, 64
    %v12744 = vpop.permute.xlu0 %12743
    %12745 = vrot.lane.b32.xlu0 %v12719, 64
    %v12746 = vpop.permute.xlu0 %12745
    %12747 = vrot.lane.b32.xlu0 %v12720, 64
    %v12748 = vpop.permute.xlu0 %12747
    %12749 = vrot.lane.b32.xlu0 %v12721, 64
    %v12750 = vpop.permute.xlu0 %12749
    %12751 = vrot.lane.b32.xlu0 %v12722, 64
    %v12752 = vpop.permute.xlu0 %12751
    %12753 = vrot.lane.b32.xlu0 %v12723, 64
    %v12754 = vpop.permute.xlu0 %12753
    %12755 = vrot.lane.b32.xlu0 %v12724, 64
    %v12756 = vpop.permute.xlu0 %12755
    %v12773 = vunpack.c.l.b16 %v11653
    %v12774 = vunpack.c.l.b16 %v11654
    %v12775 = vunpack.c.l.b16 %v11655
    %v12776 = vunpack.c.l.b16 %v11656
    %v12777 = vunpack.c.l.b16 %v11657
    %v12778 = vunpack.c.l.b16 %v11658
    %v12779 = vunpack.c.l.b16 %v11659
    %v12780 = vunpack.c.l.b16 %v11660
    %v12781 = vunpack.c.l.b16 %v11661
    %v12782 = vunpack.c.l.b16 %v11662
    %v12783 = vunpack.c.l.b16 %v11663
    %v12784 = vunpack.c.l.b16 %v11664
    %v12785 = vunpack.c.l.b16 %v11665
    %v12786 = vunpack.c.l.b16 %v11666
    %v12787 = vunpack.c.l.b16 %v11667
    %v12788 = vunpack.c.l.b16 %v11668
    %v12789 = vpack.c.b16 %v12773, %v12773
    %v12790 = vpack.c.b16 %v12774, %v12774
    %v12791 = vpack.c.b16 %v12775, %v12775
    %v12792 = vpack.c.b16 %v12776, %v12776
    %v12793 = vpack.c.b16 %v12777, %v12777
    %v12794 = vpack.c.b16 %v12778, %v12778
    %v12795 = vpack.c.b16 %v12779, %v12779
    %v12796 = vpack.c.b16 %v12780, %v12780
    %v12797 = vpack.c.b16 %v12781, %v12781
    %v12798 = vpack.c.b16 %v12782, %v12782
    %v12799 = vpack.c.b16 %v12783, %v12783
    %v12800 = vpack.c.b16 %v12784, %v12784
    %v12801 = vpack.c.b16 %v12785, %v12785
    %v12802 = vpack.c.b16 %v12786, %v12786
    %v12803 = vpack.c.b16 %v12787, %v12787
    %v12804 = vpack.c.b16 %v12788, %v12788
    %v12806 = vshrl.u32 %v12709, 16
    %v12808 = vshll.u32 %v12709, 16
    %v12810 = vrot.slane %v12808, 1
    %v12811 = vor.u32 %v12806, %v12810
    %v12813 = vshll.u32 %v12789, 16
    %v12815 = vrot.slane %v12813, 1
    %v12816 = vsel %vm1169, %v12811, %v12815
    %v12818 = vshrl.u32 %v12710, 16
    %v12820 = vshll.u32 %v12710, 16
    %v12822 = vrot.slane %v12820, 1
    %v12823 = vor.u32 %v12818, %v12822
    %v12825 = vshll.u32 %v12790, 16
    %v12827 = vrot.slane %v12825, 1
    %v12828 = vsel %vm1169, %v12823, %v12827
    %v12830 = vshrl.u32 %v12711, 16
    %v12832 = vshll.u32 %v12711, 16
    %v12834 = vrot.slane %v12832, 1
    %v12835 = vor.u32 %v12830, %v12834
    %v12837 = vshll.u32 %v12791, 16
    %v12839 = vrot.slane %v12837, 1
    %v12840 = vsel %vm1169, %v12835, %v12839
    %v12842 = vshrl.u32 %v12712, 16
    %v12844 = vshll.u32 %v12712, 16
    %v12846 = vrot.slane %v12844, 1
    %v12847 = vor.u32 %v12842, %v12846
    %v12849 = vshll.u32 %v12792, 16
    %v12851 = vrot.slane %v12849, 1
    %v12852 = vsel %vm1169, %v12847, %v12851
    %v12854 = vshrl.u32 %v12713, 16
    %v12856 = vshll.u32 %v12713, 16
    %v12858 = vrot.slane %v12856, 1
    %v12859 = vor.u32 %v12854, %v12858
    %v12861 = vshll.u32 %v12793, 16
    %v12863 = vrot.slane %v12861, 1
    %v12864 = vsel %vm1169, %v12859, %v12863
    %v12866 = vshrl.u32 %v12714, 16
    %v12868 = vshll.u32 %v12714, 16
    %v12870 = vrot.slane %v12868, 1
    %v12871 = vor.u32 %v12866, %v12870
    %v12873 = vshll.u32 %v12794, 16
    %v12875 = vrot.slane %v12873, 1
    %v12876 = vsel %vm1169, %v12871, %v12875
    %v12878 = vshrl.u32 %v12715, 16
    %v12880 = vshll.u32 %v12715, 16
    %v12882 = vrot.slane %v12880, 1
    %v12883 = vor.u32 %v12878, %v12882
    %v12885 = vshll.u32 %v12795, 16
    %v12887 = vrot.slane %v12885, 1
    %v12888 = vsel %vm1169, %v12883, %v12887
    %v12890 = vshrl.u32 %v12716, 16
    %v12892 = vshll.u32 %v12716, 16
    %v12894 = vrot.slane %v12892, 1
    %v12895 = vor.u32 %v12890, %v12894
    %v12897 = vshll.u32 %v12796, 16
    %v12899 = vrot.slane %v12897, 1
    %v12900 = vsel %vm1169, %v12895, %v12899
    %v12902 = vshrl.u32 %v12717, 16
    %v12904 = vshll.u32 %v12717, 16
    %v12906 = vrot.slane %v12904, 1
    %v12907 = vor.u32 %v12902, %v12906
    %v12909 = vshll.u32 %v12797, 16
    %v12911 = vrot.slane %v12909, 1
    %v12912 = vsel %vm1169, %v12907, %v12911
    %v12914 = vshrl.u32 %v12718, 16
    %v12916 = vshll.u32 %v12718, 16
    %v12918 = vrot.slane %v12916, 1
    %v12919 = vor.u32 %v12914, %v12918
    %v12921 = vshll.u32 %v12798, 16
    %v12923 = vrot.slane %v12921, 1
    %v12924 = vsel %vm1169, %v12919, %v12923
    %v12926 = vshrl.u32 %v12719, 16
    %v12928 = vshll.u32 %v12719, 16
    %v12930 = vrot.slane %v12928, 1
    %v12931 = vor.u32 %v12926, %v12930
    %v12933 = vshll.u32 %v12799, 16
    %v12935 = vrot.slane %v12933, 1
    %v12936 = vsel %vm1169, %v12931, %v12935
    %v12938 = vshrl.u32 %v12720, 16
    %v12940 = vshll.u32 %v12720, 16
    %v12942 = vrot.slane %v12940, 1
    %v12943 = vor.u32 %v12938, %v12942
    %v12945 = vshll.u32 %v12800, 16
    %v12947 = vrot.slane %v12945, 1
    %v12948 = vsel %vm1169, %v12943, %v12947
    %v12950 = vshrl.u32 %v12721, 16
    %v12952 = vshll.u32 %v12721, 16
    %v12954 = vrot.slane %v12952, 1
    %v12955 = vor.u32 %v12950, %v12954
    %v12957 = vshll.u32 %v12801, 16
    %v12959 = vrot.slane %v12957, 1
    %v12960 = vsel %vm1169, %v12955, %v12959
    %v12962 = vshrl.u32 %v12722, 16
    %v12964 = vshll.u32 %v12722, 16
    %v12966 = vrot.slane %v12964, 1
    %v12967 = vor.u32 %v12962, %v12966
    %v12969 = vshll.u32 %v12802, 16
    %v12971 = vrot.slane %v12969, 1
    %v12972 = vsel %vm1169, %v12967, %v12971
    %v12974 = vshrl.u32 %v12723, 16
    %v12976 = vshll.u32 %v12723, 16
    %v12978 = vrot.slane %v12976, 1
    %v12979 = vor.u32 %v12974, %v12978
    %v12981 = vshll.u32 %v12803, 16
    %v12983 = vrot.slane %v12981, 1
    %v12984 = vsel %vm1169, %v12979, %v12983
    %v12986 = vshrl.u32 %v12724, 16
    %v12988 = vshll.u32 %v12724, 16
    %v12990 = vrot.slane %v12988, 1
    %v12991 = vor.u32 %v12986, %v12990
    %v12993 = vshll.u32 %v12804, 16
    %v12995 = vrot.slane %v12993, 1
    %v12996 = vsel %vm1169, %v12991, %v12995
    %12997 = vrot.lane.b32.xlu0 %v12816, 96
    %v12998 = vpop.permute.xlu0 %12997
    %12999 = vrot.lane.b32.xlu0 %v12828, 96
    %v13000 = vpop.permute.xlu0 %12999
    %13001 = vrot.lane.b32.xlu0 %v12840, 96
    %v13002 = vpop.permute.xlu0 %13001
    %13003 = vrot.lane.b32.xlu0 %v12852, 96
    %v13004 = vpop.permute.xlu0 %13003
    %13005 = vrot.lane.b32.xlu0 %v12864, 96
    %v13006 = vpop.permute.xlu0 %13005
    %13007 = vrot.lane.b32.xlu0 %v12876, 96
    %v13008 = vpop.permute.xlu0 %13007
    %13009 = vrot.lane.b32.xlu0 %v12888, 96
    %v13010 = vpop.permute.xlu0 %13009
    %13011 = vrot.lane.b32.xlu0 %v12900, 96
    %v13012 = vpop.permute.xlu0 %13011
    %13013 = vrot.lane.b32.xlu0 %v12912, 96
    %v13014 = vpop.permute.xlu0 %13013
    %13015 = vrot.lane.b32.xlu0 %v12924, 96
    %v13016 = vpop.permute.xlu0 %13015
    %13017 = vrot.lane.b32.xlu0 %v12936, 96
    %v13018 = vpop.permute.xlu0 %13017
    %13019 = vrot.lane.b32.xlu0 %v12948, 96
    %v13020 = vpop.permute.xlu0 %13019
    %13021 = vrot.lane.b32.xlu0 %v12960, 96
    %v13022 = vpop.permute.xlu0 %13021
    %13023 = vrot.lane.b32.xlu0 %v12972, 96
    %v13024 = vpop.permute.xlu0 %13023
    %13025 = vrot.lane.b32.xlu0 %v12984, 96
    %v13026 = vpop.permute.xlu0 %13025
    %13027 = vrot.lane.b32.xlu0 %v12996, 96
    %v13028 = vpop.permute.xlu0 %13027
    %v13045 = vunpack.c.l.b16 %v11669
    %v13046 = vunpack.c.l.b16 %v11670
    %v13047 = vunpack.c.l.b16 %v11671
    %v13048 = vunpack.c.l.b16 %v11672
    %v13049 = vunpack.c.l.b16 %v11673
    %v13050 = vunpack.c.l.b16 %v11674
    %v13051 = vunpack.c.l.b16 %v11675
    %v13052 = vunpack.c.l.b16 %v11676
    %v13053 = vunpack.c.l.b16 %v11677
    %v13054 = vunpack.c.l.b16 %v11678
    %v13055 = vunpack.c.l.b16 %v11679
    %v13056 = vunpack.c.l.b16 %v11680
    %v13057 = vunpack.c.l.b16 %v11681
    %v13058 = vunpack.c.l.b16 %v11682
    %v13059 = vunpack.c.l.b16 %v11683
    %v13060 = vunpack.c.l.b16 %v11684
    %v13061 = vpack.c.b16 %v12678, %v13045
    %v13062 = vpack.c.b16 %v12680, %v13046
    %v13063 = vpack.c.b16 %v12682, %v13047
    %v13064 = vpack.c.b16 %v12684, %v13048
    %v13065 = vpack.c.b16 %v12686, %v13049
    %v13066 = vpack.c.b16 %v12688, %v13050
    %v13067 = vpack.c.b16 %v12690, %v13051
    %v13068 = vpack.c.b16 %v12692, %v13052
    %v13069 = vpack.c.b16 %v12694, %v13053
    %v13070 = vpack.c.b16 %v12696, %v13054
    %v13071 = vpack.c.b16 %v12698, %v13055
    %v13072 = vpack.c.b16 %v12700, %v13056
    %v13073 = vpack.c.b16 %v12702, %v13057
    %v13074 = vpack.c.b16 %v12704, %v13058
    %v13075 = vpack.c.b16 %v12706, %v13059
    %v13076 = vpack.c.b16 %v12708, %v13060
    %v13077 = vrot.slane %v13061, 1
    %v13078 = vrot.slane %v12789, 1
    %v13079 = vsel %vm1442, %v13077, %v13078
    %v13080 = vrot.slane %v13062, 1
    %v13081 = vrot.slane %v12790, 1
    %v13082 = vsel %vm1442, %v13080, %v13081
    %v13083 = vrot.slane %v13063, 1
    %v13084 = vrot.slane %v12791, 1
    %v13085 = vsel %vm1442, %v13083, %v13084
    %v13086 = vrot.slane %v13064, 1
    %v13087 = vrot.slane %v12792, 1
    %v13088 = vsel %vm1442, %v13086, %v13087
    %v13089 = vrot.slane %v13065, 1
    %v13090 = vrot.slane %v12793, 1
    %v13091 = vsel %vm1442, %v13089, %v13090
    %v13092 = vrot.slane %v13066, 1
    %v13093 = vrot.slane %v12794, 1
    %v13094 = vsel %vm1442, %v13092, %v13093
    %v13095 = vrot.slane %v13067, 1
    %v13096 = vrot.slane %v12795, 1
    %v13097 = vsel %vm1442, %v13095, %v13096
    %v13098 = vrot.slane %v13068, 1
    %v13099 = vrot.slane %v12796, 1
    %v13100 = vsel %vm1442, %v13098, %v13099
    %v13101 = vrot.slane %v13069, 1
    %v13102 = vrot.slane %v12797, 1
    %v13103 = vsel %vm1442, %v13101, %v13102
    %v13104 = vrot.slane %v13070, 1
    %v13105 = vrot.slane %v12798, 1
    %v13106 = vsel %vm1442, %v13104, %v13105
    %v13107 = vrot.slane %v13071, 1
    %v13108 = vrot.slane %v12799, 1
    %v13109 = vsel %vm1442, %v13107, %v13108
    %v13110 = vrot.slane %v13072, 1
    %v13111 = vrot.slane %v12800, 1
    %v13112 = vsel %vm1442, %v13110, %v13111
    %v13113 = vrot.slane %v13073, 1
    %v13114 = vrot.slane %v12801, 1
    %v13115 = vsel %vm1442, %v13113, %v13114
    %v13116 = vrot.slane %v13074, 1
    %v13117 = vrot.slane %v12802, 1
    %v13118 = vsel %vm1442, %v13116, %v13117
    %v13119 = vrot.slane %v13075, 1
    %v13120 = vrot.slane %v12803, 1
    %v13121 = vsel %vm1442, %v13119, %v13120
    %v13122 = vrot.slane %v13076, 1
    %v13123 = vrot.slane %v12804, 1
    %v13124 = vsel %vm1442, %v13122, %v13123
    %v13126 = vsel %vm2483, %v11749, %v12006
    %v13128 = vsel %vm2483, %v11750, %v12008
    %v13130 = vsel %vm2483, %v11751, %v12010
    %v13132 = vsel %vm2483, %v11752, %v12012
    %v13134 = vsel %vm2483, %v11753, %v12014
    %v13136 = vsel %vm2483, %v11754, %v12016
    %v13138 = vsel %vm2483, %v11755, %v12018
    %v13140 = vsel %vm2483, %v11756, %v12020
    %v13142 = vsel %vm2483, %v11757, %v12022
    %v13144 = vsel %vm2483, %v11758, %v12024
    %v13146 = vsel %vm2483, %v11759, %v12026
    %v13148 = vsel %vm2483, %v11760, %v12028
    %v13150 = vsel %vm2483, %v11761, %v12030
    %v13152 = vsel %vm2483, %v11762, %v12032
    %v13154 = vsel %vm2483, %v11763, %v12034
    %v13156 = vsel %vm2483, %v11764, %v12036
    %v13158 = vsel %vm122, %v13126, %v12134
    %v13160 = vsel %vm122, %v13128, %v12136
    %v13162 = vsel %vm122, %v13130, %v12138
    %v13164 = vsel %vm122, %v13132, %v12140
    %v13166 = vsel %vm122, %v13134, %v12142
    %v13168 = vsel %vm122, %v13136, %v12144
    %v13170 = vsel %vm122, %v13138, %v12146
    %v13172 = vsel %vm122, %v13140, %v12148
    %v13174 = vsel %vm122, %v13142, %v12150
    %v13176 = vsel %vm122, %v13144, %v12152
    %v13178 = vsel %vm122, %v13146, %v12154
    %v13180 = vsel %vm122, %v13148, %v12156
    %v13182 = vsel %vm122, %v13150, %v12158
    %v13184 = vsel %vm122, %v13152, %v12160
    %v13186 = vsel %vm122, %v13154, %v12162
    %v13188 = vsel %vm122, %v13156, %v12164
    %v13190 = vsel %vm2548, %v13158, %v12246
    %v13193 = vsel %vm2548, %v13160, %v12248
    %v13196 = vsel %vm2548, %v13162, %v12250
    %v13199 = vsel %vm2548, %v13164, %v12252
    %v13202 = vsel %vm2548, %v13166, %v12254
    %v13205 = vsel %vm2548, %v13168, %v12256
    %v13208 = vsel %vm2548, %v13170, %v12258
    %v13211 = vsel %vm2548, %v13172, %v12260
    %v13214 = vsel %vm2548, %v13174, %v12262
    %v13217 = vsel %vm2548, %v13176, %v12264
    %v13220 = vsel %vm2548, %v13178, %v12266
    %v13223 = vsel %vm2548, %v13180, %v12268
    %v13226 = vsel %vm2548, %v13182, %v12270
    %v13229 = vsel %vm2548, %v13184, %v12272
    %v13232 = vsel %vm2548, %v13186, %v12274
    %v13235 = vsel %vm2548, %v13188, %v12276
    %v13239 = vsel %vm2483, %v12336, %v12614
    %v13242 = vsel %vm2483, %v12348, %v12616
    %v13245 = vsel %vm2483, %v12360, %v12618
    %v13248 = vsel %vm2483, %v12372, %v12620
    %v13251 = vsel %vm2483, %v12384, %v12622
    %v13254 = vsel %vm2483, %v12396, %v12624
    %v13257 = vsel %vm2483, %v12408, %v12626
    %v13260 = vsel %vm2483, %v12420, %v12628
    %v13263 = vsel %vm2483, %v12432, %v12630
    %v13266 = vsel %vm2483, %v12444, %v12632
    %v13269 = vsel %vm2483, %v12456, %v12634
    %v13272 = vsel %vm2483, %v12468, %v12636
    %v13275 = vsel %vm2483, %v12480, %v12638
    %v13278 = vsel %vm2483, %v12492, %v12640
    %v13281 = vsel %vm2483, %v12504, %v12642
    %v13284 = vsel %vm2483, %v12516, %v12644
    %v13286 = vsel %vm122, %v13239, %v12726
    %v13288 = vsel %vm122, %v13242, %v12728
    %v13290 = vsel %vm122, %v13245, %v12730
    %v13292 = vsel %vm122, %v13248, %v12732
    %v13294 = vsel %vm122, %v13251, %v12734
    %v13296 = vsel %vm122, %v13254, %v12736
    %v13298 = vsel %vm122, %v13257, %v12738
    %v13300 = vsel %vm122, %v13260, %v12740
    %v13302 = vsel %vm122, %v13263, %v12742
    %v13304 = vsel %vm122, %v13266, %v12744
    %v13306 = vsel %vm122, %v13269, %v12746
    %v13308 = vsel %vm122, %v13272, %v12748
    %v13310 = vsel %vm122, %v13275, %v12750
    %v13312 = vsel %vm122, %v13278, %v12752
    %v13314 = vsel %vm122, %v13281, %v12754
    %v13316 = vsel %vm122, %v13284, %v12756
    %v13318 = vsel %vm2548, %v13286, %v12998
    %v13321 = vsel %vm2548, %v13288, %v13000
    %v13324 = vsel %vm2548, %v13290, %v13002
    %v13327 = vsel %vm2548, %v13292, %v13004
    %v13330 = vsel %vm2548, %v13294, %v13006
    %v13333 = vsel %vm2548, %v13296, %v13008
    %v13336 = vsel %vm2548, %v13298, %v13010
    %v13339 = vsel %vm2548, %v13300, %v13012
    %v13342 = vsel %vm2548, %v13302, %v13014
    %v13345 = vsel %vm2548, %v13304, %v13016
    %v13348 = vsel %vm2548, %v13306, %v13018
    %v13351 = vsel %vm2548, %v13308, %v13020
    %v13354 = vsel %vm2548, %v13310, %v13022
    %v13357 = vsel %vm2548, %v13312, %v13024
    %v13360 = vsel %vm2548, %v13314, %v13026
    %v13363 = vsel %vm2548, %v13316, %v13028
    %v13365 = vld [vmem:[%s6250] sm:$0xf]
    %v13366 = vld [vmem:[%s6250 + $0x4] sm:$0xf]
    %v13367 = vld [vmem:[%s6250 + $0x8] sm:$0xf]
    %v13368 = vld [vmem:[%s6250 + $0xc] sm:$0xf]
    %v13369 = vld [vmem:[%s6250 + $0x10] sm:$0xf]
    %v13370 = vld [vmem:[%s6250 + $0x14] sm:$0xf]
    %v13371 = vld [vmem:[%s6250 + $0x18] sm:$0xf]
    %v13372 = vld [vmem:[%s6250 + $0x1c] sm:$0xf]
    %v13373 = vld [vmem:[%s6250 + $0x20] sm:$0xf]
    %v13374 = vld [vmem:[%s6250 + $0x24] sm:$0xf]
    %v13375 = vld [vmem:[%s6250 + $0x28] sm:$0xf]
    %v13376 = vld [vmem:[%s6250 + $0x2c] sm:$0xf]
    %v13377 = vld [vmem:[%s6250 + $0x30] sm:$0xf]
    %v13378 = vld [vmem:[%s6250 + $0x34] sm:$0xf]
    %v13379 = vld [vmem:[%s6250 + $0x38] sm:$0xf]
    %v13380 = vld [vmem:[%s6250 + $0x3c] sm:$0xf]
    %v13381 = vld [vmem:[%s6250 + $0x40] sm:$0xf]
    %v13382 = vld [vmem:[%s6250 + $0x44] sm:$0xf]
    %v13383 = vld [vmem:[%s6250 + $0x48] sm:$0xf]
    %v13384 = vld [vmem:[%s6250 + $0x4c] sm:$0xf]
    %v13385 = vld [vmem:[%s6250 + $0x50] sm:$0xf]
    %v13386 = vld [vmem:[%s6250 + $0x54] sm:$0xf]
    %v13387 = vld [vmem:[%s6250 + $0x58] sm:$0xf]
    %v13388 = vld [vmem:[%s6250 + $0x5c] sm:$0xf]
    %v13389 = vld [vmem:[%s6250 + $0x60] sm:$0xf]
    %v13390 = vld [vmem:[%s6250 + $0x64] sm:$0xf]
    %v13391 = vld [vmem:[%s6250 + $0x68] sm:$0xf]
    %v13392 = vld [vmem:[%s6250 + $0x6c] sm:$0xf]
    %v13393 = vld [vmem:[%s6250 + $0x70] sm:$0xf]
    %v13394 = vld [vmem:[%s6250 + $0x74] sm:$0xf]
    %v13395 = vld [vmem:[%s6250 + $0x78] sm:$0xf]
    %v13396 = vld [vmem:[%s6250 + $0x7c] sm:$0xf]
    %v13397 = vld [vmem:[%s6250 + $0x80] sm:$0xf]
    %v13398 = vld [vmem:[%s6250 + $0x84] sm:$0xf]
    %v13399 = vld [vmem:[%s6250 + $0x88] sm:$0xf]
    %v13400 = vld [vmem:[%s6250 + $0x8c] sm:$0xf]
    %v13437 = vunpack.c.l.b16 %v13365
    %v13438 = vunpack.c.l.b16 %v13366
    %v13439 = vunpack.c.l.b16 %v13367
    %v13440 = vunpack.c.l.b16 %v13368
    %v13441 = vunpack.c.l.b16 %v13369
    %v13442 = vunpack.c.l.b16 %v13370
    %v13443 = vunpack.c.l.b16 %v13371
    %v13444 = vunpack.c.l.b16 %v13372
    %v13445 = vunpack.c.l.b16 %v13373
    %v13446 = vunpack.c.l.b16 %v13374
    %v13447 = vunpack.c.l.b16 %v13375
    %v13448 = vunpack.c.l.b16 %v13376
    %v13449 = vunpack.c.l.b16 %v13377
    %v13450 = vunpack.c.l.b16 %v13378
    %v13451 = vunpack.c.l.b16 %v13379
    %v13452 = vunpack.c.l.b16 %v13380
    %v13453 = vunpack.c.l.b16 %v13381
    %v13454 = vunpack.c.l.b16 %v13382
    %v13455 = vunpack.c.l.b16 %v13383
    %v13456 = vunpack.c.l.b16 %v13384
    %v13457 = vunpack.c.l.b16 %v13385
    %v13458 = vunpack.c.l.b16 %v13386
    %v13459 = vunpack.c.l.b16 %v13387
    %v13460 = vunpack.c.l.b16 %v13388
    %v13461 = vunpack.c.l.b16 %v13389
    %v13462 = vunpack.c.l.b16 %v13390
    %v13463 = vunpack.c.l.b16 %v13391
    %v13464 = vunpack.c.l.b16 %v13392
    %v13465 = vunpack.c.l.b16 %v13393
    %v13466 = vunpack.c.l.b16 %v13394
    %v13467 = vunpack.c.l.b16 %v13395
    %v13468 = vunpack.c.l.b16 %v13396
    %v13469 = vunpack.c.l.b16 %v13397
    %v13470 = vunpack.c.l.b16 %v13398
    %v13471 = vunpack.c.l.b16 %v13399
    %v13472 = vunpack.c.l.b16 %v13400
    %v13473 = vpack.c.b16 %v13438, %v13437
    %v13474 = vpack.c.b16 %v13440, %v13439
    %v13475 = vpack.c.b16 %v13442, %v13441
    %v13476 = vpack.c.b16 %v13444, %v13443
    %v13477 = vpack.c.b16 %v13446, %v13445
    %v13478 = vpack.c.b16 %v13448, %v13447
    %v13479 = vpack.c.b16 %v13450, %v13449
    %v13480 = vpack.c.b16 %v13452, %v13451
    %v13481 = vpack.c.b16 %v13454, %v13453
    %v13482 = vpack.c.b16 %v13456, %v13455
    %v13483 = vpack.c.b16 %v13458, %v13457
    %v13484 = vpack.c.b16 %v13460, %v13459
    %v13485 = vpack.c.b16 %v13462, %v13461
    %v13486 = vpack.c.b16 %v13464, %v13463
    %v13487 = vpack.c.b16 %v13466, %v13465
    %v13488 = vpack.c.b16 %v13468, %v13467
    %v13489 = vpack.c.b16 %v13470, %v13469
    %v13490 = vpack.c.b16 %v13472, %v13471
    %v13510 = vsel %vm2483, %v13079, 0
    %v13513 = vsel %vm2483, %v13082, 0
    %v13516 = vsel %vm2483, %v13085, 0
    %v13519 = vsel %vm2483, %v13088, 0
    %v13522 = vsel %vm2483, %v13091, 0
    %v13525 = vsel %vm2483, %v13094, 0
    %v13528 = vsel %vm2483, %v13097, 0
    %v13531 = vsel %vm2483, %v13100, 0
    %v13534 = vsel %vm2483, %v13103, 0
    %v13537 = vsel %vm2483, %v13106, 0
    %v13540 = vsel %vm2483, %v13109, 0
    %v13543 = vsel %vm2483, %v13112, 0
    %v13546 = vsel %vm2483, %v13115, 0
    %v13549 = vsel %vm2483, %v13118, 0
    %v13552 = vsel %vm2483, %v13121, 0
    %v13555 = vsel %vm2483, %v13124, 0
    %13557 = vmatprep.subr.bf16.mxu0 0
    %13558 = vmatpush1.bf16.msra.mxu0 %v13473
    %13559 = vmatprep.subr.bf16.mxu0 0
    %13560 = vmatpush1.bf16.msra.mxu0 %v13474
    %13561 = vmatprep.subr.bf16.mxu0 0
    %13562 = vmatpush1.bf16.msra.mxu0 %v13475
    %13563 = vmatprep.subr.bf16.mxu0 0
    %13564 = vmatpush1.bf16.msra.mxu0 %v13476
    %13565 = vmatprep.subr.bf16.mxu0 0
    %13566 = vmatpush1.bf16.msra.mxu0 %v13477
    %13567 = vmatprep.subr.bf16.mxu0 0
    %13568 = vmatpush1.bf16.msra.mxu0 %v13478
    %13569 = vmatprep.subr.bf16.mxu0 0
    %13570 = vmatpush1.bf16.msra.mxu0 %v13479
    %13571 = vmatprep.subr.bf16.mxu0 0
    %13572 = vmatpush1.bf16.msra.mxu0 %v13480
    %13573 = vmatprep.subr.bf16.mxu0 0
    %13574 = vmatpush1.bf16.msra.mxu0 %v13481
    %13575 = vmatprep.subr.bf16.mxu0 0
    %13576 = vmatpush1.bf16.msra.mxu0 %v13482
    %13577 = vmatprep.subr.bf16.mxu0 0
    %13578 = vmatpush1.bf16.msra.mxu0 %v13483
    %13579 = vmatprep.subr.bf16.mxu0 0
    %13580 = vmatpush1.bf16.msra.mxu0 %v13484
    %13581 = vmatprep.subr.bf16.mxu0 0
    %13582 = vmatpush1.bf16.msra.mxu0 %v13485
    %13583 = vmatprep.subr.bf16.mxu0 0
    %13584 = vmatpush1.bf16.msra.mxu0 %v13486
    %13585 = vmatprep.subr.bf16.mxu0 0
    %13586 = vmatpush1.bf16.msra.mxu0 %v13487
    %13587 = vmatprep.subr.bf16.mxu0 0
    %13588 = vmatpush1.bf16.msra.mxu0 %v13488
    %13589 = vmatprep.mubr.bf16.mxu0 %v13318
    %13590 = vmatmul.mubr.bf16.gmra.mrb[0].mxu0 %v13190
    %v13591 = vpop.f32.mrb[0].mxu0
    %v13592 = vadd.f32 0.0, %v13591
    %v13593 = vpop.f32.mrb[0].mxu0
    %v13594 = vpop.f32.mrb[0].mxu0
    %v13595 = vadd.f32 0.0, %v13594
    %v13596 = vpop.f32.mrb[0].mxu0
    %13597 = vmatprep.mubr.bf16.mxu0 %v13321
    %13598 = vmatmul.mubr.bf16.gmra.mrb[0].mxu0 %v13193
    %v13599 = vpop.f32.mrb[0].mxu0
    %v13600 = vadd.f32 0.0, %v13599
    %v13601 = vpop.f32.mrb[0].mxu0
    %v13602 = vpop.f32.mrb[0].mxu0
    %v13603 = vadd.f32 0.0, %v13602
    %v13604 = vpop.f32.mrb[0].mxu0
    %13605 = vmatprep.mubr.bf16.mxu0 %v13324
    %13606 = vmatmul.mubr.bf16.gmra.mrb[0].mxu0 %v13196
    %v13607 = vpop.f32.mrb[0].mxu0
    %v13608 = vadd.f32 0.0, %v13607
    %v13609 = vpop.f32.mrb[0].mxu0
    %v13610 = vpop.f32.mrb[0].mxu0
    %v13611 = vadd.f32 0.0, %v13610
    %v13612 = vpop.f32.mrb[0].mxu0
    %13613 = vmatprep.mubr.bf16.mxu0 %v13327
    %13614 = vmatmul.mubr.bf16.gmra.mrb[0].mxu0 %v13199
    %v13615 = vpop.f32.mrb[0].mxu0
    %v13616 = vadd.f32 0.0, %v13615
    %v13617 = vpop.f32.mrb[0].mxu0
    %v13618 = vpop.f32.mrb[0].mxu0
    %v13619 = vadd.f32 0.0, %v13618
    %v13620 = vpop.f32.mrb[0].mxu0
    %13621 = vmatprep.mubr.bf16.mxu0 %v13330
    %13622 = vmatmul.mubr.bf16.gmra.mrb[0].mxu0 %v13202
    %v13623 = vpop.f32.mrb[0].mxu0
    %v13624 = vadd.f32 0.0, %v13623
    %v13625 = vpop.f32.mrb[0].mxu0
    %v13626 = vpop.f32.mrb[0].mxu0
    %v13627 = vadd.f32 0.0, %v13626
    %v13628 = vpop.f32.mrb[0].mxu0
    %13629 = vmatprep.mubr.bf16.mxu0 %v13333
    %13630 = vmatmul.mubr.bf16.gmra.mrb[0].mxu0 %v13205
    %v13631 = vpop.f32.mrb[0].mxu0
    %v13632 = vadd.f32 0.0, %v13631
    %v13633 = vpop.f32.mrb[0].mxu0
    %v13634 = vpop.f32.mrb[0].mxu0
    %v13635 = vadd.f32 0.0, %v13634
    %v13636 = vpop.f32.mrb[0].mxu0
    %13637 = vmatprep.mubr.bf16.mxu0 %v13336
    %13638 = vmatmul.mubr.bf16.gmra.mrb[0].mxu0 %v13208
    %v13639 = vpop.f32.mrb[0].mxu0
    %v13640 = vadd.f32 0.0, %v13639
    %v13641 = vpop.f32.mrb[0].mxu0
    %v13642 = vpop.f32.mrb[0].mxu0
    %v13643 = vadd.f32 0.0, %v13642
    %v13644 = vpop.f32.mrb[0].mxu0
    %13645 = vmatprep.mubr.bf16.mxu0 %v13339
    %13646 = vmatmul.mubr.bf16.gmra.mrb[0].mxu0 %v13211
    %v13647 = vpop.f32.mrb[0].mxu0
    %v13648 = vadd.f32 0.0, %v13647
    %v13649 = vpop.f32.mrb[0].mxu0
    %v13650 = vpop.f32.mrb[0].mxu0
    %v13651 = vadd.f32 0.0, %v13650
    %v13652 = vpop.f32.mrb[0].mxu0
    %13653 = vmatprep.mubr.bf16.mxu0 %v13342
    %13654 = vmatmul.mubr.bf16.gmra.mrb[0].mxu0 %v13214
    %v13655 = vpop.f32.mrb[0].mxu0
    %v13656 = vadd.f32 0.0, %v13655
    %v13657 = vpop.f32.mrb[0].mxu0
    %v13658 = vpop.f32.mrb[0].mxu0
    %v13659 = vadd.f32 0.0, %v13658
    %v13660 = vpop.f32.mrb[0].mxu0
    %13661 = vmatprep.mubr.bf16.mxu0 %v13345
    %13662 = vmatmul.mubr.bf16.gmra.mrb[0].mxu0 %v13217
    %v13663 = vpop.f32.mrb[0].mxu0
    %v13664 = vadd.f32 0.0, %v13663
    %v13665 = vpop.f32.mrb[0].mxu0
    %v13666 = vpop.f32.mrb[0].mxu0
    %v13667 = vadd.f32 0.0, %v13666
    %v13668 = vpop.f32.mrb[0].mxu0
    %13669 = vmatprep.mubr.bf16.mxu0 %v13348
    %13670 = vmatmul.mubr.bf16.gmra.mrb[0].mxu0 %v13220
    %v13671 = vpop.f32.mrb[0].mxu0
    %v13672 = vadd.f32 0.0, %v13671
    %v13673 = vpop.f32.mrb[0].mxu0
    %v13674 = vpop.f32.mrb[0].mxu0
    %v13675 = vadd.f32 0.0, %v13674
    %v13676 = vpop.f32.mrb[0].mxu0
    %13677 = vmatprep.mubr.bf16.mxu0 %v13351
    %13678 = vmatmul.mubr.bf16.gmra.mrb[0].mxu0 %v13223
    %v13679 = vpop.f32.mrb[0].mxu0
    %v13680 = vadd.f32 0.0, %v13679
    %v13681 = vpop.f32.mrb[0].mxu0
    %v13682 = vpop.f32.mrb[0].mxu0
    %v13683 = vadd.f32 0.0, %v13682
    %v13684 = vpop.f32.mrb[0].mxu0
    %13685 = vmatprep.mubr.bf16.mxu0 %v13354
    %13686 = vmatmul.mubr.bf16.gmra.mrb[0].mxu0 %v13226
    %v13687 = vpop.f32.mrb[0].mxu0
    %v13688 = vadd.f32 0.0, %v13687
    %v13689 = vpop.f32.mrb[0].mxu0
    %v13690 = vpop.f32.mrb[0].mxu0
    %v13691 = vadd.f32 0.0, %v13690
    %v13692 = vpop.f32.mrb[0].mxu0
    %13693 = vmatprep.mubr.bf16.mxu0 %v13357
    %13694 = vmatmul.mubr.bf16.gmra.mrb[0].mxu0 %v13229
    %v13695 = vpop.f32.mrb[0].mxu0
    %v13696 = vadd.f32 0.0, %v13695
    %v13697 = vpop.f32.mrb[0].mxu0
    %v13698 = vpop.f32.mrb[0].mxu0
    %v13699 = vadd.f32 0.0, %v13698
    %v13700 = vpop.f32.mrb[0].mxu0
    %13701 = vmatprep.mubr.bf16.mxu0 %v13360
    %13702 = vmatmul.mubr.bf16.gmra.mrb[0].mxu0 %v13232
    %v13703 = vpop.f32.mrb[0].mxu0
    %v13704 = vadd.f32 0.0, %v13703
    %v13705 = vpop.f32.mrb[0].mxu0
    %v13706 = vpop.f32.mrb[0].mxu0
    %v13707 = vadd.f32 0.0, %v13706
    %v13708 = vpop.f32.mrb[0].mxu0
    %13709 = vmatprep.mubr.bf16.mxu0 %v13363
    %13710 = vmatmul.mubr.bf16.gmra.mrb[0].mxu0 %v13235
    %v13711 = vpop.f32.mrb[0].mxu0
    %v13712 = vadd.f32 0.0, %v13711
    %v13713 = vpop.f32.mrb[0].mxu0
    %v13714 = vpop.f32.mrb[0].mxu0
    %v13715 = vadd.f32 0.0, %v13714
    %v13716 = vpop.f32.mrb[0].mxu0
    %13717 = vdwg.mxu0
    %13718 = vmatprep.subr.bf16.mxu0 0
    %13719 = vmatpush1.bf16.msra.mxu0 %v13489
    %13720 = vmatprep.subr.bf16.mxu0 0
    %13721 = vmatpush1.bf16.msra.mxu0 %v13490
    %13722 = vmatprep.subr.bf16.mxu0 0
    %13723 = vmatpush1.bf16.msra.mxu0 0
    %13724 = vmatprep.subr.bf16.mxu0 0
    %13725 = vmatpush1.bf16.msra.mxu0 0
    %13726 = vmatprep.subr.bf16.mxu0 0
    %13727 = vmatpush1.bf16.msra.mxu0 0
    %13728 = vmatprep.subr.bf16.mxu0 0
    %13729 = vmatpush1.bf16.msra.mxu0 0
    %13730 = vmatprep.subr.bf16.mxu0 0
    %13731 = vmatpush1.bf16.msra.mxu0 0
    %13732 = vmatprep.subr.bf16.mxu0 0
    %13733 = vmatpush1.bf16.msra.mxu0 0
    %13734 = vmatprep.subr.bf16.mxu0 0
    %13735 = vmatpush1.bf16.msra.mxu0 0
    %13736 = vmatprep.subr.bf16.mxu0 0
    %13737 = vmatpush1.bf16.msra.mxu0 0
    %13738 = vmatprep.subr.bf16.mxu0 0
    %13739 = vmatpush1.bf16.msra.mxu0 0
    %13740 = vmatprep.subr.bf16.mxu0 0
    %13741 = vmatpush1.bf16.msra.mxu0 0
    %13742 = vmatprep.subr.bf16.mxu0 0
    %13743 = vmatpush1.bf16.msra.mxu0 0
    %13744 = vmatprep.subr.bf16.mxu0 0
    %13745 = vmatpush1.bf16.msra.mxu0 0
    %13746 = vmatprep.subr.bf16.mxu0 0
    %13747 = vmatpush1.bf16.msra.mxu0 0
    %13748 = vmatprep.subr.bf16.mxu0 0
    %13749 = vmatpush1.bf16.msra.mxu0 0
    %13750 = vmatprep.mubr.bf16.mxu0 0
    %13751 = vmatmul.mubr.bf16.gmra.mrb[0].mxu0 %v13510
    %v13752 = vpop.f32.mrb[0].mxu0
    %v13753 = vadd.f32 %v13592, %v13752
    %v13754 = vpop.f32.mrb[0].mxu0
    %v13755 = vpop.f32.mrb[0].mxu0
    %v13756 = vadd.f32 %v13595, %v13755
    %v13757 = vpop.f32.mrb[0].mxu0
    %13758 = vmatprep.mubr.bf16.mxu0 0
    %13759 = vmatmul.mubr.bf16.gmra.mrb[0].mxu0 %v13513
    %v13760 = vpop.f32.mrb[0].mxu0
    %v13761 = vadd.f32 %v13600, %v13760
    %v13762 = vpop.f32.mrb[0].mxu0
    %v13763 = vpop.f32.mrb[0].mxu0
    %v13764 = vadd.f32 %v13603, %v13763
    %v13765 = vpop.f32.mrb[0].mxu0
    %13766 = vmatprep.mubr.bf16.mxu0 0
    %13767 = vmatmul.mubr.bf16.gmra.mrb[0].mxu0 %v13516
    %v13768 = vpop.f32.mrb[0].mxu0
    %v13769 = vadd.f32 %v13608, %v13768
    %v13770 = vpop.f32.mrb[0].mxu0
    %v13771 = vpop.f32.mrb[0].mxu0
    %v13772 = vadd.f32 %v13611, %v13771
    %v13773 = vpop.f32.mrb[0].mxu0
    %13774 = vmatprep.mubr.bf16.mxu0 0
    %13775 = vmatmul.mubr.bf16.gmra.mrb[0].mxu0 %v13519
    %v13776 = vpop.f32.mrb[0].mxu0
    %v13777 = vadd.f32 %v13616, %v13776
    %v13778 = vpop.f32.mrb[0].mxu0
    %v13779 = vpop.f32.mrb[0].mxu0
    %v13780 = vadd.f32 %v13619, %v13779
    %v13781 = vpop.f32.mrb[0].mxu0
    %13782 = vmatprep.mubr.bf16.mxu0 0
    %13783 = vmatmul.mubr.bf16.gmra.mrb[0].mxu0 %v13522
    %v13784 = vpop.f32.mrb[0].mxu0
    %v13785 = vadd.f32 %v13624, %v13784
    %v13786 = vpop.f32.mrb[0].mxu0
    %v13787 = vpop.f32.mrb[0].mxu0
    %v13788 = vadd.f32 %v13627, %v13787
    %v13789 = vpop.f32.mrb[0].mxu0
    %13790 = vmatprep.mubr.bf16.mxu0 0
    %13791 = vmatmul.mubr.bf16.gmra.mrb[0].mxu0 %v13525
    %v13792 = vpop.f32.mrb[0].mxu0
    %v13793 = vadd.f32 %v13632, %v13792
    %v13794 = vpop.f32.mrb[0].mxu0
    %v13795 = vpop.f32.mrb[0].mxu0
    %v13796 = vadd.f32 %v13635, %v13795
    %v13797 = vpop.f32.mrb[0].mxu0
    %13798 = vmatprep.mubr.bf16.mxu0 0
    %13799 = vmatmul.mubr.bf16.gmra.mrb[0].mxu0 %v13528
    %v13800 = vpop.f32.mrb[0].mxu0
    %v13801 = vadd.f32 %v13640, %v13800
    %v13802 = vpop.f32.mrb[0].mxu0
    %v13803 = vpop.f32.mrb[0].mxu0
    %v13804 = vadd.f32 %v13643, %v13803
    %v13805 = vpop.f32.mrb[0].mxu0
    %13806 = vmatprep.mubr.bf16.mxu0 0
    %13807 = vmatmul.mubr.bf16.gmra.mrb[0].mxu0 %v13531
    %v13808 = vpop.f32.mrb[0].mxu0
    %v13809 = vadd.f32 %v13648, %v13808
    %v13810 = vpop.f32.mrb[0].mxu0
    %v13811 = vpop.f32.mrb[0].mxu0
    %v13812 = vadd.f32 %v13651, %v13811
    %v13813 = vpop.f32.mrb[0].mxu0
    %13814 = vmatprep.mubr.bf16.mxu0 0
    %13815 = vmatmul.mubr.bf16.gmra.mrb[0].mxu0 %v13534
    %v13816 = vpop.f32.mrb[0].mxu0
    %v13817 = vadd.f32 %v13656, %v13816
    %v13818 = vpop.f32.mrb[0].mxu0
    %v13819 = vpop.f32.mrb[0].mxu0
    %v13820 = vadd.f32 %v13659, %v13819
    %v13821 = vpop.f32.mrb[0].mxu0
    %13822 = vmatprep.mubr.bf16.mxu0 0
    %13823 = vmatmul.mubr.bf16.gmra.mrb[0].mxu0 %v13537
    %v13824 = vpop.f32.mrb[0].mxu0
    %v13825 = vadd.f32 %v13664, %v13824
    %v13826 = vpop.f32.mrb[0].mxu0
    %v13827 = vpop.f32.mrb[0].mxu0
    %v13828 = vadd.f32 %v13667, %v13827
    %v13829 = vpop.f32.mrb[0].mxu0
    %13830 = vmatprep.mubr.bf16.mxu0 0
    %13831 = vmatmul.mubr.bf16.gmra.mrb[0].mxu0 %v13540
    %v13832 = vpop.f32.mrb[0].mxu0
    %v13833 = vadd.f32 %v13672, %v13832
    %v13834 = vpop.f32.mrb[0].mxu0
    %v13835 = vpop.f32.mrb[0].mxu0
    %v13836 = vadd.f32 %v13675, %v13835
    %v13837 = vpop.f32.mrb[0].mxu0
    %13838 = vmatprep.mubr.bf16.mxu0 0
    %13839 = vmatmul.mubr.bf16.gmra.mrb[0].mxu0 %v13543
    %v13840 = vpop.f32.mrb[0].mxu0
    %v13841 = vadd.f32 %v13680, %v13840
    %v13842 = vpop.f32.mrb[0].mxu0
    %v13843 = vpop.f32.mrb[0].mxu0
    %v13844 = vadd.f32 %v13683, %v13843
    %v13845 = vpop.f32.mrb[0].mxu0
    %13846 = vmatprep.mubr.bf16.mxu0 0
    %13847 = vmatmul.mubr.bf16.gmra.mrb[0].mxu0 %v13546
    %v13848 = vpop.f32.mrb[0].mxu0
    %v13849 = vadd.f32 %v13688, %v13848
    %v13850 = vpop.f32.mrb[0].mxu0
    %v13851 = vpop.f32.mrb[0].mxu0
    %v13852 = vadd.f32 %v13691, %v13851
    %v13853 = vpop.f32.mrb[0].mxu0
    %13854 = vmatprep.mubr.bf16.mxu0 0
    %13855 = vmatmul.mubr.bf16.gmra.mrb[0].mxu0 %v13549
    %v13856 = vpop.f32.mrb[0].mxu0
    %v13857 = vadd.f32 %v13696, %v13856
    %v13858 = vpop.f32.mrb[0].mxu0
    %v13859 = vpop.f32.mrb[0].mxu0
    %v13860 = vadd.f32 %v13699, %v13859
    %v13861 = vpop.f32.mrb[0].mxu0
    %13862 = vmatprep.mubr.bf16.mxu0 0
    %13863 = vmatmul.mubr.bf16.gmra.mrb[0].mxu0 %v13552
    %v13864 = vpop.f32.mrb[0].mxu0
    %v13865 = vadd.f32 %v13704, %v13864
    %v13866 = vpop.f32.mrb[0].mxu0
    %v13867 = vpop.f32.mrb[0].mxu0
    %v13868 = vadd.f32 %v13707, %v13867
    %v13869 = vpop.f32.mrb[0].mxu0
    %13870 = vmatprep.mubr.bf16.mxu0 0
    %13871 = vmatmul.mubr.bf16.gmra.mrb[0].mxu0 %v13555
    %v13872 = vpop.f32.mrb[0].mxu0
    %v13873 = vadd.f32 %v13712, %v13872
    %v13874 = vpop.f32.mrb[0].mxu0
    %v13875 = vpop.f32.mrb[0].mxu0
    %v13876 = vadd.f32 %v13715, %v13875
    %v13877 = vpop.f32.mrb[0].mxu0
    %13878 = vdwg.mxu0
    %vm13879 = vcmp.gt.f32.partialorder %v13753, 0.0
    %vm13880 = vcmp.gt.f32.partialorder %v13756, 0.0
    %vm13881 = vcmp.gt.f32.partialorder %v13761, 0.0
    %vm13882 = vcmp.gt.f32.partialorder %v13764, 0.0
    %vm13883 = vcmp.gt.f32.partialorder %v13769, 0.0
    %vm13884 = vcmp.gt.f32.partialorder %v13772, 0.0
    %vm13885 = vcmp.gt.f32.partialorder %v13777, 0.0
    %vm13886 = vcmp.gt.f32.partialorder %v13780, 0.0
    %vm13887 = vcmp.gt.f32.partialorder %v13785, 0.0
    %vm13888 = vcmp.gt.f32.partialorder %v13788, 0.0
    %vm13889 = vcmp.gt.f32.partialorder %v13793, 0.0
    %vm13890 = vcmp.gt.f32.partialorder %v13796, 0.0
    %vm13891 = vcmp.gt.f32.partialorder %v13801, 0.0
    %vm13892 = vcmp.gt.f32.partialorder %v13804, 0.0
    %vm13893 = vcmp.gt.f32.partialorder %v13809, 0.0
    %vm13894 = vcmp.gt.f32.partialorder %v13812, 0.0
    %vm13895 = vcmp.gt.f32.partialorder %v13817, 0.0
    %vm13896 = vcmp.gt.f32.partialorder %v13820, 0.0
    %vm13897 = vcmp.gt.f32.partialorder %v13825, 0.0
    %vm13898 = vcmp.gt.f32.partialorder %v13828, 0.0
    %vm13899 = vcmp.gt.f32.partialorder %v13833, 0.0
    %vm13900 = vcmp.gt.f32.partialorder %v13836, 0.0
    %vm13901 = vcmp.gt.f32.partialorder %v13841, 0.0
    %vm13902 = vcmp.gt.f32.partialorder %v13844, 0.0
    %vm13903 = vcmp.gt.f32.partialorder %v13849, 0.0
    %vm13904 = vcmp.gt.f32.partialorder %v13852, 0.0
    %vm13905 = vcmp.gt.f32.partialorder %v13857, 0.0
    %vm13906 = vcmp.gt.f32.partialorder %v13860, 0.0
    %vm13907 = vcmp.gt.f32.partialorder %v13865, 0.0
    %vm13908 = vcmp.gt.f32.partialorder %v13868, 0.0
    %vm13909 = vcmp.gt.f32.partialorder %v13873, 0.0
    %vm13910 = vcmp.gt.f32.partialorder %v13876, 0.0
    %v13911 = vmul.f32 %v13753, 0.2
    %v13912 = vmul.f32 %v13756, 0.2
    %v13913 = vmul.f32 %v13761, 0.2
    %v13914 = vmul.f32 %v13764, 0.2
    %v13915 = vmul.f32 %v13769, 0.2
    %v13916 = vmul.f32 %v13772, 0.2
    %v13917 = vmul.f32 %v13777, 0.2
    %v13918 = vmul.f32 %v13780, 0.2
    %v13919 = vmul.f32 %v13785, 0.2
    %v13920 = vmul.f32 %v13788, 0.2
    %v13921 = vmul.f32 %v13793, 0.2
    %v13922 = vmul.f32 %v13796, 0.2
    %v13923 = vmul.f32 %v13801, 0.2
    %v13924 = vmul.f32 %v13804, 0.2
    %v13925 = vmul.f32 %v13809, 0.2
    %v13926 = vmul.f32 %v13812, 0.2
    %v13927 = vmul.f32 %v13817, 0.2
    %v13928 = vmul.f32 %v13820, 0.2
    %v13929 = vmul.f32 %v13825, 0.2
    %v13930 = vmul.f32 %v13828, 0.2
    %v13931 = vmul.f32 %v13833, 0.2
    %v13932 = vmul.f32 %v13836, 0.2
    %v13933 = vmul.f32 %v13841, 0.2
    %v13934 = vmul.f32 %v13844, 0.2
    %v13935 = vmul.f32 %v13849, 0.2
    %v13936 = vmul.f32 %v13852, 0.2
    %v13937 = vmul.f32 %v13857, 0.2
    %v13938 = vmul.f32 %v13860, 0.2
    %v13939 = vmul.f32 %v13865, 0.2
    %v13940 = vmul.f32 %v13868, 0.2
    %v13941 = vmul.f32 %v13873, 0.2
    %v13942 = vmul.f32 %v13876, 0.2
    %v13943 = vsel %vm13879, %v13753, %v13911
    %v13944 = vsel %vm13880, %v13756, %v13912
    %v13945 = vsel %vm13881, %v13761, %v13913
    %v13946 = vsel %vm13882, %v13764, %v13914
    %v13947 = vsel %vm13883, %v13769, %v13915
    %v13948 = vsel %vm13884, %v13772, %v13916
    %v13949 = vsel %vm13885, %v13777, %v13917
    %v13950 = vsel %vm13886, %v13780, %v13918
    %v13951 = vsel %vm13887, %v13785, %v13919
    %v13952 = vsel %vm13888, %v13788, %v13920
    %v13953 = vsel %vm13889, %v13793, %v13921
    %v13954 = vsel %vm13890, %v13796, %v13922
    %v13955 = vsel %vm13891, %v13801, %v13923
    %v13956 = vsel %vm13892, %v13804, %v13924
    %v13957 = vsel %vm13893, %v13809, %v13925
    %v13958 = vsel %vm13894, %v13812, %v13926
    %v13959 = vsel %vm13895, %v13817, %v13927
    %v13960 = vsel %vm13896, %v13820, %v13928
    %v13961 = vsel %vm13897, %v13825, %v13929
    %v13962 = vsel %vm13898, %v13828, %v13930
    %v13963 = vsel %vm13899, %v13833, %v13931
    %v13964 = vsel %vm13900, %v13836, %v13932
    %v13965 = vsel %vm13901, %v13841, %v13933
    %v13966 = vsel %vm13902, %v13844, %v13934
    %v13967 = vsel %vm13903, %v13849, %v13935
    %v13968 = vsel %vm13904, %v13852, %v13936
    %v13969 = vsel %vm13905, %v13857, %v13937
    %v13970 = vsel %vm13906, %v13860, %v13938
    %v13971 = vsel %vm13907, %v13865, %v13939
    %v13972 = vsel %vm13908, %v13868, %v13940
    %v13973 = vsel %vm13909, %v13873, %v13941
    %v13974 = vsel %vm13910, %v13876, %v13942
    %v13975 = vpack.c.bf16 %v13944, %v13943
    %v13976 = vpack.c.bf16 %v13946, %v13945
    %v13977 = vpack.c.bf16 %v13948, %v13947
    %v13978 = vpack.c.bf16 %v13950, %v13949
    %v13979 = vpack.c.bf16 %v13952, %v13951
    %v13980 = vpack.c.bf16 %v13954, %v13953
    %v13981 = vpack.c.bf16 %v13956, %v13955
    %v13982 = vpack.c.bf16 %v13958, %v13957
    %v13983 = vpack.c.bf16 %v13960, %v13959
    %v13984 = vpack.c.bf16 %v13962, %v13961
    %v13985 = vpack.c.bf16 %v13964, %v13963
    %v13986 = vpack.c.bf16 %v13966, %v13965
    %v13987 = vpack.c.bf16 %v13968, %v13967
    %v13988 = vpack.c.bf16 %v13970, %v13969
    %v13989 = vpack.c.bf16 %v13972, %v13971
    %v13990 = vpack.c.bf16 %v13974, %v13973
    %v13991 = vld [vmem:[%s6877] sm:$0xf]
    %v13992 = vld [vmem:[%s6877 + $0x4] sm:$0xf]
    %v13993 = vld [vmem:[%s6877 + $0x8] sm:$0xf]
    %v13994 = vld [vmem:[%s6877 + $0xc] sm:$0xf]
    %v13999 = vunpack.c.l.b16 %v13991
    %v14000 = vunpack.c.l.b16 %v13992
    %v14001 = vunpack.c.l.b16 %v13993
    %v14002 = vunpack.c.l.b16 %v13994
    %v14003 = vpack.c.b16 %v14000, %v13999
    %v14004 = vpack.c.b16 %v14002, %v14001
    %v14008 = vsel %vm2483, %v13975, 0
    %v14011 = vsel %vm2483, %v13976, 0
    %v14014 = vsel %vm2483, %v13977, 0
    %v14017 = vsel %vm2483, %v13978, 0
    %v14020 = vsel %vm2483, %v13979, 0
    %v14023 = vsel %vm2483, %v13980, 0
    %v14026 = vsel %vm2483, %v13981, 0
    %v14029 = vsel %vm2483, %v13982, 0
    %v14032 = vsel %vm2483, %v13983, 0
    %v14035 = vsel %vm2483, %v13984, 0
    %v14038 = vsel %vm2483, %v13985, 0
    %v14041 = vsel %vm2483, %v13986, 0
    %v14044 = vsel %vm2483, %v13987, 0
    %v14047 = vsel %vm2483, %v13988, 0
    %v14050 = vsel %vm2483, %v13989, 0
    %v14053 = vsel %vm2483, %v13990, 0
    %14055 = vmatprep.subr.bf16.mxu0 0
    %14056 = vmatpush1.bf16.msra.mxu0 %v14003
    %14057 = vmatprep.subr.bf16.mxu0 0
    %14058 = vmatpush1.bf16.msra.mxu0 %v14004
    %14059 = vmatprep.subr.bf16.mxu0 0
    %14060 = vmatpush1.bf16.msra.mxu0 0
    %14061 = vmatprep.subr.bf16.mxu0 0
    %14062 = vmatpush1.bf16.msra.mxu0 0
    %14063 = vmatprep.subr.bf16.mxu0 0
    %14064 = vmatpush1.bf16.msra.mxu0 0
    %14065 = vmatprep.subr.bf16.mxu0 0
    %14066 = vmatpush1.bf16.msra.mxu0 0
    %14067 = vmatprep.subr.bf16.mxu0 0
    %14068 = vmatpush1.bf16.msra.mxu0 0
    %14069 = vmatprep.subr.bf16.mxu0 0
    %14070 = vmatpush1.bf16.msra.mxu0 0
    %14071 = vmatprep.subr.bf16.mxu0 0
    %14072 = vmatpush1.bf16.msra.mxu0 0
    %14073 = vmatprep.subr.bf16.mxu0 0
    %14074 = vmatpush1.bf16.msra.mxu0 0
    %14075 = vmatprep.subr.bf16.mxu0 0
    %14076 = vmatpush1.bf16.msra.mxu0 0
    %14077 = vmatprep.subr.bf16.mxu0 0
    %14078 = vmatpush1.bf16.msra.mxu0 0
    %14079 = vmatprep.subr.bf16.mxu0 0
    %14080 = vmatpush1.bf16.msra.mxu0 0
    %14081 = vmatprep.subr.bf16.mxu0 0
    %14082 = vmatpush1.bf16.msra.mxu0 0
    %14083 = vmatprep.subr.bf16.mxu0 0
    %14084 = vmatpush1.bf16.msra.mxu0 0
    %14085 = vmatprep.subr.bf16.mxu0 0
    %14086 = vmatpush1.bf16.msra.mxu0 0
    %14087 = vmatprep.mubr.bf16.mxu0 0
    %14088 = vmatmul.mubr.bf16.gmra.mrb[0].mxu0 %v14008
    %v14089 = vpop.f32.mrb[0].mxu0
    %v14090 = vadd.f32 0.0, %v14089
    %v14091 = vpop.f32.mrb[0].mxu0
    %v14092 = vpop.f32.mrb[0].mxu0
    %v14093 = vadd.f32 0.0, %v14092
    %v14094 = vpop.f32.mrb[0].mxu0
    %14095 = vmatprep.mubr.bf16.mxu0 0
    %14096 = vmatmul.mubr.bf16.gmra.mrb[0].mxu0 %v14011
    %v14097 = vpop.f32.mrb[0].mxu0
    %v14098 = vadd.f32 0.0, %v14097
    %v14099 = vpop.f32.mrb[0].mxu0
    %v14100 = vpop.f32.mrb[0].mxu0
    %v14101 = vadd.f32 0.0, %v14100
    %v14102 = vpop.f32.mrb[0].mxu0
    %14103 = vmatprep.mubr.bf16.mxu0 0
    %14104 = vmatmul.mubr.bf16.gmra.mrb[0].mxu0 %v14014
    %v14105 = vpop.f32.mrb[0].mxu0
    %v14106 = vadd.f32 0.0, %v14105
    %v14107 = vpop.f32.mrb[0].mxu0
    %v14108 = vpop.f32.mrb[0].mxu0
    %v14109 = vadd.f32 0.0, %v14108
    %v14110 = vpop.f32.mrb[0].mxu0
    %14111 = vmatprep.mubr.bf16.mxu0 0
    %14112 = vmatmul.mubr.bf16.gmra.mrb[0].mxu0 %v14017
    %v14113 = vpop.f32.mrb[0].mxu0
    %v14114 = vadd.f32 0.0, %v14113
    %v14115 = vpop.f32.mrb[0].mxu0
    %v14116 = vpop.f32.mrb[0].mxu0
    %v14117 = vadd.f32 0.0, %v14116
    %v14118 = vpop.f32.mrb[0].mxu0
    %14119 = vmatprep.mubr.bf16.mxu0 0
    %14120 = vmatmul.mubr.bf16.gmra.mrb[0].mxu0 %v14020
    %v14121 = vpop.f32.mrb[0].mxu0
    %v14122 = vadd.f32 0.0, %v14121
    %v14123 = vpop.f32.mrb[0].mxu0
    %v14124 = vpop.f32.mrb[0].mxu0
    %v14125 = vadd.f32 0.0, %v14124
    %v14126 = vpop.f32.mrb[0].mxu0
    %14127 = vmatprep.mubr.bf16.mxu0 0
    %14128 = vmatmul.mubr.bf16.gmra.mrb[0].mxu0 %v14023
    %v14129 = vpop.f32.mrb[0].mxu0
    %v14130 = vadd.f32 0.0, %v14129
    %v14131 = vpop.f32.mrb[0].mxu0
    %v14132 = vpop.f32.mrb[0].mxu0
    %v14133 = vadd.f32 0.0, %v14132
    %v14134 = vpop.f32.mrb[0].mxu0
    %14135 = vmatprep.mubr.bf16.mxu0 0
    %14136 = vmatmul.mubr.bf16.gmra.mrb[0].mxu0 %v14026
    %v14137 = vpop.f32.mrb[0].mxu0
    %v14138 = vadd.f32 0.0, %v14137
    %v14139 = vpop.f32.mrb[0].mxu0
    %v14140 = vpop.f32.mrb[0].mxu0
    %v14141 = vadd.f32 0.0, %v14140
    %v14142 = vpop.f32.mrb[0].mxu0
    %14143 = vmatprep.mubr.bf16.mxu0 0
    %14144 = vmatmul.mubr.bf16.gmra.mrb[0].mxu0 %v14029
    %v14145 = vpop.f32.mrb[0].mxu0
    %v14146 = vadd.f32 0.0, %v14145
    %v14147 = vpop.f32.mrb[0].mxu0
    %v14148 = vpop.f32.mrb[0].mxu0
    %v14149 = vadd.f32 0.0, %v14148
    %v14150 = vpop.f32.mrb[0].mxu0
    %14151 = vmatprep.mubr.bf16.mxu0 0
    %14152 = vmatmul.mubr.bf16.gmra.mrb[0].mxu0 %v14032
    %v14153 = vpop.f32.mrb[0].mxu0
    %v14154 = vadd.f32 0.0, %v14153
    %v14155 = vpop.f32.mrb[0].mxu0
    %v14156 = vpop.f32.mrb[0].mxu0
    %v14157 = vadd.f32 0.0, %v14156
    %v14158 = vpop.f32.mrb[0].mxu0
    %14159 = vmatprep.mubr.bf16.mxu0 0
    %14160 = vmatmul.mubr.bf16.gmra.mrb[0].mxu0 %v14035
    %v14161 = vpop.f32.mrb[0].mxu0
    %v14162 = vadd.f32 0.0, %v14161
    %v14163 = vpop.f32.mrb[0].mxu0
    %v14164 = vpop.f32.mrb[0].mxu0
    %v14165 = vadd.f32 0.0, %v14164
    %v14166 = vpop.f32.mrb[0].mxu0
    %14167 = vmatprep.mubr.bf16.mxu0 0
    %14168 = vmatmul.mubr.bf16.gmra.mrb[0].mxu0 %v14038
    %v14169 = vpop.f32.mrb[0].mxu0
    %v14170 = vadd.f32 0.0, %v14169
    %v14171 = vpop.f32.mrb[0].mxu0
    %v14172 = vpop.f32.mrb[0].mxu0
    %v14173 = vadd.f32 0.0, %v14172
    %v14174 = vpop.f32.mrb[0].mxu0
    %14175 = vmatprep.mubr.bf16.mxu0 0
    %14176 = vmatmul.mubr.bf16.gmra.mrb[0].mxu0 %v14041
    %v14177 = vpop.f32.mrb[0].mxu0
    %v14178 = vadd.f32 0.0, %v14177
    %v14179 = vpop.f32.mrb[0].mxu0
    %v14180 = vpop.f32.mrb[0].mxu0
    %v14181 = vadd.f32 0.0, %v14180
    %v14182 = vpop.f32.mrb[0].mxu0
    %14183 = vmatprep.mubr.bf16.mxu0 0
    %14184 = vmatmul.mubr.bf16.gmra.mrb[0].mxu0 %v14044
    %v14185 = vpop.f32.mrb[0].mxu0
    %v14186 = vadd.f32 0.0, %v14185
    %v14187 = vpop.f32.mrb[0].mxu0
    %v14188 = vpop.f32.mrb[0].mxu0
    %v14189 = vadd.f32 0.0, %v14188
    %v14190 = vpop.f32.mrb[0].mxu0
    %14191 = vmatprep.mubr.bf16.mxu0 0
    %14192 = vmatmul.mubr.bf16.gmra.mrb[0].mxu0 %v14047
    %v14193 = vpop.f32.mrb[0].mxu0
    %v14194 = vadd.f32 0.0, %v14193
    %v14195 = vpop.f32.mrb[0].mxu0
    %v14196 = vpop.f32.mrb[0].mxu0
    %v14197 = vadd.f32 0.0, %v14196
    %v14198 = vpop.f32.mrb[0].mxu0
    %14199 = vmatprep.mubr.bf16.mxu0 0
    %14200 = vmatmul.mubr.bf16.gmra.mrb[0].mxu0 %v14050
    %v14201 = vpop.f32.mrb[0].mxu0
    %v14202 = vadd.f32 0.0, %v14201
    %v14203 = vpop.f32.mrb[0].mxu0
    %v14204 = vpop.f32.mrb[0].mxu0
    %v14205 = vadd.f32 0.0, %v14204
    %v14206 = vpop.f32.mrb[0].mxu0
    %14207 = vmatprep.mubr.bf16.mxu0 0
    %14208 = vmatmul.mubr.bf16.gmra.mrb[0].mxu0 %v14053
    %v14209 = vpop.f32.mrb[0].mxu0
    %v14210 = vadd.f32 0.0, %v14209
    %v14211 = vpop.f32.mrb[0].mxu0
    %v14212 = vpop.f32.mrb[0].mxu0
    %v14213 = vadd.f32 0.0, %v14212
    %v14214 = vpop.f32.mrb[0].mxu0
    %14215 = vdwg.mxu0
    %v14216 = vadd.f32 %v10692, %v14090
    %v14217 = vadd.f32 %v10693, %v14093
    %v14218 = vadd.f32 %v10694, %v14098
    %v14219 = vadd.f32 %v10695, %v14101
    %v14220 = vadd.f32 %v10696, %v14106
    %v14221 = vadd.f32 %v10697, %v14109
    %v14222 = vadd.f32 %v10698, %v14114
    %v14223 = vadd.f32 %v10699, %v14117
    %v14224 = vadd.f32 %v10700, %v14122
    %v14225 = vadd.f32 %v10701, %v14125
    %v14226 = vadd.f32 %v10702, %v14130
    %v14227 = vadd.f32 %v10703, %v14133
    %v14228 = vadd.f32 %v10704, %v14138
    %v14229 = vadd.f32 %v10705, %v14141
    %v14230 = vadd.f32 %v10706, %v14146
    %v14231 = vadd.f32 %v10707, %v14149
    %v14232 = vadd.f32 %v10708, %v14154
    %v14233 = vadd.f32 %v10709, %v14157
    %v14234 = vadd.f32 %v10710, %v14162
    %v14235 = vadd.f32 %v10711, %v14165
    %v14236 = vadd.f32 %v10712, %v14170
    %v14237 = vadd.f32 %v10713, %v14173
    %v14238 = vadd.f32 %v10714, %v14178
    %v14239 = vadd.f32 %v10715, %v14181
    %v14240 = vadd.f32 %v10716, %v14186
    %v14241 = vadd.f32 %v10717, %v14189
    %v14242 = vadd.f32 %v10718, %v14194
    %v14243 = vadd.f32 %v10719, %v14197
    %v14244 = vadd.f32 %v10720, %v14202
    %v14245 = vadd.f32 %v10721, %v14205
    %v14246 = vadd.f32 %v10722, %v14210
    %v14247 = vadd.f32 %v10723, %v14213
    %s14248 = scalar_lea.vmem [#allocation6], 256
    %14249 = vst.msk [vmem:[%s14248] sm:$0xff] %vm122, %v14216
    %14250 = vst.msk [vmem:[%s14248 + $0x8] sm:$0xff] %vm122, %v14217
    %14251 = vst.msk [vmem:[%s14248 + $0x10] sm:$0xff] %vm122, %v14218
    %14252 = vst.msk [vmem:[%s14248 + $0x18] sm:$0xff] %vm122, %v14219
    %14253 = vst.msk [vmem:[%s14248 + $0x20] sm:$0xff] %vm122, %v14220
    %14254 = vst.msk [vmem:[%s14248 + $0x28] sm:$0xff] %vm122, %v14221
    %14255 = vst.msk [vmem:[%s14248 + $0x30] sm:$0xff] %vm122, %v14222
    %14256 = vst.msk [vmem:[%s14248 + $0x38] sm:$0xff] %vm122, %v14223
    %14257 = vst.msk [vmem:[%s14248 + $0x40] sm:$0xff] %vm122, %v14224
    %14258 = vst.msk [vmem:[%s14248 + $0x48] sm:$0xff] %vm122, %v14225
    %14259 = vst.msk [vmem:[%s14248 + $0x50] sm:$0xff] %vm122, %v14226
    %14260 = vst.msk [vmem:[%s14248 + $0x58] sm:$0xff] %vm122, %v14227
    %14261 = vst.msk [vmem:[%s14248 + $0x60] sm:$0xff] %vm122, %v14228
    %14262 = vst.msk [vmem:[%s14248 + $0x68] sm:$0xff] %vm122, %v14229
    %14263 = vst.msk [vmem:[%s14248 + $0x70] sm:$0xff] %vm122, %v14230
    %14264 = vst.msk [vmem:[%s14248 + $0x78] sm:$0xff] %vm122, %v14231
    %14265 = vst.msk [vmem:[%s14248 + $0x80] sm:$0xff] %vm122, %v14232
    %14266 = vst.msk [vmem:[%s14248 + $0x88] sm:$0xff] %vm122, %v14233
    %14267 = vst.msk [vmem:[%s14248 + $0x90] sm:$0xff] %vm122, %v14234
    %14268 = vst.msk [vmem:[%s14248 + $0x98] sm:$0xff] %vm122, %v14235
    %14269 = vst.msk [vmem:[%s14248 + $0xa0] sm:$0xff] %vm122, %v14236
    %14270 = vst.msk [vmem:[%s14248 + $0xa8] sm:$0xff] %vm122, %v14237
    %14271 = vst.msk [vmem:[%s14248 + $0xb0] sm:$0xff] %vm122, %v14238
    %14272 = vst.msk [vmem:[%s14248 + $0xb8] sm:$0xff] %vm122, %v14239
    %14273 = vst.msk [vmem:[%s14248 + $0xc0] sm:$0xff] %vm122, %v14240
    %14274 = vst.msk [vmem:[%s14248 + $0xc8] sm:$0xff] %vm122, %v14241
    %14275 = vst.msk [vmem:[%s14248 + $0xd0] sm:$0xff] %vm122, %v14242
    %14276 = vst.msk [vmem:[%s14248 + $0xd8] sm:$0xff] %vm122, %v14243
    %14277 = vst.msk [vmem:[%s14248 + $0xe0] sm:$0xff] %vm122, %v14244
    %14278 = vst.msk [vmem:[%s14248 + $0xe8] sm:$0xff] %vm122, %v14245
    %14279 = vst.msk [vmem:[%s14248 + $0xf0] sm:$0xff] %vm122, %v14246
    %14280 = vst.msk [vmem:[%s14248 + $0xf8] sm:$0xff] %vm122, %v14247
    // Predicated region
    $region22: #{tpu_custom_call.1} parent=1 // pred_check
      _
    $region23: #{tpu_custom_call.1} parent=1 // pred_check_branch
      %14282 = sbr.rel (0) target = $region25
    $region24: #{tpu_custom_call.1} parent=1 // pred_region
      %s14284 = ssub.s32 8192, 8192
      %14285 = vsyncadd [#allocation5], %s14284
      %s14286 = sshll.u32 [#allocation6], 4
      %s14287 = int_to_ptr.vmem [resolvable:$true] %s14286
      %14292 = dma.vmem_to_hbm [thread:$0]  %s14287, 8192, %s4, [#allocation5], 128, 128, 8
    $region25: #{tpu_custom_call.1} parent=1 // pred_fallthru
      _
    // Predicated region
    $region26: #{tpu_custom_call.1} parent=1 // pred_check
      _
    $region27: #{tpu_custom_call.1} parent=1 // pred_check_branch
      %14294 = sbr.rel (0) target = $region29
    $region28: #{tpu_custom_call.1} parent=1 // pred_region
      %14295 = dma.done [#allocation5], 8192
    $region29: #{tpu_custom_call.1} parent=1 // pred_fallthru
      _
    %14296 = vsyncpa [#allocation4], 1
    %14297 = vsyncpa [#allocation5], 1

</llo_original>
